<compile_context>
chip_gen: v6e
topology: v6e:2x2x1
jax: 0.10.0
libtpu: 0.0.40
codegen_flags: <defaults>
</compile_context>

<pallas_src>
import functools

import jax
import jax.numpy as jnp
import numpy as np
from jax.experimental import pallas as pl
from jax.experimental.pallas import tpu as pltpu

KERNEL_SIZE = 5
CHANNELS = [128, 64, 32, 16, 8]
DILATIONS = [1, 2, 4, 8, 16]
BN_EPS = 1e-5


# ------------------------------ fused Pallas kernel ---------------------------------
def _fused_kernel(x_ref,
                  j0_ref, j1_ref, j2_ref, j3_ref, j4_ref,
                  w0_ref, b0_ref, w1_ref, b1_ref, w2_ref, b2_ref, w3_ref, b3_ref,
                  wo_ref, bo_ref,
                  o_ref, stack_ref, act_ref,
                  *, nt, bblk, dilations, channels, ksize):
    j_refs = (j0_ref, j1_ref, j2_ref, j3_ref, j4_ref)
    w_refs = (w0_ref, w1_ref, w2_ref, w3_ref)
    b_refs = (b0_ref, b1_ref, b2_ref, b3_ref)
    n_hidden = len(channels) - 1                         # 4 conv+BN+ReLU layers

    def build_stack(read, layer):
        """Stack the K dilated taps (with reflect edges) into stack_ref.

        read(b, lo, hi) -> (cin, hi-lo) slice of segment b of this layer's input.
        Only the 2*d reflected edge columns use a tiny (p, p) exchange-matrix matmul;
        every tap interior is a plain copy (edge-only reflect, review fix #2).
        """
        cin = channels[layer]
        d = dilations[layer]
        p = 2 * d                                        # == ((K-1)*d + 1)//2 for K=5
        J = j_refs[layer][...]                           # (p, p) anti-identity
        for b in range(bblk):
            col0 = b * nt
            # left[:, j]  = h[:, p - j]       (reflect about t = 0)
            # right[:, j] = h[:, nt - 2 - j]  (reflect about t = nt-1)
            left = jnp.dot(read(b, 1, p + 1), J, preferred_element_type=jnp.float32)
            right = jnp.dot(read(b, nt - 1 - p, nt - 1), J,
                            preferred_element_type=jnp.float32)
            for k in range(ksize):
                r0 = k * cin
                off = (k - 2) * d                        # tap offset in input coords
                if off < 0:
                    m = -off
                    stack_ref[r0:r0 + cin, col0:col0 + m] = left[:, p - m:p]
                    stack_ref[r0:r0 + cin, col0 + m:col0 + nt] = read(b, 0, nt - m)
                elif off == 0:
                    stack_ref[r0:r0 + cin, col0:col0 + nt] = read(b, 0, nt)
                else:
                    m = off
                    stack_ref[r0:r0 + cin, col0:col0 + nt - m] = read(b, m, nt)
                    stack_ref[r0:r0 + cin, col0 + nt - m:col0 + nt] = right[:, 0:m]
        return stack_ref[0:ksize * cin, :]               # (K*cin, bblk*nt)

    def read_x(b, lo, hi):                               # layer-0 input straight from x
        return x_ref[b, :, lo:hi]

    read = read_x
    for layer in range(n_hidden):
        hs = build_stack(read, layer)
        # conv (+ folded eval-BN) + ReLU.  Default precision -> single-pass bf16 MXU
        # feed with f32 accumulation (review fix #3: no Precision.HIGHEST).
        y = jnp.dot(w_refs[layer][...], hs, preferred_element_type=jnp.float32)
        cout = channels[layer + 1]
        # NOTE: act_ref / stack_ref keep stale rows beyond cout / K*cin; reads are
        # always sliced to the live rows, so no clearing is needed.
        act_ref[0:cout, :] = jnp.maximum(y + b_refs[layer][...], 0.0)

        def read_act(b, lo, hi, _c=cout):
            return act_ref[0:_c, b * nt + lo:b * nt + hi]
        read = read_act

    # conv_out: reduce over the K*C_last axis BEFORE upsampling (exact reorder, fix #1).
    hs = build_stack(read, n_hidden)                     # (K*c_last, bblk*nt)
    v = jnp.dot(wo_ref[...], hs, preferred_element_type=jnp.float32) + bo_ref[...]

    # x2 linear upsample (align_corners=False) as a 3-tap VPU stencil; even/odd phases
    # are written as two lane-dense rows and interleaved by a tiny wrapper transpose.
    for b in range(bblk):
        vb = v[:, b * nt:(b + 1) * nt]                   # (1, nt)
        lft = jnp.concatenate([vb[:, :1], vb[:, :nt - 1]], axis=1)
        rgt = jnp.concatenate([vb[:, 1:], vb[:, nt - 1:]], axis=1)
        even = 0.25 * lft + 0.75 * vb                    # output index 2t
        odd = 0.75 * vb + 0.25 * rgt                     # output index 2t+1
        o_ref[b] = jnp.concatenate([even, odd], axis=0)  # (2, nt)


# ------------------------------ parameters -------------------------------------------
def init_params(key, channels=CHANNELS, ksize=KERNEL_SIZE):
    params = {"convs": [], "bns": []}
    for i in range(len(channels) - 1):
        cin, cout = channels[i], channels[i + 1]
        bound = 1.0 / np.sqrt(cin * ksize)
        key, k1, k2, k3, k4, k5 = jax.random.split(key, 6)
        params["convs"].append(
            jax.random.uniform(k1, (cout, cin, ksize), jnp.float32, -bound, bound))
        gamma = jax.random.uniform(k2, (cout,), jnp.float32, 0.5, 1.5)
        beta = 0.1 * jax.random.normal(k3, (cout,), jnp.float32)
        rmean = 0.1 * jax.random.normal(k4, (cout,), jnp.float32)
        rvar = jax.random.uniform(k5, (cout,), jnp.float32, 0.5, 1.5)
        params["bns"].append((gamma, beta, rmean, rvar))
    cin = channels[-1]
    bound = 1.0 / np.sqrt(cin * ksize)
    key, k1, k2 = jax.random.split(key, 3)
    w_out = jax.random.uniform(k1, (1, cin, ksize), jnp.float32, -bound, bound)
    b_out = jax.random.uniform(k2, (1,), jnp.float32, -bound, bound)
    params["conv_out"] = (w_out, b_out)
    return params


def _pick_bblk(B):
    # Prefer wider per-step matmuls, but keep >=2 grid steps when possible so the
    # pipeline / megacore (v7x dual-TC) sharding still has work to split.
    for cand in (8, 4, 2):
        if B % cand == 0 and B // cand >= 2:
            return cand
    return 2 if B % 2 == 0 else 1


# ------------------------------ forward (Pallas) --------------------------------------
def event_detector_forward(x, params, dilations=tuple(DILATIONS)):
    # x == features['out'], shape [bt, st, ch, nt]
    bt, st, ch, nt = x.shape
    B = bt * st
    K = KERNEL_SIZE
    channels = [ch] + [w.shape[0] for w in params["convs"]]
    assert nt > 2 * max(dilations), "reflect padding requires nt > max pad"
    bblk = _pick_bblk(B)

    h = x.reshape(B, ch, nt).astype(jnp.float32)

    # Fold eval-mode BatchNorm into conv weights/bias; (Cout, K*Cin) layout matches the
    # stacked-tap contraction in the kernel.
    ws, bs = [], []
    for w, (gamma, beta, rmean, rvar) in zip(params["convs"], params["bns"]):
        cout, cin, _ = w.shape
        scale = gamma / jnp.sqrt(rvar + BN_EPS)
        shift = beta - rmean * scale
        wf = w * scale[:, None, None]
        ws.append(jnp.transpose(wf, (0, 2, 1)).reshape(cout, K * cin).astype(jnp.float32))
        bs.append(shift.reshape(cout, 1).astype(jnp.float32))
    w_out, b_out = params["conv_out"]
    c_last = w_out.shape[1]
    wo = jnp.transpose(w_out, (0, 2, 1)).reshape(1, K * c_last).astype(jnp.float32)
    bo = b_out.reshape(1, 1).astype(jnp.float32)

    # Tiny (p, p) exchange matrices (p = 2*d <= 32): only the reflected edge columns go
    # through the MXU.  No O(nt^2) constants anywhere (v7x VMEM-safe at any nt).
    Js = [jnp.asarray(np.fliplr(np.eye(2 * d, dtype=np.float32))) for d in dilations]

    def _const_spec(shape):
        return pl.BlockSpec(shape, lambda i: (0,) * len(shape))

    wb_args, wb_specs = [], []
    for w2d, b2d in zip(ws, bs):
        wb_args += [w2d, b2d]
        wb_specs += [_const_spec(w2d.shape), _const_spec(b2d.shape)]

    in_specs = ([pl.BlockSpec((bblk, ch, nt), lambda i: (i, 0, 0))]
                + [_const_spec(j.shape) for j in Js]
                + wb_specs
                + [_const_spec(wo.shape), _const_spec(bo.shape)])

    kernel = functools.partial(_fused_kernel, nt=nt, bblk=bblk,
                               dilations=tuple(dilations),
                               channels=tuple(channels), ksize=K)

    # Advisory cost estimate (conv matmuls dominate; edge matmuls are tiny).
    flops = 0
    for li in range(len(channels) - 1):
        flops += 2 * channels[li + 1] * (K * channels[li]) * nt
        flops += 2 * 2 * channels[li] * (2 * dilations[li]) ** 2
    flops += 2 * 1 * (K * channels[-1]) * nt
    flops += 2 * 2 * channels[-1] * (2 * dilations[-1]) ** 2
    flops *= B
    const_bytes = sum(int(np.prod(a.shape)) * 4 for a in ([wo, bo] + wb_args + Js))
    bytes_accessed = B * ch * nt * 4 + B * 2 * nt * 4 + const_bytes

    eo = pl.pallas_call(
        kernel,
        out_shape=jax.ShapeDtypeStruct((B, 2, nt), jnp.float32),
        grid_spec=pltpu.PrefetchScalarGridSpec(
            num_scalar_prefetch=0,
            grid=(B // bblk,),
            in_specs=in_specs,
            out_specs=pl.BlockSpec((bblk, 2, nt), lambda i: (i, 0, 0)),
            scratch_shapes=[
                pltpu.VMEM((K * ch, bblk * nt), jnp.float32),       # stacked taps
                pltpu.VMEM((channels[1], bblk * nt), jnp.float32),  # hidden activations
            ],
        ),
        compiler_params=pltpu.CompilerParams(dimension_semantics=("parallel",)),
        cost_estimate=pl.CostEstimate(flops=int(flops), transcendentals=0,
                                      bytes_accessed=int(bytes_accessed)),
    )(h, *Js, *wb_args, wo, bo)

    # Interleave even/odd phases and restore [bt, 2*nt, st] (tiny wrapper-side reshape).
    y = jnp.transpose(eo, (0, 2, 1)).reshape(bt, st, 2 * nt)
    return jnp.transpose(y, (0, 2, 1))


# ------------------------------ pure-JAX reference ------------------------------------
def reference_forward(x, params, dilations=tuple(DILATIONS)):
    bt, st, ch, nt = x.shape
    h = x.reshape(bt * st, ch, nt)

    def conv1d(h, w, dil):
        K = w.shape[-1]
        pad = ((K - 1) * dil + 1) // 2
        hp = jnp.pad(h, ((0, 0), (0, 0), (pad, pad)), mode="reflect")
        out = 0.0
        for kk in range(K):
            out = out + jnp.einsum("oi,bit->bot", w[:, :, kk],
                                   hp[:, :, kk * dil: kk * dil + nt],
                                   precision=jax.lax.Precision.HIGHEST)
        return out

    for i, (w, (gamma, beta, rmean, rvar)) in enumerate(zip(params["convs"], params["bns"])):
        scale = (gamma / jnp.sqrt(rvar + BN_EPS))[None, :, None]
        shift = (beta - rmean * gamma / jnp.sqrt(rvar + BN_EPS))[None, :, None]
        h = jnp.maximum(conv1d(h, w, dilations[i]) * scale + shift, 0.0)
    w_out, b_out = params["conv_out"]
    h = conv1d(h, w_out, dilations[-1]) + b_out[None, :, None]   # (B, 1, nt)
    v = h[:, 0, :]
    left = jnp.concatenate([v[:, :1], v[:, :-1]], axis=1)
    right = jnp.concatenate([v[:, 1:], v[:, -1:]], axis=1)
    even = 0.25 * left + 0.75 * v
    odd = 0.75 * v + 0.25 * right
    y = jnp.stack([even, odd], axis=-1).reshape(bt * st, 2 * nt)
    y = y.reshape(bt, st, 2 * nt)
    return jnp.transpose(y, (0, 2, 1))


if __name__ == "__main__":
    key = jax.random.PRNGKey(0)
    kp, kx = jax.random.split(key)
    params = init_params(kp)

    # features['out'] ~ [bt, st, ch, nt]; nt lane-dense (multiple of 128) and larger
    # than the biggest reflect pad (32).
    bt, st, ch, nt = 2, 2, CHANNELS[0], 256
    x = jax.random.normal(kx, (bt, st, ch, nt), jnp.float32)

    out = jax.jit(event_detector_forward)(x, params)
    out = jax.block_until_ready(out)
    assert out.shape == (bt, 2 * nt, st)

    ref = reference_forward(x, params)
    np.testing.assert_allclose(np.asarray(out), np.asarray(ref), rtol=2e-2, atol=2e-2)
    print("KERNEL_OK")
</pallas_src>

<mosaic_0001>
module attributes {stable_mosaic.version = 11 : i64} {
  func.func @_fused_kernel(%arg0: i32, %arg1: memref<2x128x256xf32, #tpu.memory_space<vmem>>, %arg2: memref<2x2xf32, #tpu.memory_space<vmem>>, %arg3: memref<4x4xf32, #tpu.memory_space<vmem>>, %arg4: memref<8x8xf32, #tpu.memory_space<vmem>>, %arg5: memref<16x16xf32, #tpu.memory_space<vmem>>, %arg6: memref<32x32xf32, #tpu.memory_space<vmem>>, %arg7: memref<64x640xf32, #tpu.memory_space<vmem>>, %arg8: memref<64x1xf32, #tpu.memory_space<vmem>>, %arg9: memref<32x320xf32, #tpu.memory_space<vmem>>, %arg10: memref<32x1xf32, #tpu.memory_space<vmem>>, %arg11: memref<16x160xf32, #tpu.memory_space<vmem>>, %arg12: memref<16x1xf32, #tpu.memory_space<vmem>>, %arg13: memref<8x80xf32, #tpu.memory_space<vmem>>, %arg14: memref<8x1xf32, #tpu.memory_space<vmem>>, %arg15: memref<1x40xf32, #tpu.memory_space<vmem>>, %arg16: memref<1x1xf32, #tpu.memory_space<vmem>>, %arg17: memref<2x2x256xf32, #tpu.memory_space<vmem>>, %arg18: memref<640x512xf32, #tpu.memory_space<vmem>>, %arg19: memref<64x512xf32, #tpu.memory_space<vmem>>) attributes {dimension_semantics = [#tpu.dimension_semantics<parallel>], iteration_bounds = array<i64: 2>, scalar_prefetch = 0 : i64, scratch_operands = 2 : i64, tpu.core_type = #tpu.core_type<tc>, window_params = [{transform_indices = @transform_0, window_bounds = array<i64: 2, 128, 256>}, {pipeline_mode = #tpu.pipeline_mode<synchronous>, transform_indices = @transform_1, window_bounds = array<i64: 2, 2>}, {pipeline_mode = #tpu.pipeline_mode<synchronous>, transform_indices = @transform_2, window_bounds = array<i64: 4, 4>}, {pipeline_mode = #tpu.pipeline_mode<synchronous>, transform_indices = @transform_3, window_bounds = array<i64: 8, 8>}, {pipeline_mode = #tpu.pipeline_mode<synchronous>, transform_indices = @transform_4, window_bounds = array<i64: 16, 16>}, {pipeline_mode = #tpu.pipeline_mode<synchronous>, transform_indices = @transform_5, window_bounds = array<i64: 32, 32>}, {pipeline_mode = #tpu.pipeline_mode<synchronous>, transform_indices = @transform_6, window_bounds = array<i64: 64, 640>}, {pipeline_mode = #tpu.pipeline_mode<synchronous>, transform_indices = @transform_7, window_bounds = array<i64: 64, 1>}, {pipeline_mode = #tpu.pipeline_mode<synchronous>, transform_indices = @transform_8, window_bounds = array<i64: 32, 320>}, {pipeline_mode = #tpu.pipeline_mode<synchronous>, transform_indices = @transform_9, window_bounds = array<i64: 32, 1>}, {pipeline_mode = #tpu.pipeline_mode<synchronous>, transform_indices = @transform_10, window_bounds = array<i64: 16, 160>}, {pipeline_mode = #tpu.pipeline_mode<synchronous>, transform_indices = @transform_11, window_bounds = array<i64: 16, 1>}, {pipeline_mode = #tpu.pipeline_mode<synchronous>, transform_indices = @transform_12, window_bounds = array<i64: 8, 80>}, {pipeline_mode = #tpu.pipeline_mode<synchronous>, transform_indices = @transform_13, window_bounds = array<i64: 8, 1>}, {pipeline_mode = #tpu.pipeline_mode<synchronous>, transform_indices = @transform_14, window_bounds = array<i64: 1, 40>}, {pipeline_mode = #tpu.pipeline_mode<synchronous>, transform_indices = @transform_15, window_bounds = array<i64: 1, 1>}, {transform_indices = @transform_16, window_bounds = array<i64: 2, 2, 256>}]} {
    %c0 = arith.constant 0 : index
    %c0_0 = arith.constant 0 : index
    %0 = vector.load %arg2[%c0, %c0_0] : memref<2x2xf32, #tpu.memory_space<vmem>>, vector<2x2xf32>
    %c0_1 = arith.constant 0 : index
    %c0_2 = arith.constant 0 : index
    %c1 = arith.constant 1 : index
    %1 = vector.load %arg1[%c0_1, %c0_2, %c1] : memref<2x128x256xf32, #tpu.memory_space<vmem>>, vector<1x128x2xf32>
    %2 = vector.shape_cast %1 : vector<1x128x2xf32> to vector<128x2xf32>
    %cst = arith.constant dense<0.000000e+00> : vector<128x2xf32>
    %3 = tpu.matmul %2, %0, %cst {dimension_numbers = #tpu.dot_dimension_numbers<[1], [0], [0], [1], [0, 0, 1, 1], [], []>} : vector<128x2xf32>, vector<2x2xf32>, vector<128x2xf32> -> vector<128x2xf32>
    %c0_3 = arith.constant 0 : index
    %c0_4 = arith.constant 0 : index
    %c253 = arith.constant 253 : index
    %4 = vector.load %arg1[%c0_3, %c0_4, %c253] : memref<2x128x256xf32, #tpu.memory_space<vmem>>, vector<1x128x2xf32>
    %5 = vector.shape_cast %4 : vector<1x128x2xf32> to vector<128x2xf32>
    %cst_5 = arith.constant dense<0.000000e+00> : vector<128x2xf32>
    %6 = tpu.matmul %5, %0, %cst_5 {dimension_numbers = #tpu.dot_dimension_numbers<[1], [0], [0], [1], [0, 0, 1, 1], [], []>} : vector<128x2xf32>, vector<2x2xf32>, vector<128x2xf32> -> vector<128x2xf32>
    %c0_6 = arith.constant 0 : index
    %c0_7 = arith.constant 0 : index
    %7 = vector.load %arg18[%c0_6, %c0_7] : memref<640x512xf32, #tpu.memory_space<vmem>>, vector<128x2xf32>
    tpu.vector_store %arg18[%c0_6, %c0_7], %3 {strides = array<i32>} : memref<640x512xf32, #tpu.memory_space<vmem>>, vector<128x2xf32>,
    %c0_8 = arith.constant 0 : index
    %c0_9 = arith.constant 0 : index
    %c0_10 = arith.constant 0 : index
    %8 = vector.load %arg1[%c0_8, %c0_9, %c0_10] : memref<2x128x256xf32, #tpu.memory_space<vmem>>, vector<1x128x254xf32>
    %9 = vector.shape_cast %8 : vector<1x128x254xf32> to vector<128x254xf32>
    %c0_11 = arith.constant 0 : index
    %c2 = arith.constant 2 : index
    %10 = vector.load %arg18[%c0_11, %c2] : memref<640x512xf32, #tpu.memory_space<vmem>>, vector<128x254xf32>
    tpu.vector_store %arg18[%c0_11, %c2], %9 {strides = array<i32>} : memref<640x512xf32, #tpu.memory_space<vmem>>, vector<128x254xf32>,
    %11 = vector.extract_strided_slice %3 {offsets = [0, 1], sizes = [128, 1], strides = [1, 1]} : vector<128x2xf32> to vector<128x1xf32>
    %c128 = arith.constant 128 : index
    %c0_12 = arith.constant 0 : index
    %12 = vector.load %arg18[%c128, %c0_12] : memref<640x512xf32, #tpu.memory_space<vmem>>, vector<128x1xf32>
    tpu.vector_store %arg18[%c128, %c0_12], %11 {strides = array<i32>} : memref<640x512xf32, #tpu.memory_space<vmem>>, vector<128x1xf32>,
    %c0_13 = arith.constant 0 : index
    %c0_14 = arith.constant 0 : index
    %c0_15 = arith.constant 0 : index
    %13 = vector.load %arg1[%c0_13, %c0_14, %c0_15] : memref<2x128x256xf32, #tpu.memory_space<vmem>>, vector<1x128x255xf32>
    %14 = vector.shape_cast %13 : vector<1x128x255xf32> to vector<128x255xf32>
    %c128_16 = arith.constant 128 : index
    %c1_17 = arith.constant 1 : index
    %15 = vector.load %arg18[%c128_16, %c1_17] : memref<640x512xf32, #tpu.memory_space<vmem>>, vector<128x255xf32>
    tpu.vector_store %arg18[%c128_16, %c1_17], %14 {strides = array<i32>} : memref<640x512xf32, #tpu.memory_space<vmem>>, vector<128x255xf32>,
    %c0_18 = arith.constant 0 : index
    %c0_19 = arith.constant 0 : index
    %c0_20 = arith.constant 0 : index
    %16 = vector.load %arg1[%c0_18, %c0_19, %c0_20] : memref<2x128x256xf32, #tpu.memory_space<vmem>>, vector<1x128x256xf32>
    %17 = vector.shape_cast %16 : vector<1x128x256xf32> to vector<128x256xf32>
    %c256 = arith.constant 256 : index
    %c0_21 = arith.constant 0 : index
    %18 = vector.load %arg18[%c256, %c0_21] : memref<640x512xf32, #tpu.memory_space<vmem>>, vector<128x256xf32>
    tpu.vector_store %arg18[%c256, %c0_21], %17 {strides = array<i32>} : memref<640x512xf32, #tpu.memory_space<vmem>>, vector<128x256xf32>,
    %c0_22 = arith.constant 0 : index
    %c0_23 = arith.constant 0 : index
    %c1_24 = arith.constant 1 : index
    %19 = vector.load %arg1[%c0_22, %c0_23, %c1_24] : memref<2x128x256xf32, #tpu.memory_space<vmem>>, vector<1x128x255xf32>
    %20 = vector.shape_cast %19 : vector<1x128x255xf32> to vector<128x255xf32>
    %c384 = arith.constant 384 : index
    %c0_25 = arith.constant 0 : index
    %21 = vector.load %arg18[%c384, %c0_25] : memref<640x512xf32, #tpu.memory_space<vmem>>, vector<128x255xf32>
    tpu.vector_store %arg18[%c384, %c0_25], %20 {strides = array<i32>} : memref<640x512xf32, #tpu.memory_space<vmem>>, vector<128x255xf32>,
    %22 = vector.extract_strided_slice %6 {offsets = [0, 0], sizes = [128, 1], strides = [1, 1]} : vector<128x2xf32> to vector<128x1xf32>
    %c384_26 = arith.constant 384 : index
    %c255 = arith.constant 255 : index
    %23 = vector.load %arg18[%c384_26, %c255] : memref<640x512xf32, #tpu.memory_space<vmem>>, vector<128x1xf32>
    tpu.vector_store %arg18[%c384_26, %c255], %22 {strides = array<i32>} : memref<640x512xf32, #tpu.memory_space<vmem>>, vector<128x1xf32>,
    %c0_27 = arith.constant 0 : index
    %c0_28 = arith.constant 0 : index
    %c2_29 = arith.constant 2 : index
    %24 = vector.load %arg1[%c0_27, %c0_28, %c2_29] : memref<2x128x256xf32, #tpu.memory_space<vmem>>, vector<1x128x254xf32>
    %25 = vector.shape_cast %24 : vector<1x128x254xf32> to vector<128x254xf32>
    %c512 = arith.constant 512 : index
    %c0_30 = arith.constant 0 : index
    %26 = vector.load %arg18[%c512, %c0_30] : memref<640x512xf32, #tpu.memory_space<vmem>>, vector<128x254xf32>
    tpu.vector_store %arg18[%c512, %c0_30], %25 {strides = array<i32>} : memref<640x512xf32, #tpu.memory_space<vmem>>, vector<128x254xf32>,
    %c512_31 = arith.constant 512 : index
    %c254 = arith.constant 254 : index
    %27 = vector.load %arg18[%c512_31, %c254] : memref<640x512xf32, #tpu.memory_space<vmem>>, vector<128x2xf32>
    tpu.vector_store %arg18[%c512_31, %c254], %6 {strides = array<i32>} : memref<640x512xf32, #tpu.memory_space<vmem>>, vector<128x2xf32>,
    %c1_32 = arith.constant 1 : index
    %c0_33 = arith.constant 0 : index
    %c1_34 = arith.constant 1 : index
    %28 = vector.load %arg1[%c1_32, %c0_33, %c1_34] : memref<2x128x256xf32, #tpu.memory_space<vmem>>, vector<1x128x2xf32>
    %29 = vector.shape_cast %28 : vector<1x128x2xf32> to vector<128x2xf32>
    %cst_35 = arith.constant dense<0.000000e+00> : vector<128x2xf32>
    %30 = tpu.matmul %29, %0, %cst_35 {dimension_numbers = #tpu.dot_dimension_numbers<[1], [0], [0], [1], [0, 0, 1, 1], [], []>} : vector<128x2xf32>, vector<2x2xf32>, vector<128x2xf32> -> vector<128x2xf32>
    %c1_36 = arith.constant 1 : index
    %c0_37 = arith.constant 0 : index
    %c253_38 = arith.constant 253 : index
    %31 = vector.load %arg1[%c1_36, %c0_37, %c253_38] : memref<2x128x256xf32, #tpu.memory_space<vmem>>, vector<1x128x2xf32>
    %32 = vector.shape_cast %31 : vector<1x128x2xf32> to vector<128x2xf32>
    %cst_39 = arith.constant dense<0.000000e+00> : vector<128x2xf32>
    %33 = tpu.matmul %32, %0, %cst_39 {dimension_numbers = #tpu.dot_dimension_numbers<[1], [0], [0], [1], [0, 0, 1, 1], [], []>} : vector<128x2xf32>, vector<2x2xf32>, vector<128x2xf32> -> vector<128x2xf32>
    %c0_40 = arith.constant 0 : index
    %c256_41 = arith.constant 256 : index
    %34 = vector.load %arg18[%c0_40, %c256_41] : memref<640x512xf32, #tpu.memory_space<vmem>>, vector<128x2xf32>
    tpu.vector_store %arg18[%c0_40, %c256_41], %30 {strides = array<i32>} : memref<640x512xf32, #tpu.memory_space<vmem>>, vector<128x2xf32>,
    %c1_42 = arith.constant 1 : index
    %c0_43 = arith.constant 0 : index
    %c0_44 = arith.constant 0 : index
    %35 = vector.load %arg1[%c1_42, %c0_43, %c0_44] : memref<2x128x256xf32, #tpu.memory_space<vmem>>, vector<1x128x254xf32>
    %36 = vector.shape_cast %35 : vector<1x128x254xf32> to vector<128x254xf32>
    %c0_45 = arith.constant 0 : index
    %c258 = arith.constant 258 : index
    %37 = vector.load %arg18[%c0_45, %c258] : memref<640x512xf32, #tpu.memory_space<vmem>>, vector<128x254xf32>
    tpu.vector_store %arg18[%c0_45, %c258], %36 {strides = array<i32>} : memref<640x512xf32, #tpu.memory_space<vmem>>, vector<128x254xf32>,
    %38 = vector.extract_strided_slice %30 {offsets = [0, 1], sizes = [128, 1], strides = [1, 1]} : vector<128x2xf32> to vector<128x1xf32>
    %c128_46 = arith.constant 128 : index
    %c256_47 = arith.constant 256 : index
    %39 = vector.load %arg18[%c128_46, %c256_47] : memref<640x512xf32, #tpu.memory_space<vmem>>, vector<128x1xf32>
    tpu.vector_store %arg18[%c128_46, %c256_47], %38 {strides = array<i32>} : memref<640x512xf32, #tpu.memory_space<vmem>>, vector<128x1xf32>,
    %c1_48 = arith.constant 1 : index
    %c0_49 = arith.constant 0 : index
    %c0_50 = arith.constant 0 : index
    %40 = vector.load %arg1[%c1_48, %c0_49, %c0_50] : memref<2x128x256xf32, #tpu.memory_space<vmem>>, vector<1x128x255xf32>
    %41 = vector.shape_cast %40 : vector<1x128x255xf32> to vector<128x255xf32>
    %c128_51 = arith.constant 128 : index
    %c257 = arith.constant 257 : index
    %42 = vector.load %arg18[%c128_51, %c257] : memref<640x512xf32, #tpu.memory_space<vmem>>, vector<128x255xf32>
    tpu.vector_store %arg18[%c128_51, %c257], %41 {strides = array<i32>} : memref<640x512xf32, #tpu.memory_space<vmem>>, vector<128x255xf32>,
    %c1_52 = arith.constant 1 : index
    %c0_53 = arith.constant 0 : index
    %c0_54 = arith.constant 0 : index
    %43 = vector.load %arg1[%c1_52, %c0_53, %c0_54] : memref<2x128x256xf32, #tpu.memory_space<vmem>>, vector<1x128x256xf32>
    %44 = vector.shape_cast %43 : vector<1x128x256xf32> to vector<128x256xf32>
    %c256_55 = arith.constant 256 : index
    %c256_56 = arith.constant 256 : index
    %45 = vector.load %arg18[%c256_55, %c256_56] : memref<640x512xf32, #tpu.memory_space<vmem>>, vector<128x256xf32>
    tpu.vector_store %arg18[%c256_55, %c256_56], %44 {strides = array<i32>} : memref<640x512xf32, #tpu.memory_space<vmem>>, vector<128x256xf32>,
    %c1_57 = arith.constant 1 : index
    %c0_58 = arith.constant 0 : index
    %c1_59 = arith.constant 1 : index
    %46 = vector.load %arg1[%c1_57, %c0_58, %c1_59] : memref<2x128x256xf32, #tpu.memory_space<vmem>>, vector<1x128x255xf32>
    %47 = vector.shape_cast %46 : vector<1x128x255xf32> to vector<128x255xf32>
    %c384_60 = arith.constant 384 : index
    %c256_61 = arith.constant 256 : index
    %48 = vector.load %arg18[%c384_60, %c256_61] : memref<640x512xf32, #tpu.memory_space<vmem>>, vector<128x255xf32>
    tpu.vector_store %arg18[%c384_60, %c256_61], %47 {strides = array<i32>} : memref<640x512xf32, #tpu.memory_space<vmem>>, vector<128x255xf32>,
    %49 = vector.extract_strided_slice %33 {offsets = [0, 0], sizes = [128, 1], strides = [1, 1]} : vector<128x2xf32> to vector<128x1xf32>
    %c384_62 = arith.constant 384 : index
    %c511 = arith.constant 511 : index
    %50 = vector.load %arg18[%c384_62, %c511] : memref<640x512xf32, #tpu.memory_space<vmem>>, vector<128x1xf32>
    tpu.vector_store %arg18[%c384_62, %c511], %49 {strides = array<i32>} : memref<640x512xf32, #tpu.memory_space<vmem>>, vector<128x1xf32>,
    %c1_63 = arith.constant 1 : index
    %c0_64 = arith.constant 0 : index
    %c2_65 = arith.constant 2 : index
    %51 = vector.load %arg1[%c1_63, %c0_64, %c2_65] : memref<2x128x256xf32, #tpu.memory_space<vmem>>, vector<1x128x254xf32>
    %52 = vector.shape_cast %51 : vector<1x128x254xf32> to vector<128x254xf32>
    %c512_66 = arith.constant 512 : index
    %c256_67 = arith.constant 256 : index
    %53 = vector.load %arg18[%c512_66, %c256_67] : memref<640x512xf32, #tpu.memory_space<vmem>>, vector<128x254xf32>
    tpu.vector_store %arg18[%c512_66, %c256_67], %52 {strides = array<i32>} : memref<640x512xf32, #tpu.memory_space<vmem>>, vector<128x254xf32>,
    %c512_68 = arith.constant 512 : index
    %c510 = arith.constant 510 : index
    %54 = vector.load %arg18[%c512_68, %c510] : memref<640x512xf32, #tpu.memory_space<vmem>>, vector<128x2xf32>
    tpu.vector_store %arg18[%c512_68, %c510], %33 {strides = array<i32>} : memref<640x512xf32, #tpu.memory_space<vmem>>, vector<128x2xf32>,
    %c0_69 = arith.constant 0 : index
    %c0_70 = arith.constant 0 : index
    %55 = vector.load %arg18[%c0_69, %c0_70] : memref<640x512xf32, #tpu.memory_space<vmem>>, vector<640x512xf32>
    %c0_71 = arith.constant 0 : index
    %c0_72 = arith.constant 0 : index
    %56 = vector.load %arg7[%c0_71, %c0_72] : memref<64x640xf32, #tpu.memory_space<vmem>>, vector<64x640xf32>
    %cst_73 = arith.constant dense<0.000000e+00> : vector<64x512xf32>
    %57 = tpu.matmul %56, %55, %cst_73 {dimension_numbers = #tpu.dot_dimension_numbers<[1], [0], [0], [1], [0, 0, 1, 1], [], []>} : vector<64x640xf32>, vector<640x512xf32>, vector<64x512xf32> -> vector<64x512xf32>
    %c0_74 = arith.constant 0 : index
    %c0_75 = arith.constant 0 : index
    %58 = vector.load %arg8[%c0_74, %c0_75] : memref<64x1xf32, #tpu.memory_space<vmem>>, vector<64x1xf32>
    %59 = vector.broadcast %58 : vector<64x1xf32> to vector<64x512xf32>
    %60 = arith.addf %57, %59 : vector<64x512xf32>
    %cst_76 = arith.constant 0.000000e+00 : f32
    %61 = vector.broadcast %cst_76 : f32 to vector<64x512xf32>
    %62 = arith.maximumf %60, %61 : vector<64x512xf32>
    %c0_77 = arith.constant 0 : index
    %c0_78 = arith.constant 0 : index
    %63 = vector.load %arg19[%c0_77, %c0_78] : memref<64x512xf32, #tpu.memory_space<vmem>>, vector<64x512xf32>
    tpu.vector_store %arg19[%c0_77, %c0_78], %62 {strides = array<i32>} : memref<64x512xf32, #tpu.memory_space<vmem>>, vector<64x512xf32>,
    %c0_79 = arith.constant 0 : index
    %c0_80 = arith.constant 0 : index
    %64 = vector.load %arg3[%c0_79, %c0_80] : memref<4x4xf32, #tpu.memory_space<vmem>>, vector<4x4xf32>
    %c0_81 = arith.constant 0 : index
    %c1_82 = arith.constant 1 : index
    %65 = vector.load %arg19[%c0_81, %c1_82] : memref<64x512xf32, #tpu.memory_space<vmem>>, vector<64x4xf32>
    %cst_83 = arith.constant dense<0.000000e+00> : vector<64x4xf32>
    %66 = tpu.matmul %65, %64, %cst_83 {dimension_numbers = #tpu.dot_dimension_numbers<[1], [0], [0], [1], [0, 0, 1, 1], [], []>} : vector<64x4xf32>, vector<4x4xf32>, vector<64x4xf32> -> vector<64x4xf32>
    %c0_84 = arith.constant 0 : index
    %c251 = arith.constant 251 : index
    %67 = vector.load %arg19[%c0_84, %c251] : memref<64x512xf32, #tpu.memory_space<vmem>>, vector<64x4xf32>
    %cst_85 = arith.constant dense<0.000000e+00> : vector<64x4xf32>
    %68 = tpu.matmul %67, %64, %cst_85 {dimension_numbers = #tpu.dot_dimension_numbers<[1], [0], [0], [1], [0, 0, 1, 1], [], []>} : vector<64x4xf32>, vector<4x4xf32>, vector<64x4xf32> -> vector<64x4xf32>
    %c0_86 = arith.constant 0 : index
    %c0_87 = arith.constant 0 : index
    %69 = vector.load %arg18[%c0_86, %c0_87] : memref<640x512xf32, #tpu.memory_space<vmem>>, vector<64x4xf32>
    tpu.vector_store %arg18[%c0_86, %c0_87], %66 {strides = array<i32>} : memref<640x512xf32, #tpu.memory_space<vmem>>, vector<64x4xf32>,
    %c0_88 = arith.constant 0 : index
    %c0_89 = arith.constant 0 : index
    %70 = vector.load %arg19[%c0_88, %c0_89] : memref<64x512xf32, #tpu.memory_space<vmem>>, vector<64x252xf32>
    %c0_90 = arith.constant 0 : index
    %c4 = arith.constant 4 : index
    %71 = vector.load %arg18[%c0_90, %c4] : memref<640x512xf32, #tpu.memory_space<vmem>>, vector<64x252xf32>
    tpu.vector_store %arg18[%c0_90, %c4], %70 {strides = array<i32>} : memref<640x512xf32, #tpu.memory_space<vmem>>, vector<64x252xf32>,
    %72 = vector.extract_strided_slice %66 {offsets = [0, 2], sizes = [64, 2], strides = [1, 1]} : vector<64x4xf32> to vector<64x2xf32>
    %c64 = arith.constant 64 : index
    %c0_91 = arith.constant 0 : index
    %73 = vector.load %arg18[%c64, %c0_91] : memref<640x512xf32, #tpu.memory_space<vmem>>, vector<64x2xf32>
    tpu.vector_store %arg18[%c64, %c0_91], %72 {strides = array<i32>} : memref<640x512xf32, #tpu.memory_space<vmem>>, vector<64x2xf32>,
    %c0_92 = arith.constant 0 : index
    %c0_93 = arith.constant 0 : index
    %74 = vector.load %arg19[%c0_92, %c0_93] : memref<64x512xf32, #tpu.memory_space<vmem>>, vector<64x254xf32>
    %c64_94 = arith.constant 64 : index
    %c2_95 = arith.constant 2 : index
    %75 = vector.load %arg18[%c64_94, %c2_95] : memref<640x512xf32, #tpu.memory_space<vmem>>, vector<64x254xf32>
    tpu.vector_store %arg18[%c64_94, %c2_95], %74 {strides = array<i32>} : memref<640x512xf32, #tpu.memory_space<vmem>>, vector<64x254xf32>,
    %c0_96 = arith.constant 0 : index
    %c0_97 = arith.constant 0 : index
    %76 = vector.load %arg19[%c0_96, %c0_97] : memref<64x512xf32, #tpu.memory_space<vmem>>, vector<64x256xf32>
    %c128_98 = arith.constant 128 : index
    %c0_99 = arith.constant 0 : index
    %77 = vector.load %arg18[%c128_98, %c0_99] : memref<640x512xf32, #tpu.memory_space<vmem>>, vector<64x256xf32>
    tpu.vector_store %arg18[%c128_98, %c0_99], %76 {strides = array<i32>} : memref<640x512xf32, #tpu.memory_space<vmem>>, vector<64x256xf32>,
    %c0_100 = arith.constant 0 : index
    %c2_101 = arith.constant 2 : index
    %78 = vector.load %arg19[%c0_100, %c2_101] : memref<64x512xf32, #tpu.memory_space<vmem>>, vector<64x254xf32>
    %c192 = arith.constant 192 : index
    %c0_102 = arith.constant 0 : index
    %79 = vector.load %arg18[%c192, %c0_102] : memref<640x512xf32, #tpu.memory_space<vmem>>, vector<64x254xf32>
    tpu.vector_store %arg18[%c192, %c0_102], %78 {strides = array<i32>} : memref<640x512xf32, #tpu.memory_space<vmem>>, vector<64x254xf32>,
    %80 = vector.extract_strided_slice %68 {offsets = [0, 0], sizes = [64, 2], strides = [1, 1]} : vector<64x4xf32> to vector<64x2xf32>
    %c192_103 = arith.constant 192 : index
    %c254_104 = arith.constant 254 : index
    %81 = vector.load %arg18[%c192_103, %c254_104] : memref<640x512xf32, #tpu.memory_space<vmem>>, vector<64x2xf32>
    tpu.vector_store %arg18[%c192_103, %c254_104], %80 {strides = array<i32>} : memref<640x512xf32, #tpu.memory_space<vmem>>, vector<64x2xf32>,
    %c0_105 = arith.constant 0 : index
    %c4_106 = arith.constant 4 : index
    %82 = vector.load %arg19[%c0_105, %c4_106] : memref<64x512xf32, #tpu.memory_space<vmem>>, vector<64x252xf32>
    %c256_107 = arith.constant 256 : index
    %c0_108 = arith.constant 0 : index
    %83 = vector.load %arg18[%c256_107, %c0_108] : memref<640x512xf32, #tpu.memory_space<vmem>>, vector<64x252xf32>
    tpu.vector_store %arg18[%c256_107, %c0_108], %82 {strides = array<i32>} : memref<640x512xf32, #tpu.memory_space<vmem>>, vector<64x252xf32>,
    %c256_109 = arith.constant 256 : index
    %c252 = arith.constant 252 : index
    %84 = vector.load %arg18[%c256_109, %c252] : memref<640x512xf32, #tpu.memory_space<vmem>>, vector<64x4xf32>
    tpu.vector_store %arg18[%c256_109, %c252], %68 {strides = array<i32>} : memref<640x512xf32, #tpu.memory_space<vmem>>, vector<64x4xf32>,
    %c0_110 = arith.constant 0 : index
    %c257_111 = arith.constant 257 : index
    %85 = vector.load %arg19[%c0_110, %c257_111] : memref<64x512xf32, #tpu.memory_space<vmem>>, vector<64x4xf32>
    %cst_112 = arith.constant dense<0.000000e+00> : vector<64x4xf32>
    %86 = tpu.matmul %85, %64, %cst_112 {dimension_numbers = #tpu.dot_dimension_numbers<[1], [0], [0], [1], [0, 0, 1, 1], [], []>} : vector<64x4xf32>, vector<4x4xf32>, vector<64x4xf32> -> vector<64x4xf32>
    %c0_113 = arith.constant 0 : index
    %c507 = arith.constant 507 : index
    %87 = vector.load %arg19[%c0_113, %c507] : memref<64x512xf32, #tpu.memory_space<vmem>>, vector<64x4xf32>
    %cst_114 = arith.constant dense<0.000000e+00> : vector<64x4xf32>
    %88 = tpu.matmul %87, %64, %cst_114 {dimension_numbers = #tpu.dot_dimension_numbers<[1], [0], [0], [1], [0, 0, 1, 1], [], []>} : vector<64x4xf32>, vector<4x4xf32>, vector<64x4xf32> -> vector<64x4xf32>
    %c0_115 = arith.constant 0 : index
    %c256_116 = arith.constant 256 : index
    %89 = vector.load %arg18[%c0_115, %c256_116] : memref<640x512xf32, #tpu.memory_space<vmem>>, vector<64x4xf32>
    tpu.vector_store %arg18[%c0_115, %c256_116], %86 {strides = array<i32>} : memref<640x512xf32, #tpu.memory_space<vmem>>, vector<64x4xf32>,
    %c0_117 = arith.constant 0 : index
    %c256_118 = arith.constant 256 : index
    %90 = vector.load %arg19[%c0_117, %c256_118] : memref<64x512xf32, #tpu.memory_space<vmem>>, vector<64x252xf32>
    %c0_119 = arith.constant 0 : index
    %c260 = arith.constant 260 : index
    %91 = vector.load %arg18[%c0_119, %c260] : memref<640x512xf32, #tpu.memory_space<vmem>>, vector<64x252xf32>
    tpu.vector_store %arg18[%c0_119, %c260], %90 {strides = array<i32>} : memref<640x512xf32, #tpu.memory_space<vmem>>, vector<64x252xf32>,
    %92 = vector.extract_strided_slice %86 {offsets = [0, 2], sizes = [64, 2], strides = [1, 1]} : vector<64x4xf32> to vector<64x2xf32>
    %c64_120 = arith.constant 64 : index
    %c256_121 = arith.constant 256 : index
    %93 = vector.load %arg18[%c64_120, %c256_121] : memref<640x512xf32, #tpu.memory_space<vmem>>, vector<64x2xf32>
    tpu.vector_store %arg18[%c64_120, %c256_121], %92 {strides = array<i32>} : memref<640x512xf32, #tpu.memory_space<vmem>>, vector<64x2xf32>,
    %c0_122 = arith.constant 0 : index
    %c256_123 = arith.constant 256 : index
    %94 = vector.load %arg19[%c0_122, %c256_123] : memref<64x512xf32, #tpu.memory_space<vmem>>, vector<64x254xf32>
    %c64_124 = arith.constant 64 : index
    %c258_125 = arith.constant 258 : index
    %95 = vector.load %arg18[%c64_124, %c258_125] : memref<640x512xf32, #tpu.memory_space<vmem>>, vector<64x254xf32>
    tpu.vector_store %arg18[%c64_124, %c258_125], %94 {strides = array<i32>} : memref<640x512xf32, #tpu.memory_space<vmem>>, vector<64x254xf32>,
    %c0_126 = arith.constant 0 : index
    %c256_127 = arith.constant 256 : index
    %96 = vector.load %arg19[%c0_126, %c256_127] : memref<64x512xf32, #tpu.memory_space<vmem>>, vector<64x256xf32>
    %c128_128 = arith.constant 128 : index
    %c256_129 = arith.constant 256 : index
    %97 = vector.load %arg18[%c128_128, %c256_129] : memref<640x512xf32, #tpu.memory_space<vmem>>, vector<64x256xf32>
    tpu.vector_store %arg18[%c128_128, %c256_129], %96 {strides = array<i32>} : memref<640x512xf32, #tpu.memory_space<vmem>>, vector<64x256xf32>,
    %c0_130 = arith.constant 0 : index
    %c258_131 = arith.constant 258 : index
    %98 = vector.load %arg19[%c0_130, %c258_131] : memref<64x512xf32, #tpu.memory_space<vmem>>, vector<64x254xf32>
    %c192_132 = arith.constant 192 : index
    %c256_133 = arith.constant 256 : index
    %99 = vector.load %arg18[%c192_132, %c256_133] : memref<640x512xf32, #tpu.memory_space<vmem>>, vector<64x254xf32>
    tpu.vector_store %arg18[%c192_132, %c256_133], %98 {strides = array<i32>} : memref<640x512xf32, #tpu.memory_space<vmem>>, vector<64x254xf32>,
    %100 = vector.extract_strided_slice %88 {offsets = [0, 0], sizes = [64, 2], strides = [1, 1]} : vector<64x4xf32> to vector<64x2xf32>
    %c192_134 = arith.constant 192 : index
    %c510_135 = arith.constant 510 : index
    %101 = vector.load %arg18[%c192_134, %c510_135] : memref<640x512xf32, #tpu.memory_space<vmem>>, vector<64x2xf32>
    tpu.vector_store %arg18[%c192_134, %c510_135], %100 {strides = array<i32>} : memref<640x512xf32, #tpu.memory_space<vmem>>, vector<64x2xf32>,
    %c0_136 = arith.constant 0 : index
    %c260_137 = arith.constant 260 : index
    %102 = vector.load %arg19[%c0_136, %c260_137] : memref<64x512xf32, #tpu.memory_space<vmem>>, vector<64x252xf32>
    %c256_138 = arith.constant 256 : index
    %c256_139 = arith.constant 256 : index
    %103 = vector.load %arg18[%c256_138, %c256_139] : memref<640x512xf32, #tpu.memory_space<vmem>>, vector<64x252xf32>
    tpu.vector_store %arg18[%c256_138, %c256_139], %102 {strides = array<i32>} : memref<640x512xf32, #tpu.memory_space<vmem>>, vector<64x252xf32>,
    %c256_140 = arith.constant 256 : index
    %c508 = arith.constant 508 : index
    %104 = vector.load %arg18[%c256_140, %c508] : memref<640x512xf32, #tpu.memory_space<vmem>>, vector<64x4xf32>
    tpu.vector_store %arg18[%c256_140, %c508], %88 {strides = array<i32>} : memref<640x512xf32, #tpu.memory_space<vmem>>, vector<64x4xf32>,
    %c0_141 = arith.constant 0 : index
    %c0_142 = arith.constant 0 : index
    %105 = vector.load %arg18[%c0_141, %c0_142] : memref<640x512xf32, #tpu.memory_space<vmem>>, vector<320x512xf32>
    %c0_143 = arith.constant 0 : index
    %c0_144 = arith.constant 0 : index
    %106 = vector.load %arg9[%c0_143, %c0_144] : memref<32x320xf32, #tpu.memory_space<vmem>>, vector<32x320xf32>
    %cst_145 = arith.constant dense<0.000000e+00> : vector<32x512xf32>
    %107 = tpu.matmul %106, %105, %cst_145 {dimension_numbers = #tpu.dot_dimension_numbers<[1], [0], [0], [1], [0, 0, 1, 1], [], []>} : vector<32x320xf32>, vector<320x512xf32>, vector<32x512xf32> -> vector<32x512xf32>
    %c0_146 = arith.constant 0 : index
    %c0_147 = arith.constant 0 : index
    %108 = vector.load %arg10[%c0_146, %c0_147] : memref<32x1xf32, #tpu.memory_space<vmem>>, vector<32x1xf32>
    %109 = vector.broadcast %108 : vector<32x1xf32> to vector<32x512xf32>
    %110 = arith.addf %107, %109 : vector<32x512xf32>
    %cst_148 = arith.constant 0.000000e+00 : f32
    %111 = vector.broadcast %cst_148 : f32 to vector<32x512xf32>
    %112 = arith.maximumf %110, %111 : vector<32x512xf32>
    %c0_149 = arith.constant 0 : index
    %c0_150 = arith.constant 0 : index
    %113 = vector.load %arg19[%c0_149, %c0_150] : memref<64x512xf32, #tpu.memory_space<vmem>>, vector<32x512xf32>
    tpu.vector_store %arg19[%c0_149, %c0_150], %112 {strides = array<i32>} : memref<64x512xf32, #tpu.memory_space<vmem>>, vector<32x512xf32>,
    %c0_151 = arith.constant 0 : index
    %c0_152 = arith.constant 0 : index
    %114 = vector.load %arg4[%c0_151, %c0_152] : memref<8x8xf32, #tpu.memory_space<vmem>>, vector<8x8xf32>
    %c0_153 = arith.constant 0 : index
    %c1_154 = arith.constant 1 : index
    %115 = vector.load %arg19[%c0_153, %c1_154] : memref<64x512xf32, #tpu.memory_space<vmem>>, vector<32x8xf32>
    %cst_155 = arith.constant dense<0.000000e+00> : vector<32x8xf32>
    %116 = tpu.matmul %115, %114, %cst_155 {dimension_numbers = #tpu.dot_dimension_numbers<[1], [0], [0], [1], [0, 0, 1, 1], [], []>} : vector<32x8xf32>, vector<8x8xf32>, vector<32x8xf32> -> vector<32x8xf32>
    %c0_156 = arith.constant 0 : index
    %c247 = arith.constant 247 : index
    %117 = vector.load %arg19[%c0_156, %c247] : memref<64x512xf32, #tpu.memory_space<vmem>>, vector<32x8xf32>
    %cst_157 = arith.constant dense<0.000000e+00> : vector<32x8xf32>
    %118 = tpu.matmul %117, %114, %cst_157 {dimension_numbers = #tpu.dot_dimension_numbers<[1], [0], [0], [1], [0, 0, 1, 1], [], []>} : vector<32x8xf32>, vector<8x8xf32>, vector<32x8xf32> -> vector<32x8xf32>
    %c0_158 = arith.constant 0 : index
    %c0_159 = arith.constant 0 : index
    %119 = vector.load %arg18[%c0_158, %c0_159] : memref<640x512xf32, #tpu.memory_space<vmem>>, vector<32x8xf32>
    tpu.vector_store %arg18[%c0_158, %c0_159], %116 {strides = array<i32>} : memref<640x512xf32, #tpu.memory_space<vmem>>, vector<32x8xf32>,
    %c0_160 = arith.constant 0 : index
    %c0_161 = arith.constant 0 : index
    %120 = vector.load %arg19[%c0_160, %c0_161] : memref<64x512xf32, #tpu.memory_space<vmem>>, vector<32x248xf32>
    %c0_162 = arith.constant 0 : index
    %c8 = arith.constant 8 : index
    %121 = vector.load %arg18[%c0_162, %c8] : memref<640x512xf32, #tpu.memory_space<vmem>>, vector<32x248xf32>
    tpu.vector_store %arg18[%c0_162, %c8], %120 {strides = array<i32>} : memref<640x512xf32, #tpu.memory_space<vmem>>, vector<32x248xf32>,
    %122 = vector.extract_strided_slice %116 {offsets = [0, 4], sizes = [32, 4], strides = [1, 1]} : vector<32x8xf32> to vector<32x4xf32>
    %c32 = arith.constant 32 : index
    %c0_163 = arith.constant 0 : index
    %123 = vector.load %arg18[%c32, %c0_163] : memref<640x512xf32, #tpu.memory_space<vmem>>, vector<32x4xf32>
    tpu.vector_store %arg18[%c32, %c0_163], %122 {strides = array<i32>} : memref<640x512xf32, #tpu.memory_space<vmem>>, vector<32x4xf32>,
    %c0_164 = arith.constant 0 : index
    %c0_165 = arith.constant 0 : index
    %124 = vector.load %arg19[%c0_164, %c0_165] : memref<64x512xf32, #tpu.memory_space<vmem>>, vector<32x252xf32>
    %c32_166 = arith.constant 32 : index
    %c4_167 = arith.constant 4 : index
    %125 = vector.load %arg18[%c32_166, %c4_167] : memref<640x512xf32, #tpu.memory_space<vmem>>, vector<32x252xf32>
    tpu.vector_store %arg18[%c32_166, %c4_167], %124 {strides = array<i32>} : memref<640x512xf32, #tpu.memory_space<vmem>>, vector<32x252xf32>,
    %c0_168 = arith.constant 0 : index
    %c0_169 = arith.constant 0 : index
    %126 = vector.load %arg19[%c0_168, %c0_169] : memref<64x512xf32, #tpu.memory_space<vmem>>, vector<32x256xf32>
    %c64_170 = arith.constant 64 : index
    %c0_171 = arith.constant 0 : index
    %127 = vector.load %arg18[%c64_170, %c0_171] : memref<640x512xf32, #tpu.memory_space<vmem>>, vector<32x256xf32>
    tpu.vector_store %arg18[%c64_170, %c0_171], %126 {strides = array<i32>} : memref<640x512xf32, #tpu.memory_space<vmem>>, vector<32x256xf32>,
    %c0_172 = arith.constant 0 : index
    %c4_173 = arith.constant 4 : index
    %128 = vector.load %arg19[%c0_172, %c4_173] : memref<64x512xf32, #tpu.memory_space<vmem>>, vector<32x252xf32>
    %c96 = arith.constant 96 : index
    %c0_174 = arith.constant 0 : index
    %129 = vector.load %arg18[%c96, %c0_174] : memref<640x512xf32, #tpu.memory_space<vmem>>, vector<32x252xf32>
    tpu.vector_store %arg18[%c96, %c0_174], %128 {strides = array<i32>} : memref<640x512xf32, #tpu.memory_space<vmem>>, vector<32x252xf32>,
    %130 = vector.extract_strided_slice %118 {offsets = [0, 0], sizes = [32, 4], strides = [1, 1]} : vector<32x8xf32> to vector<32x4xf32>
    %c96_175 = arith.constant 96 : index
    %c252_176 = arith.constant 252 : index
    %131 = vector.load %arg18[%c96_175, %c252_176] : memref<640x512xf32, #tpu.memory_space<vmem>>, vector<32x4xf32>
    tpu.vector_store %arg18[%c96_175, %c252_176], %130 {strides = array<i32>} : memref<640x512xf32, #tpu.memory_space<vmem>>, vector<32x4xf32>,
    %c0_177 = arith.constant 0 : index
    %c8_178 = arith.constant 8 : index
    %132 = vector.load %arg19[%c0_177, %c8_178] : memref<64x512xf32, #tpu.memory_space<vmem>>, vector<32x248xf32>
    %c128_179 = arith.constant 128 : index
    %c0_180 = arith.constant 0 : index
    %133 = vector.load %arg18[%c128_179, %c0_180] : memref<640x512xf32, #tpu.memory_space<vmem>>, vector<32x248xf32>
    tpu.vector_store %arg18[%c128_179, %c0_180], %132 {strides = array<i32>} : memref<640x512xf32, #tpu.memory_space<vmem>>, vector<32x248xf32>,
    %c128_181 = arith.constant 128 : index
    %c248 = arith.constant 248 : index
    %134 = vector.load %arg18[%c128_181, %c248] : memref<640x512xf32, #tpu.memory_space<vmem>>, vector<32x8xf32>
    tpu.vector_store %arg18[%c128_181, %c248], %118 {strides = array<i32>} : memref<640x512xf32, #tpu.memory_space<vmem>>, vector<32x8xf32>,
    %c0_182 = arith.constant 0 : index
    %c257_183 = arith.constant 257 : index
    %135 = vector.load %arg19[%c0_182, %c257_183] : memref<64x512xf32, #tpu.memory_space<vmem>>, vector<32x8xf32>
    %cst_184 = arith.constant dense<0.000000e+00> : vector<32x8xf32>
    %136 = tpu.matmul %135, %114, %cst_184 {dimension_numbers = #tpu.dot_dimension_numbers<[1], [0], [0], [1], [0, 0, 1, 1], [], []>} : vector<32x8xf32>, vector<8x8xf32>, vector<32x8xf32> -> vector<32x8xf32>
    %c0_185 = arith.constant 0 : index
    %c503 = arith.constant 503 : index
    %137 = vector.load %arg19[%c0_185, %c503] : memref<64x512xf32, #tpu.memory_space<vmem>>, vector<32x8xf32>
    %cst_186 = arith.constant dense<0.000000e+00> : vector<32x8xf32>
    %138 = tpu.matmul %137, %114, %cst_186 {dimension_numbers = #tpu.dot_dimension_numbers<[1], [0], [0], [1], [0, 0, 1, 1], [], []>} : vector<32x8xf32>, vector<8x8xf32>, vector<32x8xf32> -> vector<32x8xf32>
    %c0_187 = arith.constant 0 : index
    %c256_188 = arith.constant 256 : index
    %139 = vector.load %arg18[%c0_187, %c256_188] : memref<640x512xf32, #tpu.memory_space<vmem>>, vector<32x8xf32>
    tpu.vector_store %arg18[%c0_187, %c256_188], %136 {strides = array<i32>} : memref<640x512xf32, #tpu.memory_space<vmem>>, vector<32x8xf32>,
    %c0_189 = arith.constant 0 : index
    %c256_190 = arith.constant 256 : index
    %140 = vector.load %arg19[%c0_189, %c256_190] : memref<64x512xf32, #tpu.memory_space<vmem>>, vector<32x248xf32>
    %c0_191 = arith.constant 0 : index
    %c264 = arith.constant 264 : index
    %141 = vector.load %arg18[%c0_191, %c264] : memref<640x512xf32, #tpu.memory_space<vmem>>, vector<32x248xf32>
    tpu.vector_store %arg18[%c0_191, %c264], %140 {strides = array<i32>} : memref<640x512xf32, #tpu.memory_space<vmem>>, vector<32x248xf32>,
    %142 = vector.extract_strided_slice %136 {offsets = [0, 4], sizes = [32, 4], strides = [1, 1]} : vector<32x8xf32> to vector<32x4xf32>
    %c32_192 = arith.constant 32 : index
    %c256_193 = arith.constant 256 : index
    %143 = vector.load %arg18[%c32_192, %c256_193] : memref<640x512xf32, #tpu.memory_space<vmem>>, vector<32x4xf32>
    tpu.vector_store %arg18[%c32_192, %c256_193], %142 {strides = array<i32>} : memref<640x512xf32, #tpu.memory_space<vmem>>, vector<32x4xf32>,
    %c0_194 = arith.constant 0 : index
    %c256_195 = arith.constant 256 : index
    %144 = vector.load %arg19[%c0_194, %c256_195] : memref<64x512xf32, #tpu.memory_space<vmem>>, vector<32x252xf32>
    %c32_196 = arith.constant 32 : index
    %c260_197 = arith.constant 260 : index
    %145 = vector.load %arg18[%c32_196, %c260_197] : memref<640x512xf32, #tpu.memory_space<vmem>>, vector<32x252xf32>
    tpu.vector_store %arg18[%c32_196, %c260_197], %144 {strides = array<i32>} : memref<640x512xf32, #tpu.memory_space<vmem>>, vector<32x252xf32>,
    %c0_198 = arith.constant 0 : index
    %c256_199 = arith.constant 256 : index
    %146 = vector.load %arg19[%c0_198, %c256_199] : memref<64x512xf32, #tpu.memory_space<vmem>>, vector<32x256xf32>
    %c64_200 = arith.constant 64 : index
    %c256_201 = arith.constant 256 : index
    %147 = vector.load %arg18[%c64_200, %c256_201] : memref<640x512xf32, #tpu.memory_space<vmem>>, vector<32x256xf32>
    tpu.vector_store %arg18[%c64_200, %c256_201], %146 {strides = array<i32>} : memref<640x512xf32, #tpu.memory_space<vmem>>, vector<32x256xf32>,
    %c0_202 = arith.constant 0 : index
    %c260_203 = arith.constant 260 : index
    %148 = vector.load %arg19[%c0_202, %c260_203] : memref<64x512xf32, #tpu.memory_space<vmem>>, vector<32x252xf32>
    %c96_204 = arith.constant 96 : index
    %c256_205 = arith.constant 256 : index
    %149 = vector.load %arg18[%c96_204, %c256_205] : memref<640x512xf32, #tpu.memory_space<vmem>>, vector<32x252xf32>
    tpu.vector_store %arg18[%c96_204, %c256_205], %148 {strides = array<i32>} : memref<640x512xf32, #tpu.memory_space<vmem>>, vector<32x252xf32>,
    %150 = vector.extract_strided_slice %138 {offsets = [0, 0], sizes = [32, 4], strides = [1, 1]} : vector<32x8xf32> to vector<32x4xf32>
    %c96_206 = arith.constant 96 : index
    %c508_207 = arith.constant 508 : index
    %151 = vector.load %arg18[%c96_206, %c508_207] : memref<640x512xf32, #tpu.memory_space<vmem>>, vector<32x4xf32>
    tpu.vector_store %arg18[%c96_206, %c508_207], %150 {strides = array<i32>} : memref<640x512xf32, #tpu.memory_space<vmem>>, vector<32x4xf32>,
    %c0_208 = arith.constant 0 : index
    %c264_209 = arith.constant 264 : index
    %152 = vector.load %arg19[%c0_208, %c264_209] : memref<64x512xf32, #tpu.memory_space<vmem>>, vector<32x248xf32>
    %c128_210 = arith.constant 128 : index
    %c256_211 = arith.constant 256 : index
    %153 = vector.load %arg18[%c128_210, %c256_211] : memref<640x512xf32, #tpu.memory_space<vmem>>, vector<32x248xf32>
    tpu.vector_store %arg18[%c128_210, %c256_211], %152 {strides = array<i32>} : memref<640x512xf32, #tpu.memory_space<vmem>>, vector<32x248xf32>,
    %c128_212 = arith.constant 128 : index
    %c504 = arith.constant 504 : index
    %154 = vector.load %arg18[%c128_212, %c504] : memref<640x512xf32, #tpu.memory_space<vmem>>, vector<32x8xf32>
    tpu.vector_store %arg18[%c128_212, %c504], %138 {strides = array<i32>} : memref<640x512xf32, #tpu.memory_space<vmem>>, vector<32x8xf32>,
    %c0_213 = arith.constant 0 : index
    %c0_214 = arith.constant 0 : index
    %155 = vector.load %arg18[%c0_213, %c0_214] : memref<640x512xf32, #tpu.memory_space<vmem>>, vector<160x512xf32>
    %c0_215 = arith.constant 0 : index
    %c0_216 = arith.constant 0 : index
    %156 = vector.load %arg11[%c0_215, %c0_216] : memref<16x160xf32, #tpu.memory_space<vmem>>, vector<16x160xf32>
    %cst_217 = arith.constant dense<0.000000e+00> : vector<16x512xf32>
    %157 = tpu.matmul %156, %155, %cst_217 {dimension_numbers = #tpu.dot_dimension_numbers<[1], [0], [0], [1], [0, 0, 1, 1], [], []>} : vector<16x160xf32>, vector<160x512xf32>, vector<16x512xf32> -> vector<16x512xf32>
    %c0_218 = arith.constant 0 : index
    %c0_219 = arith.constant 0 : index
    %158 = vector.load %arg12[%c0_218, %c0_219] : memref<16x1xf32, #tpu.memory_space<vmem>>, vector<16x1xf32>
    %159 = vector.broadcast %158 : vector<16x1xf32> to vector<16x512xf32>
    %160 = arith.addf %157, %159 : vector<16x512xf32>
    %cst_220 = arith.constant 0.000000e+00 : f32
    %161 = vector.broadcast %cst_220 : f32 to vector<16x512xf32>
    %162 = arith.maximumf %160, %161 : vector<16x512xf32>
    %c0_221 = arith.constant 0 : index
    %c0_222 = arith.constant 0 : index
    %163 = vector.load %arg19[%c0_221, %c0_222] : memref<64x512xf32, #tpu.memory_space<vmem>>, vector<16x512xf32>
    tpu.vector_store %arg19[%c0_221, %c0_222], %162 {strides = array<i32>} : memref<64x512xf32, #tpu.memory_space<vmem>>, vector<16x512xf32>,
    %c0_223 = arith.constant 0 : index
    %c0_224 = arith.constant 0 : index
    %164 = vector.load %arg5[%c0_223, %c0_224] : memref<16x16xf32, #tpu.memory_space<vmem>>, vector<16x16xf32>
    %c0_225 = arith.constant 0 : index
    %c1_226 = arith.constant 1 : index
    %165 = vector.load %arg19[%c0_225, %c1_226] : memref<64x512xf32, #tpu.memory_space<vmem>>, vector<16x16xf32>
    %cst_227 = arith.constant dense<0.000000e+00> : vector<16x16xf32>
    %166 = tpu.matmul %165, %164, %cst_227 {dimension_numbers = #tpu.dot_dimension_numbers<[1], [0], [0], [1], [0, 0, 1, 1], [], []>} : vector<16x16xf32>, vector<16x16xf32>, vector<16x16xf32> -> vector<16x16xf32>
    %c0_228 = arith.constant 0 : index
    %c239 = arith.constant 239 : index
    %167 = vector.load %arg19[%c0_228, %c239] : memref<64x512xf32, #tpu.memory_space<vmem>>, vector<16x16xf32>
    %cst_229 = arith.constant dense<0.000000e+00> : vector<16x16xf32>
    %168 = tpu.matmul %167, %164, %cst_229 {dimension_numbers = #tpu.dot_dimension_numbers<[1], [0], [0], [1], [0, 0, 1, 1], [], []>} : vector<16x16xf32>, vector<16x16xf32>, vector<16x16xf32> -> vector<16x16xf32>
    %c0_230 = arith.constant 0 : index
    %c0_231 = arith.constant 0 : index
    %169 = vector.load %arg18[%c0_230, %c0_231] : memref<640x512xf32, #tpu.memory_space<vmem>>, vector<16x16xf32>
    tpu.vector_store %arg18[%c0_230, %c0_231], %166 {strides = array<i32>} : memref<640x512xf32, #tpu.memory_space<vmem>>, vector<16x16xf32>,
    %c0_232 = arith.constant 0 : index
    %c0_233 = arith.constant 0 : index
    %170 = vector.load %arg19[%c0_232, %c0_233] : memref<64x512xf32, #tpu.memory_space<vmem>>, vector<16x240xf32>
    %c0_234 = arith.constant 0 : index
    %c16 = arith.constant 16 : index
    %171 = vector.load %arg18[%c0_234, %c16] : memref<640x512xf32, #tpu.memory_space<vmem>>, vector<16x240xf32>
    tpu.vector_store %arg18[%c0_234, %c16], %170 {strides = array<i32>} : memref<640x512xf32, #tpu.memory_space<vmem>>, vector<16x240xf32>,
    %172 = vector.extract_strided_slice %166 {offsets = [0, 8], sizes = [16, 8], strides = [1, 1]} : vector<16x16xf32> to vector<16x8xf32>
    %c16_235 = arith.constant 16 : index
    %c0_236 = arith.constant 0 : index
    %173 = vector.load %arg18[%c16_235, %c0_236] : memref<640x512xf32, #tpu.memory_space<vmem>>, vector<16x8xf32>
    tpu.vector_store %arg18[%c16_235, %c0_236], %172 {strides = array<i32>} : memref<640x512xf32, #tpu.memory_space<vmem>>, vector<16x8xf32>,
    %c0_237 = arith.constant 0 : index
    %c0_238 = arith.constant 0 : index
    %174 = vector.load %arg19[%c0_237, %c0_238] : memref<64x512xf32, #tpu.memory_space<vmem>>, vector<16x248xf32>
    %c16_239 = arith.constant 16 : index
    %c8_240 = arith.constant 8 : index
    %175 = vector.load %arg18[%c16_239, %c8_240] : memref<640x512xf32, #tpu.memory_space<vmem>>, vector<16x248xf32>
    tpu.vector_store %arg18[%c16_239, %c8_240], %174 {strides = array<i32>} : memref<640x512xf32, #tpu.memory_space<vmem>>, vector<16x248xf32>,
    %c0_241 = arith.constant 0 : index
    %c0_242 = arith.constant 0 : index
    %176 = vector.load %arg19[%c0_241, %c0_242] : memref<64x512xf32, #tpu.memory_space<vmem>>, vector<16x256xf32>
    %c32_243 = arith.constant 32 : index
    %c0_244 = arith.constant 0 : index
    %177 = vector.load %arg18[%c32_243, %c0_244] : memref<640x512xf32, #tpu.memory_space<vmem>>, vector<16x256xf32>
    tpu.vector_store %arg18[%c32_243, %c0_244], %176 {strides = array<i32>} : memref<640x512xf32, #tpu.memory_space<vmem>>, vector<16x256xf32>,
    %c0_245 = arith.constant 0 : index
    %c8_246 = arith.constant 8 : index
    %178 = vector.load %arg19[%c0_245, %c8_246] : memref<64x512xf32, #tpu.memory_space<vmem>>, vector<16x248xf32>
    %c48 = arith.constant 48 : index
    %c0_247 = arith.constant 0 : index
    %179 = vector.load %arg18[%c48, %c0_247] : memref<640x512xf32, #tpu.memory_space<vmem>>, vector<16x248xf32>
    tpu.vector_store %arg18[%c48, %c0_247], %178 {strides = array<i32>} : memref<640x512xf32, #tpu.memory_space<vmem>>, vector<16x248xf32>,
    %180 = vector.extract_strided_slice %168 {offsets = [0, 0], sizes = [16, 8], strides = [1, 1]} : vector<16x16xf32> to vector<16x8xf32>
    %c48_248 = arith.constant 48 : index
    %c248_249 = arith.constant 248 : index
    %181 = vector.load %arg18[%c48_248, %c248_249] : memref<640x512xf32, #tpu.memory_space<vmem>>, vector<16x8xf32>
    tpu.vector_store %arg18[%c48_248, %c248_249], %180 {strides = array<i32>} : memref<640x512xf32, #tpu.memory_space<vmem>>, vector<16x8xf32>,
    %c0_250 = arith.constant 0 : index
    %c16_251 = arith.constant 16 : index
    %182 = vector.load %arg19[%c0_250, %c16_251] : memref<64x512xf32, #tpu.memory_space<vmem>>, vector<16x240xf32>
    %c64_252 = arith.constant 64 : index
    %c0_253 = arith.constant 0 : index
    %183 = vector.load %arg18[%c64_252, %c0_253] : memref<640x512xf32, #tpu.memory_space<vmem>>, vector<16x240xf32>
    tpu.vector_store %arg18[%c64_252, %c0_253], %182 {strides = array<i32>} : memref<640x512xf32, #tpu.memory_space<vmem>>, vector<16x240xf32>,
    %c64_254 = arith.constant 64 : index
    %c240 = arith.constant 240 : index
    %184 = vector.load %arg18[%c64_254, %c240] : memref<640x512xf32, #tpu.memory_space<vmem>>, vector<16x16xf32>
    tpu.vector_store %arg18[%c64_254, %c240], %168 {strides = array<i32>} : memref<640x512xf32, #tpu.memory_space<vmem>>, vector<16x16xf32>,
    %c0_255 = arith.constant 0 : index
    %c257_256 = arith.constant 257 : index
    %185 = vector.load %arg19[%c0_255, %c257_256] : memref<64x512xf32, #tpu.memory_space<vmem>>, vector<16x16xf32>
    %cst_257 = arith.constant dense<0.000000e+00> : vector<16x16xf32>
    %186 = tpu.matmul %185, %164, %cst_257 {dimension_numbers = #tpu.dot_dimension_numbers<[1], [0], [0], [1], [0, 0, 1, 1], [], []>} : vector<16x16xf32>, vector<16x16xf32>, vector<16x16xf32> -> vector<16x16xf32>
    %c0_258 = arith.constant 0 : index
    %c495 = arith.constant 495 : index
    %187 = vector.load %arg19[%c0_258, %c495] : memref<64x512xf32, #tpu.memory_space<vmem>>, vector<16x16xf32>
    %cst_259 = arith.constant dense<0.000000e+00> : vector<16x16xf32>
    %188 = tpu.matmul %187, %164, %cst_259 {dimension_numbers = #tpu.dot_dimension_numbers<[1], [0], [0], [1], [0, 0, 1, 1], [], []>} : vector<16x16xf32>, vector<16x16xf32>, vector<16x16xf32> -> vector<16x16xf32>
    %c0_260 = arith.constant 0 : index
    %c256_261 = arith.constant 256 : index
    %189 = vector.load %arg18[%c0_260, %c256_261] : memref<640x512xf32, #tpu.memory_space<vmem>>, vector<16x16xf32>
    tpu.vector_store %arg18[%c0_260, %c256_261], %186 {strides = array<i32>} : memref<640x512xf32, #tpu.memory_space<vmem>>, vector<16x16xf32>,
    %c0_262 = arith.constant 0 : index
    %c256_263 = arith.constant 256 : index
    %190 = vector.load %arg19[%c0_262, %c256_263] : memref<64x512xf32, #tpu.memory_space<vmem>>, vector<16x240xf32>
    %c0_264 = arith.constant 0 : index
    %c272 = arith.constant 272 : index
    %191 = vector.load %arg18[%c0_264, %c272] : memref<640x512xf32, #tpu.memory_space<vmem>>, vector<16x240xf32>
    tpu.vector_store %arg18[%c0_264, %c272], %190 {strides = array<i32>} : memref<640x512xf32, #tpu.memory_space<vmem>>, vector<16x240xf32>,
    %192 = vector.extract_strided_slice %186 {offsets = [0, 8], sizes = [16, 8], strides = [1, 1]} : vector<16x16xf32> to vector<16x8xf32>
    %c16_265 = arith.constant 16 : index
    %c256_266 = arith.constant 256 : index
    %193 = vector.load %arg18[%c16_265, %c256_266] : memref<640x512xf32, #tpu.memory_space<vmem>>, vector<16x8xf32>
    tpu.vector_store %arg18[%c16_265, %c256_266], %192 {strides = array<i32>} : memref<640x512xf32, #tpu.memory_space<vmem>>, vector<16x8xf32>,
    %c0_267 = arith.constant 0 : index
    %c256_268 = arith.constant 256 : index
    %194 = vector.load %arg19[%c0_267, %c256_268] : memref<64x512xf32, #tpu.memory_space<vmem>>, vector<16x248xf32>
    %c16_269 = arith.constant 16 : index
    %c264_270 = arith.constant 264 : index
    %195 = vector.load %arg18[%c16_269, %c264_270] : memref<640x512xf32, #tpu.memory_space<vmem>>, vector<16x248xf32>
    tpu.vector_store %arg18[%c16_269, %c264_270], %194 {strides = array<i32>} : memref<640x512xf32, #tpu.memory_space<vmem>>, vector<16x248xf32>,
    %c0_271 = arith.constant 0 : index
    %c256_272 = arith.constant 256 : index
    %196 = vector.load %arg19[%c0_271, %c256_272] : memref<64x512xf32, #tpu.memory_space<vmem>>, vector<16x256xf32>
    %c32_273 = arith.constant 32 : index
    %c256_274 = arith.constant 256 : index
    %197 = vector.load %arg18[%c32_273, %c256_274] : memref<640x512xf32, #tpu.memory_space<vmem>>, vector<16x256xf32>
    tpu.vector_store %arg18[%c32_273, %c256_274], %196 {strides = array<i32>} : memref<640x512xf32, #tpu.memory_space<vmem>>, vector<16x256xf32>,
    %c0_275 = arith.constant 0 : index
    %c264_276 = arith.constant 264 : index
    %198 = vector.load %arg19[%c0_275, %c264_276] : memref<64x512xf32, #tpu.memory_space<vmem>>, vector<16x248xf32>
    %c48_277 = arith.constant 48 : index
    %c256_278 = arith.constant 256 : index
    %199 = vector.load %arg18[%c48_277, %c256_278] : memref<640x512xf32, #tpu.memory_space<vmem>>, vector<16x248xf32>
    tpu.vector_store %arg18[%c48_277, %c256_278], %198 {strides = array<i32>} : memref<640x512xf32, #tpu.memory_space<vmem>>, vector<16x248xf32>,
    %200 = vector.extract_strided_slice %188 {offsets = [0, 0], sizes = [16, 8], strides = [1, 1]} : vector<16x16xf32> to vector<16x8xf32>
    %c48_279 = arith.constant 48 : index
    %c504_280 = arith.constant 504 : index
    %201 = vector.load %arg18[%c48_279, %c504_280] : memref<640x512xf32, #tpu.memory_space<vmem>>, vector<16x8xf32>
    tpu.vector_store %arg18[%c48_279, %c504_280], %200 {strides = array<i32>} : memref<640x512xf32, #tpu.memory_space<vmem>>, vector<16x8xf32>,
    %c0_281 = arith.constant 0 : index
    %c272_282 = arith.constant 272 : index
    %202 = vector.load %arg19[%c0_281, %c272_282] : memref<64x512xf32, #tpu.memory_space<vmem>>, vector<16x240xf32>
    %c64_283 = arith.constant 64 : index
    %c256_284 = arith.constant 256 : index
    %203 = vector.load %arg18[%c64_283, %c256_284] : memref<640x512xf32, #tpu.memory_space<vmem>>, vector<16x240xf32>
    tpu.vector_store %arg18[%c64_283, %c256_284], %202 {strides = array<i32>} : memref<640x512xf32, #tpu.memory_space<vmem>>, vector<16x240xf32>,
    %c64_285 = arith.constant 64 : index
    %c496 = arith.constant 496 : index
    %204 = vector.load %arg18[%c64_285, %c496] : memref<640x512xf32, #tpu.memory_space<vmem>>, vector<16x16xf32>
    tpu.vector_store %arg18[%c64_285, %c496], %188 {strides = array<i32>} : memref<640x512xf32, #tpu.memory_space<vmem>>, vector<16x16xf32>,
    %c0_286 = arith.constant 0 : index
    %c0_287 = arith.constant 0 : index
    %205 = vector.load %arg18[%c0_286, %c0_287] : memref<640x512xf32, #tpu.memory_space<vmem>>, vector<80x512xf32>
    %c0_288 = arith.constant 0 : index
    %c0_289 = arith.constant 0 : index
    %206 = vector.load %arg13[%c0_288, %c0_289] : memref<8x80xf32, #tpu.memory_space<vmem>>, vector<8x80xf32>
    %cst_290 = arith.constant dense<0.000000e+00> : vector<8x512xf32>
    %207 = tpu.matmul %206, %205, %cst_290 {dimension_numbers = #tpu.dot_dimension_numbers<[1], [0], [0], [1], [0, 0, 1, 1], [], []>} : vector<8x80xf32>, vector<80x512xf32>, vector<8x512xf32> -> vector<8x512xf32>
    %c0_291 = arith.constant 0 : index
    %c0_292 = arith.constant 0 : index
    %208 = vector.load %arg14[%c0_291, %c0_292] : memref<8x1xf32, #tpu.memory_space<vmem>>, vector<8x1xf32>
    %209 = vector.broadcast %208 : vector<8x1xf32> to vector<8x512xf32>
    %210 = arith.addf %207, %209 : vector<8x512xf32>
    %cst_293 = arith.constant 0.000000e+00 : f32
    %211 = vector.broadcast %cst_293 : f32 to vector<8x512xf32>
    %212 = arith.maximumf %210, %211 : vector<8x512xf32>
    %c0_294 = arith.constant 0 : index
    %c0_295 = arith.constant 0 : index
    %213 = vector.load %arg19[%c0_294, %c0_295] : memref<64x512xf32, #tpu.memory_space<vmem>>, vector<8x512xf32>
    tpu.vector_store %arg19[%c0_294, %c0_295], %212 {strides = array<i32>} : memref<64x512xf32, #tpu.memory_space<vmem>>, vector<8x512xf32>,
    %c0_296 = arith.constant 0 : index
    %c0_297 = arith.constant 0 : index
    %214 = vector.load %arg6[%c0_296, %c0_297] : memref<32x32xf32, #tpu.memory_space<vmem>>, vector<32x32xf32>
    %c0_298 = arith.constant 0 : index
    %c1_299 = arith.constant 1 : index
    %215 = vector.load %arg19[%c0_298, %c1_299] : memref<64x512xf32, #tpu.memory_space<vmem>>, vector<8x32xf32>
    %cst_300 = arith.constant dense<0.000000e+00> : vector<8x32xf32>
    %216 = tpu.matmul %215, %214, %cst_300 {dimension_numbers = #tpu.dot_dimension_numbers<[1], [0], [0], [1], [0, 0, 1, 1], [], []>} : vector<8x32xf32>, vector<32x32xf32>, vector<8x32xf32> -> vector<8x32xf32>
    %c0_301 = arith.constant 0 : index
    %c223 = arith.constant 223 : index
    %217 = vector.load %arg19[%c0_301, %c223] : memref<64x512xf32, #tpu.memory_space<vmem>>, vector<8x32xf32>
    %cst_302 = arith.constant dense<0.000000e+00> : vector<8x32xf32>
    %218 = tpu.matmul %217, %214, %cst_302 {dimension_numbers = #tpu.dot_dimension_numbers<[1], [0], [0], [1], [0, 0, 1, 1], [], []>} : vector<8x32xf32>, vector<32x32xf32>, vector<8x32xf32> -> vector<8x32xf32>
    %c0_303 = arith.constant 0 : index
    %c0_304 = arith.constant 0 : index
    %219 = vector.load %arg18[%c0_303, %c0_304] : memref<640x512xf32, #tpu.memory_space<vmem>>, vector<8x32xf32>
    tpu.vector_store %arg18[%c0_303, %c0_304], %216 {strides = array<i32>} : memref<640x512xf32, #tpu.memory_space<vmem>>, vector<8x32xf32>,
    %c0_305 = arith.constant 0 : index
    %c0_306 = arith.constant 0 : index
    %220 = vector.load %arg19[%c0_305, %c0_306] : memref<64x512xf32, #tpu.memory_space<vmem>>, vector<8x224xf32>
    %c0_307 = arith.constant 0 : index
    %c32_308 = arith.constant 32 : index
    %221 = vector.load %arg18[%c0_307, %c32_308] : memref<640x512xf32, #tpu.memory_space<vmem>>, vector<8x224xf32>
    tpu.vector_store %arg18[%c0_307, %c32_308], %220 {strides = array<i32>} : memref<640x512xf32, #tpu.memory_space<vmem>>, vector<8x224xf32>,
    %222 = vector.extract_strided_slice %216 {offsets = [0, 16], sizes = [8, 16], strides = [1, 1]} : vector<8x32xf32> to vector<8x16xf32>
    %c8_309 = arith.constant 8 : index
    %c0_310 = arith.constant 0 : index
    %223 = vector.load %arg18[%c8_309, %c0_310] : memref<640x512xf32, #tpu.memory_space<vmem>>, vector<8x16xf32>
    tpu.vector_store %arg18[%c8_309, %c0_310], %222 {strides = array<i32>} : memref<640x512xf32, #tpu.memory_space<vmem>>, vector<8x16xf32>,
    %c0_311 = arith.constant 0 : index
    %c0_312 = arith.constant 0 : index
    %224 = vector.load %arg19[%c0_311, %c0_312] : memref<64x512xf32, #tpu.memory_space<vmem>>, vector<8x240xf32>
    %c8_313 = arith.constant 8 : index
    %c16_314 = arith.constant 16 : index
    %225 = vector.load %arg18[%c8_313, %c16_314] : memref<640x512xf32, #tpu.memory_space<vmem>>, vector<8x240xf32>
    tpu.vector_store %arg18[%c8_313, %c16_314], %224 {strides = array<i32>} : memref<640x512xf32, #tpu.memory_space<vmem>>, vector<8x240xf32>,
    %c0_315 = arith.constant 0 : index
    %c0_316 = arith.constant 0 : index
    %226 = vector.load %arg19[%c0_315, %c0_316] : memref<64x512xf32, #tpu.memory_space<vmem>>, vector<8x256xf32>
    %c16_317 = arith.constant 16 : index
    %c0_318 = arith.constant 0 : index
    %227 = vector.load %arg18[%c16_317, %c0_318] : memref<640x512xf32, #tpu.memory_space<vmem>>, vector<8x256xf32>
    tpu.vector_store %arg18[%c16_317, %c0_318], %226 {strides = array<i32>} : memref<640x512xf32, #tpu.memory_space<vmem>>, vector<8x256xf32>,
    %c0_319 = arith.constant 0 : index
    %c16_320 = arith.constant 16 : index
    %228 = vector.load %arg19[%c0_319, %c16_320] : memref<64x512xf32, #tpu.memory_space<vmem>>, vector<8x240xf32>
    %c24 = arith.constant 24 : index
    %c0_321 = arith.constant 0 : index
    %229 = vector.load %arg18[%c24, %c0_321] : memref<640x512xf32, #tpu.memory_space<vmem>>, vector<8x240xf32>
    tpu.vector_store %arg18[%c24, %c0_321], %228 {strides = array<i32>} : memref<640x512xf32, #tpu.memory_space<vmem>>, vector<8x240xf32>,
    %230 = vector.extract_strided_slice %218 {offsets = [0, 0], sizes = [8, 16], strides = [1, 1]} : vector<8x32xf32> to vector<8x16xf32>
    %c24_322 = arith.constant 24 : index
    %c240_323 = arith.constant 240 : index
    %231 = vector.load %arg18[%c24_322, %c240_323] : memref<640x512xf32, #tpu.memory_space<vmem>>, vector<8x16xf32>
    tpu.vector_store %arg18[%c24_322, %c240_323], %230 {strides = array<i32>} : memref<640x512xf32, #tpu.memory_space<vmem>>, vector<8x16xf32>,
    %c0_324 = arith.constant 0 : index
    %c32_325 = arith.constant 32 : index
    %232 = vector.load %arg19[%c0_324, %c32_325] : memref<64x512xf32, #tpu.memory_space<vmem>>, vector<8x224xf32>
    %c32_326 = arith.constant 32 : index
    %c0_327 = arith.constant 0 : index
    %233 = vector.load %arg18[%c32_326, %c0_327] : memref<640x512xf32, #tpu.memory_space<vmem>>, vector<8x224xf32>
    tpu.vector_store %arg18[%c32_326, %c0_327], %232 {strides = array<i32>} : memref<640x512xf32, #tpu.memory_space<vmem>>, vector<8x224xf32>,
    %c32_328 = arith.constant 32 : index
    %c224 = arith.constant 224 : index
    %234 = vector.load %arg18[%c32_328, %c224] : memref<640x512xf32, #tpu.memory_space<vmem>>, vector<8x32xf32>
    tpu.vector_store %arg18[%c32_328, %c224], %218 {strides = array<i32>} : memref<640x512xf32, #tpu.memory_space<vmem>>, vector<8x32xf32>,
    %c0_329 = arith.constant 0 : index
    %c257_330 = arith.constant 257 : index
    %235 = vector.load %arg19[%c0_329, %c257_330] : memref<64x512xf32, #tpu.memory_space<vmem>>, vector<8x32xf32>
    %cst_331 = arith.constant dense<0.000000e+00> : vector<8x32xf32>
    %236 = tpu.matmul %235, %214, %cst_331 {dimension_numbers = #tpu.dot_dimension_numbers<[1], [0], [0], [1], [0, 0, 1, 1], [], []>} : vector<8x32xf32>, vector<32x32xf32>, vector<8x32xf32> -> vector<8x32xf32>
    %c0_332 = arith.constant 0 : index
    %c479 = arith.constant 479 : index
    %237 = vector.load %arg19[%c0_332, %c479] : memref<64x512xf32, #tpu.memory_space<vmem>>, vector<8x32xf32>
    %cst_333 = arith.constant dense<0.000000e+00> : vector<8x32xf32>
    %238 = tpu.matmul %237, %214, %cst_333 {dimension_numbers = #tpu.dot_dimension_numbers<[1], [0], [0], [1], [0, 0, 1, 1], [], []>} : vector<8x32xf32>, vector<32x32xf32>, vector<8x32xf32> -> vector<8x32xf32>
    %c0_334 = arith.constant 0 : index
    %c256_335 = arith.constant 256 : index
    %239 = vector.load %arg18[%c0_334, %c256_335] : memref<640x512xf32, #tpu.memory_space<vmem>>, vector<8x32xf32>
    tpu.vector_store %arg18[%c0_334, %c256_335], %236 {strides = array<i32>} : memref<640x512xf32, #tpu.memory_space<vmem>>, vector<8x32xf32>,
    %c0_336 = arith.constant 0 : index
    %c256_337 = arith.constant 256 : index
    %240 = vector.load %arg19[%c0_336, %c256_337] : memref<64x512xf32, #tpu.memory_space<vmem>>, vector<8x224xf32>
    %c0_338 = arith.constant 0 : index
    %c288 = arith.constant 288 : index
    %241 = vector.load %arg18[%c0_338, %c288] : memref<640x512xf32, #tpu.memory_space<vmem>>, vector<8x224xf32>
    tpu.vector_store %arg18[%c0_338, %c288], %240 {strides = array<i32>} : memref<640x512xf32, #tpu.memory_space<vmem>>, vector<8x224xf32>,
    %242 = vector.extract_strided_slice %236 {offsets = [0, 16], sizes = [8, 16], strides = [1, 1]} : vector<8x32xf32> to vector<8x16xf32>
    %c8_339 = arith.constant 8 : index
    %c256_340 = arith.constant 256 : index
    %243 = vector.load %arg18[%c8_339, %c256_340] : memref<640x512xf32, #tpu.memory_space<vmem>>, vector<8x16xf32>
    tpu.vector_store %arg18[%c8_339, %c256_340], %242 {strides = array<i32>} : memref<640x512xf32, #tpu.memory_space<vmem>>, vector<8x16xf32>,
    %c0_341 = arith.constant 0 : index
    %c256_342 = arith.constant 256 : index
    %244 = vector.load %arg19[%c0_341, %c256_342] : memref<64x512xf32, #tpu.memory_space<vmem>>, vector<8x240xf32>
    %c8_343 = arith.constant 8 : index
    %c272_344 = arith.constant 272 : index
    %245 = vector.load %arg18[%c8_343, %c272_344] : memref<640x512xf32, #tpu.memory_space<vmem>>, vector<8x240xf32>
    tpu.vector_store %arg18[%c8_343, %c272_344], %244 {strides = array<i32>} : memref<640x512xf32, #tpu.memory_space<vmem>>, vector<8x240xf32>,
    %c0_345 = arith.constant 0 : index
    %c256_346 = arith.constant 256 : index
    %246 = vector.load %arg19[%c0_345, %c256_346] : memref<64x512xf32, #tpu.memory_space<vmem>>, vector<8x256xf32>
    %c16_347 = arith.constant 16 : index
    %c256_348 = arith.constant 256 : index
    %247 = vector.load %arg18[%c16_347, %c256_348] : memref<640x512xf32, #tpu.memory_space<vmem>>, vector<8x256xf32>
    tpu.vector_store %arg18[%c16_347, %c256_348], %246 {strides = array<i32>} : memref<640x512xf32, #tpu.memory_space<vmem>>, vector<8x256xf32>,
    %c0_349 = arith.constant 0 : index
    %c272_350 = arith.constant 272 : index
    %248 = vector.load %arg19[%c0_349, %c272_350] : memref<64x512xf32, #tpu.memory_space<vmem>>, vector<8x240xf32>
    %c24_351 = arith.constant 24 : index
    %c256_352 = arith.constant 256 : index
    %249 = vector.load %arg18[%c24_351, %c256_352] : memref<640x512xf32, #tpu.memory_space<vmem>>, vector<8x240xf32>
    tpu.vector_store %arg18[%c24_351, %c256_352], %248 {strides = array<i32>} : memref<640x512xf32, #tpu.memory_space<vmem>>, vector<8x240xf32>,
    %250 = vector.extract_strided_slice %238 {offsets = [0, 0], sizes = [8, 16], strides = [1, 1]} : vector<8x32xf32> to vector<8x16xf32>
    %c24_353 = arith.constant 24 : index
    %c496_354 = arith.constant 496 : index
    %251 = vector.load %arg18[%c24_353, %c496_354] : memref<640x512xf32, #tpu.memory_space<vmem>>, vector<8x16xf32>
    tpu.vector_store %arg18[%c24_353, %c496_354], %250 {strides = array<i32>} : memref<640x512xf32, #tpu.memory_space<vmem>>, vector<8x16xf32>,
    %c0_355 = arith.constant 0 : index
    %c288_356 = arith.constant 288 : index
    %252 = vector.load %arg19[%c0_355, %c288_356] : memref<64x512xf32, #tpu.memory_space<vmem>>, vector<8x224xf32>
    %c32_357 = arith.constant 32 : index
    %c256_358 = arith.constant 256 : index
    %253 = vector.load %arg18[%c32_357, %c256_358] : memref<640x512xf32, #tpu.memory_space<vmem>>, vector<8x224xf32>
    tpu.vector_store %arg18[%c32_357, %c256_358], %252 {strides = array<i32>} : memref<640x512xf32, #tpu.memory_space<vmem>>, vector<8x224xf32>,
    %c32_359 = arith.constant 32 : index
    %c480 = arith.constant 480 : index
    %254 = vector.load %arg18[%c32_359, %c480] : memref<640x512xf32, #tpu.memory_space<vmem>>, vector<8x32xf32>
    tpu.vector_store %arg18[%c32_359, %c480], %238 {strides = array<i32>} : memref<640x512xf32, #tpu.memory_space<vmem>>, vector<8x32xf32>,
    %c0_360 = arith.constant 0 : index
    %c0_361 = arith.constant 0 : index
    %255 = vector.load %arg18[%c0_360, %c0_361] : memref<640x512xf32, #tpu.memory_space<vmem>>, vector<40x512xf32>
    %c0_362 = arith.constant 0 : index
    %c0_363 = arith.constant 0 : index
    %256 = vector.load %arg15[%c0_362, %c0_363] : memref<1x40xf32, #tpu.memory_space<vmem>>, vector<1x40xf32>
    %cst_364 = arith.constant dense<0.000000e+00> : vector<1x512xf32>
    %257 = tpu.matmul %256, %255, %cst_364 {dimension_numbers = #tpu.dot_dimension_numbers<[1], [0], [0], [1], [0, 0, 1, 1], [], []>} : vector<1x40xf32>, vector<40x512xf32>, vector<1x512xf32> -> vector<1x512xf32>
    %c0_365 = arith.constant 0 : index
    %c0_366 = arith.constant 0 : index
    %258 = vector.load %arg16[%c0_365, %c0_366] : memref<1x1xf32, #tpu.memory_space<vmem>>, vector<1x1xf32>
    %259 = vector.broadcast %258 : vector<1x1xf32> to vector<1x512xf32>
    %260 = arith.addf %257, %259 : vector<1x512xf32>
    %261 = vector.extract_strided_slice %260 {offsets = [0, 0], sizes = [1, 256], strides = [1, 1]} : vector<1x512xf32> to vector<1x256xf32>
    %262 = vector.extract_strided_slice %261 {offsets = [0, 0], sizes = [1, 1], strides = [1, 1]} : vector<1x256xf32> to vector<1x1xf32>
    %263 = vector.extract_strided_slice %261 {offsets = [0, 0], sizes = [1, 255], strides = [1, 1]} : vector<1x256xf32> to vector<1x255xf32>
    %264 = tpu.concatenate %262, %263 in 1 : vector<1x1xf32>, vector<1x255xf32> -> vector<1x256xf32>
    %265 = vector.extract_strided_slice %261 {offsets = [0, 1], sizes = [1, 255], strides = [1, 1]} : vector<1x256xf32> to vector<1x255xf32>
    %266 = vector.extract_strided_slice %261 {offsets = [0, 255], sizes = [1, 1], strides = [1, 1]} : vector<1x256xf32> to vector<1x1xf32>
    %267 = tpu.concatenate %265, %266 in 1 : vector<1x255xf32>, vector<1x1xf32> -> vector<1x256xf32>
    %cst_367 = arith.constant 2.500000e-01 : f32
    %268 = vector.broadcast %cst_367 : f32 to vector<1x256xf32>
    %269 = arith.mulf %268, %264 : vector<1x256xf32>
    %cst_368 = arith.constant 7.500000e-01 : f32
    %270 = vector.broadcast %cst_368 : f32 to vector<1x256xf32>
    %271 = arith.mulf %270, %261 : vector<1x256xf32>
    %272 = arith.addf %269, %271 : vector<1x256xf32>
    %cst_369 = arith.constant 7.500000e-01 : f32
    %273 = vector.broadcast %cst_369 : f32 to vector<1x256xf32>
    %274 = arith.mulf %273, %261 : vector<1x256xf32>
    %cst_370 = arith.constant 2.500000e-01 : f32
    %275 = vector.broadcast %cst_370 : f32 to vector<1x256xf32>
    %276 = arith.mulf %275, %267 : vector<1x256xf32>
    %277 = arith.addf %274, %276 : vector<1x256xf32>
    %278 = tpu.concatenate %272, %277 in 0 : vector<1x256xf32>, vector<1x256xf32> -> vector<2x256xf32>
    %c0_371 = arith.constant 0 : index
    %c0_372 = arith.constant 0 : index
    %c0_373 = arith.constant 0 : index
    %279 = vector.load %arg17[%c0_371, %c0_372, %c0_373] : memref<2x2x256xf32, #tpu.memory_space<vmem>>, vector<1x2x256xf32>
    %280 = vector.shape_cast %279 : vector<1x2x256xf32> to vector<2x256xf32>
    %281 = vector.shape_cast %278 : vector<2x256xf32> to vector<1x2x256xf32>
    tpu.vector_store %arg17[%c0_371, %c0_372, %c0_373], %281 {strides = array<i32>} : memref<2x2x256xf32, #tpu.memory_space<vmem>>, vector<1x2x256xf32>,
    %282 = vector.extract_strided_slice %260 {offsets = [0, 256], sizes = [1, 256], strides = [1, 1]} : vector<1x512xf32> to vector<1x256xf32>
    %283 = vector.extract_strided_slice %282 {offsets = [0, 0], sizes = [1, 1], strides = [1, 1]} : vector<1x256xf32> to vector<1x1xf32>
    %284 = vector.extract_strided_slice %282 {offsets = [0, 0], sizes = [1, 255], strides = [1, 1]} : vector<1x256xf32> to vector<1x255xf32>
    %285 = tpu.concatenate %283, %284 in 1 : vector<1x1xf32>, vector<1x255xf32> -> vector<1x256xf32>
    %286 = vector.extract_strided_slice %282 {offsets = [0, 1], sizes = [1, 255], strides = [1, 1]} : vector<1x256xf32> to vector<1x255xf32>
    %287 = vector.extract_strided_slice %282 {offsets = [0, 255], sizes = [1, 1], strides = [1, 1]} : vector<1x256xf32> to vector<1x1xf32>
    %288 = tpu.concatenate %286, %287 in 1 : vector<1x255xf32>, vector<1x1xf32> -> vector<1x256xf32>
    %cst_374 = arith.constant 2.500000e-01 : f32
    %289 = vector.broadcast %cst_374 : f32 to vector<1x256xf32>
    %290 = arith.mulf %289, %285 : vector<1x256xf32>
    %cst_375 = arith.constant 7.500000e-01 : f32
    %291 = vector.broadcast %cst_375 : f32 to vector<1x256xf32>
    %292 = arith.mulf %291, %282 : vector<1x256xf32>
    %293 = arith.addf %290, %292 : vector<1x256xf32>
    %cst_376 = arith.constant 7.500000e-01 : f32
    %294 = vector.broadcast %cst_376 : f32 to vector<1x256xf32>
    %295 = arith.mulf %294, %282 : vector<1x256xf32>
    %cst_377 = arith.constant 2.500000e-01 : f32
    %296 = vector.broadcast %cst_377 : f32 to vector<1x256xf32>
    %297 = arith.mulf %296, %288 : vector<1x256xf32>
    %298 = arith.addf %295, %297 : vector<1x256xf32>
    %299 = tpu.concatenate %293, %298 in 0 : vector<1x256xf32>, vector<1x256xf32> -> vector<2x256xf32>
    %c1_378 = arith.constant 1 : index
    %c0_379 = arith.constant 0 : index
    %c0_380 = arith.constant 0 : index
    %300 = vector.load %arg17[%c1_378, %c0_379, %c0_380] : memref<2x2x256xf32, #tpu.memory_space<vmem>>, vector<1x2x256xf32>
    %301 = vector.shape_cast %300 : vector<1x2x256xf32> to vector<2x256xf32>
    %302 = vector.shape_cast %299 : vector<2x256xf32> to vector<1x2x256xf32>
    tpu.vector_store %arg17[%c1_378, %c0_379, %c0_380], %302 {strides = array<i32>} : memref<2x2x256xf32, #tpu.memory_space<vmem>>, vector<1x2x256xf32>,
    return
  }
  func.func @transform_0(%arg0: i32) -> (i32, i32, i32) {
    %c0_i32 = arith.constant 0 : i32
    %c0_i32_0 = arith.constant 0 : i32
    %c0_i32_1 = arith.constant 0 : i32
    return %arg0, %c0_i32, %c0_i32_0 : i32, i32, i32
  }
  func.func @transform_1(%arg0: i32) -> (i32, i32) {
    %c0_i32 = arith.constant 0 : i32
    %c0_i32_0 = arith.constant 0 : i32
    %c0_i32_1 = arith.constant 0 : i32
    return %c0_i32, %c0_i32_0 : i32, i32
  }
  func.func @transform_2(%arg0: i32) -> (i32, i32) {
    %c0_i32 = arith.constant 0 : i32
    %c0_i32_0 = arith.constant 0 : i32
    %c0_i32_1 = arith.constant 0 : i32
    return %c0_i32, %c0_i32_0 : i32, i32
  }
  func.func @transform_3(%arg0: i32) -> (i32, i32) {
    %c0_i32 = arith.constant 0 : i32
    %c0_i32_0 = arith.constant 0 : i32
    %c0_i32_1 = arith.constant 0 : i32
    return %c0_i32, %c0_i32_0 : i32, i32
  }
  func.func @transform_4(%arg0: i32) -> (i32, i32) {
    %c0_i32 = arith.constant 0 : i32
    %c0_i32_0 = arith.constant 0 : i32
    %c0_i32_1 = arith.constant 0 : i32
    return %c0_i32, %c0_i32_0 : i32, i32
  }
  func.func @transform_5(%arg0: i32) -> (i32, i32) {
    %c0_i32 = arith.constant 0 : i32
    %c0_i32_0 = arith.constant 0 : i32
    %c0_i32_1 = arith.constant 0 : i32
    return %c0_i32, %c0_i32_0 : i32, i32
  }
  func.func @transform_6(%arg0: i32) -> (i32, i32) {
    %c0_i32 = arith.constant 0 : i32
    %c0_i32_0 = arith.constant 0 : i32
    %c0_i32_1 = arith.constant 0 : i32
    return %c0_i32, %c0_i32_0 : i32, i32
  }
  func.func @transform_7(%arg0: i32) -> (i32, i32) {
    %c0_i32 = arith.constant 0 : i32
    %c0_i32_0 = arith.constant 0 : i32
    %c0_i32_1 = arith.constant 0 : i32
    return %c0_i32, %c0_i32_0 : i32, i32
  }
  func.func @transform_8(%arg0: i32) -> (i32, i32) {
    %c0_i32 = arith.constant 0 : i32
    %c0_i32_0 = arith.constant 0 : i32
    %c0_i32_1 = arith.constant 0 : i32
    return %c0_i32, %c0_i32_0 : i32, i32
  }
  func.func @transform_9(%arg0: i32) -> (i32, i32) {
    %c0_i32 = arith.constant 0 : i32
    %c0_i32_0 = arith.constant 0 : i32
    %c0_i32_1 = arith.constant 0 : i32
    return %c0_i32, %c0_i32_0 : i32, i32
  }
  func.func @transform_10(%arg0: i32) -> (i32, i32) {
    %c0_i32 = arith.constant 0 : i32
    %c0_i32_0 = arith.constant 0 : i32
    %c0_i32_1 = arith.constant 0 : i32
    return %c0_i32, %c0_i32_0 : i32, i32
  }
  func.func @transform_11(%arg0: i32) -> (i32, i32) {
    %c0_i32 = arith.constant 0 : i32
    %c0_i32_0 = arith.constant 0 : i32
    %c0_i32_1 = arith.constant 0 : i32
    return %c0_i32, %c0_i32_0 : i32, i32
  }
  func.func @transform_12(%arg0: i32) -> (i32, i32) {
    %c0_i32 = arith.constant 0 : i32
    %c0_i32_0 = arith.constant 0 : i32
    %c0_i32_1 = arith.constant 0 : i32
    return %c0_i32, %c0_i32_0 : i32, i32
  }
  func.func @transform_13(%arg0: i32) -> (i32, i32) {
    %c0_i32 = arith.constant 0 : i32
    %c0_i32_0 = arith.constant 0 : i32
    %c0_i32_1 = arith.constant 0 : i32
    return %c0_i32, %c0_i32_0 : i32, i32
  }
  func.func @transform_14(%arg0: i32) -> (i32, i32) {
    %c0_i32 = arith.constant 0 : i32
    %c0_i32_0 = arith.constant 0 : i32
    %c0_i32_1 = arith.constant 0 : i32
    return %c0_i32, %c0_i32_0 : i32, i32
  }
  func.func @transform_15(%arg0: i32) -> (i32, i32) {
    %c0_i32 = arith.constant 0 : i32
    %c0_i32_0 = arith.constant 0 : i32
    %c0_i32_1 = arith.constant 0 : i32
    return %c0_i32, %c0_i32_0 : i32, i32
  }
  func.func @transform_16(%arg0: i32) -> (i32, i32, i32) {
    %c0_i32 = arith.constant 0 : i32
    %c0_i32_0 = arith.constant 0 : i32
    %c0_i32_1 = arith.constant 0 : i32
    return %arg0, %c0_i32, %c0_i32_0 : i32, i32, i32
  }
}

</mosaic_0001>

<llo_original>
// kernel: event_detector_forward.1
$region0: #{event_detector_forward.1}
  #allocation0 [shape = 'u32[]', space=smem, size = 0x4, offset = 0x4, fixed_abs, tag = 'smem constant byte address 0x4 - core index']
  #allocation1 [shape = 'u32[144,128]{1,0:T(1,128)}', space=vmem, size = 0x12000, scoped, tag = 'internal scratch']
  #allocation2 [shape = 'f32[640,512]{1,0:T(8,128)}', space=vmem, size = 0x140000, scoped, tag = 'scratch operand']
  #allocation3 [shape = 'f32[64,512]{1,0:T(8,128)}', space=vmem, size = 0x20000, scoped, tag = 'scratch operand']
  #allocation4 [shape = 'f32[1,1]{1,0:T(1,128)S(1)}', space=vmem, size = 0x200, scoped, tag = 'scoped memory for event_detector_forward.1']
  %s0 = inlined_call_operand.vmem [shape: f32[4,128,256], index: 0, kind: input, shape index: {}]
  %s1 = inlined_call_operand.vmem [shape: f32[2,2], index: 1, kind: input, shape index: {}]
  %s2 = inlined_call_operand.vmem [shape: f32[4,4], index: 2, kind: input, shape index: {}]
  %s3 = inlined_call_operand.vmem [shape: f32[8,8], index: 3, kind: input, shape index: {}]
  %s4 = inlined_call_operand.vmem [shape: f32[16,16], index: 4, kind: input, shape index: {}]
  %s5 = inlined_call_operand.vmem [shape: f32[32,32], index: 5, kind: input, shape index: {}]
  %s6 = inlined_call_operand.vmem [shape: f32[64,640], index: 6, kind: input, shape index: {}]
  %s7 = inlined_call_operand.vmem [shape: f32[64,1], index: 7, kind: input, shape index: {}]
  %s8 = inlined_call_operand.vmem [shape: f32[32,320], index: 8, kind: input, shape index: {}]
  %s9 = inlined_call_operand.vmem [shape: f32[32,1], index: 9, kind: input, shape index: {}]
  %s10 = inlined_call_operand.vmem [shape: f32[16,160], index: 10, kind: input, shape index: {}]
  %s11 = inlined_call_operand.vmem [shape: f32[16,1], index: 11, kind: input, shape index: {}]
  %s12 = inlined_call_operand.vmem [shape: f32[8,80], index: 12, kind: input, shape index: {}]
  %s13 = inlined_call_operand.vmem [shape: f32[8,1], index: 13, kind: input, shape index: {}]
  %s14 = inlined_call_operand.vmem [shape: f32[1,40], index: 14, kind: input, shape index: {}]
  %s15 = inlined_call_operand.<no memory space> [shape: f32[1,1], index: 15, kind: input, shape index: {}]
  %s16 = inlined_call_operand.vmem [shape: f32[4,2,256], index: 16, kind: output, shape index: {}]
  %s17 = sld [smem:[#allocation0]]
  $region97: #{event_detector_forward.1} parent=0
    _
  %s19 = ssub.s32 1, %s17
  %s20 = scalar_select 0, %s19, %s17
  %v21 = vstv %s15
  %22 = vst [vmem:[#allocation4] sm:$0x1] %v21
  loop: start=0, step=1, limit=4
  $region2: #{event_detector_forward.1} parent=0 // loop_pre_header
    _
  $region3: #{event_detector_forward.1} parent=0 // loop_header
    %s24 = sphi 0, %s28
    %p25 = scmp.ge.s32.totalorder %s24, 4
    %s34 = sphi 0, %s36
    %s37 = sphi 0, %s34
    %s38 = sphi 0, %s37
    %s54 = sphi 0, %s38
    %s58 = sphi 0, %s58
    %s60 = sphi 0, %s58
    %s61 = sphi 0, %s60
    %s75 = sphi 0, %s61
    %s79 = sphi 0, %s79
    %s81 = sphi 0, %s79
    %s82 = sphi 0, %s81
    %s96 = sphi 0, %s82
    %s100 = sphi 0, %s100
    %s102 = sphi 0, %s100
    %s103 = sphi 0, %s102
    %s117 = sphi 0, %s103
    %s121 = sphi 0, %s121
    %s123 = sphi 0, %s121
    %s124 = sphi 0, %s123
    %s138 = sphi 0, %s124
    %s142 = sphi 0, %s142
    %s144 = sphi 0, %s142
    %s145 = sphi 0, %s144
    %s159 = sphi 0, %s145
    %s163 = sphi 0, %s163
    %s165 = sphi 0, %s163
    %s166 = sphi 0, %s165
    %s180 = sphi 0, %s166
    %s184 = sphi 0, %s184
    %s186 = sphi 0, %s184
    %s187 = sphi 0, %s186
    %s201 = sphi 0, %s187
    %s205 = sphi 0, %s205
    %s207 = sphi 0, %s205
    %s208 = sphi 0, %s207
    %s222 = sphi 0, %s208
    %s226 = sphi 0, %s226
    %s228 = sphi 0, %s226
    %s229 = sphi 0, %s228
    %s243 = sphi 0, %s229
    %s247 = sphi 0, %s247
    %s249 = sphi 0, %s247
    %s250 = sphi 0, %s249
    %s264 = sphi 0, %s250
    %s268 = sphi 0, %s268
    %s270 = sphi 0, %s268
    %s271 = sphi 0, %s270
    %s285 = sphi 0, %s271
    %s289 = sphi 0, %s289
    %s291 = sphi 0, %s289
    %s292 = sphi 0, %s291
    %s306 = sphi 0, %s292
    %s310 = sphi 0, %s310
    %s312 = sphi 0, %s310
    %s313 = sphi 0, %s312
    %s327 = sphi 0, %s313
    %s331 = sphi 0, %s331
    %s333 = sphi 0, %s331
    %s334 = sphi 0, %s333
    %s348 = sphi 0, %s334
    %s352 = sphi 0, %s352
    %s354 = sphi 0, %s352
    %s355 = sphi 0, %s354
    %s369 = sphi 0, %s355
    %s375 = sphi 0, %s377
    %s378 = sphi 0, %s375
    %s379 = sphi 0, %s378
    %s395 = sphi 0, %s379
  $region4: #{event_detector_forward.1} parent=0 // loop_header_branch
    %27 = sbr.rel (%p25) target = $region8
  $region5: #{event_detector_forward.1} parent=0 // loop_body
    %s29 = ssub.s32 %s24, 1
    %s30 = ssub.s32 %s24, 2
    %s31 = sadd.s32 %s24, 1
    %s32 = ssub.s32 %s24, %s31
    %p33 = scmp.eq.s32.totalorder %s32, 0
    %s35 = sadd.s32 %s34, 1
    %s36 = scalar_select %p33, %s34, %s35
    %p39 = pneg %p33
    %p40 = scmp.eq.s32.totalorder %s24, 1
    %p41 = por %p39, %p40
    %p42 = scmp.ne.s32.totalorder %s34, %s37
    %p43 = scmp.eq.s32.totalorder %s24, 0
    %p44 = por %p42, %p43
    %p45 = scmp.ne.s32.totalorder %s34, %s37
    %p46 = scmp.eq.s32.totalorder %s29, 1
    %p47 = por %p45, %p46
    %p48 = scmp.ne.s32.totalorder %s37, %s38
    %p49 = scmp.eq.s32.totalorder %s29, 0
    %p50 = por %p48, %p49
    %p51 = scmp.ne.s32.totalorder %s37, %s38
    %p52 = scmp.eq.s32.totalorder %s30, 1
    %p53 = por %p51, %p52
    %p55 = scmp.ne.s32.totalorder %s38, %s54
    %p56 = scmp.eq.s32.totalorder %s30, 0
    %p57 = por %p55, %p56
    %s59 = sadd.s32 %s58, 1
    %p62 = scmp.eq.s32.totalorder %s24, 1
    %p63 = scmp.ne.s32.totalorder %s58, %s60
    %p64 = scmp.eq.s32.totalorder %s24, 0
    %p65 = por %p63, %p64
    %p66 = scmp.ne.s32.totalorder %s58, %s60
    %p67 = scmp.eq.s32.totalorder %s29, 1
    %p68 = por %p66, %p67
    %p69 = scmp.ne.s32.totalorder %s60, %s61
    %p70 = scmp.eq.s32.totalorder %s29, 0
    %p71 = por %p69, %p70
    %p72 = scmp.ne.s32.totalorder %s60, %s61
    %p73 = scmp.eq.s32.totalorder %s30, 1
    %p74 = por %p72, %p73
    %p76 = scmp.ne.s32.totalorder %s61, %s75
    %p77 = scmp.eq.s32.totalorder %s30, 0
    %p78 = por %p76, %p77
    %s80 = sadd.s32 %s79, 1
    %p83 = scmp.eq.s32.totalorder %s24, 1
    %p84 = scmp.ne.s32.totalorder %s79, %s81
    %p85 = scmp.eq.s32.totalorder %s24, 0
    %p86 = por %p84, %p85
    %p87 = scmp.ne.s32.totalorder %s79, %s81
    %p88 = scmp.eq.s32.totalorder %s29, 1
    %p89 = por %p87, %p88
    %p90 = scmp.ne.s32.totalorder %s81, %s82
    %p91 = scmp.eq.s32.totalorder %s29, 0
    %p92 = por %p90, %p91
    %p93 = scmp.ne.s32.totalorder %s81, %s82
    %p94 = scmp.eq.s32.totalorder %s30, 1
    %p95 = por %p93, %p94
    %p97 = scmp.ne.s32.totalorder %s82, %s96
    %p98 = scmp.eq.s32.totalorder %s30, 0
    %p99 = por %p97, %p98
    %s101 = sadd.s32 %s100, 1
    %p104 = scmp.eq.s32.totalorder %s24, 1
    %p105 = scmp.ne.s32.totalorder %s100, %s102
    %p106 = scmp.eq.s32.totalorder %s24, 0
    %p107 = por %p105, %p106
    %p108 = scmp.ne.s32.totalorder %s100, %s102
    %p109 = scmp.eq.s32.totalorder %s29, 1
    %p110 = por %p108, %p109
    %p111 = scmp.ne.s32.totalorder %s102, %s103
    %p112 = scmp.eq.s32.totalorder %s29, 0
    %p113 = por %p111, %p112
    %p114 = scmp.ne.s32.totalorder %s102, %s103
    %p115 = scmp.eq.s32.totalorder %s30, 1
    %p116 = por %p114, %p115
    %p118 = scmp.ne.s32.totalorder %s103, %s117
    %p119 = scmp.eq.s32.totalorder %s30, 0
    %p120 = por %p118, %p119
    %s122 = sadd.s32 %s121, 1
    %p125 = scmp.eq.s32.totalorder %s24, 1
    %p126 = scmp.ne.s32.totalorder %s121, %s123
    %p127 = scmp.eq.s32.totalorder %s24, 0
    %p128 = por %p126, %p127
    %p129 = scmp.ne.s32.totalorder %s121, %s123
    %p130 = scmp.eq.s32.totalorder %s29, 1
    %p131 = por %p129, %p130
    %p132 = scmp.ne.s32.totalorder %s123, %s124
    %p133 = scmp.eq.s32.totalorder %s29, 0
    %p134 = por %p132, %p133
    %p135 = scmp.ne.s32.totalorder %s123, %s124
    %p136 = scmp.eq.s32.totalorder %s30, 1
    %p137 = por %p135, %p136
    %p139 = scmp.ne.s32.totalorder %s124, %s138
    %p140 = scmp.eq.s32.totalorder %s30, 0
    %p141 = por %p139, %p140
    %s143 = sadd.s32 %s142, 1
    %p146 = scmp.eq.s32.totalorder %s24, 1
    %p147 = scmp.ne.s32.totalorder %s142, %s144
    %p148 = scmp.eq.s32.totalorder %s24, 0
    %p149 = por %p147, %p148
    %p150 = scmp.ne.s32.totalorder %s142, %s144
    %p151 = scmp.eq.s32.totalorder %s29, 1
    %p152 = por %p150, %p151
    %p153 = scmp.ne.s32.totalorder %s144, %s145
    %p154 = scmp.eq.s32.totalorder %s29, 0
    %p155 = por %p153, %p154
    %p156 = scmp.ne.s32.totalorder %s144, %s145
    %p157 = scmp.eq.s32.totalorder %s30, 1
    %p158 = por %p156, %p157
    %p160 = scmp.ne.s32.totalorder %s145, %s159
    %p161 = scmp.eq.s32.totalorder %s30, 0
    %p162 = por %p160, %p161
    %s164 = sadd.s32 %s163, 1
    %p167 = scmp.eq.s32.totalorder %s24, 1
    %p168 = scmp.ne.s32.totalorder %s163, %s165
    %p169 = scmp.eq.s32.totalorder %s24, 0
    %p170 = por %p168, %p169
    %p171 = scmp.ne.s32.totalorder %s163, %s165
    %p172 = scmp.eq.s32.totalorder %s29, 1
    %p173 = por %p171, %p172
    %p174 = scmp.ne.s32.totalorder %s165, %s166
    %p175 = scmp.eq.s32.totalorder %s29, 0
    %p176 = por %p174, %p175
    %p177 = scmp.ne.s32.totalorder %s165, %s166
    %p178 = scmp.eq.s32.totalorder %s30, 1
    %p179 = por %p177, %p178
    %p181 = scmp.ne.s32.totalorder %s166, %s180
    %p182 = scmp.eq.s32.totalorder %s30, 0
    %p183 = por %p181, %p182
    %s185 = sadd.s32 %s184, 1
    %p188 = scmp.eq.s32.totalorder %s24, 1
    %p189 = scmp.ne.s32.totalorder %s184, %s186
    %p190 = scmp.eq.s32.totalorder %s24, 0
    %p191 = por %p189, %p190
    %p192 = scmp.ne.s32.totalorder %s184, %s186
    %p193 = scmp.eq.s32.totalorder %s29, 1
    %p194 = por %p192, %p193
    %p195 = scmp.ne.s32.totalorder %s186, %s187
    %p196 = scmp.eq.s32.totalorder %s29, 0
    %p197 = por %p195, %p196
    %p198 = scmp.ne.s32.totalorder %s186, %s187
    %p199 = scmp.eq.s32.totalorder %s30, 1
    %p200 = por %p198, %p199
    %p202 = scmp.ne.s32.totalorder %s187, %s201
    %p203 = scmp.eq.s32.totalorder %s30, 0
    %p204 = por %p202, %p203
    %s206 = sadd.s32 %s205, 1
    %p209 = scmp.eq.s32.totalorder %s24, 1
    %p210 = scmp.ne.s32.totalorder %s205, %s207
    %p211 = scmp.eq.s32.totalorder %s24, 0
    %p212 = por %p210, %p211
    %p213 = scmp.ne.s32.totalorder %s205, %s207
    %p214 = scmp.eq.s32.totalorder %s29, 1
    %p215 = por %p213, %p214
    %p216 = scmp.ne.s32.totalorder %s207, %s208
    %p217 = scmp.eq.s32.totalorder %s29, 0
    %p218 = por %p216, %p217
    %p219 = scmp.ne.s32.totalorder %s207, %s208
    %p220 = scmp.eq.s32.totalorder %s30, 1
    %p221 = por %p219, %p220
    %p223 = scmp.ne.s32.totalorder %s208, %s222
    %p224 = scmp.eq.s32.totalorder %s30, 0
    %p225 = por %p223, %p224
    %s227 = sadd.s32 %s226, 1
    %p230 = scmp.eq.s32.totalorder %s24, 1
    %p231 = scmp.ne.s32.totalorder %s226, %s228
    %p232 = scmp.eq.s32.totalorder %s24, 0
    %p233 = por %p231, %p232
    %p234 = scmp.ne.s32.totalorder %s226, %s228
    %p235 = scmp.eq.s32.totalorder %s29, 1
    %p236 = por %p234, %p235
    %p237 = scmp.ne.s32.totalorder %s228, %s229
    %p238 = scmp.eq.s32.totalorder %s29, 0
    %p239 = por %p237, %p238
    %p240 = scmp.ne.s32.totalorder %s228, %s229
    %p241 = scmp.eq.s32.totalorder %s30, 1
    %p242 = por %p240, %p241
    %p244 = scmp.ne.s32.totalorder %s229, %s243
    %p245 = scmp.eq.s32.totalorder %s30, 0
    %p246 = por %p244, %p245
    %s248 = sadd.s32 %s247, 1
    %p251 = scmp.eq.s32.totalorder %s24, 1
    %p252 = scmp.ne.s32.totalorder %s247, %s249
    %p253 = scmp.eq.s32.totalorder %s24, 0
    %p254 = por %p252, %p253
    %p255 = scmp.ne.s32.totalorder %s247, %s249
    %p256 = scmp.eq.s32.totalorder %s29, 1
    %p257 = por %p255, %p256
    %p258 = scmp.ne.s32.totalorder %s249, %s250
    %p259 = scmp.eq.s32.totalorder %s29, 0
    %p260 = por %p258, %p259
    %p261 = scmp.ne.s32.totalorder %s249, %s250
    %p262 = scmp.eq.s32.totalorder %s30, 1
    %p263 = por %p261, %p262
    %p265 = scmp.ne.s32.totalorder %s250, %s264
    %p266 = scmp.eq.s32.totalorder %s30, 0
    %p267 = por %p265, %p266
    %s269 = sadd.s32 %s268, 1
    %p272 = scmp.eq.s32.totalorder %s24, 1
    %p273 = scmp.ne.s32.totalorder %s268, %s270
    %p274 = scmp.eq.s32.totalorder %s24, 0
    %p275 = por %p273, %p274
    %p276 = scmp.ne.s32.totalorder %s268, %s270
    %p277 = scmp.eq.s32.totalorder %s29, 1
    %p278 = por %p276, %p277
    %p279 = scmp.ne.s32.totalorder %s270, %s271
    %p280 = scmp.eq.s32.totalorder %s29, 0
    %p281 = por %p279, %p280
    %p282 = scmp.ne.s32.totalorder %s270, %s271
    %p283 = scmp.eq.s32.totalorder %s30, 1
    %p284 = por %p282, %p283
    %p286 = scmp.ne.s32.totalorder %s271, %s285
    %p287 = scmp.eq.s32.totalorder %s30, 0
    %p288 = por %p286, %p287
    %s290 = sadd.s32 %s289, 1
    %p293 = scmp.eq.s32.totalorder %s24, 1
    %p294 = scmp.ne.s32.totalorder %s289, %s291
    %p295 = scmp.eq.s32.totalorder %s24, 0
    %p296 = por %p294, %p295
    %p297 = scmp.ne.s32.totalorder %s289, %s291
    %p298 = scmp.eq.s32.totalorder %s29, 1
    %p299 = por %p297, %p298
    %p300 = scmp.ne.s32.totalorder %s291, %s292
    %p301 = scmp.eq.s32.totalorder %s29, 0
    %p302 = por %p300, %p301
    %p303 = scmp.ne.s32.totalorder %s291, %s292
    %p304 = scmp.eq.s32.totalorder %s30, 1
    %p305 = por %p303, %p304
    %p307 = scmp.ne.s32.totalorder %s292, %s306
    %p308 = scmp.eq.s32.totalorder %s30, 0
    %p309 = por %p307, %p308
    %s311 = sadd.s32 %s310, 1
    %p314 = scmp.eq.s32.totalorder %s24, 1
    %p315 = scmp.ne.s32.totalorder %s310, %s312
    %p316 = scmp.eq.s32.totalorder %s24, 0
    %p317 = por %p315, %p316
    %p318 = scmp.ne.s32.totalorder %s310, %s312
    %p319 = scmp.eq.s32.totalorder %s29, 1
    %p320 = por %p318, %p319
    %p321 = scmp.ne.s32.totalorder %s312, %s313
    %p322 = scmp.eq.s32.totalorder %s29, 0
    %p323 = por %p321, %p322
    %p324 = scmp.ne.s32.totalorder %s312, %s313
    %p325 = scmp.eq.s32.totalorder %s30, 1
    %p326 = por %p324, %p325
    %p328 = scmp.ne.s32.totalorder %s313, %s327
    %p329 = scmp.eq.s32.totalorder %s30, 0
    %p330 = por %p328, %p329
    %s332 = sadd.s32 %s331, 1
    %p335 = scmp.eq.s32.totalorder %s24, 1
    %p336 = scmp.ne.s32.totalorder %s331, %s333
    %p337 = scmp.eq.s32.totalorder %s24, 0
    %p338 = por %p336, %p337
    %p339 = scmp.ne.s32.totalorder %s331, %s333
    %p340 = scmp.eq.s32.totalorder %s29, 1
    %p341 = por %p339, %p340
    %p342 = scmp.ne.s32.totalorder %s333, %s334
    %p343 = scmp.eq.s32.totalorder %s29, 0
    %p344 = por %p342, %p343
    %p345 = scmp.ne.s32.totalorder %s333, %s334
    %p346 = scmp.eq.s32.totalorder %s30, 1
    %p347 = por %p345, %p346
    %p349 = scmp.ne.s32.totalorder %s334, %s348
    %p350 = scmp.eq.s32.totalorder %s30, 0
    %p351 = por %p349, %p350
    %s353 = sadd.s32 %s352, 1
    %p356 = scmp.eq.s32.totalorder %s24, 1
    %p357 = scmp.ne.s32.totalorder %s352, %s354
    %p358 = scmp.eq.s32.totalorder %s24, 0
    %p359 = por %p357, %p358
    %p360 = scmp.ne.s32.totalorder %s352, %s354
    %p361 = scmp.eq.s32.totalorder %s29, 1
    %p362 = por %p360, %p361
    %p363 = scmp.ne.s32.totalorder %s354, %s355
    %p364 = scmp.eq.s32.totalorder %s29, 0
    %p365 = por %p363, %p364
    %p366 = scmp.ne.s32.totalorder %s354, %s355
    %p367 = scmp.eq.s32.totalorder %s30, 1
    %p368 = por %p366, %p367
    %p370 = scmp.ne.s32.totalorder %s355, %s369
    %p371 = scmp.eq.s32.totalorder %s30, 0
    %p372 = por %p370, %p371
    %s373 = ssub.s32 %s24, %s31
    %p374 = scmp.eq.s32.totalorder %s373, 0
    %s376 = sadd.s32 %s375, 1
    %s377 = scalar_select %p374, %s375, %s376
    %p380 = pneg %p374
    %p381 = scmp.eq.s32.totalorder %s24, 1
    %p382 = por %p380, %p381
    %p383 = scmp.ne.s32.totalorder %s375, %s378
    %p384 = scmp.eq.s32.totalorder %s24, 0
    %p385 = por %p383, %p384
    %p386 = scmp.ne.s32.totalorder %s375, %s378
    %p387 = scmp.eq.s32.totalorder %s29, 1
    %p388 = por %p386, %p387
    %p389 = scmp.ne.s32.totalorder %s378, %s379
    %p390 = scmp.eq.s32.totalorder %s29, 0
    %p391 = por %p389, %p390
    %p392 = scmp.ne.s32.totalorder %s378, %s379
    %p393 = scmp.eq.s32.totalorder %s30, 1
    %p394 = por %p392, %p393
    %p396 = scmp.ne.s32.totalorder %s379, %s395
    %p397 = scmp.eq.s32.totalorder %s30, 0
    %p398 = por %p396, %p397
    %p399 = scmp.le.s32.totalorder 1, %s24
    %p400 = scmp.lt.s32.totalorder %s24, 3
    %p401 = pnand %p399, %p400
    %p402 = pneg %p401
    // Predicated region
    $region9: #{event_detector_forward.1} parent=5 // pred_check
      _
    $region10: #{event_detector_forward.1} parent=5 // pred_check_branch
      %404 = sbr.rel (%p401) target = $region12
    $region11: #{event_detector_forward.1} parent=5 // pred_region
      %s405 = ssub.s32 %s24, 1
      // Predicated region
      $region13: #{event_detector_forward.1} parent=11 // pred_check
        %p406 = pneg %p71
      $region14: #{event_detector_forward.1} parent=11 // pred_check_branch
        %408 = sbr.rel (%p406) target = $region16
      $region15: #{event_detector_forward.1} parent=11 // pred_region
        _
      $region16: #{event_detector_forward.1} parent=11 // pred_fallthru
        _
      // Predicated region
      $region17: #{event_detector_forward.1} parent=11 // pred_check
        %p409 = pneg %p92
      $region18: #{event_detector_forward.1} parent=11 // pred_check_branch
        %411 = sbr.rel (%p409) target = $region20
      $region19: #{event_detector_forward.1} parent=11 // pred_region
        _
      $region20: #{event_detector_forward.1} parent=11 // pred_fallthru
        _
      // Predicated region
      $region21: #{event_detector_forward.1} parent=11 // pred_check
        %p412 = pneg %p113
      $region22: #{event_detector_forward.1} parent=11 // pred_check_branch
        %414 = sbr.rel (%p412) target = $region24
      $region23: #{event_detector_forward.1} parent=11 // pred_region
        _
      $region24: #{event_detector_forward.1} parent=11 // pred_fallthru
        _
      // Predicated region
      $region25: #{event_detector_forward.1} parent=11 // pred_check
        %p415 = pneg %p134
      $region26: #{event_detector_forward.1} parent=11 // pred_check_branch
        %417 = sbr.rel (%p415) target = $region28
      $region27: #{event_detector_forward.1} parent=11 // pred_region
        _
      $region28: #{event_detector_forward.1} parent=11 // pred_fallthru
        _
      // Predicated region
      $region29: #{event_detector_forward.1} parent=11 // pred_check
        %p418 = pneg %p155
      $region30: #{event_detector_forward.1} parent=11 // pred_check_branch
        %420 = sbr.rel (%p418) target = $region32
      $region31: #{event_detector_forward.1} parent=11 // pred_region
        _
      $region32: #{event_detector_forward.1} parent=11 // pred_fallthru
        _
      // Predicated region
      $region33: #{event_detector_forward.1} parent=11 // pred_check
        %p421 = pneg %p176
      $region34: #{event_detector_forward.1} parent=11 // pred_check_branch
        %423 = sbr.rel (%p421) target = $region36
      $region35: #{event_detector_forward.1} parent=11 // pred_region
        _
      $region36: #{event_detector_forward.1} parent=11 // pred_fallthru
        _
      // Predicated region
      $region37: #{event_detector_forward.1} parent=11 // pred_check
        %p424 = pneg %p197
      $region38: #{event_detector_forward.1} parent=11 // pred_check_branch
        %426 = sbr.rel (%p424) target = $region40
      $region39: #{event_detector_forward.1} parent=11 // pred_region
        _
      $region40: #{event_detector_forward.1} parent=11 // pred_fallthru
        _
      // Predicated region
      $region41: #{event_detector_forward.1} parent=11 // pred_check
        %p427 = pneg %p218
      $region42: #{event_detector_forward.1} parent=11 // pred_check_branch
        %429 = sbr.rel (%p427) target = $region44
      $region43: #{event_detector_forward.1} parent=11 // pred_region
        _
      $region44: #{event_detector_forward.1} parent=11 // pred_fallthru
        _
      // Predicated region
      $region45: #{event_detector_forward.1} parent=11 // pred_check
        %p430 = pneg %p239
      $region46: #{event_detector_forward.1} parent=11 // pred_check_branch
        %432 = sbr.rel (%p430) target = $region48
      $region47: #{event_detector_forward.1} parent=11 // pred_region
        _
      $region48: #{event_detector_forward.1} parent=11 // pred_fallthru
        _
      // Predicated region
      $region49: #{event_detector_forward.1} parent=11 // pred_check
        %p433 = pneg %p260
      $region50: #{event_detector_forward.1} parent=11 // pred_check_branch
        %435 = sbr.rel (%p433) target = $region52
      $region51: #{event_detector_forward.1} parent=11 // pred_region
        _
      $region52: #{event_detector_forward.1} parent=11 // pred_fallthru
        _
      // Predicated region
      $region53: #{event_detector_forward.1} parent=11 // pred_check
        %p436 = pneg %p281
      $region54: #{event_detector_forward.1} parent=11 // pred_check_branch
        %438 = sbr.rel (%p436) target = $region56
      $region55: #{event_detector_forward.1} parent=11 // pred_region
        _
      $region56: #{event_detector_forward.1} parent=11 // pred_fallthru
        _
      // Predicated region
      $region57: #{event_detector_forward.1} parent=11 // pred_check
        %p439 = pneg %p302
      $region58: #{event_detector_forward.1} parent=11 // pred_check_branch
        %441 = sbr.rel (%p439) target = $region60
      $region59: #{event_detector_forward.1} parent=11 // pred_region
        _
      $region60: #{event_detector_forward.1} parent=11 // pred_fallthru
        _
      // Predicated region
      $region61: #{event_detector_forward.1} parent=11 // pred_check
        %p442 = pneg %p323
      $region62: #{event_detector_forward.1} parent=11 // pred_check_branch
        %444 = sbr.rel (%p442) target = $region64
      $region63: #{event_detector_forward.1} parent=11 // pred_region
        _
      $region64: #{event_detector_forward.1} parent=11 // pred_fallthru
        _
      // Predicated region
      $region65: #{event_detector_forward.1} parent=11 // pred_check
        %p445 = pneg %p344
      $region66: #{event_detector_forward.1} parent=11 // pred_check_branch
        %447 = sbr.rel (%p445) target = $region68
      $region67: #{event_detector_forward.1} parent=11 // pred_region
        _
      $region68: #{event_detector_forward.1} parent=11 // pred_fallthru
        _
      // Predicated region
      $region69: #{event_detector_forward.1} parent=11 // pred_check
        %p448 = pneg %p365
      $region70: #{event_detector_forward.1} parent=11 // pred_check_branch
        %450 = sbr.rel (%p448) target = $region72
      $region71: #{event_detector_forward.1} parent=11 // pred_region
        _
      $region72: #{event_detector_forward.1} parent=11 // pred_fallthru
        _
    $region12: #{event_detector_forward.1} parent=5 // pred_fallthru
      _
    %p451 = scmp.lt.s32.totalorder %s24, 2
    // Predicated region
    $region73: #{event_detector_forward.1} parent=5 // pred_check
      %p452 = pneg %p451
    $region74: #{event_detector_forward.1} parent=5 // pred_check_branch
      %454 = sbr.rel (%p452) target = $region76
    $region75: #{event_detector_forward.1} parent=5 // pred_region
      // Predicated region
      $region77: #{event_detector_forward.1} parent=75 // pred_check
        %p455 = pneg %p44
      $region78: #{event_detector_forward.1} parent=75 // pred_check_branch
        %457 = sbr.rel (%p455) target = $region80
      $region79: #{event_detector_forward.1} parent=75 // pred_region
        %s458 = smul.u32 2, %s24
        %p459 = scmp.lt.s32.totalorder %s458, 3
        %s460 = scalar_select %p459, %s458, 3
        %s461 = smul.addr %s460, 32
        %s462 = smul.addr %s461, 8
        %s463 = scalar_lea.vmem %s0, %s462
        %s464 = smul.u32 2, %s24
      $region80: #{event_detector_forward.1} parent=75 // pred_fallthru
        _
    $region76: #{event_detector_forward.1} parent=5 // pred_fallthru
      _
    %p465 = scmp.le.s32.totalorder 1, %s24
    %p466 = scmp.lt.s32.totalorder %s24, 3
    %p467 = pnand %p465, %p466
    %p468 = pneg %p467
    // Predicated region
    $region81: #{event_detector_forward.1} parent=5 // pred_check
      _
    $region82: #{event_detector_forward.1} parent=5 // pred_check_branch
      %470 = sbr.rel (%p467) target = $region84
    $region83: #{event_detector_forward.1} parent=5 // pred_region
      %s471 = ssub.s32 %s24, 1
      %s472 = smul.u32 2, %s29
      %p473 = scmp.lt.s32.totalorder %s472, 3
      %s474 = scalar_select %p473, %s472, 3
      %s475 = smul.addr %s474, 32
      %s476 = smul.addr %s475, 8
      %s477 = scalar_lea.vmem %s0, %s476
      %p478 = pneg %p50
      %p479 = pneg %p47
      %p480 = pneg %p71
      %p481 = pneg %p68
      %p482 = pneg %p92
      %p483 = pneg %p89
      %p484 = pneg %p113
      %p485 = pneg %p110
      %p486 = pneg %p134
      %p487 = pneg %p131
      %p488 = pneg %p155
      %p489 = pneg %p152
      %p490 = pneg %p176
      %p491 = pneg %p173
      %p492 = pneg %p197
      %p493 = pneg %p194
      %p494 = pneg %p218
      %p495 = pneg %p215
      %p496 = pneg %p239
      %p497 = pneg %p236
      %p498 = pneg %p260
      %p499 = pneg %p257
      %p500 = pneg %p281
      %p501 = pneg %p278
      %p502 = pneg %p302
      %p503 = pneg %p299
      %p504 = pneg %p323
      %p505 = pneg %p320
      %p506 = pneg %p344
      %p507 = pneg %p341
      %p508 = pneg %p365
      %p509 = pneg %p362
      %p510 = pneg %p391
      %p511 = pneg %p388
      %s512 = smul.u32 2, %s29
      %p513 = scmp.lt.s32.totalorder %s512, 3
      %s514 = scalar_select %p513, %s512, 3
      %s515 = smul.addr %s514, 2
      %s516 = smul.addr %s515, 2
      %s517 = scalar_lea.vmem %s16, %s516
      %s518 = smul.u32 2, %s29
      %p519 = scmp.lt.s32.totalorder %s518, 3
      %s520 = scalar_select %p519, %s518, 3
      %s521 = smul.addr %s520, 32
      %s522 = smul.addr %s521, 8
      %s523 = scalar_lea.vmem %s0, %s522
      %s524 = smul.u32 2, %s29
      %s525 = smul.u32 2, %s29
      %p526 = scmp.lt.s32.totalorder %s525, 3
      %s527 = scalar_select %p526, %s525, 3
      %s528 = smul.addr %s527, 2
      %s529 = smul.addr %s528, 2
      %s530 = scalar_lea.vmem %s16, %s529
      %s531 = smul.u32 2, %s29
      %v532 = vld [vmem:[%s1] sm:$0x3]
      %v533 = vld [vmem:[%s523] sm:$0xff]
      %v534 = vld [vmem:[%s523 + $0x10] sm:$0xff]
      %v535 = vld [vmem:[%s523 + $0x20] sm:$0xff]
      %v536 = vld [vmem:[%s523 + $0x30] sm:$0xff]
      %v537 = vld [vmem:[%s523 + $0x40] sm:$0xff]
      %v538 = vld [vmem:[%s523 + $0x50] sm:$0xff]
      %v539 = vld [vmem:[%s523 + $0x60] sm:$0xff]
      %v540 = vld [vmem:[%s523 + $0x70] sm:$0xff]
      %v541 = vld [vmem:[%s523 + $0x80] sm:$0xff]
      %v542 = vld [vmem:[%s523 + $0x90] sm:$0xff]
      %v543 = vld [vmem:[%s523 + $0xa0] sm:$0xff]
      %v544 = vld [vmem:[%s523 + $0xb0] sm:$0xff]
      %v545 = vld [vmem:[%s523 + $0xc0] sm:$0xff]
      %v546 = vld [vmem:[%s523 + $0xd0] sm:$0xff]
      %v547 = vld [vmem:[%s523 + $0xe0] sm:$0xff]
      %v548 = vld [vmem:[%s523 + $0xf0] sm:$0xff]
      %565 = vrot.lane.b32.xlu0 %v533, 127
      %v566 = vpop.permute.xlu0 %565
      %567 = vrot.lane.b32.xlu0 %v534, 127
      %v568 = vpop.permute.xlu0 %567
      %569 = vrot.lane.b32.xlu0 %v535, 127
      %v570 = vpop.permute.xlu0 %569
      %571 = vrot.lane.b32.xlu0 %v536, 127
      %v572 = vpop.permute.xlu0 %571
      %573 = vrot.lane.b32.xlu0 %v537, 127
      %v574 = vpop.permute.xlu0 %573
      %575 = vrot.lane.b32.xlu0 %v538, 127
      %v576 = vpop.permute.xlu0 %575
      %577 = vrot.lane.b32.xlu0 %v539, 127
      %v578 = vpop.permute.xlu0 %577
      %579 = vrot.lane.b32.xlu0 %v540, 127
      %v580 = vpop.permute.xlu0 %579
      %581 = vrot.lane.b32.xlu0 %v541, 127
      %v582 = vpop.permute.xlu0 %581
      %583 = vrot.lane.b32.xlu0 %v542, 127
      %v584 = vpop.permute.xlu0 %583
      %585 = vrot.lane.b32.xlu0 %v543, 127
      %v586 = vpop.permute.xlu0 %585
      %587 = vrot.lane.b32.xlu0 %v544, 127
      %v588 = vpop.permute.xlu0 %587
      %589 = vrot.lane.b32.xlu0 %v545, 127
      %v590 = vpop.permute.xlu0 %589
      %591 = vrot.lane.b32.xlu0 %v546, 127
      %v592 = vpop.permute.xlu0 %591
      %593 = vrot.lane.b32.xlu0 %v547, 127
      %v594 = vpop.permute.xlu0 %593
      %595 = vrot.lane.b32.xlu0 %v548, 127
      %v596 = vpop.permute.xlu0 %595
      %vm597 = vcmask 15360
      %v598 = vsel %vm597, %v566, 0
      %v600 = vsel %vm597, %v568, 0
      %v602 = vsel %vm597, %v570, 0
      %v604 = vsel %vm597, %v572, 0
      %v606 = vsel %vm597, %v574, 0
      %v608 = vsel %vm597, %v576, 0
      %v610 = vsel %vm597, %v578, 0
      %v612 = vsel %vm597, %v580, 0
      %v614 = vsel %vm597, %v582, 0
      %v616 = vsel %vm597, %v584, 0
      %v618 = vsel %vm597, %v586, 0
      %v620 = vsel %vm597, %v588, 0
      %v622 = vsel %vm597, %v590, 0
      %v624 = vsel %vm597, %v592, 0
      %v626 = vsel %vm597, %v594, 0
      %v628 = vsel %vm597, %v596, 0
      %vm630 = vcmask 1041408
      %v632 = vsel %vm630, %v532, 0
      %634 = vmatprep.subr.mxu0 0.0
      %635 = vmatpush1.msra.mxu0 0.0
      %636 = vmatprep.subr.mxu0 0.0
      %637 = vmatpush1.msra.mxu0 0.0
      %638 = vmatprep.subr.mxu0 0.0
      %639 = vmatpush1.msra.mxu0 0.0
      %640 = vmatprep.subr.mxu0 0.0
      %641 = vmatpush1.msra.mxu0 0.0
      %642 = vmatprep.subr.mxu0 0.0
      %643 = vmatpush1.msra.mxu0 0.0
      %644 = vmatprep.subr.mxu0 0.0
      %645 = vmatpush1.msra.mxu0 0.0
      %646 = vmatprep.subr.mxu0 0.0
      %647 = vmatpush1.msra.mxu0 0.0
      %648 = vmatprep.subr.mxu0 0.0
      %649 = vmatpush1.msra.mxu0 0.0
      %650 = vmatprep.subr.mxu0 0.0
      %651 = vmatpush1.msra.mxu0 0.0
      %652 = vmatprep.subr.mxu0 0.0
      %653 = vmatpush1.msra.mxu0 0.0
      %654 = vmatprep.subr.mxu0 0.0
      %655 = vmatpush1.msra.mxu0 0.0
      %656 = vmatprep.subr.mxu0 0.0
      %657 = vmatpush1.msra.mxu0 0.0
      %658 = vmatprep.subr.mxu0 0.0
      %659 = vmatpush1.msra.mxu0 0.0
      %660 = vmatprep.subr.mxu0 0.0
      %661 = vmatpush1.msra.mxu0 0.0
      %662 = vmatprep.subr.mxu0 0.0
      %663 = vmatpush1.msra.mxu0 0.0
      %664 = vmatprep.subr.mxu0 0.0
      %665 = vmatpush1.msra.mxu0 %v632
      %666 = vmatprep.subr.mxu0 0.0
      %667 = vmatpush2.msra.mxu0 0.0
      %668 = vmatprep.subr.mxu0 0.0
      %669 = vmatpush2.msra.mxu0 0.0
      %670 = vmatprep.subr.mxu0 0.0
      %671 = vmatpush2.msra.mxu0 0.0
      %672 = vmatprep.subr.mxu0 0.0
      %673 = vmatpush2.msra.mxu0 0.0
      %674 = vmatprep.subr.mxu0 0.0
      %675 = vmatpush2.msra.mxu0 0.0
      %676 = vmatprep.subr.mxu0 0.0
      %677 = vmatpush2.msra.mxu0 0.0
      %678 = vmatprep.subr.mxu0 0.0
      %679 = vmatpush2.msra.mxu0 0.0
      %680 = vmatprep.subr.mxu0 0.0
      %681 = vmatpush2.msra.mxu0 0.0
      %682 = vmatprep.subr.mxu0 0.0
      %683 = vmatpush2.msra.mxu0 0.0
      %684 = vmatprep.subr.mxu0 0.0
      %685 = vmatpush2.msra.mxu0 0.0
      %686 = vmatprep.subr.mxu0 0.0
      %687 = vmatpush2.msra.mxu0 0.0
      %688 = vmatprep.subr.mxu0 0.0
      %689 = vmatpush2.msra.mxu0 0.0
      %690 = vmatprep.subr.mxu0 0.0
      %691 = vmatpush2.msra.mxu0 0.0
      %692 = vmatprep.subr.mxu0 0.0
      %693 = vmatpush2.msra.mxu0 0.0
      %694 = vmatprep.subr.mxu0 0.0
      %695 = vmatpush2.msra.mxu0 0.0
      %696 = vmatprep.subr.mxu0 0.0
      %697 = vmatpush2.msra.mxu0 0.0
      %698 = vmatprep.mubr.f32.mxu0 0.0
      %699 = vmatmul.mubr.f32.gmra.mxu0 %v598
      %v700 = vpop.f32.mrf.mxu0
      %v701 = vadd.f32 0.0, %v700
      %v702 = vpop.f32.mrf.mxu0
      %703 = vmatprep.mubr.f32.mxu0 0.0
      %704 = vmatmul.mubr.f32.gmra.mxu0 %v600
      %v705 = vpop.f32.mrf.mxu0
      %v706 = vadd.f32 0.0, %v705
      %v707 = vpop.f32.mrf.mxu0
      %708 = vmatprep.mubr.f32.mxu0 0.0
      %709 = vmatmul.mubr.f32.gmra.mxu0 %v602
      %v710 = vpop.f32.mrf.mxu0
      %v711 = vadd.f32 0.0, %v710
      %v712 = vpop.f32.mrf.mxu0
      %713 = vmatprep.mubr.f32.mxu0 0.0
      %714 = vmatmul.mubr.f32.gmra.mxu0 %v604
      %v715 = vpop.f32.mrf.mxu0
      %v716 = vadd.f32 0.0, %v715
      %v717 = vpop.f32.mrf.mxu0
      %718 = vmatprep.mubr.f32.mxu0 0.0
      %719 = vmatmul.mubr.f32.gmra.mxu0 %v606
      %v720 = vpop.f32.mrf.mxu0
      %v721 = vadd.f32 0.0, %v720
      %v722 = vpop.f32.mrf.mxu0
      %723 = vmatprep.mubr.f32.mxu0 0.0
      %724 = vmatmul.mubr.f32.gmra.mxu0 %v608
      %v725 = vpop.f32.mrf.mxu0
      %v726 = vadd.f32 0.0, %v725
      %v727 = vpop.f32.mrf.mxu0
      %728 = vmatprep.mubr.f32.mxu0 0.0
      %729 = vmatmul.mubr.f32.gmra.mxu0 %v610
      %v730 = vpop.f32.mrf.mxu0
      %v731 = vadd.f32 0.0, %v730
      %v732 = vpop.f32.mrf.mxu0
      %733 = vmatprep.mubr.f32.mxu0 0.0
      %734 = vmatmul.mubr.f32.gmra.mxu0 %v612
      %v735 = vpop.f32.mrf.mxu0
      %v736 = vadd.f32 0.0, %v735
      %v737 = vpop.f32.mrf.mxu0
      %738 = vmatprep.mubr.f32.mxu0 0.0
      %739 = vmatmul.mubr.f32.gmra.mxu0 %v614
      %v740 = vpop.f32.mrf.mxu0
      %v741 = vadd.f32 0.0, %v740
      %v742 = vpop.f32.mrf.mxu0
      %743 = vmatprep.mubr.f32.mxu0 0.0
      %744 = vmatmul.mubr.f32.gmra.mxu0 %v616
      %v745 = vpop.f32.mrf.mxu0
      %v746 = vadd.f32 0.0, %v745
      %v747 = vpop.f32.mrf.mxu0
      %748 = vmatprep.mubr.f32.mxu0 0.0
      %749 = vmatmul.mubr.f32.gmra.mxu0 %v618
      %v750 = vpop.f32.mrf.mxu0
      %v751 = vadd.f32 0.0, %v750
      %v752 = vpop.f32.mrf.mxu0
      %753 = vmatprep.mubr.f32.mxu0 0.0
      %754 = vmatmul.mubr.f32.gmra.mxu0 %v620
      %v755 = vpop.f32.mrf.mxu0
      %v756 = vadd.f32 0.0, %v755
      %v757 = vpop.f32.mrf.mxu0
      %758 = vmatprep.mubr.f32.mxu0 0.0
      %759 = vmatmul.mubr.f32.gmra.mxu0 %v622
      %v760 = vpop.f32.mrf.mxu0
      %v761 = vadd.f32 0.0, %v760
      %v762 = vpop.f32.mrf.mxu0
      %763 = vmatprep.mubr.f32.mxu0 0.0
      %764 = vmatmul.mubr.f32.gmra.mxu0 %v624
      %v765 = vpop.f32.mrf.mxu0
      %v766 = vadd.f32 0.0, %v765
      %v767 = vpop.f32.mrf.mxu0
      %768 = vmatprep.mubr.f32.mxu0 0.0
      %769 = vmatmul.mubr.f32.gmra.mxu0 %v626
      %v770 = vpop.f32.mrf.mxu0
      %v771 = vadd.f32 0.0, %v770
      %v772 = vpop.f32.mrf.mxu0
      %773 = vmatprep.mubr.f32.mxu0 0.0
      %774 = vmatmul.mubr.f32.gmra.mxu0 %v628
      %v775 = vpop.f32.mrf.mxu0
      %v776 = vadd.f32 0.0, %v775
      %v777 = vpop.f32.mrf.mxu0
      %778 = vdwg.mxu0
      %v779 = vld [vmem:[%s523 + $0x8] sm:$0xff]
      %v780 = vld [vmem:[%s523 + $0x18] sm:$0xff]
      %v781 = vld [vmem:[%s523 + $0x28] sm:$0xff]
      %v782 = vld [vmem:[%s523 + $0x38] sm:$0xff]
      %v783 = vld [vmem:[%s523 + $0x48] sm:$0xff]
      %v784 = vld [vmem:[%s523 + $0x58] sm:$0xff]
      %v785 = vld [vmem:[%s523 + $0x68] sm:$0xff]
      %v786 = vld [vmem:[%s523 + $0x78] sm:$0xff]
      %v787 = vld [vmem:[%s523 + $0x88] sm:$0xff]
      %v788 = vld [vmem:[%s523 + $0x98] sm:$0xff]
      %v789 = vld [vmem:[%s523 + $0xa8] sm:$0xff]
      %v790 = vld [vmem:[%s523 + $0xb8] sm:$0xff]
      %v791 = vld [vmem:[%s523 + $0xc8] sm:$0xff]
      %v792 = vld [vmem:[%s523 + $0xd8] sm:$0xff]
      %v793 = vld [vmem:[%s523 + $0xe8] sm:$0xff]
      %v794 = vld [vmem:[%s523 + $0xf8] sm:$0xff]
      %811 = vrot.lane.b32.xlu0 %v779, 3
      %v812 = vpop.permute.xlu0 %811
      %813 = vrot.lane.b32.xlu0 %v780, 3
      %v814 = vpop.permute.xlu0 %813
      %815 = vrot.lane.b32.xlu0 %v781, 3
      %v816 = vpop.permute.xlu0 %815
      %817 = vrot.lane.b32.xlu0 %v782, 3
      %v818 = vpop.permute.xlu0 %817
      %819 = vrot.lane.b32.xlu0 %v783, 3
      %v820 = vpop.permute.xlu0 %819
      %821 = vrot.lane.b32.xlu0 %v784, 3
      %v822 = vpop.permute.xlu0 %821
      %823 = vrot.lane.b32.xlu0 %v785, 3
      %v824 = vpop.permute.xlu0 %823
      %825 = vrot.lane.b32.xlu0 %v786, 3
      %v826 = vpop.permute.xlu0 %825
      %827 = vrot.lane.b32.xlu0 %v787, 3
      %v828 = vpop.permute.xlu0 %827
      %829 = vrot.lane.b32.xlu0 %v788, 3
      %v830 = vpop.permute.xlu0 %829
      %831 = vrot.lane.b32.xlu0 %v789, 3
      %v832 = vpop.permute.xlu0 %831
      %833 = vrot.lane.b32.xlu0 %v790, 3
      %v834 = vpop.permute.xlu0 %833
      %835 = vrot.lane.b32.xlu0 %v791, 3
      %v836 = vpop.permute.xlu0 %835
      %837 = vrot.lane.b32.xlu0 %v792, 3
      %v838 = vpop.permute.xlu0 %837
      %839 = vrot.lane.b32.xlu0 %v793, 3
      %v840 = vpop.permute.xlu0 %839
      %841 = vrot.lane.b32.xlu0 %v794, 3
      %v842 = vpop.permute.xlu0 %841
      %v843 = vsel %vm597, %v812, 0
      %v845 = vsel %vm597, %v814, 0
      %v847 = vsel %vm597, %v816, 0
      %v849 = vsel %vm597, %v818, 0
      %v851 = vsel %vm597, %v820, 0
      %v853 = vsel %vm597, %v822, 0
      %v855 = vsel %vm597, %v824, 0
      %v857 = vsel %vm597, %v826, 0
      %v859 = vsel %vm597, %v828, 0
      %v861 = vsel %vm597, %v830, 0
      %v863 = vsel %vm597, %v832, 0
      %v865 = vsel %vm597, %v834, 0
      %v867 = vsel %vm597, %v836, 0
      %v869 = vsel %vm597, %v838, 0
      %v871 = vsel %vm597, %v840, 0
      %v873 = vsel %vm597, %v842, 0
      %875 = vmatprep.subr.mxu0 0.0
      %876 = vmatpush1.msra.mxu0 0.0
      %877 = vmatprep.subr.mxu0 0.0
      %878 = vmatpush1.msra.mxu0 0.0
      %879 = vmatprep.subr.mxu0 0.0
      %880 = vmatpush1.msra.mxu0 0.0
      %881 = vmatprep.subr.mxu0 0.0
      %882 = vmatpush1.msra.mxu0 0.0
      %883 = vmatprep.subr.mxu0 0.0
      %884 = vmatpush1.msra.mxu0 0.0
      %885 = vmatprep.subr.mxu0 0.0
      %886 = vmatpush1.msra.mxu0 0.0
      %887 = vmatprep.subr.mxu0 0.0
      %888 = vmatpush1.msra.mxu0 0.0
      %889 = vmatprep.subr.mxu0 0.0
      %890 = vmatpush1.msra.mxu0 0.0
      %891 = vmatprep.subr.mxu0 0.0
      %892 = vmatpush1.msra.mxu0 0.0
      %893 = vmatprep.subr.mxu0 0.0
      %894 = vmatpush1.msra.mxu0 0.0
      %895 = vmatprep.subr.mxu0 0.0
      %896 = vmatpush1.msra.mxu0 0.0
      %897 = vmatprep.subr.mxu0 0.0
      %898 = vmatpush1.msra.mxu0 0.0
      %899 = vmatprep.subr.mxu0 0.0
      %900 = vmatpush1.msra.mxu0 0.0
      %901 = vmatprep.subr.mxu0 0.0
      %902 = vmatpush1.msra.mxu0 0.0
      %903 = vmatprep.subr.mxu0 0.0
      %904 = vmatpush1.msra.mxu0 0.0
      %905 = vmatprep.subr.mxu0 0.0
      %906 = vmatpush1.msra.mxu0 %v632
      %907 = vmatprep.subr.mxu0 0.0
      %908 = vmatpush2.msra.mxu0 0.0
      %909 = vmatprep.subr.mxu0 0.0
      %910 = vmatpush2.msra.mxu0 0.0
      %911 = vmatprep.subr.mxu0 0.0
      %912 = vmatpush2.msra.mxu0 0.0
      %913 = vmatprep.subr.mxu0 0.0
      %914 = vmatpush2.msra.mxu0 0.0
      %915 = vmatprep.subr.mxu0 0.0
      %916 = vmatpush2.msra.mxu0 0.0
      %917 = vmatprep.subr.mxu0 0.0
      %918 = vmatpush2.msra.mxu0 0.0
      %919 = vmatprep.subr.mxu0 0.0
      %920 = vmatpush2.msra.mxu0 0.0
      %921 = vmatprep.subr.mxu0 0.0
      %922 = vmatpush2.msra.mxu0 0.0
      %923 = vmatprep.subr.mxu0 0.0
      %924 = vmatpush2.msra.mxu0 0.0
      %925 = vmatprep.subr.mxu0 0.0
      %926 = vmatpush2.msra.mxu0 0.0
      %927 = vmatprep.subr.mxu0 0.0
      %928 = vmatpush2.msra.mxu0 0.0
      %929 = vmatprep.subr.mxu0 0.0
      %930 = vmatpush2.msra.mxu0 0.0
      %931 = vmatprep.subr.mxu0 0.0
      %932 = vmatpush2.msra.mxu0 0.0
      %933 = vmatprep.subr.mxu0 0.0
      %934 = vmatpush2.msra.mxu0 0.0
      %935 = vmatprep.subr.mxu0 0.0
      %936 = vmatpush2.msra.mxu0 0.0
      %937 = vmatprep.subr.mxu0 0.0
      %938 = vmatpush2.msra.mxu0 0.0
      %939 = vmatprep.mubr.f32.mxu0 0.0
      %940 = vmatmul.mubr.f32.gmra.mxu0 %v843
      %v941 = vpop.f32.mrf.mxu0
      %v942 = vadd.f32 0.0, %v941
      %v943 = vpop.f32.mrf.mxu0
      %944 = vmatprep.mubr.f32.mxu0 0.0
      %945 = vmatmul.mubr.f32.gmra.mxu0 %v845
      %v946 = vpop.f32.mrf.mxu0
      %v947 = vadd.f32 0.0, %v946
      %v948 = vpop.f32.mrf.mxu0
      %949 = vmatprep.mubr.f32.mxu0 0.0
      %950 = vmatmul.mubr.f32.gmra.mxu0 %v847
      %v951 = vpop.f32.mrf.mxu0
      %v952 = vadd.f32 0.0, %v951
      %v953 = vpop.f32.mrf.mxu0
      %954 = vmatprep.mubr.f32.mxu0 0.0
      %955 = vmatmul.mubr.f32.gmra.mxu0 %v849
      %v956 = vpop.f32.mrf.mxu0
      %v957 = vadd.f32 0.0, %v956
      %v958 = vpop.f32.mrf.mxu0
      %959 = vmatprep.mubr.f32.mxu0 0.0
      %960 = vmatmul.mubr.f32.gmra.mxu0 %v851
      %v961 = vpop.f32.mrf.mxu0
      %v962 = vadd.f32 0.0, %v961
      %v963 = vpop.f32.mrf.mxu0
      %964 = vmatprep.mubr.f32.mxu0 0.0
      %965 = vmatmul.mubr.f32.gmra.mxu0 %v853
      %v966 = vpop.f32.mrf.mxu0
      %v967 = vadd.f32 0.0, %v966
      %v968 = vpop.f32.mrf.mxu0
      %969 = vmatprep.mubr.f32.mxu0 0.0
      %970 = vmatmul.mubr.f32.gmra.mxu0 %v855
      %v971 = vpop.f32.mrf.mxu0
      %v972 = vadd.f32 0.0, %v971
      %v973 = vpop.f32.mrf.mxu0
      %974 = vmatprep.mubr.f32.mxu0 0.0
      %975 = vmatmul.mubr.f32.gmra.mxu0 %v857
      %v976 = vpop.f32.mrf.mxu0
      %v977 = vadd.f32 0.0, %v976
      %v978 = vpop.f32.mrf.mxu0
      %979 = vmatprep.mubr.f32.mxu0 0.0
      %980 = vmatmul.mubr.f32.gmra.mxu0 %v859
      %v981 = vpop.f32.mrf.mxu0
      %v982 = vadd.f32 0.0, %v981
      %v983 = vpop.f32.mrf.mxu0
      %984 = vmatprep.mubr.f32.mxu0 0.0
      %985 = vmatmul.mubr.f32.gmra.mxu0 %v861
      %v986 = vpop.f32.mrf.mxu0
      %v987 = vadd.f32 0.0, %v986
      %v988 = vpop.f32.mrf.mxu0
      %989 = vmatprep.mubr.f32.mxu0 0.0
      %990 = vmatmul.mubr.f32.gmra.mxu0 %v863
      %v991 = vpop.f32.mrf.mxu0
      %v992 = vadd.f32 0.0, %v991
      %v993 = vpop.f32.mrf.mxu0
      %994 = vmatprep.mubr.f32.mxu0 0.0
      %995 = vmatmul.mubr.f32.gmra.mxu0 %v865
      %v996 = vpop.f32.mrf.mxu0
      %v997 = vadd.f32 0.0, %v996
      %v998 = vpop.f32.mrf.mxu0
      %999 = vmatprep.mubr.f32.mxu0 0.0
      %1000 = vmatmul.mubr.f32.gmra.mxu0 %v867
      %v1001 = vpop.f32.mrf.mxu0
      %v1002 = vadd.f32 0.0, %v1001
      %v1003 = vpop.f32.mrf.mxu0
      %1004 = vmatprep.mubr.f32.mxu0 0.0
      %1005 = vmatmul.mubr.f32.gmra.mxu0 %v869
      %v1006 = vpop.f32.mrf.mxu0
      %v1007 = vadd.f32 0.0, %v1006
      %v1008 = vpop.f32.mrf.mxu0
      %1009 = vmatprep.mubr.f32.mxu0 0.0
      %1010 = vmatmul.mubr.f32.gmra.mxu0 %v871
      %v1011 = vpop.f32.mrf.mxu0
      %v1012 = vadd.f32 0.0, %v1011
      %v1013 = vpop.f32.mrf.mxu0
      %1014 = vmatprep.mubr.f32.mxu0 0.0
      %1015 = vmatmul.mubr.f32.gmra.mxu0 %v873
      %v1016 = vpop.f32.mrf.mxu0
      %v1017 = vadd.f32 0.0, %v1016
      %v1018 = vpop.f32.mrf.mxu0
      %1019 = vdwg.mxu0
      %1020 = vst.msk [vmem:[#allocation2] sm:$0xff] %vm597, %v701
      %1021 = vst.msk [vmem:[#allocation2 + $0x20] sm:$0xff] %vm597, %v706
      %1022 = vst.msk [vmem:[#allocation2 + $0x40] sm:$0xff] %vm597, %v711
      %1023 = vst.msk [vmem:[#allocation2 + $0x60] sm:$0xff] %vm597, %v716
      %1024 = vst.msk [vmem:[#allocation2 + $0x80] sm:$0xff] %vm597, %v721
      %1025 = vst.msk [vmem:[#allocation2 + $0xa0] sm:$0xff] %vm597, %v726
      %1026 = vst.msk [vmem:[#allocation2 + $0xc0] sm:$0xff] %vm597, %v731
      %1027 = vst.msk [vmem:[#allocation2 + $0xe0] sm:$0xff] %vm597, %v736
      %1028 = vst.msk [vmem:[#allocation2 + $0x100] sm:$0xff] %vm597, %v741
      %1029 = vst.msk [vmem:[#allocation2 + $0x120] sm:$0xff] %vm597, %v746
      %1030 = vst.msk [vmem:[#allocation2 + $0x140] sm:$0xff] %vm597, %v751
      %1031 = vst.msk [vmem:[#allocation2 + $0x160] sm:$0xff] %vm597, %v756
      %1032 = vst.msk [vmem:[#allocation2 + $0x180] sm:$0xff] %vm597, %v761
      %1033 = vst.msk [vmem:[#allocation2 + $0x1a0] sm:$0xff] %vm597, %v766
      %1034 = vst.msk [vmem:[#allocation2 + $0x1c0] sm:$0xff] %vm597, %v771
      %1035 = vst.msk [vmem:[#allocation2 + $0x1e0] sm:$0xff] %vm597, %v776
      %v1036 = vld [vmem:[%s523] sm:$0xff]
      %v1037 = vld [vmem:[%s523 + $0x8] sm:$0xff]
      %v1038 = vld [vmem:[%s523 + $0x10] sm:$0xff]
      %v1039 = vld [vmem:[%s523 + $0x18] sm:$0xff]
      %v1040 = vld [vmem:[%s523 + $0x20] sm:$0xff]
      %v1041 = vld [vmem:[%s523 + $0x28] sm:$0xff]
      %v1042 = vld [vmem:[%s523 + $0x30] sm:$0xff]
      %v1043 = vld [vmem:[%s523 + $0x38] sm:$0xff]
      %v1044 = vld [vmem:[%s523 + $0x40] sm:$0xff]
      %v1045 = vld [vmem:[%s523 + $0x48] sm:$0xff]
      %v1046 = vld [vmem:[%s523 + $0x50] sm:$0xff]
      %v1047 = vld [vmem:[%s523 + $0x58] sm:$0xff]
      %v1048 = vld [vmem:[%s523 + $0x60] sm:$0xff]
      %v1049 = vld [vmem:[%s523 + $0x68] sm:$0xff]
      %v1050 = vld [vmem:[%s523 + $0x70] sm:$0xff]
      %v1051 = vld [vmem:[%s523 + $0x78] sm:$0xff]
      %v1052 = vld [vmem:[%s523 + $0x80] sm:$0xff]
      %v1053 = vld [vmem:[%s523 + $0x88] sm:$0xff]
      %v1054 = vld [vmem:[%s523 + $0x90] sm:$0xff]
      %v1055 = vld [vmem:[%s523 + $0x98] sm:$0xff]
      %v1056 = vld [vmem:[%s523 + $0xa0] sm:$0xff]
      %v1057 = vld [vmem:[%s523 + $0xa8] sm:$0xff]
      %v1058 = vld [vmem:[%s523 + $0xb0] sm:$0xff]
      %v1059 = vld [vmem:[%s523 + $0xb8] sm:$0xff]
      %v1060 = vld [vmem:[%s523 + $0xc0] sm:$0xff]
      %v1061 = vld [vmem:[%s523 + $0xc8] sm:$0xff]
      %v1062 = vld [vmem:[%s523 + $0xd0] sm:$0xff]
      %v1063 = vld [vmem:[%s523 + $0xd8] sm:$0xff]
      %v1064 = vld [vmem:[%s523 + $0xe0] sm:$0xff]
      %v1065 = vld [vmem:[%s523 + $0xe8] sm:$0xff]
      %v1066 = vld [vmem:[%s523 + $0xf0] sm:$0xff]
      %v1067 = vld [vmem:[%s523 + $0xf8] sm:$0xff]
      %1100 = vrot.lane.b32.xlu0 %v1036, 2
      %v1101 = vpop.permute.xlu0 %1100
      %1102 = vrot.lane.b32.xlu0 %v1037, 2
      %v1103 = vpop.permute.xlu0 %1102
      %1104 = vrot.lane.b32.xlu0 %v1038, 2
      %v1105 = vpop.permute.xlu0 %1104
      %1106 = vrot.lane.b32.xlu0 %v1039, 2
      %v1107 = vpop.permute.xlu0 %1106
      %1108 = vrot.lane.b32.xlu0 %v1040, 2
      %v1109 = vpop.permute.xlu0 %1108
      %1110 = vrot.lane.b32.xlu0 %v1041, 2
      %v1111 = vpop.permute.xlu0 %1110
      %1112 = vrot.lane.b32.xlu0 %v1042, 2
      %v1113 = vpop.permute.xlu0 %1112
      %1114 = vrot.lane.b32.xlu0 %v1043, 2
      %v1115 = vpop.permute.xlu0 %1114
      %1116 = vrot.lane.b32.xlu0 %v1044, 2
      %v1117 = vpop.permute.xlu0 %1116
      %1118 = vrot.lane.b32.xlu0 %v1045, 2
      %v1119 = vpop.permute.xlu0 %1118
      %1120 = vrot.lane.b32.xlu0 %v1046, 2
      %v1121 = vpop.permute.xlu0 %1120
      %1122 = vrot.lane.b32.xlu0 %v1047, 2
      %v1123 = vpop.permute.xlu0 %1122
      %1124 = vrot.lane.b32.xlu0 %v1048, 2
      %v1125 = vpop.permute.xlu0 %1124
      %1126 = vrot.lane.b32.xlu0 %v1049, 2
      %v1127 = vpop.permute.xlu0 %1126
      %1128 = vrot.lane.b32.xlu0 %v1050, 2
      %v1129 = vpop.permute.xlu0 %1128
      %1130 = vrot.lane.b32.xlu0 %v1051, 2
      %v1131 = vpop.permute.xlu0 %1130
      %1132 = vrot.lane.b32.xlu0 %v1052, 2
      %v1133 = vpop.permute.xlu0 %1132
      %1134 = vrot.lane.b32.xlu0 %v1053, 2
      %v1135 = vpop.permute.xlu0 %1134
      %1136 = vrot.lane.b32.xlu0 %v1054, 2
      %v1137 = vpop.permute.xlu0 %1136
      %1138 = vrot.lane.b32.xlu0 %v1055, 2
      %v1139 = vpop.permute.xlu0 %1138
      %1140 = vrot.lane.b32.xlu0 %v1056, 2
      %v1141 = vpop.permute.xlu0 %1140
      %1142 = vrot.lane.b32.xlu0 %v1057, 2
      %v1143 = vpop.permute.xlu0 %1142
      %1144 = vrot.lane.b32.xlu0 %v1058, 2
      %v1145 = vpop.permute.xlu0 %1144
      %1146 = vrot.lane.b32.xlu0 %v1059, 2
      %v1147 = vpop.permute.xlu0 %1146
      %1148 = vrot.lane.b32.xlu0 %v1060, 2
      %v1149 = vpop.permute.xlu0 %1148
      %1150 = vrot.lane.b32.xlu0 %v1061, 2
      %v1151 = vpop.permute.xlu0 %1150
      %1152 = vrot.lane.b32.xlu0 %v1062, 2
      %v1153 = vpop.permute.xlu0 %1152
      %1154 = vrot.lane.b32.xlu0 %v1063, 2
      %v1155 = vpop.permute.xlu0 %1154
      %1156 = vrot.lane.b32.xlu0 %v1064, 2
      %v1157 = vpop.permute.xlu0 %1156
      %1158 = vrot.lane.b32.xlu0 %v1065, 2
      %v1159 = vpop.permute.xlu0 %1158
      %1160 = vrot.lane.b32.xlu0 %v1066, 2
      %v1161 = vpop.permute.xlu0 %1160
      %1162 = vrot.lane.b32.xlu0 %v1067, 2
      %v1163 = vpop.permute.xlu0 %1162
      %v1164 = vsel %vm597, %v1101, %v1103
      %v1165 = vsel %vm597, %v1105, %v1107
      %v1166 = vsel %vm597, %v1109, %v1111
      %v1167 = vsel %vm597, %v1113, %v1115
      %v1168 = vsel %vm597, %v1117, %v1119
      %v1169 = vsel %vm597, %v1121, %v1123
      %v1170 = vsel %vm597, %v1125, %v1127
      %v1171 = vsel %vm597, %v1129, %v1131
      %v1172 = vsel %vm597, %v1133, %v1135
      %v1173 = vsel %vm597, %v1137, %v1139
      %v1174 = vsel %vm597, %v1141, %v1143
      %v1175 = vsel %vm597, %v1145, %v1147
      %v1176 = vsel %vm597, %v1149, %v1151
      %v1177 = vsel %vm597, %v1153, %v1155
      %v1178 = vsel %vm597, %v1157, %v1159
      %v1179 = vsel %vm597, %v1161, %v1163
      %vm1212 = vcmask 1047568
      %1213 = vst.msk [vmem:[#allocation2] sm:$0xff] %vm1212, %v1101
      %1214 = vst [vmem:[#allocation2 + $0x8] sm:$0xff] %v1164
      %1215 = vst.msk [vmem:[#allocation2 + $0x20] sm:$0xff] %vm1212, %v1105
      %1216 = vst [vmem:[#allocation2 + $0x28] sm:$0xff] %v1165
      %1217 = vst.msk [vmem:[#allocation2 + $0x40] sm:$0xff] %vm1212, %v1109
      %1218 = vst [vmem:[#allocation2 + $0x48] sm:$0xff] %v1166
      %1219 = vst.msk [vmem:[#allocation2 + $0x60] sm:$0xff] %vm1212, %v1113
      %1220 = vst [vmem:[#allocation2 + $0x68] sm:$0xff] %v1167
      %1221 = vst.msk [vmem:[#allocation2 + $0x80] sm:$0xff] %vm1212, %v1117
      %1222 = vst [vmem:[#allocation2 + $0x88] sm:$0xff] %v1168
      %1223 = vst.msk [vmem:[#allocation2 + $0xa0] sm:$0xff] %vm1212, %v1121
      %1224 = vst [vmem:[#allocation2 + $0xa8] sm:$0xff] %v1169
      %1225 = vst.msk [vmem:[#allocation2 + $0xc0] sm:$0xff] %vm1212, %v1125
      %1226 = vst [vmem:[#allocation2 + $0xc8] sm:$0xff] %v1170
      %1227 = vst.msk [vmem:[#allocation2 + $0xe0] sm:$0xff] %vm1212, %v1129
      %1228 = vst [vmem:[#allocation2 + $0xe8] sm:$0xff] %v1171
      %1229 = vst.msk [vmem:[#allocation2 + $0x100] sm:$0xff] %vm1212, %v1133
      %1230 = vst [vmem:[#allocation2 + $0x108] sm:$0xff] %v1172
      %1231 = vst.msk [vmem:[#allocation2 + $0x120] sm:$0xff] %vm1212, %v1137
      %1232 = vst [vmem:[#allocation2 + $0x128] sm:$0xff] %v1173
      %1233 = vst.msk [vmem:[#allocation2 + $0x140] sm:$0xff] %vm1212, %v1141
      %1234 = vst [vmem:[#allocation2 + $0x148] sm:$0xff] %v1174
      %1235 = vst.msk [vmem:[#allocation2 + $0x160] sm:$0xff] %vm1212, %v1145
      %1236 = vst [vmem:[#allocation2 + $0x168] sm:$0xff] %v1175
      %1237 = vst.msk [vmem:[#allocation2 + $0x180] sm:$0xff] %vm1212, %v1149
      %1238 = vst [vmem:[#allocation2 + $0x188] sm:$0xff] %v1176
      %1239 = vst.msk [vmem:[#allocation2 + $0x1a0] sm:$0xff] %vm1212, %v1153
      %1240 = vst [vmem:[#allocation2 + $0x1a8] sm:$0xff] %v1177
      %1241 = vst.msk [vmem:[#allocation2 + $0x1c0] sm:$0xff] %vm1212, %v1157
      %1242 = vst [vmem:[#allocation2 + $0x1c8] sm:$0xff] %v1178
      %1243 = vst.msk [vmem:[#allocation2 + $0x1e0] sm:$0xff] %vm1212, %v1161
      %1244 = vst [vmem:[#allocation2 + $0x1e8] sm:$0xff] %v1179
      %1261 = vrot.lane.b32.xlu0 %v701, 127
      %v1262 = vpop.permute.xlu0 %1261
      %1263 = vrot.lane.b32.xlu0 %v706, 127
      %v1264 = vpop.permute.xlu0 %1263
      %1265 = vrot.lane.b32.xlu0 %v711, 127
      %v1266 = vpop.permute.xlu0 %1265
      %1267 = vrot.lane.b32.xlu0 %v716, 127
      %v1268 = vpop.permute.xlu0 %1267
      %1269 = vrot.lane.b32.xlu0 %v721, 127
      %v1270 = vpop.permute.xlu0 %1269
      %1271 = vrot.lane.b32.xlu0 %v726, 127
      %v1272 = vpop.permute.xlu0 %1271
      %1273 = vrot.lane.b32.xlu0 %v731, 127
      %v1274 = vpop.permute.xlu0 %1273
      %1275 = vrot.lane.b32.xlu0 %v736, 127
      %v1276 = vpop.permute.xlu0 %1275
      %1277 = vrot.lane.b32.xlu0 %v741, 127
      %v1278 = vpop.permute.xlu0 %1277
      %1279 = vrot.lane.b32.xlu0 %v746, 127
      %v1280 = vpop.permute.xlu0 %1279
      %1281 = vrot.lane.b32.xlu0 %v751, 127
      %v1282 = vpop.permute.xlu0 %1281
      %1283 = vrot.lane.b32.xlu0 %v756, 127
      %v1284 = vpop.permute.xlu0 %1283
      %1285 = vrot.lane.b32.xlu0 %v761, 127
      %v1286 = vpop.permute.xlu0 %1285
      %1287 = vrot.lane.b32.xlu0 %v766, 127
      %v1288 = vpop.permute.xlu0 %1287
      %1289 = vrot.lane.b32.xlu0 %v771, 127
      %v1290 = vpop.permute.xlu0 %1289
      %1291 = vrot.lane.b32.xlu0 %v776, 127
      %v1292 = vpop.permute.xlu0 %1291
      %vm1309 = vcmask 7168
      %1310 = vst.msk [vmem:[#allocation2 + $0x200] sm:$0xff] %vm1309, %v1262
      %1311 = vst.msk [vmem:[#allocation2 + $0x220] sm:$0xff] %vm1309, %v1264
      %1312 = vst.msk [vmem:[#allocation2 + $0x240] sm:$0xff] %vm1309, %v1266
      %1313 = vst.msk [vmem:[#allocation2 + $0x260] sm:$0xff] %vm1309, %v1268
      %1314 = vst.msk [vmem:[#allocation2 + $0x280] sm:$0xff] %vm1309, %v1270
      %1315 = vst.msk [vmem:[#allocation2 + $0x2a0] sm:$0xff] %vm1309, %v1272
      %1316 = vst.msk [vmem:[#allocation2 + $0x2c0] sm:$0xff] %vm1309, %v1274
      %1317 = vst.msk [vmem:[#allocation2 + $0x2e0] sm:$0xff] %vm1309, %v1276
      %1318 = vst.msk [vmem:[#allocation2 + $0x300] sm:$0xff] %vm1309, %v1278
      %1319 = vst.msk [vmem:[#allocation2 + $0x320] sm:$0xff] %vm1309, %v1280
      %1320 = vst.msk [vmem:[#allocation2 + $0x340] sm:$0xff] %vm1309, %v1282
      %1321 = vst.msk [vmem:[#allocation2 + $0x360] sm:$0xff] %vm1309, %v1284
      %1322 = vst.msk [vmem:[#allocation2 + $0x380] sm:$0xff] %vm1309, %v1286
      %1323 = vst.msk [vmem:[#allocation2 + $0x3a0] sm:$0xff] %vm1309, %v1288
      %1324 = vst.msk [vmem:[#allocation2 + $0x3c0] sm:$0xff] %vm1309, %v1290
      %1325 = vst.msk [vmem:[#allocation2 + $0x3e0] sm:$0xff] %vm1309, %v1292
      %v1326 = vld [vmem:[%s523] sm:$0xff]
      %v1327 = vld [vmem:[%s523 + $0x8] sm:$0xff]
      %v1328 = vld [vmem:[%s523 + $0x10] sm:$0xff]
      %v1329 = vld [vmem:[%s523 + $0x18] sm:$0xff]
      %v1330 = vld [vmem:[%s523 + $0x20] sm:$0xff]
      %v1331 = vld [vmem:[%s523 + $0x28] sm:$0xff]
      %v1332 = vld [vmem:[%s523 + $0x30] sm:$0xff]
      %v1333 = vld [vmem:[%s523 + $0x38] sm:$0xff]
      %v1334 = vld [vmem:[%s523 + $0x40] sm:$0xff]
      %v1335 = vld [vmem:[%s523 + $0x48] sm:$0xff]
      %v1336 = vld [vmem:[%s523 + $0x50] sm:$0xff]
      %v1337 = vld [vmem:[%s523 + $0x58] sm:$0xff]
      %v1338 = vld [vmem:[%s523 + $0x60] sm:$0xff]
      %v1339 = vld [vmem:[%s523 + $0x68] sm:$0xff]
      %v1340 = vld [vmem:[%s523 + $0x70] sm:$0xff]
      %v1341 = vld [vmem:[%s523 + $0x78] sm:$0xff]
      %v1342 = vld [vmem:[%s523 + $0x80] sm:$0xff]
      %v1343 = vld [vmem:[%s523 + $0x88] sm:$0xff]
      %v1344 = vld [vmem:[%s523 + $0x90] sm:$0xff]
      %v1345 = vld [vmem:[%s523 + $0x98] sm:$0xff]
      %v1346 = vld [vmem:[%s523 + $0xa0] sm:$0xff]
      %v1347 = vld [vmem:[%s523 + $0xa8] sm:$0xff]
      %v1348 = vld [vmem:[%s523 + $0xb0] sm:$0xff]
      %v1349 = vld [vmem:[%s523 + $0xb8] sm:$0xff]
      %v1350 = vld [vmem:[%s523 + $0xc0] sm:$0xff]
      %v1351 = vld [vmem:[%s523 + $0xc8] sm:$0xff]
      %v1352 = vld [vmem:[%s523 + $0xd0] sm:$0xff]
      %v1353 = vld [vmem:[%s523 + $0xd8] sm:$0xff]
      %v1354 = vld [vmem:[%s523 + $0xe0] sm:$0xff]
      %v1355 = vld [vmem:[%s523 + $0xe8] sm:$0xff]
      %v1356 = vld [vmem:[%s523 + $0xf0] sm:$0xff]
      %v1357 = vld [vmem:[%s523 + $0xf8] sm:$0xff]
      %1390 = vrot.lane.b32.xlu0 %v1326, 1
      %v1391 = vpop.permute.xlu0 %1390
      %1392 = vrot.lane.b32.xlu0 %v1327, 1
      %v1393 = vpop.permute.xlu0 %1392
      %1394 = vrot.lane.b32.xlu0 %v1328, 1
      %v1395 = vpop.permute.xlu0 %1394
      %1396 = vrot.lane.b32.xlu0 %v1329, 1
      %v1397 = vpop.permute.xlu0 %1396
      %1398 = vrot.lane.b32.xlu0 %v1330, 1
      %v1399 = vpop.permute.xlu0 %1398
      %1400 = vrot.lane.b32.xlu0 %v1331, 1
      %v1401 = vpop.permute.xlu0 %1400
      %1402 = vrot.lane.b32.xlu0 %v1332, 1
      %v1403 = vpop.permute.xlu0 %1402
      %1404 = vrot.lane.b32.xlu0 %v1333, 1
      %v1405 = vpop.permute.xlu0 %1404
      %1406 = vrot.lane.b32.xlu0 %v1334, 1
      %v1407 = vpop.permute.xlu0 %1406
      %1408 = vrot.lane.b32.xlu0 %v1335, 1
      %v1409 = vpop.permute.xlu0 %1408
      %1410 = vrot.lane.b32.xlu0 %v1336, 1
      %v1411 = vpop.permute.xlu0 %1410
      %1412 = vrot.lane.b32.xlu0 %v1337, 1
      %v1413 = vpop.permute.xlu0 %1412
      %1414 = vrot.lane.b32.xlu0 %v1338, 1
      %v1415 = vpop.permute.xlu0 %1414
      %1416 = vrot.lane.b32.xlu0 %v1339, 1
      %v1417 = vpop.permute.xlu0 %1416
      %1418 = vrot.lane.b32.xlu0 %v1340, 1
      %v1419 = vpop.permute.xlu0 %1418
      %1420 = vrot.lane.b32.xlu0 %v1341, 1
      %v1421 = vpop.permute.xlu0 %1420
      %1422 = vrot.lane.b32.xlu0 %v1342, 1
      %v1423 = vpop.permute.xlu0 %1422
      %1424 = vrot.lane.b32.xlu0 %v1343, 1
      %v1425 = vpop.permute.xlu0 %1424
      %1426 = vrot.lane.b32.xlu0 %v1344, 1
      %v1427 = vpop.permute.xlu0 %1426
      %1428 = vrot.lane.b32.xlu0 %v1345, 1
      %v1429 = vpop.permute.xlu0 %1428
      %1430 = vrot.lane.b32.xlu0 %v1346, 1
      %v1431 = vpop.permute.xlu0 %1430
      %1432 = vrot.lane.b32.xlu0 %v1347, 1
      %v1433 = vpop.permute.xlu0 %1432
      %1434 = vrot.lane.b32.xlu0 %v1348, 1
      %v1435 = vpop.permute.xlu0 %1434
      %1436 = vrot.lane.b32.xlu0 %v1349, 1
      %v1437 = vpop.permute.xlu0 %1436
      %1438 = vrot.lane.b32.xlu0 %v1350, 1
      %v1439 = vpop.permute.xlu0 %1438
      %1440 = vrot.lane.b32.xlu0 %v1351, 1
      %v1441 = vpop.permute.xlu0 %1440
      %1442 = vrot.lane.b32.xlu0 %v1352, 1
      %v1443 = vpop.permute.xlu0 %1442
      %1444 = vrot.lane.b32.xlu0 %v1353, 1
      %v1445 = vpop.permute.xlu0 %1444
      %1446 = vrot.lane.b32.xlu0 %v1354, 1
      %v1447 = vpop.permute.xlu0 %1446
      %1448 = vrot.lane.b32.xlu0 %v1355, 1
      %v1449 = vpop.permute.xlu0 %1448
      %1450 = vrot.lane.b32.xlu0 %v1356, 1
      %v1451 = vpop.permute.xlu0 %1450
      %1452 = vrot.lane.b32.xlu0 %v1357, 1
      %v1453 = vpop.permute.xlu0 %1452
      %v1454 = vsel %vm1309, %v1391, %v1393
      %v1455 = vsel %vm1309, %v1395, %v1397
      %v1456 = vsel %vm1309, %v1399, %v1401
      %v1457 = vsel %vm1309, %v1403, %v1405
      %v1458 = vsel %vm1309, %v1407, %v1409
      %v1459 = vsel %vm1309, %v1411, %v1413
      %v1460 = vsel %vm1309, %v1415, %v1417
      %v1461 = vsel %vm1309, %v1419, %v1421
      %v1462 = vsel %vm1309, %v1423, %v1425
      %v1463 = vsel %vm1309, %v1427, %v1429
      %v1464 = vsel %vm1309, %v1431, %v1433
      %v1465 = vsel %vm1309, %v1435, %v1437
      %v1466 = vsel %vm1309, %v1439, %v1441
      %v1467 = vsel %vm1309, %v1443, %v1445
      %v1468 = vsel %vm1309, %v1447, %v1449
      %v1469 = vsel %vm1309, %v1451, %v1453
      %vm1502 = vcmask 1047560
      %1503 = vst.msk [vmem:[#allocation2 + $0x200] sm:$0xff] %vm1502, %v1391
      %1504 = vst [vmem:[#allocation2 + $0x208] sm:$0xff] %v1454
      %1505 = vst.msk [vmem:[#allocation2 + $0x220] sm:$0xff] %vm1502, %v1395
      %1506 = vst [vmem:[#allocation2 + $0x228] sm:$0xff] %v1455
      %1507 = vst.msk [vmem:[#allocation2 + $0x240] sm:$0xff] %vm1502, %v1399
      %1508 = vst [vmem:[#allocation2 + $0x248] sm:$0xff] %v1456
      %1509 = vst.msk [vmem:[#allocation2 + $0x260] sm:$0xff] %vm1502, %v1403
      %1510 = vst [vmem:[#allocation2 + $0x268] sm:$0xff] %v1457
      %1511 = vst.msk [vmem:[#allocation2 + $0x280] sm:$0xff] %vm1502, %v1407
      %1512 = vst [vmem:[#allocation2 + $0x288] sm:$0xff] %v1458
      %1513 = vst.msk [vmem:[#allocation2 + $0x2a0] sm:$0xff] %vm1502, %v1411
      %1514 = vst [vmem:[#allocation2 + $0x2a8] sm:$0xff] %v1459
      %1515 = vst.msk [vmem:[#allocation2 + $0x2c0] sm:$0xff] %vm1502, %v1415
      %1516 = vst [vmem:[#allocation2 + $0x2c8] sm:$0xff] %v1460
      %1517 = vst.msk [vmem:[#allocation2 + $0x2e0] sm:$0xff] %vm1502, %v1419
      %1518 = vst [vmem:[#allocation2 + $0x2e8] sm:$0xff] %v1461
      %1519 = vst.msk [vmem:[#allocation2 + $0x300] sm:$0xff] %vm1502, %v1423
      %1520 = vst [vmem:[#allocation2 + $0x308] sm:$0xff] %v1462
      %1521 = vst.msk [vmem:[#allocation2 + $0x320] sm:$0xff] %vm1502, %v1427
      %1522 = vst [vmem:[#allocation2 + $0x328] sm:$0xff] %v1463
      %1523 = vst.msk [vmem:[#allocation2 + $0x340] sm:$0xff] %vm1502, %v1431
      %1524 = vst [vmem:[#allocation2 + $0x348] sm:$0xff] %v1464
      %1525 = vst.msk [vmem:[#allocation2 + $0x360] sm:$0xff] %vm1502, %v1435
      %1526 = vst [vmem:[#allocation2 + $0x368] sm:$0xff] %v1465
      %1527 = vst.msk [vmem:[#allocation2 + $0x380] sm:$0xff] %vm1502, %v1439
      %1528 = vst [vmem:[#allocation2 + $0x388] sm:$0xff] %v1466
      %1529 = vst.msk [vmem:[#allocation2 + $0x3a0] sm:$0xff] %vm1502, %v1443
      %1530 = vst [vmem:[#allocation2 + $0x3a8] sm:$0xff] %v1467
      %1531 = vst.msk [vmem:[#allocation2 + $0x3c0] sm:$0xff] %vm1502, %v1447
      %1532 = vst [vmem:[#allocation2 + $0x3c8] sm:$0xff] %v1468
      %1533 = vst.msk [vmem:[#allocation2 + $0x3e0] sm:$0xff] %vm1502, %v1451
      %1534 = vst [vmem:[#allocation2 + $0x3e8] sm:$0xff] %v1469
      %v1535 = vld [vmem:[%s523] sm:$0xff]
      %v1536 = vld [vmem:[%s523 + $0x8] sm:$0xff]
      %v1537 = vld [vmem:[%s523 + $0x10] sm:$0xff]
      %v1538 = vld [vmem:[%s523 + $0x18] sm:$0xff]
      %v1539 = vld [vmem:[%s523 + $0x20] sm:$0xff]
      %v1540 = vld [vmem:[%s523 + $0x28] sm:$0xff]
      %v1541 = vld [vmem:[%s523 + $0x30] sm:$0xff]
      %v1542 = vld [vmem:[%s523 + $0x38] sm:$0xff]
      %v1543 = vld [vmem:[%s523 + $0x40] sm:$0xff]
      %v1544 = vld [vmem:[%s523 + $0x48] sm:$0xff]
      %v1545 = vld [vmem:[%s523 + $0x50] sm:$0xff]
      %v1546 = vld [vmem:[%s523 + $0x58] sm:$0xff]
      %v1547 = vld [vmem:[%s523 + $0x60] sm:$0xff]
      %v1548 = vld [vmem:[%s523 + $0x68] sm:$0xff]
      %v1549 = vld [vmem:[%s523 + $0x70] sm:$0xff]
      %v1550 = vld [vmem:[%s523 + $0x78] sm:$0xff]
      %v1551 = vld [vmem:[%s523 + $0x80] sm:$0xff]
      %v1552 = vld [vmem:[%s523 + $0x88] sm:$0xff]
      %v1553 = vld [vmem:[%s523 + $0x90] sm:$0xff]
      %v1554 = vld [vmem:[%s523 + $0x98] sm:$0xff]
      %v1555 = vld [vmem:[%s523 + $0xa0] sm:$0xff]
      %v1556 = vld [vmem:[%s523 + $0xa8] sm:$0xff]
      %v1557 = vld [vmem:[%s523 + $0xb0] sm:$0xff]
      %v1558 = vld [vmem:[%s523 + $0xb8] sm:$0xff]
      %v1559 = vld [vmem:[%s523 + $0xc0] sm:$0xff]
      %v1560 = vld [vmem:[%s523 + $0xc8] sm:$0xff]
      %v1561 = vld [vmem:[%s523 + $0xd0] sm:$0xff]
      %v1562 = vld [vmem:[%s523 + $0xd8] sm:$0xff]
      %v1563 = vld [vmem:[%s523 + $0xe0] sm:$0xff]
      %v1564 = vld [vmem:[%s523 + $0xe8] sm:$0xff]
      %v1565 = vld [vmem:[%s523 + $0xf0] sm:$0xff]
      %v1566 = vld [vmem:[%s523 + $0xf8] sm:$0xff]
      %1567 = vst [vmem:[#allocation2 + $0x400] sm:$0xff] %v1535
      %1568 = vst [vmem:[#allocation2 + $0x408] sm:$0xff] %v1536
      %1569 = vst [vmem:[#allocation2 + $0x420] sm:$0xff] %v1537
      %1570 = vst [vmem:[#allocation2 + $0x428] sm:$0xff] %v1538
      %1571 = vst [vmem:[#allocation2 + $0x440] sm:$0xff] %v1539
      %1572 = vst [vmem:[#allocation2 + $0x448] sm:$0xff] %v1540
      %1573 = vst [vmem:[#allocation2 + $0x460] sm:$0xff] %v1541
      %1574 = vst [vmem:[#allocation2 + $0x468] sm:$0xff] %v1542
      %1575 = vst [vmem:[#allocation2 + $0x480] sm:$0xff] %v1543
      %1576 = vst [vmem:[#allocation2 + $0x488] sm:$0xff] %v1544
      %1577 = vst [vmem:[#allocation2 + $0x4a0] sm:$0xff] %v1545
      %1578 = vst [vmem:[#allocation2 + $0x4a8] sm:$0xff] %v1546
      %1579 = vst [vmem:[#allocation2 + $0x4c0] sm:$0xff] %v1547
      %1580 = vst [vmem:[#allocation2 + $0x4c8] sm:$0xff] %v1548
      %1581 = vst [vmem:[#allocation2 + $0x4e0] sm:$0xff] %v1549
      %1582 = vst [vmem:[#allocation2 + $0x4e8] sm:$0xff] %v1550
      %1583 = vst [vmem:[#allocation2 + $0x500] sm:$0xff] %v1551
      %1584 = vst [vmem:[#allocation2 + $0x508] sm:$0xff] %v1552
      %1585 = vst [vmem:[#allocation2 + $0x520] sm:$0xff] %v1553
      %1586 = vst [vmem:[#allocation2 + $0x528] sm:$0xff] %v1554
      %1587 = vst [vmem:[#allocation2 + $0x540] sm:$0xff] %v1555
      %1588 = vst [vmem:[#allocation2 + $0x548] sm:$0xff] %v1556
      %1589 = vst [vmem:[#allocation2 + $0x560] sm:$0xff] %v1557
      %1590 = vst [vmem:[#allocation2 + $0x568] sm:$0xff] %v1558
      %1591 = vst [vmem:[#allocation2 + $0x580] sm:$0xff] %v1559
      %1592 = vst [vmem:[#allocation2 + $0x588] sm:$0xff] %v1560
      %1593 = vst [vmem:[#allocation2 + $0x5a0] sm:$0xff] %v1561
      %1594 = vst [vmem:[#allocation2 + $0x5a8] sm:$0xff] %v1562
      %1595 = vst [vmem:[#allocation2 + $0x5c0] sm:$0xff] %v1563
      %1596 = vst [vmem:[#allocation2 + $0x5c8] sm:$0xff] %v1564
      %1597 = vst [vmem:[#allocation2 + $0x5e0] sm:$0xff] %v1565
      %1598 = vst [vmem:[#allocation2 + $0x5e8] sm:$0xff] %v1566
      %v1599 = vld [vmem:[%s523] sm:$0xff]
      %v1600 = vld [vmem:[%s523 + $0x8] sm:$0xff]
      %v1601 = vld [vmem:[%s523 + $0x10] sm:$0xff]
      %v1602 = vld [vmem:[%s523 + $0x18] sm:$0xff]
      %v1603 = vld [vmem:[%s523 + $0x20] sm:$0xff]
      %v1604 = vld [vmem:[%s523 + $0x28] sm:$0xff]
      %v1605 = vld [vmem:[%s523 + $0x30] sm:$0xff]
      %v1606 = vld [vmem:[%s523 + $0x38] sm:$0xff]
      %v1607 = vld [vmem:[%s523 + $0x40] sm:$0xff]
      %v1608 = vld [vmem:[%s523 + $0x48] sm:$0xff]
      %v1609 = vld [vmem:[%s523 + $0x50] sm:$0xff]
      %v1610 = vld [vmem:[%s523 + $0x58] sm:$0xff]
      %v1611 = vld [vmem:[%s523 + $0x60] sm:$0xff]
      %v1612 = vld [vmem:[%s523 + $0x68] sm:$0xff]
      %v1613 = vld [vmem:[%s523 + $0x70] sm:$0xff]
      %v1614 = vld [vmem:[%s523 + $0x78] sm:$0xff]
      %v1615 = vld [vmem:[%s523 + $0x80] sm:$0xff]
      %v1616 = vld [vmem:[%s523 + $0x88] sm:$0xff]
      %v1617 = vld [vmem:[%s523 + $0x90] sm:$0xff]
      %v1618 = vld [vmem:[%s523 + $0x98] sm:$0xff]
      %v1619 = vld [vmem:[%s523 + $0xa0] sm:$0xff]
      %v1620 = vld [vmem:[%s523 + $0xa8] sm:$0xff]
      %v1621 = vld [vmem:[%s523 + $0xb0] sm:$0xff]
      %v1622 = vld [vmem:[%s523 + $0xb8] sm:$0xff]
      %v1623 = vld [vmem:[%s523 + $0xc0] sm:$0xff]
      %v1624 = vld [vmem:[%s523 + $0xc8] sm:$0xff]
      %v1625 = vld [vmem:[%s523 + $0xd0] sm:$0xff]
      %v1626 = vld [vmem:[%s523 + $0xd8] sm:$0xff]
      %v1627 = vld [vmem:[%s523 + $0xe0] sm:$0xff]
      %v1628 = vld [vmem:[%s523 + $0xe8] sm:$0xff]
      %v1629 = vld [vmem:[%s523 + $0xf0] sm:$0xff]
      %v1630 = vld [vmem:[%s523 + $0xf8] sm:$0xff]
      %1663 = vrot.lane.b32.xlu0 %v1599, 127
      %v1664 = vpop.permute.xlu0 %1663
      %1665 = vrot.lane.b32.xlu0 %v1600, 127
      %v1666 = vpop.permute.xlu0 %1665
      %1667 = vrot.lane.b32.xlu0 %v1601, 127
      %v1668 = vpop.permute.xlu0 %1667
      %1669 = vrot.lane.b32.xlu0 %v1602, 127
      %v1670 = vpop.permute.xlu0 %1669
      %1671 = vrot.lane.b32.xlu0 %v1603, 127
      %v1672 = vpop.permute.xlu0 %1671
      %1673 = vrot.lane.b32.xlu0 %v1604, 127
      %v1674 = vpop.permute.xlu0 %1673
      %1675 = vrot.lane.b32.xlu0 %v1605, 127
      %v1676 = vpop.permute.xlu0 %1675
      %1677 = vrot.lane.b32.xlu0 %v1606, 127
      %v1678 = vpop.permute.xlu0 %1677
      %1679 = vrot.lane.b32.xlu0 %v1607, 127
      %v1680 = vpop.permute.xlu0 %1679
      %1681 = vrot.lane.b32.xlu0 %v1608, 127
      %v1682 = vpop.permute.xlu0 %1681
      %1683 = vrot.lane.b32.xlu0 %v1609, 127
      %v1684 = vpop.permute.xlu0 %1683
      %1685 = vrot.lane.b32.xlu0 %v1610, 127
      %v1686 = vpop.permute.xlu0 %1685
      %1687 = vrot.lane.b32.xlu0 %v1611, 127
      %v1688 = vpop.permute.xlu0 %1687
      %1689 = vrot.lane.b32.xlu0 %v1612, 127
      %v1690 = vpop.permute.xlu0 %1689
      %1691 = vrot.lane.b32.xlu0 %v1613, 127
      %v1692 = vpop.permute.xlu0 %1691
      %1693 = vrot.lane.b32.xlu0 %v1614, 127
      %v1694 = vpop.permute.xlu0 %1693
      %1695 = vrot.lane.b32.xlu0 %v1615, 127
      %v1696 = vpop.permute.xlu0 %1695
      %1697 = vrot.lane.b32.xlu0 %v1616, 127
      %v1698 = vpop.permute.xlu0 %1697
      %1699 = vrot.lane.b32.xlu0 %v1617, 127
      %v1700 = vpop.permute.xlu0 %1699
      %1701 = vrot.lane.b32.xlu0 %v1618, 127
      %v1702 = vpop.permute.xlu0 %1701
      %1703 = vrot.lane.b32.xlu0 %v1619, 127
      %v1704 = vpop.permute.xlu0 %1703
      %1705 = vrot.lane.b32.xlu0 %v1620, 127
      %v1706 = vpop.permute.xlu0 %1705
      %1707 = vrot.lane.b32.xlu0 %v1621, 127
      %v1708 = vpop.permute.xlu0 %1707
      %1709 = vrot.lane.b32.xlu0 %v1622, 127
      %v1710 = vpop.permute.xlu0 %1709
      %1711 = vrot.lane.b32.xlu0 %v1623, 127
      %v1712 = vpop.permute.xlu0 %1711
      %1713 = vrot.lane.b32.xlu0 %v1624, 127
      %v1714 = vpop.permute.xlu0 %1713
      %1715 = vrot.lane.b32.xlu0 %v1625, 127
      %v1716 = vpop.permute.xlu0 %1715
      %1717 = vrot.lane.b32.xlu0 %v1626, 127
      %v1718 = vpop.permute.xlu0 %1717
      %1719 = vrot.lane.b32.xlu0 %v1627, 127
      %v1720 = vpop.permute.xlu0 %1719
      %1721 = vrot.lane.b32.xlu0 %v1628, 127
      %v1722 = vpop.permute.xlu0 %1721
      %1723 = vrot.lane.b32.xlu0 %v1629, 127
      %v1724 = vpop.permute.xlu0 %1723
      %1725 = vrot.lane.b32.xlu0 %v1630, 127
      %v1726 = vpop.permute.xlu0 %1725
      %vm1727 = vcmask 1039360
      %v1728 = vsel %vm1727, %v1664, %v1666
      %v1729 = vsel %vm1727, %v1668, %v1670
      %v1730 = vsel %vm1727, %v1672, %v1674
      %v1731 = vsel %vm1727, %v1676, %v1678
      %v1732 = vsel %vm1727, %v1680, %v1682
      %v1733 = vsel %vm1727, %v1684, %v1686
      %v1734 = vsel %vm1727, %v1688, %v1690
      %v1735 = vsel %vm1727, %v1692, %v1694
      %v1736 = vsel %vm1727, %v1696, %v1698
      %v1737 = vsel %vm1727, %v1700, %v1702
      %v1738 = vsel %vm1727, %v1704, %v1706
      %v1739 = vsel %vm1727, %v1708, %v1710
      %v1740 = vsel %vm1727, %v1712, %v1714
      %v1741 = vsel %vm1727, %v1716, %v1718
      %v1742 = vsel %vm1727, %v1720, %v1722
      %v1743 = vsel %vm1727, %v1724, %v1726
      %1776 = vst [vmem:[#allocation2 + $0x600] sm:$0xff] %v1728
      %1777 = vst.msk [vmem:[#allocation2 + $0x608] sm:$0xff] %vm1727, %v1666
      %1778 = vst [vmem:[#allocation2 + $0x620] sm:$0xff] %v1729
      %1779 = vst.msk [vmem:[#allocation2 + $0x628] sm:$0xff] %vm1727, %v1670
      %1780 = vst [vmem:[#allocation2 + $0x640] sm:$0xff] %v1730
      %1781 = vst.msk [vmem:[#allocation2 + $0x648] sm:$0xff] %vm1727, %v1674
      %1782 = vst [vmem:[#allocation2 + $0x660] sm:$0xff] %v1731
      %1783 = vst.msk [vmem:[#allocation2 + $0x668] sm:$0xff] %vm1727, %v1678
      %1784 = vst [vmem:[#allocation2 + $0x680] sm:$0xff] %v1732
      %1785 = vst.msk [vmem:[#allocation2 + $0x688] sm:$0xff] %vm1727, %v1682
      %1786 = vst [vmem:[#allocation2 + $0x6a0] sm:$0xff] %v1733
      %1787 = vst.msk [vmem:[#allocation2 + $0x6a8] sm:$0xff] %vm1727, %v1686
      %1788 = vst [vmem:[#allocation2 + $0x6c0] sm:$0xff] %v1734
      %1789 = vst.msk [vmem:[#allocation2 + $0x6c8] sm:$0xff] %vm1727, %v1690
      %1790 = vst [vmem:[#allocation2 + $0x6e0] sm:$0xff] %v1735
      %1791 = vst.msk [vmem:[#allocation2 + $0x6e8] sm:$0xff] %vm1727, %v1694
      %1792 = vst [vmem:[#allocation2 + $0x700] sm:$0xff] %v1736
      %1793 = vst.msk [vmem:[#allocation2 + $0x708] sm:$0xff] %vm1727, %v1698
      %1794 = vst [vmem:[#allocation2 + $0x720] sm:$0xff] %v1737
      %1795 = vst.msk [vmem:[#allocation2 + $0x728] sm:$0xff] %vm1727, %v1702
      %1796 = vst [vmem:[#allocation2 + $0x740] sm:$0xff] %v1738
      %1797 = vst.msk [vmem:[#allocation2 + $0x748] sm:$0xff] %vm1727, %v1706
      %1798 = vst [vmem:[#allocation2 + $0x760] sm:$0xff] %v1739
      %1799 = vst.msk [vmem:[#allocation2 + $0x768] sm:$0xff] %vm1727, %v1710
      %1800 = vst [vmem:[#allocation2 + $0x780] sm:$0xff] %v1740
      %1801 = vst.msk [vmem:[#allocation2 + $0x788] sm:$0xff] %vm1727, %v1714
      %1802 = vst [vmem:[#allocation2 + $0x7a0] sm:$0xff] %v1741
      %1803 = vst.msk [vmem:[#allocation2 + $0x7a8] sm:$0xff] %vm1727, %v1718
      %1804 = vst [vmem:[#allocation2 + $0x7c0] sm:$0xff] %v1742
      %1805 = vst.msk [vmem:[#allocation2 + $0x7c8] sm:$0xff] %vm1727, %v1722
      %1806 = vst [vmem:[#allocation2 + $0x7e0] sm:$0xff] %v1743
      %1807 = vst.msk [vmem:[#allocation2 + $0x7e8] sm:$0xff] %vm1727, %v1726
      %1824 = vrot.lane.b32.xlu0 %v942, 127
      %v1825 = vpop.permute.xlu0 %1824
      %1826 = vrot.lane.b32.xlu0 %v947, 127
      %v1827 = vpop.permute.xlu0 %1826
      %1828 = vrot.lane.b32.xlu0 %v952, 127
      %v1829 = vpop.permute.xlu0 %1828
      %1830 = vrot.lane.b32.xlu0 %v957, 127
      %v1831 = vpop.permute.xlu0 %1830
      %1832 = vrot.lane.b32.xlu0 %v962, 127
      %v1833 = vpop.permute.xlu0 %1832
      %1834 = vrot.lane.b32.xlu0 %v967, 127
      %v1835 = vpop.permute.xlu0 %1834
      %1836 = vrot.lane.b32.xlu0 %v972, 127
      %v1837 = vpop.permute.xlu0 %1836
      %1838 = vrot.lane.b32.xlu0 %v977, 127
      %v1839 = vpop.permute.xlu0 %1838
      %1840 = vrot.lane.b32.xlu0 %v982, 127
      %v1841 = vpop.permute.xlu0 %1840
      %1842 = vrot.lane.b32.xlu0 %v987, 127
      %v1843 = vpop.permute.xlu0 %1842
      %1844 = vrot.lane.b32.xlu0 %v992, 127
      %v1845 = vpop.permute.xlu0 %1844
      %1846 = vrot.lane.b32.xlu0 %v997, 127
      %v1847 = vpop.permute.xlu0 %1846
      %1848 = vrot.lane.b32.xlu0 %v1002, 127
      %v1849 = vpop.permute.xlu0 %1848
      %1850 = vrot.lane.b32.xlu0 %v1007, 127
      %v1851 = vpop.permute.xlu0 %1850
      %1852 = vrot.lane.b32.xlu0 %v1012, 127
      %v1853 = vpop.permute.xlu0 %1852
      %1854 = vrot.lane.b32.xlu0 %v1017, 127
      %v1855 = vpop.permute.xlu0 %1854
      %vm1872 = vcmask 1048568
      %1873 = vst.msk [vmem:[#allocation2 + $0x608] sm:$0xff] %vm1872, %v1825
      %1874 = vst.msk [vmem:[#allocation2 + $0x628] sm:$0xff] %vm1872, %v1827
      %1875 = vst.msk [vmem:[#allocation2 + $0x648] sm:$0xff] %vm1872, %v1829
      %1876 = vst.msk [vmem:[#allocation2 + $0x668] sm:$0xff] %vm1872, %v1831
      %1877 = vst.msk [vmem:[#allocation2 + $0x688] sm:$0xff] %vm1872, %v1833
      %1878 = vst.msk [vmem:[#allocation2 + $0x6a8] sm:$0xff] %vm1872, %v1835
      %1879 = vst.msk [vmem:[#allocation2 + $0x6c8] sm:$0xff] %vm1872, %v1837
      %1880 = vst.msk [vmem:[#allocation2 + $0x6e8] sm:$0xff] %vm1872, %v1839
      %1881 = vst.msk [vmem:[#allocation2 + $0x708] sm:$0xff] %vm1872, %v1841
      %1882 = vst.msk [vmem:[#allocation2 + $0x728] sm:$0xff] %vm1872, %v1843
      %1883 = vst.msk [vmem:[#allocation2 + $0x748] sm:$0xff] %vm1872, %v1845
      %1884 = vst.msk [vmem:[#allocation2 + $0x768] sm:$0xff] %vm1872, %v1847
      %1885 = vst.msk [vmem:[#allocation2 + $0x788] sm:$0xff] %vm1872, %v1849
      %1886 = vst.msk [vmem:[#allocation2 + $0x7a8] sm:$0xff] %vm1872, %v1851
      %1887 = vst.msk [vmem:[#allocation2 + $0x7c8] sm:$0xff] %vm1872, %v1853
      %1888 = vst.msk [vmem:[#allocation2 + $0x7e8] sm:$0xff] %vm1872, %v1855
      %v1889 = vld [vmem:[%s523] sm:$0xff]
      %v1890 = vld [vmem:[%s523 + $0x8] sm:$0xff]
      %v1891 = vld [vmem:[%s523 + $0x10] sm:$0xff]
      %v1892 = vld [vmem:[%s523 + $0x18] sm:$0xff]
      %v1893 = vld [vmem:[%s523 + $0x20] sm:$0xff]
      %v1894 = vld [vmem:[%s523 + $0x28] sm:$0xff]
      %v1895 = vld [vmem:[%s523 + $0x30] sm:$0xff]
      %v1896 = vld [vmem:[%s523 + $0x38] sm:$0xff]
      %v1897 = vld [vmem:[%s523 + $0x40] sm:$0xff]
      %v1898 = vld [vmem:[%s523 + $0x48] sm:$0xff]
      %v1899 = vld [vmem:[%s523 + $0x50] sm:$0xff]
      %v1900 = vld [vmem:[%s523 + $0x58] sm:$0xff]
      %v1901 = vld [vmem:[%s523 + $0x60] sm:$0xff]
      %v1902 = vld [vmem:[%s523 + $0x68] sm:$0xff]
      %v1903 = vld [vmem:[%s523 + $0x70] sm:$0xff]
      %v1904 = vld [vmem:[%s523 + $0x78] sm:$0xff]
      %v1905 = vld [vmem:[%s523 + $0x80] sm:$0xff]
      %v1906 = vld [vmem:[%s523 + $0x88] sm:$0xff]
      %v1907 = vld [vmem:[%s523 + $0x90] sm:$0xff]
      %v1908 = vld [vmem:[%s523 + $0x98] sm:$0xff]
      %v1909 = vld [vmem:[%s523 + $0xa0] sm:$0xff]
      %v1910 = vld [vmem:[%s523 + $0xa8] sm:$0xff]
      %v1911 = vld [vmem:[%s523 + $0xb0] sm:$0xff]
      %v1912 = vld [vmem:[%s523 + $0xb8] sm:$0xff]
      %v1913 = vld [vmem:[%s523 + $0xc0] sm:$0xff]
      %v1914 = vld [vmem:[%s523 + $0xc8] sm:$0xff]
      %v1915 = vld [vmem:[%s523 + $0xd0] sm:$0xff]
      %v1916 = vld [vmem:[%s523 + $0xd8] sm:$0xff]
      %v1917 = vld [vmem:[%s523 + $0xe0] sm:$0xff]
      %v1918 = vld [vmem:[%s523 + $0xe8] sm:$0xff]
      %v1919 = vld [vmem:[%s523 + $0xf0] sm:$0xff]
      %v1920 = vld [vmem:[%s523 + $0xf8] sm:$0xff]
      %1953 = vrot.lane.b32.xlu0 %v1889, 126
      %v1954 = vpop.permute.xlu0 %1953
      %1955 = vrot.lane.b32.xlu0 %v1890, 126
      %v1956 = vpop.permute.xlu0 %1955
      %1957 = vrot.lane.b32.xlu0 %v1891, 126
      %v1958 = vpop.permute.xlu0 %1957
      %1959 = vrot.lane.b32.xlu0 %v1892, 126
      %v1960 = vpop.permute.xlu0 %1959
      %1961 = vrot.lane.b32.xlu0 %v1893, 126
      %v1962 = vpop.permute.xlu0 %1961
      %1963 = vrot.lane.b32.xlu0 %v1894, 126
      %v1964 = vpop.permute.xlu0 %1963
      %1965 = vrot.lane.b32.xlu0 %v1895, 126
      %v1966 = vpop.permute.xlu0 %1965
      %1967 = vrot.lane.b32.xlu0 %v1896, 126
      %v1968 = vpop.permute.xlu0 %1967
      %1969 = vrot.lane.b32.xlu0 %v1897, 126
      %v1970 = vpop.permute.xlu0 %1969
      %1971 = vrot.lane.b32.xlu0 %v1898, 126
      %v1972 = vpop.permute.xlu0 %1971
      %1973 = vrot.lane.b32.xlu0 %v1899, 126
      %v1974 = vpop.permute.xlu0 %1973
      %1975 = vrot.lane.b32.xlu0 %v1900, 126
      %v1976 = vpop.permute.xlu0 %1975
      %1977 = vrot.lane.b32.xlu0 %v1901, 126
      %v1978 = vpop.permute.xlu0 %1977
      %1979 = vrot.lane.b32.xlu0 %v1902, 126
      %v1980 = vpop.permute.xlu0 %1979
      %1981 = vrot.lane.b32.xlu0 %v1903, 126
      %v1982 = vpop.permute.xlu0 %1981
      %1983 = vrot.lane.b32.xlu0 %v1904, 126
      %v1984 = vpop.permute.xlu0 %1983
      %1985 = vrot.lane.b32.xlu0 %v1905, 126
      %v1986 = vpop.permute.xlu0 %1985
      %1987 = vrot.lane.b32.xlu0 %v1906, 126
      %v1988 = vpop.permute.xlu0 %1987
      %1989 = vrot.lane.b32.xlu0 %v1907, 126
      %v1990 = vpop.permute.xlu0 %1989
      %1991 = vrot.lane.b32.xlu0 %v1908, 126
      %v1992 = vpop.permute.xlu0 %1991
      %1993 = vrot.lane.b32.xlu0 %v1909, 126
      %v1994 = vpop.permute.xlu0 %1993
      %1995 = vrot.lane.b32.xlu0 %v1910, 126
      %v1996 = vpop.permute.xlu0 %1995
      %1997 = vrot.lane.b32.xlu0 %v1911, 126
      %v1998 = vpop.permute.xlu0 %1997
      %1999 = vrot.lane.b32.xlu0 %v1912, 126
      %v2000 = vpop.permute.xlu0 %1999
      %2001 = vrot.lane.b32.xlu0 %v1913, 126
      %v2002 = vpop.permute.xlu0 %2001
      %2003 = vrot.lane.b32.xlu0 %v1914, 126
      %v2004 = vpop.permute.xlu0 %2003
      %2005 = vrot.lane.b32.xlu0 %v1915, 126
      %v2006 = vpop.permute.xlu0 %2005
      %2007 = vrot.lane.b32.xlu0 %v1916, 126
      %v2008 = vpop.permute.xlu0 %2007
      %2009 = vrot.lane.b32.xlu0 %v1917, 126
      %v2010 = vpop.permute.xlu0 %2009
      %2011 = vrot.lane.b32.xlu0 %v1918, 126
      %v2012 = vpop.permute.xlu0 %2011
      %2013 = vrot.lane.b32.xlu0 %v1919, 126
      %v2014 = vpop.permute.xlu0 %2013
      %2015 = vrot.lane.b32.xlu0 %v1920, 126
      %v2016 = vpop.permute.xlu0 %2015
      %vm2017 = vcmask 1031168
      %v2018 = vsel %vm2017, %v1954, %v1956
      %v2019 = vsel %vm2017, %v1958, %v1960
      %v2020 = vsel %vm2017, %v1962, %v1964
      %v2021 = vsel %vm2017, %v1966, %v1968
      %v2022 = vsel %vm2017, %v1970, %v1972
      %v2023 = vsel %vm2017, %v1974, %v1976
      %v2024 = vsel %vm2017, %v1978, %v1980
      %v2025 = vsel %vm2017, %v1982, %v1984
      %v2026 = vsel %vm2017, %v1986, %v1988
      %v2027 = vsel %vm2017, %v1990, %v1992
      %v2028 = vsel %vm2017, %v1994, %v1996
      %v2029 = vsel %vm2017, %v1998, %v2000
      %v2030 = vsel %vm2017, %v2002, %v2004
      %v2031 = vsel %vm2017, %v2006, %v2008
      %v2032 = vsel %vm2017, %v2010, %v2012
      %v2033 = vsel %vm2017, %v2014, %v2016
      %2066 = vst [vmem:[#allocation2 + $0x800] sm:$0xff] %v2018
      %2067 = vst.msk [vmem:[#allocation2 + $0x808] sm:$0xff] %vm2017, %v1956
      %2068 = vst [vmem:[#allocation2 + $0x820] sm:$0xff] %v2019
      %2069 = vst.msk [vmem:[#allocation2 + $0x828] sm:$0xff] %vm2017, %v1960
      %2070 = vst [vmem:[#allocation2 + $0x840] sm:$0xff] %v2020
      %2071 = vst.msk [vmem:[#allocation2 + $0x848] sm:$0xff] %vm2017, %v1964
      %2072 = vst [vmem:[#allocation2 + $0x860] sm:$0xff] %v2021
      %2073 = vst.msk [vmem:[#allocation2 + $0x868] sm:$0xff] %vm2017, %v1968
      %2074 = vst [vmem:[#allocation2 + $0x880] sm:$0xff] %v2022
      %2075 = vst.msk [vmem:[#allocation2 + $0x888] sm:$0xff] %vm2017, %v1972
      %2076 = vst [vmem:[#allocation2 + $0x8a0] sm:$0xff] %v2023
      %2077 = vst.msk [vmem:[#allocation2 + $0x8a8] sm:$0xff] %vm2017, %v1976
      %2078 = vst [vmem:[#allocation2 + $0x8c0] sm:$0xff] %v2024
      %2079 = vst.msk [vmem:[#allocation2 + $0x8c8] sm:$0xff] %vm2017, %v1980
      %2080 = vst [vmem:[#allocation2 + $0x8e0] sm:$0xff] %v2025
      %2081 = vst.msk [vmem:[#allocation2 + $0x8e8] sm:$0xff] %vm2017, %v1984
      %2082 = vst [vmem:[#allocation2 + $0x900] sm:$0xff] %v2026
      %2083 = vst.msk [vmem:[#allocation2 + $0x908] sm:$0xff] %vm2017, %v1988
      %2084 = vst [vmem:[#allocation2 + $0x920] sm:$0xff] %v2027
      %2085 = vst.msk [vmem:[#allocation2 + $0x928] sm:$0xff] %vm2017, %v1992
      %2086 = vst [vmem:[#allocation2 + $0x940] sm:$0xff] %v2028
      %2087 = vst.msk [vmem:[#allocation2 + $0x948] sm:$0xff] %vm2017, %v1996
      %2088 = vst [vmem:[#allocation2 + $0x960] sm:$0xff] %v2029
      %2089 = vst.msk [vmem:[#allocation2 + $0x968] sm:$0xff] %vm2017, %v2000
      %2090 = vst [vmem:[#allocation2 + $0x980] sm:$0xff] %v2030
      %2091 = vst.msk [vmem:[#allocation2 + $0x988] sm:$0xff] %vm2017, %v2004
      %2092 = vst [vmem:[#allocation2 + $0x9a0] sm:$0xff] %v2031
      %2093 = vst.msk [vmem:[#allocation2 + $0x9a8] sm:$0xff] %vm2017, %v2008
      %2094 = vst [vmem:[#allocation2 + $0x9c0] sm:$0xff] %v2032
      %2095 = vst.msk [vmem:[#allocation2 + $0x9c8] sm:$0xff] %vm2017, %v2012
      %2096 = vst [vmem:[#allocation2 + $0x9e0] sm:$0xff] %v2033
      %2097 = vst.msk [vmem:[#allocation2 + $0x9e8] sm:$0xff] %vm2017, %v2016
      %2098 = vrot.lane.b32.xlu0 %v942, 126
      %v2099 = vpop.permute.xlu0 %2098
      %2100 = vrot.lane.b32.xlu0 %v947, 126
      %v2101 = vpop.permute.xlu0 %2100
      %2102 = vrot.lane.b32.xlu0 %v952, 126
      %v2103 = vpop.permute.xlu0 %2102
      %2104 = vrot.lane.b32.xlu0 %v957, 126
      %v2105 = vpop.permute.xlu0 %2104
      %2106 = vrot.lane.b32.xlu0 %v962, 126
      %v2107 = vpop.permute.xlu0 %2106
      %2108 = vrot.lane.b32.xlu0 %v967, 126
      %v2109 = vpop.permute.xlu0 %2108
      %2110 = vrot.lane.b32.xlu0 %v972, 126
      %v2111 = vpop.permute.xlu0 %2110
      %2112 = vrot.lane.b32.xlu0 %v977, 126
      %v2113 = vpop.permute.xlu0 %2112
      %2114 = vrot.lane.b32.xlu0 %v982, 126
      %v2115 = vpop.permute.xlu0 %2114
      %2116 = vrot.lane.b32.xlu0 %v987, 126
      %v2117 = vpop.permute.xlu0 %2116
      %2118 = vrot.lane.b32.xlu0 %v992, 126
      %v2119 = vpop.permute.xlu0 %2118
      %2120 = vrot.lane.b32.xlu0 %v997, 126
      %v2121 = vpop.permute.xlu0 %2120
      %2122 = vrot.lane.b32.xlu0 %v1002, 126
      %v2123 = vpop.permute.xlu0 %2122
      %2124 = vrot.lane.b32.xlu0 %v1007, 126
      %v2125 = vpop.permute.xlu0 %2124
      %2126 = vrot.lane.b32.xlu0 %v1012, 126
      %v2127 = vpop.permute.xlu0 %2126
      %2128 = vrot.lane.b32.xlu0 %v1017, 126
      %v2129 = vpop.permute.xlu0 %2128
      %vm2146 = vcmask 1048560
      %2147 = vst.msk [vmem:[#allocation2 + $0x808] sm:$0xff] %vm2146, %v2099
      %2148 = vst.msk [vmem:[#allocation2 + $0x828] sm:$0xff] %vm2146, %v2101
      %2149 = vst.msk [vmem:[#allocation2 + $0x848] sm:$0xff] %vm2146, %v2103
      %2150 = vst.msk [vmem:[#allocation2 + $0x868] sm:$0xff] %vm2146, %v2105
      %2151 = vst.msk [vmem:[#allocation2 + $0x888] sm:$0xff] %vm2146, %v2107
      %2152 = vst.msk [vmem:[#allocation2 + $0x8a8] sm:$0xff] %vm2146, %v2109
      %2153 = vst.msk [vmem:[#allocation2 + $0x8c8] sm:$0xff] %vm2146, %v2111
      %2154 = vst.msk [vmem:[#allocation2 + $0x8e8] sm:$0xff] %vm2146, %v2113
      %2155 = vst.msk [vmem:[#allocation2 + $0x908] sm:$0xff] %vm2146, %v2115
      %2156 = vst.msk [vmem:[#allocation2 + $0x928] sm:$0xff] %vm2146, %v2117
      %2157 = vst.msk [vmem:[#allocation2 + $0x948] sm:$0xff] %vm2146, %v2119
      %2158 = vst.msk [vmem:[#allocation2 + $0x968] sm:$0xff] %vm2146, %v2121
      %2159 = vst.msk [vmem:[#allocation2 + $0x988] sm:$0xff] %vm2146, %v2123
      %2160 = vst.msk [vmem:[#allocation2 + $0x9a8] sm:$0xff] %vm2146, %v2125
      %2161 = vst.msk [vmem:[#allocation2 + $0x9c8] sm:$0xff] %vm2146, %v2127
      %2162 = vst.msk [vmem:[#allocation2 + $0x9e8] sm:$0xff] %vm2146, %v2129
      %s2163 = scalar_lea.vmem %s523, 256
      %v2164 = vld [vmem:[%s2163] sm:$0xff]
      %v2165 = vld [vmem:[%s2163 + $0x10] sm:$0xff]
      %v2166 = vld [vmem:[%s2163 + $0x20] sm:$0xff]
      %v2167 = vld [vmem:[%s2163 + $0x30] sm:$0xff]
      %v2168 = vld [vmem:[%s2163 + $0x40] sm:$0xff]
      %v2169 = vld [vmem:[%s2163 + $0x50] sm:$0xff]
      %v2170 = vld [vmem:[%s2163 + $0x60] sm:$0xff]
      %v2171 = vld [vmem:[%s2163 + $0x70] sm:$0xff]
      %v2172 = vld [vmem:[%s2163 + $0x80] sm:$0xff]
      %v2173 = vld [vmem:[%s2163 + $0x90] sm:$0xff]
      %v2174 = vld [vmem:[%s2163 + $0xa0] sm:$0xff]
      %v2175 = vld [vmem:[%s2163 + $0xb0] sm:$0xff]
      %v2176 = vld [vmem:[%s2163 + $0xc0] sm:$0xff]
      %v2177 = vld [vmem:[%s2163 + $0xd0] sm:$0xff]
      %v2178 = vld [vmem:[%s2163 + $0xe0] sm:$0xff]
      %v2179 = vld [vmem:[%s2163 + $0xf0] sm:$0xff]
      %2196 = vrot.lane.b32.xlu0 %v2164, 127
      %v2197 = vpop.permute.xlu0 %2196
      %2198 = vrot.lane.b32.xlu0 %v2165, 127
      %v2199 = vpop.permute.xlu0 %2198
      %2200 = vrot.lane.b32.xlu0 %v2166, 127
      %v2201 = vpop.permute.xlu0 %2200
      %2202 = vrot.lane.b32.xlu0 %v2167, 127
      %v2203 = vpop.permute.xlu0 %2202
      %2204 = vrot.lane.b32.xlu0 %v2168, 127
      %v2205 = vpop.permute.xlu0 %2204
      %2206 = vrot.lane.b32.xlu0 %v2169, 127
      %v2207 = vpop.permute.xlu0 %2206
      %2208 = vrot.lane.b32.xlu0 %v2170, 127
      %v2209 = vpop.permute.xlu0 %2208
      %2210 = vrot.lane.b32.xlu0 %v2171, 127
      %v2211 = vpop.permute.xlu0 %2210
      %2212 = vrot.lane.b32.xlu0 %v2172, 127
      %v2213 = vpop.permute.xlu0 %2212
      %2214 = vrot.lane.b32.xlu0 %v2173, 127
      %v2215 = vpop.permute.xlu0 %2214
      %2216 = vrot.lane.b32.xlu0 %v2174, 127
      %v2217 = vpop.permute.xlu0 %2216
      %2218 = vrot.lane.b32.xlu0 %v2175, 127
      %v2219 = vpop.permute.xlu0 %2218
      %2220 = vrot.lane.b32.xlu0 %v2176, 127
      %v2221 = vpop.permute.xlu0 %2220
      %2222 = vrot.lane.b32.xlu0 %v2177, 127
      %v2223 = vpop.permute.xlu0 %2222
      %2224 = vrot.lane.b32.xlu0 %v2178, 127
      %v2225 = vpop.permute.xlu0 %2224
      %2226 = vrot.lane.b32.xlu0 %v2179, 127
      %v2227 = vpop.permute.xlu0 %2226
      %v2228 = vsel %vm597, %v2197, 0
      %v2230 = vsel %vm597, %v2199, 0
      %v2232 = vsel %vm597, %v2201, 0
      %v2234 = vsel %vm597, %v2203, 0
      %v2236 = vsel %vm597, %v2205, 0
      %v2238 = vsel %vm597, %v2207, 0
      %v2240 = vsel %vm597, %v2209, 0
      %v2242 = vsel %vm597, %v2211, 0
      %v2244 = vsel %vm597, %v2213, 0
      %v2246 = vsel %vm597, %v2215, 0
      %v2248 = vsel %vm597, %v2217, 0
      %v2250 = vsel %vm597, %v2219, 0
      %v2252 = vsel %vm597, %v2221, 0
      %v2254 = vsel %vm597, %v2223, 0
      %v2256 = vsel %vm597, %v2225, 0
      %v2258 = vsel %vm597, %v2227, 0
      %2260 = vmatprep.subr.mxu0 0.0
      %2261 = vmatpush1.msra.mxu0 0.0
      %2262 = vmatprep.subr.mxu0 0.0
      %2263 = vmatpush1.msra.mxu0 0.0
      %2264 = vmatprep.subr.mxu0 0.0
      %2265 = vmatpush1.msra.mxu0 0.0
      %2266 = vmatprep.subr.mxu0 0.0
      %2267 = vmatpush1.msra.mxu0 0.0
      %2268 = vmatprep.subr.mxu0 0.0
      %2269 = vmatpush1.msra.mxu0 0.0
      %2270 = vmatprep.subr.mxu0 0.0
      %2271 = vmatpush1.msra.mxu0 0.0
      %2272 = vmatprep.subr.mxu0 0.0
      %2273 = vmatpush1.msra.mxu0 0.0
      %2274 = vmatprep.subr.mxu0 0.0
      %2275 = vmatpush1.msra.mxu0 0.0
      %2276 = vmatprep.subr.mxu0 0.0
      %2277 = vmatpush1.msra.mxu0 0.0
      %2278 = vmatprep.subr.mxu0 0.0
      %2279 = vmatpush1.msra.mxu0 0.0
      %2280 = vmatprep.subr.mxu0 0.0
      %2281 = vmatpush1.msra.mxu0 0.0
      %2282 = vmatprep.subr.mxu0 0.0
      %2283 = vmatpush1.msra.mxu0 0.0
      %2284 = vmatprep.subr.mxu0 0.0
      %2285 = vmatpush1.msra.mxu0 0.0
      %2286 = vmatprep.subr.mxu0 0.0
      %2287 = vmatpush1.msra.mxu0 0.0
      %2288 = vmatprep.subr.mxu0 0.0
      %2289 = vmatpush1.msra.mxu0 0.0
      %2290 = vmatprep.subr.mxu0 0.0
      %2291 = vmatpush1.msra.mxu0 %v632
      %2292 = vmatprep.subr.mxu0 0.0
      %2293 = vmatpush2.msra.mxu0 0.0
      %2294 = vmatprep.subr.mxu0 0.0
      %2295 = vmatpush2.msra.mxu0 0.0
      %2296 = vmatprep.subr.mxu0 0.0
      %2297 = vmatpush2.msra.mxu0 0.0
      %2298 = vmatprep.subr.mxu0 0.0
      %2299 = vmatpush2.msra.mxu0 0.0
      %2300 = vmatprep.subr.mxu0 0.0
      %2301 = vmatpush2.msra.mxu0 0.0
      %2302 = vmatprep.subr.mxu0 0.0
      %2303 = vmatpush2.msra.mxu0 0.0
      %2304 = vmatprep.subr.mxu0 0.0
      %2305 = vmatpush2.msra.mxu0 0.0
      %2306 = vmatprep.subr.mxu0 0.0
      %2307 = vmatpush2.msra.mxu0 0.0
      %2308 = vmatprep.subr.mxu0 0.0
      %2309 = vmatpush2.msra.mxu0 0.0
      %2310 = vmatprep.subr.mxu0 0.0
      %2311 = vmatpush2.msra.mxu0 0.0
      %2312 = vmatprep.subr.mxu0 0.0
      %2313 = vmatpush2.msra.mxu0 0.0
      %2314 = vmatprep.subr.mxu0 0.0
      %2315 = vmatpush2.msra.mxu0 0.0
      %2316 = vmatprep.subr.mxu0 0.0
      %2317 = vmatpush2.msra.mxu0 0.0
      %2318 = vmatprep.subr.mxu0 0.0
      %2319 = vmatpush2.msra.mxu0 0.0
      %2320 = vmatprep.subr.mxu0 0.0
      %2321 = vmatpush2.msra.mxu0 0.0
      %2322 = vmatprep.subr.mxu0 0.0
      %2323 = vmatpush2.msra.mxu0 0.0
      %2324 = vmatprep.mubr.f32.mxu0 0.0
      %2325 = vmatmul.mubr.f32.gmra.mxu0 %v2228
      %v2326 = vpop.f32.mrf.mxu0
      %v2327 = vadd.f32 0.0, %v2326
      %v2328 = vpop.f32.mrf.mxu0
      %2329 = vmatprep.mubr.f32.mxu0 0.0
      %2330 = vmatmul.mubr.f32.gmra.mxu0 %v2230
      %v2331 = vpop.f32.mrf.mxu0
      %v2332 = vadd.f32 0.0, %v2331
      %v2333 = vpop.f32.mrf.mxu0
      %2334 = vmatprep.mubr.f32.mxu0 0.0
      %2335 = vmatmul.mubr.f32.gmra.mxu0 %v2232
      %v2336 = vpop.f32.mrf.mxu0
      %v2337 = vadd.f32 0.0, %v2336
      %v2338 = vpop.f32.mrf.mxu0
      %2339 = vmatprep.mubr.f32.mxu0 0.0
      %2340 = vmatmul.mubr.f32.gmra.mxu0 %v2234
      %v2341 = vpop.f32.mrf.mxu0
      %v2342 = vadd.f32 0.0, %v2341
      %v2343 = vpop.f32.mrf.mxu0
      %2344 = vmatprep.mubr.f32.mxu0 0.0
      %2345 = vmatmul.mubr.f32.gmra.mxu0 %v2236
      %v2346 = vpop.f32.mrf.mxu0
      %v2347 = vadd.f32 0.0, %v2346
      %v2348 = vpop.f32.mrf.mxu0
      %2349 = vmatprep.mubr.f32.mxu0 0.0
      %2350 = vmatmul.mubr.f32.gmra.mxu0 %v2238
      %v2351 = vpop.f32.mrf.mxu0
      %v2352 = vadd.f32 0.0, %v2351
      %v2353 = vpop.f32.mrf.mxu0
      %2354 = vmatprep.mubr.f32.mxu0 0.0
      %2355 = vmatmul.mubr.f32.gmra.mxu0 %v2240
      %v2356 = vpop.f32.mrf.mxu0
      %v2357 = vadd.f32 0.0, %v2356
      %v2358 = vpop.f32.mrf.mxu0
      %2359 = vmatprep.mubr.f32.mxu0 0.0
      %2360 = vmatmul.mubr.f32.gmra.mxu0 %v2242
      %v2361 = vpop.f32.mrf.mxu0
      %v2362 = vadd.f32 0.0, %v2361
      %v2363 = vpop.f32.mrf.mxu0
      %2364 = vmatprep.mubr.f32.mxu0 0.0
      %2365 = vmatmul.mubr.f32.gmra.mxu0 %v2244
      %v2366 = vpop.f32.mrf.mxu0
      %v2367 = vadd.f32 0.0, %v2366
      %v2368 = vpop.f32.mrf.mxu0
      %2369 = vmatprep.mubr.f32.mxu0 0.0
      %2370 = vmatmul.mubr.f32.gmra.mxu0 %v2246
      %v2371 = vpop.f32.mrf.mxu0
      %v2372 = vadd.f32 0.0, %v2371
      %v2373 = vpop.f32.mrf.mxu0
      %2374 = vmatprep.mubr.f32.mxu0 0.0
      %2375 = vmatmul.mubr.f32.gmra.mxu0 %v2248
      %v2376 = vpop.f32.mrf.mxu0
      %v2377 = vadd.f32 0.0, %v2376
      %v2378 = vpop.f32.mrf.mxu0
      %2379 = vmatprep.mubr.f32.mxu0 0.0
      %2380 = vmatmul.mubr.f32.gmra.mxu0 %v2250
      %v2381 = vpop.f32.mrf.mxu0
      %v2382 = vadd.f32 0.0, %v2381
      %v2383 = vpop.f32.mrf.mxu0
      %2384 = vmatprep.mubr.f32.mxu0 0.0
      %2385 = vmatmul.mubr.f32.gmra.mxu0 %v2252
      %v2386 = vpop.f32.mrf.mxu0
      %v2387 = vadd.f32 0.0, %v2386
      %v2388 = vpop.f32.mrf.mxu0
      %2389 = vmatprep.mubr.f32.mxu0 0.0
      %2390 = vmatmul.mubr.f32.gmra.mxu0 %v2254
      %v2391 = vpop.f32.mrf.mxu0
      %v2392 = vadd.f32 0.0, %v2391
      %v2393 = vpop.f32.mrf.mxu0
      %2394 = vmatprep.mubr.f32.mxu0 0.0
      %2395 = vmatmul.mubr.f32.gmra.mxu0 %v2256
      %v2396 = vpop.f32.mrf.mxu0
      %v2397 = vadd.f32 0.0, %v2396
      %v2398 = vpop.f32.mrf.mxu0
      %2399 = vmatprep.mubr.f32.mxu0 0.0
      %2400 = vmatmul.mubr.f32.gmra.mxu0 %v2258
      %v2401 = vpop.f32.mrf.mxu0
      %v2402 = vadd.f32 0.0, %v2401
      %v2403 = vpop.f32.mrf.mxu0
      %2404 = vdwg.mxu0
      %v2405 = vld [vmem:[%s2163 + $0x8] sm:$0xff]
      %v2406 = vld [vmem:[%s2163 + $0x18] sm:$0xff]
      %v2407 = vld [vmem:[%s2163 + $0x28] sm:$0xff]
      %v2408 = vld [vmem:[%s2163 + $0x38] sm:$0xff]
      %v2409 = vld [vmem:[%s2163 + $0x48] sm:$0xff]
      %v2410 = vld [vmem:[%s2163 + $0x58] sm:$0xff]
      %v2411 = vld [vmem:[%s2163 + $0x68] sm:$0xff]
      %v2412 = vld [vmem:[%s2163 + $0x78] sm:$0xff]
      %v2413 = vld [vmem:[%s2163 + $0x88] sm:$0xff]
      %v2414 = vld [vmem:[%s2163 + $0x98] sm:$0xff]
      %v2415 = vld [vmem:[%s2163 + $0xa8] sm:$0xff]
      %v2416 = vld [vmem:[%s2163 + $0xb8] sm:$0xff]
      %v2417 = vld [vmem:[%s2163 + $0xc8] sm:$0xff]
      %v2418 = vld [vmem:[%s2163 + $0xd8] sm:$0xff]
      %v2419 = vld [vmem:[%s2163 + $0xe8] sm:$0xff]
      %v2420 = vld [vmem:[%s2163 + $0xf8] sm:$0xff]
      %2437 = vrot.lane.b32.xlu0 %v2405, 3
      %v2438 = vpop.permute.xlu0 %2437
      %2439 = vrot.lane.b32.xlu0 %v2406, 3
      %v2440 = vpop.permute.xlu0 %2439
      %2441 = vrot.lane.b32.xlu0 %v2407, 3
      %v2442 = vpop.permute.xlu0 %2441
      %2443 = vrot.lane.b32.xlu0 %v2408, 3
      %v2444 = vpop.permute.xlu0 %2443
      %2445 = vrot.lane.b32.xlu0 %v2409, 3
      %v2446 = vpop.permute.xlu0 %2445
      %2447 = vrot.lane.b32.xlu0 %v2410, 3
      %v2448 = vpop.permute.xlu0 %2447
      %2449 = vrot.lane.b32.xlu0 %v2411, 3
      %v2450 = vpop.permute.xlu0 %2449
      %2451 = vrot.lane.b32.xlu0 %v2412, 3
      %v2452 = vpop.permute.xlu0 %2451
      %2453 = vrot.lane.b32.xlu0 %v2413, 3
      %v2454 = vpop.permute.xlu0 %2453
      %2455 = vrot.lane.b32.xlu0 %v2414, 3
      %v2456 = vpop.permute.xlu0 %2455
      %2457 = vrot.lane.b32.xlu0 %v2415, 3
      %v2458 = vpop.permute.xlu0 %2457
      %2459 = vrot.lane.b32.xlu0 %v2416, 3
      %v2460 = vpop.permute.xlu0 %2459
      %2461 = vrot.lane.b32.xlu0 %v2417, 3
      %v2462 = vpop.permute.xlu0 %2461
      %2463 = vrot.lane.b32.xlu0 %v2418, 3
      %v2464 = vpop.permute.xlu0 %2463
      %2465 = vrot.lane.b32.xlu0 %v2419, 3
      %v2466 = vpop.permute.xlu0 %2465
      %2467 = vrot.lane.b32.xlu0 %v2420, 3
      %v2468 = vpop.permute.xlu0 %2467
      %v2469 = vsel %vm597, %v2438, 0
      %v2471 = vsel %vm597, %v2440, 0
      %v2473 = vsel %vm597, %v2442, 0
      %v2475 = vsel %vm597, %v2444, 0
      %v2477 = vsel %vm597, %v2446, 0
      %v2479 = vsel %vm597, %v2448, 0
      %v2481 = vsel %vm597, %v2450, 0
      %v2483 = vsel %vm597, %v2452, 0
      %v2485 = vsel %vm597, %v2454, 0
      %v2487 = vsel %vm597, %v2456, 0
      %v2489 = vsel %vm597, %v2458, 0
      %v2491 = vsel %vm597, %v2460, 0
      %v2493 = vsel %vm597, %v2462, 0
      %v2495 = vsel %vm597, %v2464, 0
      %v2497 = vsel %vm597, %v2466, 0
      %v2499 = vsel %vm597, %v2468, 0
      %2501 = vmatprep.subr.mxu0 0.0
      %2502 = vmatpush1.msra.mxu0 0.0
      %2503 = vmatprep.subr.mxu0 0.0
      %2504 = vmatpush1.msra.mxu0 0.0
      %2505 = vmatprep.subr.mxu0 0.0
      %2506 = vmatpush1.msra.mxu0 0.0
      %2507 = vmatprep.subr.mxu0 0.0
      %2508 = vmatpush1.msra.mxu0 0.0
      %2509 = vmatprep.subr.mxu0 0.0
      %2510 = vmatpush1.msra.mxu0 0.0
      %2511 = vmatprep.subr.mxu0 0.0
      %2512 = vmatpush1.msra.mxu0 0.0
      %2513 = vmatprep.subr.mxu0 0.0
      %2514 = vmatpush1.msra.mxu0 0.0
      %2515 = vmatprep.subr.mxu0 0.0
      %2516 = vmatpush1.msra.mxu0 0.0
      %2517 = vmatprep.subr.mxu0 0.0
      %2518 = vmatpush1.msra.mxu0 0.0
      %2519 = vmatprep.subr.mxu0 0.0
      %2520 = vmatpush1.msra.mxu0 0.0
      %2521 = vmatprep.subr.mxu0 0.0
      %2522 = vmatpush1.msra.mxu0 0.0
      %2523 = vmatprep.subr.mxu0 0.0
      %2524 = vmatpush1.msra.mxu0 0.0
      %2525 = vmatprep.subr.mxu0 0.0
      %2526 = vmatpush1.msra.mxu0 0.0
      %2527 = vmatprep.subr.mxu0 0.0
      %2528 = vmatpush1.msra.mxu0 0.0
      %2529 = vmatprep.subr.mxu0 0.0
      %2530 = vmatpush1.msra.mxu0 0.0
      %2531 = vmatprep.subr.mxu0 0.0
      %2532 = vmatpush1.msra.mxu0 %v632
      %2533 = vmatprep.subr.mxu0 0.0
      %2534 = vmatpush2.msra.mxu0 0.0
      %2535 = vmatprep.subr.mxu0 0.0
      %2536 = vmatpush2.msra.mxu0 0.0
      %2537 = vmatprep.subr.mxu0 0.0
      %2538 = vmatpush2.msra.mxu0 0.0
      %2539 = vmatprep.subr.mxu0 0.0
      %2540 = vmatpush2.msra.mxu0 0.0
      %2541 = vmatprep.subr.mxu0 0.0
      %2542 = vmatpush2.msra.mxu0 0.0
      %2543 = vmatprep.subr.mxu0 0.0
      %2544 = vmatpush2.msra.mxu0 0.0
      %2545 = vmatprep.subr.mxu0 0.0
      %2546 = vmatpush2.msra.mxu0 0.0
      %2547 = vmatprep.subr.mxu0 0.0
      %2548 = vmatpush2.msra.mxu0 0.0
      %2549 = vmatprep.subr.mxu0 0.0
      %2550 = vmatpush2.msra.mxu0 0.0
      %2551 = vmatprep.subr.mxu0 0.0
      %2552 = vmatpush2.msra.mxu0 0.0
      %2553 = vmatprep.subr.mxu0 0.0
      %2554 = vmatpush2.msra.mxu0 0.0
      %2555 = vmatprep.subr.mxu0 0.0
      %2556 = vmatpush2.msra.mxu0 0.0
      %2557 = vmatprep.subr.mxu0 0.0
      %2558 = vmatpush2.msra.mxu0 0.0
      %2559 = vmatprep.subr.mxu0 0.0
      %2560 = vmatpush2.msra.mxu0 0.0
      %2561 = vmatprep.subr.mxu0 0.0
      %2562 = vmatpush2.msra.mxu0 0.0
      %2563 = vmatprep.subr.mxu0 0.0
      %2564 = vmatpush2.msra.mxu0 0.0
      %2565 = vmatprep.mubr.f32.mxu0 0.0
      %2566 = vmatmul.mubr.f32.gmra.mxu0 %v2469
      %v2567 = vpop.f32.mrf.mxu0
      %v2568 = vadd.f32 0.0, %v2567
      %v2569 = vpop.f32.mrf.mxu0
      %2570 = vmatprep.mubr.f32.mxu0 0.0
      %2571 = vmatmul.mubr.f32.gmra.mxu0 %v2471
      %v2572 = vpop.f32.mrf.mxu0
      %v2573 = vadd.f32 0.0, %v2572
      %v2574 = vpop.f32.mrf.mxu0
      %2575 = vmatprep.mubr.f32.mxu0 0.0
      %2576 = vmatmul.mubr.f32.gmra.mxu0 %v2473
      %v2577 = vpop.f32.mrf.mxu0
      %v2578 = vadd.f32 0.0, %v2577
      %v2579 = vpop.f32.mrf.mxu0
      %2580 = vmatprep.mubr.f32.mxu0 0.0
      %2581 = vmatmul.mubr.f32.gmra.mxu0 %v2475
      %v2582 = vpop.f32.mrf.mxu0
      %v2583 = vadd.f32 0.0, %v2582
      %v2584 = vpop.f32.mrf.mxu0
      %2585 = vmatprep.mubr.f32.mxu0 0.0
      %2586 = vmatmul.mubr.f32.gmra.mxu0 %v2477
      %v2587 = vpop.f32.mrf.mxu0
      %v2588 = vadd.f32 0.0, %v2587
      %v2589 = vpop.f32.mrf.mxu0
      %2590 = vmatprep.mubr.f32.mxu0 0.0
      %2591 = vmatmul.mubr.f32.gmra.mxu0 %v2479
      %v2592 = vpop.f32.mrf.mxu0
      %v2593 = vadd.f32 0.0, %v2592
      %v2594 = vpop.f32.mrf.mxu0
      %2595 = vmatprep.mubr.f32.mxu0 0.0
      %2596 = vmatmul.mubr.f32.gmra.mxu0 %v2481
      %v2597 = vpop.f32.mrf.mxu0
      %v2598 = vadd.f32 0.0, %v2597
      %v2599 = vpop.f32.mrf.mxu0
      %2600 = vmatprep.mubr.f32.mxu0 0.0
      %2601 = vmatmul.mubr.f32.gmra.mxu0 %v2483
      %v2602 = vpop.f32.mrf.mxu0
      %v2603 = vadd.f32 0.0, %v2602
      %v2604 = vpop.f32.mrf.mxu0
      %2605 = vmatprep.mubr.f32.mxu0 0.0
      %2606 = vmatmul.mubr.f32.gmra.mxu0 %v2485
      %v2607 = vpop.f32.mrf.mxu0
      %v2608 = vadd.f32 0.0, %v2607
      %v2609 = vpop.f32.mrf.mxu0
      %2610 = vmatprep.mubr.f32.mxu0 0.0
      %2611 = vmatmul.mubr.f32.gmra.mxu0 %v2487
      %v2612 = vpop.f32.mrf.mxu0
      %v2613 = vadd.f32 0.0, %v2612
      %v2614 = vpop.f32.mrf.mxu0
      %2615 = vmatprep.mubr.f32.mxu0 0.0
      %2616 = vmatmul.mubr.f32.gmra.mxu0 %v2489
      %v2617 = vpop.f32.mrf.mxu0
      %v2618 = vadd.f32 0.0, %v2617
      %v2619 = vpop.f32.mrf.mxu0
      %2620 = vmatprep.mubr.f32.mxu0 0.0
      %2621 = vmatmul.mubr.f32.gmra.mxu0 %v2491
      %v2622 = vpop.f32.mrf.mxu0
      %v2623 = vadd.f32 0.0, %v2622
      %v2624 = vpop.f32.mrf.mxu0
      %2625 = vmatprep.mubr.f32.mxu0 0.0
      %2626 = vmatmul.mubr.f32.gmra.mxu0 %v2493
      %v2627 = vpop.f32.mrf.mxu0
      %v2628 = vadd.f32 0.0, %v2627
      %v2629 = vpop.f32.mrf.mxu0
      %2630 = vmatprep.mubr.f32.mxu0 0.0
      %2631 = vmatmul.mubr.f32.gmra.mxu0 %v2495
      %v2632 = vpop.f32.mrf.mxu0
      %v2633 = vadd.f32 0.0, %v2632
      %v2634 = vpop.f32.mrf.mxu0
      %2635 = vmatprep.mubr.f32.mxu0 0.0
      %2636 = vmatmul.mubr.f32.gmra.mxu0 %v2497
      %v2637 = vpop.f32.mrf.mxu0
      %v2638 = vadd.f32 0.0, %v2637
      %v2639 = vpop.f32.mrf.mxu0
      %2640 = vmatprep.mubr.f32.mxu0 0.0
      %2641 = vmatmul.mubr.f32.gmra.mxu0 %v2499
      %v2642 = vpop.f32.mrf.mxu0
      %v2643 = vadd.f32 0.0, %v2642
      %v2644 = vpop.f32.mrf.mxu0
      %2645 = vdwg.mxu0
      %2646 = vst.msk [vmem:[#allocation2 + $0x10] sm:$0xff] %vm597, %v2327
      %2647 = vst.msk [vmem:[#allocation2 + $0x30] sm:$0xff] %vm597, %v2332
      %2648 = vst.msk [vmem:[#allocation2 + $0x50] sm:$0xff] %vm597, %v2337
      %2649 = vst.msk [vmem:[#allocation2 + $0x70] sm:$0xff] %vm597, %v2342
      %2650 = vst.msk [vmem:[#allocation2 + $0x90] sm:$0xff] %vm597, %v2347
      %2651 = vst.msk [vmem:[#allocation2 + $0xb0] sm:$0xff] %vm597, %v2352
      %2652 = vst.msk [vmem:[#allocation2 + $0xd0] sm:$0xff] %vm597, %v2357
      %2653 = vst.msk [vmem:[#allocation2 + $0xf0] sm:$0xff] %vm597, %v2362
      %2654 = vst.msk [vmem:[#allocation2 + $0x110] sm:$0xff] %vm597, %v2367
      %2655 = vst.msk [vmem:[#allocation2 + $0x130] sm:$0xff] %vm597, %v2372
      %2656 = vst.msk [vmem:[#allocation2 + $0x150] sm:$0xff] %vm597, %v2377
      %2657 = vst.msk [vmem:[#allocation2 + $0x170] sm:$0xff] %vm597, %v2382
      %2658 = vst.msk [vmem:[#allocation2 + $0x190] sm:$0xff] %vm597, %v2387
      %2659 = vst.msk [vmem:[#allocation2 + $0x1b0] sm:$0xff] %vm597, %v2392
      %2660 = vst.msk [vmem:[#allocation2 + $0x1d0] sm:$0xff] %vm597, %v2397
      %2661 = vst.msk [vmem:[#allocation2 + $0x1f0] sm:$0xff] %vm597, %v2402
      %v2662 = vld [vmem:[%s2163] sm:$0xff]
      %v2663 = vld [vmem:[%s2163 + $0x8] sm:$0xff]
      %v2664 = vld [vmem:[%s2163 + $0x10] sm:$0xff]
      %v2665 = vld [vmem:[%s2163 + $0x18] sm:$0xff]
      %v2666 = vld [vmem:[%s2163 + $0x20] sm:$0xff]
      %v2667 = vld [vmem:[%s2163 + $0x28] sm:$0xff]
      %v2668 = vld [vmem:[%s2163 + $0x30] sm:$0xff]
      %v2669 = vld [vmem:[%s2163 + $0x38] sm:$0xff]
      %v2670 = vld [vmem:[%s2163 + $0x40] sm:$0xff]
      %v2671 = vld [vmem:[%s2163 + $0x48] sm:$0xff]
      %v2672 = vld [vmem:[%s2163 + $0x50] sm:$0xff]
      %v2673 = vld [vmem:[%s2163 + $0x58] sm:$0xff]
      %v2674 = vld [vmem:[%s2163 + $0x60] sm:$0xff]
      %v2675 = vld [vmem:[%s2163 + $0x68] sm:$0xff]
      %v2676 = vld [vmem:[%s2163 + $0x70] sm:$0xff]
      %v2677 = vld [vmem:[%s2163 + $0x78] sm:$0xff]
      %v2678 = vld [vmem:[%s2163 + $0x80] sm:$0xff]
      %v2679 = vld [vmem:[%s2163 + $0x88] sm:$0xff]
      %v2680 = vld [vmem:[%s2163 + $0x90] sm:$0xff]
      %v2681 = vld [vmem:[%s2163 + $0x98] sm:$0xff]
      %v2682 = vld [vmem:[%s2163 + $0xa0] sm:$0xff]
      %v2683 = vld [vmem:[%s2163 + $0xa8] sm:$0xff]
      %v2684 = vld [vmem:[%s2163 + $0xb0] sm:$0xff]
      %v2685 = vld [vmem:[%s2163 + $0xb8] sm:$0xff]
      %v2686 = vld [vmem:[%s2163 + $0xc0] sm:$0xff]
      %v2687 = vld [vmem:[%s2163 + $0xc8] sm:$0xff]
      %v2688 = vld [vmem:[%s2163 + $0xd0] sm:$0xff]
      %v2689 = vld [vmem:[%s2163 + $0xd8] sm:$0xff]
      %v2690 = vld [vmem:[%s2163 + $0xe0] sm:$0xff]
      %v2691 = vld [vmem:[%s2163 + $0xe8] sm:$0xff]
      %v2692 = vld [vmem:[%s2163 + $0xf0] sm:$0xff]
      %v2693 = vld [vmem:[%s2163 + $0xf8] sm:$0xff]
      %2726 = vrot.lane.b32.xlu0 %v2662, 2
      %v2727 = vpop.permute.xlu0 %2726
      %2728 = vrot.lane.b32.xlu0 %v2663, 2
      %v2729 = vpop.permute.xlu0 %2728
      %2730 = vrot.lane.b32.xlu0 %v2664, 2
      %v2731 = vpop.permute.xlu0 %2730
      %2732 = vrot.lane.b32.xlu0 %v2665, 2
      %v2733 = vpop.permute.xlu0 %2732
      %2734 = vrot.lane.b32.xlu0 %v2666, 2
      %v2735 = vpop.permute.xlu0 %2734
      %2736 = vrot.lane.b32.xlu0 %v2667, 2
      %v2737 = vpop.permute.xlu0 %2736
      %2738 = vrot.lane.b32.xlu0 %v2668, 2
      %v2739 = vpop.permute.xlu0 %2738
      %2740 = vrot.lane.b32.xlu0 %v2669, 2
      %v2741 = vpop.permute.xlu0 %2740
      %2742 = vrot.lane.b32.xlu0 %v2670, 2
      %v2743 = vpop.permute.xlu0 %2742
      %2744 = vrot.lane.b32.xlu0 %v2671, 2
      %v2745 = vpop.permute.xlu0 %2744
      %2746 = vrot.lane.b32.xlu0 %v2672, 2
      %v2747 = vpop.permute.xlu0 %2746
      %2748 = vrot.lane.b32.xlu0 %v2673, 2
      %v2749 = vpop.permute.xlu0 %2748
      %2750 = vrot.lane.b32.xlu0 %v2674, 2
      %v2751 = vpop.permute.xlu0 %2750
      %2752 = vrot.lane.b32.xlu0 %v2675, 2
      %v2753 = vpop.permute.xlu0 %2752
      %2754 = vrot.lane.b32.xlu0 %v2676, 2
      %v2755 = vpop.permute.xlu0 %2754
      %2756 = vrot.lane.b32.xlu0 %v2677, 2
      %v2757 = vpop.permute.xlu0 %2756
      %2758 = vrot.lane.b32.xlu0 %v2678, 2
      %v2759 = vpop.permute.xlu0 %2758
      %2760 = vrot.lane.b32.xlu0 %v2679, 2
      %v2761 = vpop.permute.xlu0 %2760
      %2762 = vrot.lane.b32.xlu0 %v2680, 2
      %v2763 = vpop.permute.xlu0 %2762
      %2764 = vrot.lane.b32.xlu0 %v2681, 2
      %v2765 = vpop.permute.xlu0 %2764
      %2766 = vrot.lane.b32.xlu0 %v2682, 2
      %v2767 = vpop.permute.xlu0 %2766
      %2768 = vrot.lane.b32.xlu0 %v2683, 2
      %v2769 = vpop.permute.xlu0 %2768
      %2770 = vrot.lane.b32.xlu0 %v2684, 2
      %v2771 = vpop.permute.xlu0 %2770
      %2772 = vrot.lane.b32.xlu0 %v2685, 2
      %v2773 = vpop.permute.xlu0 %2772
      %2774 = vrot.lane.b32.xlu0 %v2686, 2
      %v2775 = vpop.permute.xlu0 %2774
      %2776 = vrot.lane.b32.xlu0 %v2687, 2
      %v2777 = vpop.permute.xlu0 %2776
      %2778 = vrot.lane.b32.xlu0 %v2688, 2
      %v2779 = vpop.permute.xlu0 %2778
      %2780 = vrot.lane.b32.xlu0 %v2689, 2
      %v2781 = vpop.permute.xlu0 %2780
      %2782 = vrot.lane.b32.xlu0 %v2690, 2
      %v2783 = vpop.permute.xlu0 %2782
      %2784 = vrot.lane.b32.xlu0 %v2691, 2
      %v2785 = vpop.permute.xlu0 %2784
      %2786 = vrot.lane.b32.xlu0 %v2692, 2
      %v2787 = vpop.permute.xlu0 %2786
      %2788 = vrot.lane.b32.xlu0 %v2693, 2
      %v2789 = vpop.permute.xlu0 %2788
      %v2790 = vsel %vm597, %v2727, %v2729
      %v2791 = vsel %vm597, %v2731, %v2733
      %v2792 = vsel %vm597, %v2735, %v2737
      %v2793 = vsel %vm597, %v2739, %v2741
      %v2794 = vsel %vm597, %v2743, %v2745
      %v2795 = vsel %vm597, %v2747, %v2749
      %v2796 = vsel %vm597, %v2751, %v2753
      %v2797 = vsel %vm597, %v2755, %v2757
      %v2798 = vsel %vm597, %v2759, %v2761
      %v2799 = vsel %vm597, %v2763, %v2765
      %v2800 = vsel %vm597, %v2767, %v2769
      %v2801 = vsel %vm597, %v2771, %v2773
      %v2802 = vsel %vm597, %v2775, %v2777
      %v2803 = vsel %vm597, %v2779, %v2781
      %v2804 = vsel %vm597, %v2783, %v2785
      %v2805 = vsel %vm597, %v2787, %v2789
      %2838 = vst.msk [vmem:[#allocation2 + $0x10] sm:$0xff] %vm1212, %v2727
      %2839 = vst [vmem:[#allocation2 + $0x18] sm:$0xff] %v2790
      %2840 = vst.msk [vmem:[#allocation2 + $0x30] sm:$0xff] %vm1212, %v2731
      %2841 = vst [vmem:[#allocation2 + $0x38] sm:$0xff] %v2791
      %2842 = vst.msk [vmem:[#allocation2 + $0x50] sm:$0xff] %vm1212, %v2735
      %2843 = vst [vmem:[#allocation2 + $0x58] sm:$0xff] %v2792
      %2844 = vst.msk [vmem:[#allocation2 + $0x70] sm:$0xff] %vm1212, %v2739
      %2845 = vst [vmem:[#allocation2 + $0x78] sm:$0xff] %v2793
      %2846 = vst.msk [vmem:[#allocation2 + $0x90] sm:$0xff] %vm1212, %v2743
      %2847 = vst [vmem:[#allocation2 + $0x98] sm:$0xff] %v2794
      %2848 = vst.msk [vmem:[#allocation2 + $0xb0] sm:$0xff] %vm1212, %v2747
      %2849 = vst [vmem:[#allocation2 + $0xb8] sm:$0xff] %v2795
      %2850 = vst.msk [vmem:[#allocation2 + $0xd0] sm:$0xff] %vm1212, %v2751
      %2851 = vst [vmem:[#allocation2 + $0xd8] sm:$0xff] %v2796
      %2852 = vst.msk [vmem:[#allocation2 + $0xf0] sm:$0xff] %vm1212, %v2755
      %2853 = vst [vmem:[#allocation2 + $0xf8] sm:$0xff] %v2797
      %2854 = vst.msk [vmem:[#allocation2 + $0x110] sm:$0xff] %vm1212, %v2759
      %2855 = vst [vmem:[#allocation2 + $0x118] sm:$0xff] %v2798
      %2856 = vst.msk [vmem:[#allocation2 + $0x130] sm:$0xff] %vm1212, %v2763
      %2857 = vst [vmem:[#allocation2 + $0x138] sm:$0xff] %v2799
      %2858 = vst.msk [vmem:[#allocation2 + $0x150] sm:$0xff] %vm1212, %v2767
      %2859 = vst [vmem:[#allocation2 + $0x158] sm:$0xff] %v2800
      %2860 = vst.msk [vmem:[#allocation2 + $0x170] sm:$0xff] %vm1212, %v2771
      %2861 = vst [vmem:[#allocation2 + $0x178] sm:$0xff] %v2801
      %2862 = vst.msk [vmem:[#allocation2 + $0x190] sm:$0xff] %vm1212, %v2775
      %2863 = vst [vmem:[#allocation2 + $0x198] sm:$0xff] %v2802
      %2864 = vst.msk [vmem:[#allocation2 + $0x1b0] sm:$0xff] %vm1212, %v2779
      %2865 = vst [vmem:[#allocation2 + $0x1b8] sm:$0xff] %v2803
      %2866 = vst.msk [vmem:[#allocation2 + $0x1d0] sm:$0xff] %vm1212, %v2783
      %2867 = vst [vmem:[#allocation2 + $0x1d8] sm:$0xff] %v2804
      %2868 = vst.msk [vmem:[#allocation2 + $0x1f0] sm:$0xff] %vm1212, %v2787
      %2869 = vst [vmem:[#allocation2 + $0x1f8] sm:$0xff] %v2805
      %2886 = vrot.lane.b32.xlu0 %v2327, 127
      %v2887 = vpop.permute.xlu0 %2886
      %2888 = vrot.lane.b32.xlu0 %v2332, 127
      %v2889 = vpop.permute.xlu0 %2888
      %2890 = vrot.lane.b32.xlu0 %v2337, 127
      %v2891 = vpop.permute.xlu0 %2890
      %2892 = vrot.lane.b32.xlu0 %v2342, 127
      %v2893 = vpop.permute.xlu0 %2892
      %2894 = vrot.lane.b32.xlu0 %v2347, 127
      %v2895 = vpop.permute.xlu0 %2894
      %2896 = vrot.lane.b32.xlu0 %v2352, 127
      %v2897 = vpop.permute.xlu0 %2896
      %2898 = vrot.lane.b32.xlu0 %v2357, 127
      %v2899 = vpop.permute.xlu0 %2898
      %2900 = vrot.lane.b32.xlu0 %v2362, 127
      %v2901 = vpop.permute.xlu0 %2900
      %2902 = vrot.lane.b32.xlu0 %v2367, 127
      %v2903 = vpop.permute.xlu0 %2902
      %2904 = vrot.lane.b32.xlu0 %v2372, 127
      %v2905 = vpop.permute.xlu0 %2904
      %2906 = vrot.lane.b32.xlu0 %v2377, 127
      %v2907 = vpop.permute.xlu0 %2906
      %2908 = vrot.lane.b32.xlu0 %v2382, 127
      %v2909 = vpop.permute.xlu0 %2908
      %2910 = vrot.lane.b32.xlu0 %v2387, 127
      %v2911 = vpop.permute.xlu0 %2910
      %2912 = vrot.lane.b32.xlu0 %v2392, 127
      %v2913 = vpop.permute.xlu0 %2912
      %2914 = vrot.lane.b32.xlu0 %v2397, 127
      %v2915 = vpop.permute.xlu0 %2914
      %2916 = vrot.lane.b32.xlu0 %v2402, 127
      %v2917 = vpop.permute.xlu0 %2916
      %2934 = vst.msk [vmem:[#allocation2 + $0x210] sm:$0xff] %vm1309, %v2887
      %2935 = vst.msk [vmem:[#allocation2 + $0x230] sm:$0xff] %vm1309, %v2889
      %2936 = vst.msk [vmem:[#allocation2 + $0x250] sm:$0xff] %vm1309, %v2891
      %2937 = vst.msk [vmem:[#allocation2 + $0x270] sm:$0xff] %vm1309, %v2893
      %2938 = vst.msk [vmem:[#allocation2 + $0x290] sm:$0xff] %vm1309, %v2895
      %2939 = vst.msk [vmem:[#allocation2 + $0x2b0] sm:$0xff] %vm1309, %v2897
      %2940 = vst.msk [vmem:[#allocation2 + $0x2d0] sm:$0xff] %vm1309, %v2899
      %2941 = vst.msk [vmem:[#allocation2 + $0x2f0] sm:$0xff] %vm1309, %v2901
      %2942 = vst.msk [vmem:[#allocation2 + $0x310] sm:$0xff] %vm1309, %v2903
      %2943 = vst.msk [vmem:[#allocation2 + $0x330] sm:$0xff] %vm1309, %v2905
      %2944 = vst.msk [vmem:[#allocation2 + $0x350] sm:$0xff] %vm1309, %v2907
      %2945 = vst.msk [vmem:[#allocation2 + $0x370] sm:$0xff] %vm1309, %v2909
      %2946 = vst.msk [vmem:[#allocation2 + $0x390] sm:$0xff] %vm1309, %v2911
      %2947 = vst.msk [vmem:[#allocation2 + $0x3b0] sm:$0xff] %vm1309, %v2913
      %2948 = vst.msk [vmem:[#allocation2 + $0x3d0] sm:$0xff] %vm1309, %v2915
      %2949 = vst.msk [vmem:[#allocation2 + $0x3f0] sm:$0xff] %vm1309, %v2917
      %v2950 = vld [vmem:[%s2163] sm:$0xff]
      %v2951 = vld [vmem:[%s2163 + $0x8] sm:$0xff]
      %v2952 = vld [vmem:[%s2163 + $0x10] sm:$0xff]
      %v2953 = vld [vmem:[%s2163 + $0x18] sm:$0xff]
      %v2954 = vld [vmem:[%s2163 + $0x20] sm:$0xff]
      %v2955 = vld [vmem:[%s2163 + $0x28] sm:$0xff]
      %v2956 = vld [vmem:[%s2163 + $0x30] sm:$0xff]
      %v2957 = vld [vmem:[%s2163 + $0x38] sm:$0xff]
      %v2958 = vld [vmem:[%s2163 + $0x40] sm:$0xff]
      %v2959 = vld [vmem:[%s2163 + $0x48] sm:$0xff]
      %v2960 = vld [vmem:[%s2163 + $0x50] sm:$0xff]
      %v2961 = vld [vmem:[%s2163 + $0x58] sm:$0xff]
      %v2962 = vld [vmem:[%s2163 + $0x60] sm:$0xff]
      %v2963 = vld [vmem:[%s2163 + $0x68] sm:$0xff]
      %v2964 = vld [vmem:[%s2163 + $0x70] sm:$0xff]
      %v2965 = vld [vmem:[%s2163 + $0x78] sm:$0xff]
      %v2966 = vld [vmem:[%s2163 + $0x80] sm:$0xff]
      %v2967 = vld [vmem:[%s2163 + $0x88] sm:$0xff]
      %v2968 = vld [vmem:[%s2163 + $0x90] sm:$0xff]
      %v2969 = vld [vmem:[%s2163 + $0x98] sm:$0xff]
      %v2970 = vld [vmem:[%s2163 + $0xa0] sm:$0xff]
      %v2971 = vld [vmem:[%s2163 + $0xa8] sm:$0xff]
      %v2972 = vld [vmem:[%s2163 + $0xb0] sm:$0xff]
      %v2973 = vld [vmem:[%s2163 + $0xb8] sm:$0xff]
      %v2974 = vld [vmem:[%s2163 + $0xc0] sm:$0xff]
      %v2975 = vld [vmem:[%s2163 + $0xc8] sm:$0xff]
      %v2976 = vld [vmem:[%s2163 + $0xd0] sm:$0xff]
      %v2977 = vld [vmem:[%s2163 + $0xd8] sm:$0xff]
      %v2978 = vld [vmem:[%s2163 + $0xe0] sm:$0xff]
      %v2979 = vld [vmem:[%s2163 + $0xe8] sm:$0xff]
      %v2980 = vld [vmem:[%s2163 + $0xf0] sm:$0xff]
      %v2981 = vld [vmem:[%s2163 + $0xf8] sm:$0xff]
      %3014 = vrot.lane.b32.xlu0 %v2950, 1
      %v3015 = vpop.permute.xlu0 %3014
      %3016 = vrot.lane.b32.xlu0 %v2951, 1
      %v3017 = vpop.permute.xlu0 %3016
      %3018 = vrot.lane.b32.xlu0 %v2952, 1
      %v3019 = vpop.permute.xlu0 %3018
      %3020 = vrot.lane.b32.xlu0 %v2953, 1
      %v3021 = vpop.permute.xlu0 %3020
      %3022 = vrot.lane.b32.xlu0 %v2954, 1
      %v3023 = vpop.permute.xlu0 %3022
      %3024 = vrot.lane.b32.xlu0 %v2955, 1
      %v3025 = vpop.permute.xlu0 %3024
      %3026 = vrot.lane.b32.xlu0 %v2956, 1
      %v3027 = vpop.permute.xlu0 %3026
      %3028 = vrot.lane.b32.xlu0 %v2957, 1
      %v3029 = vpop.permute.xlu0 %3028
      %3030 = vrot.lane.b32.xlu0 %v2958, 1
      %v3031 = vpop.permute.xlu0 %3030
      %3032 = vrot.lane.b32.xlu0 %v2959, 1
      %v3033 = vpop.permute.xlu0 %3032
      %3034 = vrot.lane.b32.xlu0 %v2960, 1
      %v3035 = vpop.permute.xlu0 %3034
      %3036 = vrot.lane.b32.xlu0 %v2961, 1
      %v3037 = vpop.permute.xlu0 %3036
      %3038 = vrot.lane.b32.xlu0 %v2962, 1
      %v3039 = vpop.permute.xlu0 %3038
      %3040 = vrot.lane.b32.xlu0 %v2963, 1
      %v3041 = vpop.permute.xlu0 %3040
      %3042 = vrot.lane.b32.xlu0 %v2964, 1
      %v3043 = vpop.permute.xlu0 %3042
      %3044 = vrot.lane.b32.xlu0 %v2965, 1
      %v3045 = vpop.permute.xlu0 %3044
      %3046 = vrot.lane.b32.xlu0 %v2966, 1
      %v3047 = vpop.permute.xlu0 %3046
      %3048 = vrot.lane.b32.xlu0 %v2967, 1
      %v3049 = vpop.permute.xlu0 %3048
      %3050 = vrot.lane.b32.xlu0 %v2968, 1
      %v3051 = vpop.permute.xlu0 %3050
      %3052 = vrot.lane.b32.xlu0 %v2969, 1
      %v3053 = vpop.permute.xlu0 %3052
      %3054 = vrot.lane.b32.xlu0 %v2970, 1
      %v3055 = vpop.permute.xlu0 %3054
      %3056 = vrot.lane.b32.xlu0 %v2971, 1
      %v3057 = vpop.permute.xlu0 %3056
      %3058 = vrot.lane.b32.xlu0 %v2972, 1
      %v3059 = vpop.permute.xlu0 %3058
      %3060 = vrot.lane.b32.xlu0 %v2973, 1
      %v3061 = vpop.permute.xlu0 %3060
      %3062 = vrot.lane.b32.xlu0 %v2974, 1
      %v3063 = vpop.permute.xlu0 %3062
      %3064 = vrot.lane.b32.xlu0 %v2975, 1
      %v3065 = vpop.permute.xlu0 %3064
      %3066 = vrot.lane.b32.xlu0 %v2976, 1
      %v3067 = vpop.permute.xlu0 %3066
      %3068 = vrot.lane.b32.xlu0 %v2977, 1
      %v3069 = vpop.permute.xlu0 %3068
      %3070 = vrot.lane.b32.xlu0 %v2978, 1
      %v3071 = vpop.permute.xlu0 %3070
      %3072 = vrot.lane.b32.xlu0 %v2979, 1
      %v3073 = vpop.permute.xlu0 %3072
      %3074 = vrot.lane.b32.xlu0 %v2980, 1
      %v3075 = vpop.permute.xlu0 %3074
      %3076 = vrot.lane.b32.xlu0 %v2981, 1
      %v3077 = vpop.permute.xlu0 %3076
      %v3078 = vsel %vm1309, %v3015, %v3017
      %v3079 = vsel %vm1309, %v3019, %v3021
      %v3080 = vsel %vm1309, %v3023, %v3025
      %v3081 = vsel %vm1309, %v3027, %v3029
      %v3082 = vsel %vm1309, %v3031, %v3033
      %v3083 = vsel %vm1309, %v3035, %v3037
      %v3084 = vsel %vm1309, %v3039, %v3041
      %v3085 = vsel %vm1309, %v3043, %v3045
      %v3086 = vsel %vm1309, %v3047, %v3049
      %v3087 = vsel %vm1309, %v3051, %v3053
      %v3088 = vsel %vm1309, %v3055, %v3057
      %v3089 = vsel %vm1309, %v3059, %v3061
      %v3090 = vsel %vm1309, %v3063, %v3065
      %v3091 = vsel %vm1309, %v3067, %v3069
      %v3092 = vsel %vm1309, %v3071, %v3073
      %v3093 = vsel %vm1309, %v3075, %v3077
      %3126 = vst.msk [vmem:[#allocation2 + $0x210] sm:$0xff] %vm1502, %v3015
      %3127 = vst [vmem:[#allocation2 + $0x218] sm:$0xff] %v3078
      %3128 = vst.msk [vmem:[#allocation2 + $0x230] sm:$0xff] %vm1502, %v3019
      %3129 = vst [vmem:[#allocation2 + $0x238] sm:$0xff] %v3079
      %3130 = vst.msk [vmem:[#allocation2 + $0x250] sm:$0xff] %vm1502, %v3023
      %3131 = vst [vmem:[#allocation2 + $0x258] sm:$0xff] %v3080
      %3132 = vst.msk [vmem:[#allocation2 + $0x270] sm:$0xff] %vm1502, %v3027
      %3133 = vst [vmem:[#allocation2 + $0x278] sm:$0xff] %v3081
      %3134 = vst.msk [vmem:[#allocation2 + $0x290] sm:$0xff] %vm1502, %v3031
      %3135 = vst [vmem:[#allocation2 + $0x298] sm:$0xff] %v3082
      %3136 = vst.msk [vmem:[#allocation2 + $0x2b0] sm:$0xff] %vm1502, %v3035
      %3137 = vst [vmem:[#allocation2 + $0x2b8] sm:$0xff] %v3083
      %3138 = vst.msk [vmem:[#allocation2 + $0x2d0] sm:$0xff] %vm1502, %v3039
      %3139 = vst [vmem:[#allocation2 + $0x2d8] sm:$0xff] %v3084
      %3140 = vst.msk [vmem:[#allocation2 + $0x2f0] sm:$0xff] %vm1502, %v3043
      %3141 = vst [vmem:[#allocation2 + $0x2f8] sm:$0xff] %v3085
      %3142 = vst.msk [vmem:[#allocation2 + $0x310] sm:$0xff] %vm1502, %v3047
      %3143 = vst [vmem:[#allocation2 + $0x318] sm:$0xff] %v3086
      %3144 = vst.msk [vmem:[#allocation2 + $0x330] sm:$0xff] %vm1502, %v3051
      %3145 = vst [vmem:[#allocation2 + $0x338] sm:$0xff] %v3087
      %3146 = vst.msk [vmem:[#allocation2 + $0x350] sm:$0xff] %vm1502, %v3055
      %3147 = vst [vmem:[#allocation2 + $0x358] sm:$0xff] %v3088
      %3148 = vst.msk [vmem:[#allocation2 + $0x370] sm:$0xff] %vm1502, %v3059
      %3149 = vst [vmem:[#allocation2 + $0x378] sm:$0xff] %v3089
      %3150 = vst.msk [vmem:[#allocation2 + $0x390] sm:$0xff] %vm1502, %v3063
      %3151 = vst [vmem:[#allocation2 + $0x398] sm:$0xff] %v3090
      %3152 = vst.msk [vmem:[#allocation2 + $0x3b0] sm:$0xff] %vm1502, %v3067
      %3153 = vst [vmem:[#allocation2 + $0x3b8] sm:$0xff] %v3091
      %3154 = vst.msk [vmem:[#allocation2 + $0x3d0] sm:$0xff] %vm1502, %v3071
      %3155 = vst [vmem:[#allocation2 + $0x3d8] sm:$0xff] %v3092
      %3156 = vst.msk [vmem:[#allocation2 + $0x3f0] sm:$0xff] %vm1502, %v3075
      %3157 = vst [vmem:[#allocation2 + $0x3f8] sm:$0xff] %v3093
      %v3158 = vld [vmem:[%s2163] sm:$0xff]
      %v3159 = vld [vmem:[%s2163 + $0x8] sm:$0xff]
      %v3160 = vld [vmem:[%s2163 + $0x10] sm:$0xff]
      %v3161 = vld [vmem:[%s2163 + $0x18] sm:$0xff]
      %v3162 = vld [vmem:[%s2163 + $0x20] sm:$0xff]
      %v3163 = vld [vmem:[%s2163 + $0x28] sm:$0xff]
      %v3164 = vld [vmem:[%s2163 + $0x30] sm:$0xff]
      %v3165 = vld [vmem:[%s2163 + $0x38] sm:$0xff]
      %v3166 = vld [vmem:[%s2163 + $0x40] sm:$0xff]
      %v3167 = vld [vmem:[%s2163 + $0x48] sm:$0xff]
      %v3168 = vld [vmem:[%s2163 + $0x50] sm:$0xff]
      %v3169 = vld [vmem:[%s2163 + $0x58] sm:$0xff]
      %v3170 = vld [vmem:[%s2163 + $0x60] sm:$0xff]
      %v3171 = vld [vmem:[%s2163 + $0x68] sm:$0xff]
      %v3172 = vld [vmem:[%s2163 + $0x70] sm:$0xff]
      %v3173 = vld [vmem:[%s2163 + $0x78] sm:$0xff]
      %v3174 = vld [vmem:[%s2163 + $0x80] sm:$0xff]
      %v3175 = vld [vmem:[%s2163 + $0x88] sm:$0xff]
      %v3176 = vld [vmem:[%s2163 + $0x90] sm:$0xff]
      %v3177 = vld [vmem:[%s2163 + $0x98] sm:$0xff]
      %v3178 = vld [vmem:[%s2163 + $0xa0] sm:$0xff]
      %v3179 = vld [vmem:[%s2163 + $0xa8] sm:$0xff]
      %v3180 = vld [vmem:[%s2163 + $0xb0] sm:$0xff]
      %v3181 = vld [vmem:[%s2163 + $0xb8] sm:$0xff]
      %v3182 = vld [vmem:[%s2163 + $0xc0] sm:$0xff]
      %v3183 = vld [vmem:[%s2163 + $0xc8] sm:$0xff]
      %v3184 = vld [vmem:[%s2163 + $0xd0] sm:$0xff]
      %v3185 = vld [vmem:[%s2163 + $0xd8] sm:$0xff]
      %v3186 = vld [vmem:[%s2163 + $0xe0] sm:$0xff]
      %v3187 = vld [vmem:[%s2163 + $0xe8] sm:$0xff]
      %v3188 = vld [vmem:[%s2163 + $0xf0] sm:$0xff]
      %v3189 = vld [vmem:[%s2163 + $0xf8] sm:$0xff]
      %3190 = vst [vmem:[#allocation2 + $0x410] sm:$0xff] %v3158
      %3191 = vst [vmem:[#allocation2 + $0x418] sm:$0xff] %v3159
      %3192 = vst [vmem:[#allocation2 + $0x430] sm:$0xff] %v3160
      %3193 = vst [vmem:[#allocation2 + $0x438] sm:$0xff] %v3161
      %3194 = vst [vmem:[#allocation2 + $0x450] sm:$0xff] %v3162
      %3195 = vst [vmem:[#allocation2 + $0x458] sm:$0xff] %v3163
      %3196 = vst [vmem:[#allocation2 + $0x470] sm:$0xff] %v3164
      %3197 = vst [vmem:[#allocation2 + $0x478] sm:$0xff] %v3165
      %3198 = vst [vmem:[#allocation2 + $0x490] sm:$0xff] %v3166
      %3199 = vst [vmem:[#allocation2 + $0x498] sm:$0xff] %v3167
      %3200 = vst [vmem:[#allocation2 + $0x4b0] sm:$0xff] %v3168
      %3201 = vst [vmem:[#allocation2 + $0x4b8] sm:$0xff] %v3169
      %3202 = vst [vmem:[#allocation2 + $0x4d0] sm:$0xff] %v3170
      %3203 = vst [vmem:[#allocation2 + $0x4d8] sm:$0xff] %v3171
      %3204 = vst [vmem:[#allocation2 + $0x4f0] sm:$0xff] %v3172
      %3205 = vst [vmem:[#allocation2 + $0x4f8] sm:$0xff] %v3173
      %3206 = vst [vmem:[#allocation2 + $0x510] sm:$0xff] %v3174
      %3207 = vst [vmem:[#allocation2 + $0x518] sm:$0xff] %v3175
      %3208 = vst [vmem:[#allocation2 + $0x530] sm:$0xff] %v3176
      %3209 = vst [vmem:[#allocation2 + $0x538] sm:$0xff] %v3177
      %3210 = vst [vmem:[#allocation2 + $0x550] sm:$0xff] %v3178
      %3211 = vst [vmem:[#allocation2 + $0x558] sm:$0xff] %v3179
      %3212 = vst [vmem:[#allocation2 + $0x570] sm:$0xff] %v3180
      %3213 = vst [vmem:[#allocation2 + $0x578] sm:$0xff] %v3181
      %3214 = vst [vmem:[#allocation2 + $0x590] sm:$0xff] %v3182
      %3215 = vst [vmem:[#allocation2 + $0x598] sm:$0xff] %v3183
      %3216 = vst [vmem:[#allocation2 + $0x5b0] sm:$0xff] %v3184
      %3217 = vst [vmem:[#allocation2 + $0x5b8] sm:$0xff] %v3185
      %3218 = vst [vmem:[#allocation2 + $0x5d0] sm:$0xff] %v3186
      %3219 = vst [vmem:[#allocation2 + $0x5d8] sm:$0xff] %v3187
      %3220 = vst [vmem:[#allocation2 + $0x5f0] sm:$0xff] %v3188
      %3221 = vst [vmem:[#allocation2 + $0x5f8] sm:$0xff] %v3189
      %v3222 = vld [vmem:[%s2163] sm:$0xff]
      %v3223 = vld [vmem:[%s2163 + $0x8] sm:$0xff]
      %v3224 = vld [vmem:[%s2163 + $0x10] sm:$0xff]
      %v3225 = vld [vmem:[%s2163 + $0x18] sm:$0xff]
      %v3226 = vld [vmem:[%s2163 + $0x20] sm:$0xff]
      %v3227 = vld [vmem:[%s2163 + $0x28] sm:$0xff]
      %v3228 = vld [vmem:[%s2163 + $0x30] sm:$0xff]
      %v3229 = vld [vmem:[%s2163 + $0x38] sm:$0xff]
      %v3230 = vld [vmem:[%s2163 + $0x40] sm:$0xff]
      %v3231 = vld [vmem:[%s2163 + $0x48] sm:$0xff]
      %v3232 = vld [vmem:[%s2163 + $0x50] sm:$0xff]
      %v3233 = vld [vmem:[%s2163 + $0x58] sm:$0xff]
      %v3234 = vld [vmem:[%s2163 + $0x60] sm:$0xff]
      %v3235 = vld [vmem:[%s2163 + $0x68] sm:$0xff]
      %v3236 = vld [vmem:[%s2163 + $0x70] sm:$0xff]
      %v3237 = vld [vmem:[%s2163 + $0x78] sm:$0xff]
      %v3238 = vld [vmem:[%s2163 + $0x80] sm:$0xff]
      %v3239 = vld [vmem:[%s2163 + $0x88] sm:$0xff]
      %v3240 = vld [vmem:[%s2163 + $0x90] sm:$0xff]
      %v3241 = vld [vmem:[%s2163 + $0x98] sm:$0xff]
      %v3242 = vld [vmem:[%s2163 + $0xa0] sm:$0xff]
      %v3243 = vld [vmem:[%s2163 + $0xa8] sm:$0xff]
      %v3244 = vld [vmem:[%s2163 + $0xb0] sm:$0xff]
      %v3245 = vld [vmem:[%s2163 + $0xb8] sm:$0xff]
      %v3246 = vld [vmem:[%s2163 + $0xc0] sm:$0xff]
      %v3247 = vld [vmem:[%s2163 + $0xc8] sm:$0xff]
      %v3248 = vld [vmem:[%s2163 + $0xd0] sm:$0xff]
      %v3249 = vld [vmem:[%s2163 + $0xd8] sm:$0xff]
      %v3250 = vld [vmem:[%s2163 + $0xe0] sm:$0xff]
      %v3251 = vld [vmem:[%s2163 + $0xe8] sm:$0xff]
      %v3252 = vld [vmem:[%s2163 + $0xf0] sm:$0xff]
      %v3253 = vld [vmem:[%s2163 + $0xf8] sm:$0xff]
      %3286 = vrot.lane.b32.xlu0 %v3222, 127
      %v3287 = vpop.permute.xlu0 %3286
      %3288 = vrot.lane.b32.xlu0 %v3223, 127
      %v3289 = vpop.permute.xlu0 %3288
      %3290 = vrot.lane.b32.xlu0 %v3224, 127
      %v3291 = vpop.permute.xlu0 %3290
      %3292 = vrot.lane.b32.xlu0 %v3225, 127
      %v3293 = vpop.permute.xlu0 %3292
      %3294 = vrot.lane.b32.xlu0 %v3226, 127
      %v3295 = vpop.permute.xlu0 %3294
      %3296 = vrot.lane.b32.xlu0 %v3227, 127
      %v3297 = vpop.permute.xlu0 %3296
      %3298 = vrot.lane.b32.xlu0 %v3228, 127
      %v3299 = vpop.permute.xlu0 %3298
      %3300 = vrot.lane.b32.xlu0 %v3229, 127
      %v3301 = vpop.permute.xlu0 %3300
      %3302 = vrot.lane.b32.xlu0 %v3230, 127
      %v3303 = vpop.permute.xlu0 %3302
      %3304 = vrot.lane.b32.xlu0 %v3231, 127
      %v3305 = vpop.permute.xlu0 %3304
      %3306 = vrot.lane.b32.xlu0 %v3232, 127
      %v3307 = vpop.permute.xlu0 %3306
      %3308 = vrot.lane.b32.xlu0 %v3233, 127
      %v3309 = vpop.permute.xlu0 %3308
      %3310 = vrot.lane.b32.xlu0 %v3234, 127
      %v3311 = vpop.permute.xlu0 %3310
      %3312 = vrot.lane.b32.xlu0 %v3235, 127
      %v3313 = vpop.permute.xlu0 %3312
      %3314 = vrot.lane.b32.xlu0 %v3236, 127
      %v3315 = vpop.permute.xlu0 %3314
      %3316 = vrot.lane.b32.xlu0 %v3237, 127
      %v3317 = vpop.permute.xlu0 %3316
      %3318 = vrot.lane.b32.xlu0 %v3238, 127
      %v3319 = vpop.permute.xlu0 %3318
      %3320 = vrot.lane.b32.xlu0 %v3239, 127
      %v3321 = vpop.permute.xlu0 %3320
      %3322 = vrot.lane.b32.xlu0 %v3240, 127
      %v3323 = vpop.permute.xlu0 %3322
      %3324 = vrot.lane.b32.xlu0 %v3241, 127
      %v3325 = vpop.permute.xlu0 %3324
      %3326 = vrot.lane.b32.xlu0 %v3242, 127
      %v3327 = vpop.permute.xlu0 %3326
      %3328 = vrot.lane.b32.xlu0 %v3243, 127
      %v3329 = vpop.permute.xlu0 %3328
      %3330 = vrot.lane.b32.xlu0 %v3244, 127
      %v3331 = vpop.permute.xlu0 %3330
      %3332 = vrot.lane.b32.xlu0 %v3245, 127
      %v3333 = vpop.permute.xlu0 %3332
      %3334 = vrot.lane.b32.xlu0 %v3246, 127
      %v3335 = vpop.permute.xlu0 %3334
      %3336 = vrot.lane.b32.xlu0 %v3247, 127
      %v3337 = vpop.permute.xlu0 %3336
      %3338 = vrot.lane.b32.xlu0 %v3248, 127
      %v3339 = vpop.permute.xlu0 %3338
      %3340 = vrot.lane.b32.xlu0 %v3249, 127
      %v3341 = vpop.permute.xlu0 %3340
      %3342 = vrot.lane.b32.xlu0 %v3250, 127
      %v3343 = vpop.permute.xlu0 %3342
      %3344 = vrot.lane.b32.xlu0 %v3251, 127
      %v3345 = vpop.permute.xlu0 %3344
      %3346 = vrot.lane.b32.xlu0 %v3252, 127
      %v3347 = vpop.permute.xlu0 %3346
      %3348 = vrot.lane.b32.xlu0 %v3253, 127
      %v3349 = vpop.permute.xlu0 %3348
      %v3350 = vsel %vm1727, %v3287, %v3289
      %v3351 = vsel %vm1727, %v3291, %v3293
      %v3352 = vsel %vm1727, %v3295, %v3297
      %v3353 = vsel %vm1727, %v3299, %v3301
      %v3354 = vsel %vm1727, %v3303, %v3305
      %v3355 = vsel %vm1727, %v3307, %v3309
      %v3356 = vsel %vm1727, %v3311, %v3313
      %v3357 = vsel %vm1727, %v3315, %v3317
      %v3358 = vsel %vm1727, %v3319, %v3321
      %v3359 = vsel %vm1727, %v3323, %v3325
      %v3360 = vsel %vm1727, %v3327, %v3329
      %v3361 = vsel %vm1727, %v3331, %v3333
      %v3362 = vsel %vm1727, %v3335, %v3337
      %v3363 = vsel %vm1727, %v3339, %v3341
      %v3364 = vsel %vm1727, %v3343, %v3345
      %v3365 = vsel %vm1727, %v3347, %v3349
      %3398 = vst [vmem:[#allocation2 + $0x610] sm:$0xff] %v3350
      %3399 = vst.msk [vmem:[#allocation2 + $0x618] sm:$0xff] %vm1727, %v3289
      %3400 = vst [vmem:[#allocation2 + $0x630] sm:$0xff] %v3351
      %3401 = vst.msk [vmem:[#allocation2 + $0x638] sm:$0xff] %vm1727, %v3293
      %3402 = vst [vmem:[#allocation2 + $0x650] sm:$0xff] %v3352
      %3403 = vst.msk [vmem:[#allocation2 + $0x658] sm:$0xff] %vm1727, %v3297
      %3404 = vst [vmem:[#allocation2 + $0x670] sm:$0xff] %v3353
      %3405 = vst.msk [vmem:[#allocation2 + $0x678] sm:$0xff] %vm1727, %v3301
      %3406 = vst [vmem:[#allocation2 + $0x690] sm:$0xff] %v3354
      %3407 = vst.msk [vmem:[#allocation2 + $0x698] sm:$0xff] %vm1727, %v3305
      %3408 = vst [vmem:[#allocation2 + $0x6b0] sm:$0xff] %v3355
      %3409 = vst.msk [vmem:[#allocation2 + $0x6b8] sm:$0xff] %vm1727, %v3309
      %3410 = vst [vmem:[#allocation2 + $0x6d0] sm:$0xff] %v3356
      %3411 = vst.msk [vmem:[#allocation2 + $0x6d8] sm:$0xff] %vm1727, %v3313
      %3412 = vst [vmem:[#allocation2 + $0x6f0] sm:$0xff] %v3357
      %3413 = vst.msk [vmem:[#allocation2 + $0x6f8] sm:$0xff] %vm1727, %v3317
      %3414 = vst [vmem:[#allocation2 + $0x710] sm:$0xff] %v3358
      %3415 = vst.msk [vmem:[#allocation2 + $0x718] sm:$0xff] %vm1727, %v3321
      %3416 = vst [vmem:[#allocation2 + $0x730] sm:$0xff] %v3359
      %3417 = vst.msk [vmem:[#allocation2 + $0x738] sm:$0xff] %vm1727, %v3325
      %3418 = vst [vmem:[#allocation2 + $0x750] sm:$0xff] %v3360
      %3419 = vst.msk [vmem:[#allocation2 + $0x758] sm:$0xff] %vm1727, %v3329
      %3420 = vst [vmem:[#allocation2 + $0x770] sm:$0xff] %v3361
      %3421 = vst.msk [vmem:[#allocation2 + $0x778] sm:$0xff] %vm1727, %v3333
      %3422 = vst [vmem:[#allocation2 + $0x790] sm:$0xff] %v3362
      %3423 = vst.msk [vmem:[#allocation2 + $0x798] sm:$0xff] %vm1727, %v3337
      %3424 = vst [vmem:[#allocation2 + $0x7b0] sm:$0xff] %v3363
      %3425 = vst.msk [vmem:[#allocation2 + $0x7b8] sm:$0xff] %vm1727, %v3341
      %3426 = vst [vmem:[#allocation2 + $0x7d0] sm:$0xff] %v3364
      %3427 = vst.msk [vmem:[#allocation2 + $0x7d8] sm:$0xff] %vm1727, %v3345
      %3428 = vst [vmem:[#allocation2 + $0x7f0] sm:$0xff] %v3365
      %3429 = vst.msk [vmem:[#allocation2 + $0x7f8] sm:$0xff] %vm1727, %v3349
      %3446 = vrot.lane.b32.xlu0 %v2568, 127
      %v3447 = vpop.permute.xlu0 %3446
      %3448 = vrot.lane.b32.xlu0 %v2573, 127
      %v3449 = vpop.permute.xlu0 %3448
      %3450 = vrot.lane.b32.xlu0 %v2578, 127
      %v3451 = vpop.permute.xlu0 %3450
      %3452 = vrot.lane.b32.xlu0 %v2583, 127
      %v3453 = vpop.permute.xlu0 %3452
      %3454 = vrot.lane.b32.xlu0 %v2588, 127
      %v3455 = vpop.permute.xlu0 %3454
      %3456 = vrot.lane.b32.xlu0 %v2593, 127
      %v3457 = vpop.permute.xlu0 %3456
      %3458 = vrot.lane.b32.xlu0 %v2598, 127
      %v3459 = vpop.permute.xlu0 %3458
      %3460 = vrot.lane.b32.xlu0 %v2603, 127
      %v3461 = vpop.permute.xlu0 %3460
      %3462 = vrot.lane.b32.xlu0 %v2608, 127
      %v3463 = vpop.permute.xlu0 %3462
      %3464 = vrot.lane.b32.xlu0 %v2613, 127
      %v3465 = vpop.permute.xlu0 %3464
      %3466 = vrot.lane.b32.xlu0 %v2618, 127
      %v3467 = vpop.permute.xlu0 %3466
      %3468 = vrot.lane.b32.xlu0 %v2623, 127
      %v3469 = vpop.permute.xlu0 %3468
      %3470 = vrot.lane.b32.xlu0 %v2628, 127
      %v3471 = vpop.permute.xlu0 %3470
      %3472 = vrot.lane.b32.xlu0 %v2633, 127
      %v3473 = vpop.permute.xlu0 %3472
      %3474 = vrot.lane.b32.xlu0 %v2638, 127
      %v3475 = vpop.permute.xlu0 %3474
      %3476 = vrot.lane.b32.xlu0 %v2643, 127
      %v3477 = vpop.permute.xlu0 %3476
      %3494 = vst.msk [vmem:[#allocation2 + $0x618] sm:$0xff] %vm1872, %v3447
      %3495 = vst.msk [vmem:[#allocation2 + $0x638] sm:$0xff] %vm1872, %v3449
      %3496 = vst.msk [vmem:[#allocation2 + $0x658] sm:$0xff] %vm1872, %v3451
      %3497 = vst.msk [vmem:[#allocation2 + $0x678] sm:$0xff] %vm1872, %v3453
      %3498 = vst.msk [vmem:[#allocation2 + $0x698] sm:$0xff] %vm1872, %v3455
      %3499 = vst.msk [vmem:[#allocation2 + $0x6b8] sm:$0xff] %vm1872, %v3457
      %3500 = vst.msk [vmem:[#allocation2 + $0x6d8] sm:$0xff] %vm1872, %v3459
      %3501 = vst.msk [vmem:[#allocation2 + $0x6f8] sm:$0xff] %vm1872, %v3461
      %3502 = vst.msk [vmem:[#allocation2 + $0x718] sm:$0xff] %vm1872, %v3463
      %3503 = vst.msk [vmem:[#allocation2 + $0x738] sm:$0xff] %vm1872, %v3465
      %3504 = vst.msk [vmem:[#allocation2 + $0x758] sm:$0xff] %vm1872, %v3467
      %3505 = vst.msk [vmem:[#allocation2 + $0x778] sm:$0xff] %vm1872, %v3469
      %3506 = vst.msk [vmem:[#allocation2 + $0x798] sm:$0xff] %vm1872, %v3471
      %3507 = vst.msk [vmem:[#allocation2 + $0x7b8] sm:$0xff] %vm1872, %v3473
      %3508 = vst.msk [vmem:[#allocation2 + $0x7d8] sm:$0xff] %vm1872, %v3475
      %3509 = vst.msk [vmem:[#allocation2 + $0x7f8] sm:$0xff] %vm1872, %v3477
      %v3510 = vld [vmem:[%s2163] sm:$0xff]
      %v3511 = vld [vmem:[%s2163 + $0x8] sm:$0xff]
      %v3512 = vld [vmem:[%s2163 + $0x10] sm:$0xff]
      %v3513 = vld [vmem:[%s2163 + $0x18] sm:$0xff]
      %v3514 = vld [vmem:[%s2163 + $0x20] sm:$0xff]
      %v3515 = vld [vmem:[%s2163 + $0x28] sm:$0xff]
      %v3516 = vld [vmem:[%s2163 + $0x30] sm:$0xff]
      %v3517 = vld [vmem:[%s2163 + $0x38] sm:$0xff]
      %v3518 = vld [vmem:[%s2163 + $0x40] sm:$0xff]
      %v3519 = vld [vmem:[%s2163 + $0x48] sm:$0xff]
      %v3520 = vld [vmem:[%s2163 + $0x50] sm:$0xff]
      %v3521 = vld [vmem:[%s2163 + $0x58] sm:$0xff]
      %v3522 = vld [vmem:[%s2163 + $0x60] sm:$0xff]
      %v3523 = vld [vmem:[%s2163 + $0x68] sm:$0xff]
      %v3524 = vld [vmem:[%s2163 + $0x70] sm:$0xff]
      %v3525 = vld [vmem:[%s2163 + $0x78] sm:$0xff]
      %v3526 = vld [vmem:[%s2163 + $0x80] sm:$0xff]
      %v3527 = vld [vmem:[%s2163 + $0x88] sm:$0xff]
      %v3528 = vld [vmem:[%s2163 + $0x90] sm:$0xff]
      %v3529 = vld [vmem:[%s2163 + $0x98] sm:$0xff]
      %v3530 = vld [vmem:[%s2163 + $0xa0] sm:$0xff]
      %v3531 = vld [vmem:[%s2163 + $0xa8] sm:$0xff]
      %v3532 = vld [vmem:[%s2163 + $0xb0] sm:$0xff]
      %v3533 = vld [vmem:[%s2163 + $0xb8] sm:$0xff]
      %v3534 = vld [vmem:[%s2163 + $0xc0] sm:$0xff]
      %v3535 = vld [vmem:[%s2163 + $0xc8] sm:$0xff]
      %v3536 = vld [vmem:[%s2163 + $0xd0] sm:$0xff]
      %v3537 = vld [vmem:[%s2163 + $0xd8] sm:$0xff]
      %v3538 = vld [vmem:[%s2163 + $0xe0] sm:$0xff]
      %v3539 = vld [vmem:[%s2163 + $0xe8] sm:$0xff]
      %v3540 = vld [vmem:[%s2163 + $0xf0] sm:$0xff]
      %v3541 = vld [vmem:[%s2163 + $0xf8] sm:$0xff]
      %3574 = vrot.lane.b32.xlu0 %v3510, 126
      %v3575 = vpop.permute.xlu0 %3574
      %3576 = vrot.lane.b32.xlu0 %v3511, 126
      %v3577 = vpop.permute.xlu0 %3576
      %3578 = vrot.lane.b32.xlu0 %v3512, 126
      %v3579 = vpop.permute.xlu0 %3578
      %3580 = vrot.lane.b32.xlu0 %v3513, 126
      %v3581 = vpop.permute.xlu0 %3580
      %3582 = vrot.lane.b32.xlu0 %v3514, 126
      %v3583 = vpop.permute.xlu0 %3582
      %3584 = vrot.lane.b32.xlu0 %v3515, 126
      %v3585 = vpop.permute.xlu0 %3584
      %3586 = vrot.lane.b32.xlu0 %v3516, 126
      %v3587 = vpop.permute.xlu0 %3586
      %3588 = vrot.lane.b32.xlu0 %v3517, 126
      %v3589 = vpop.permute.xlu0 %3588
      %3590 = vrot.lane.b32.xlu0 %v3518, 126
      %v3591 = vpop.permute.xlu0 %3590
      %3592 = vrot.lane.b32.xlu0 %v3519, 126
      %v3593 = vpop.permute.xlu0 %3592
      %3594 = vrot.lane.b32.xlu0 %v3520, 126
      %v3595 = vpop.permute.xlu0 %3594
      %3596 = vrot.lane.b32.xlu0 %v3521, 126
      %v3597 = vpop.permute.xlu0 %3596
      %3598 = vrot.lane.b32.xlu0 %v3522, 126
      %v3599 = vpop.permute.xlu0 %3598
      %3600 = vrot.lane.b32.xlu0 %v3523, 126
      %v3601 = vpop.permute.xlu0 %3600
      %3602 = vrot.lane.b32.xlu0 %v3524, 126
      %v3603 = vpop.permute.xlu0 %3602
      %3604 = vrot.lane.b32.xlu0 %v3525, 126
      %v3605 = vpop.permute.xlu0 %3604
      %3606 = vrot.lane.b32.xlu0 %v3526, 126
      %v3607 = vpop.permute.xlu0 %3606
      %3608 = vrot.lane.b32.xlu0 %v3527, 126
      %v3609 = vpop.permute.xlu0 %3608
      %3610 = vrot.lane.b32.xlu0 %v3528, 126
      %v3611 = vpop.permute.xlu0 %3610
      %3612 = vrot.lane.b32.xlu0 %v3529, 126
      %v3613 = vpop.permute.xlu0 %3612
      %3614 = vrot.lane.b32.xlu0 %v3530, 126
      %v3615 = vpop.permute.xlu0 %3614
      %3616 = vrot.lane.b32.xlu0 %v3531, 126
      %v3617 = vpop.permute.xlu0 %3616
      %3618 = vrot.lane.b32.xlu0 %v3532, 126
      %v3619 = vpop.permute.xlu0 %3618
      %3620 = vrot.lane.b32.xlu0 %v3533, 126
      %v3621 = vpop.permute.xlu0 %3620
      %3622 = vrot.lane.b32.xlu0 %v3534, 126
      %v3623 = vpop.permute.xlu0 %3622
      %3624 = vrot.lane.b32.xlu0 %v3535, 126
      %v3625 = vpop.permute.xlu0 %3624
      %3626 = vrot.lane.b32.xlu0 %v3536, 126
      %v3627 = vpop.permute.xlu0 %3626
      %3628 = vrot.lane.b32.xlu0 %v3537, 126
      %v3629 = vpop.permute.xlu0 %3628
      %3630 = vrot.lane.b32.xlu0 %v3538, 126
      %v3631 = vpop.permute.xlu0 %3630
      %3632 = vrot.lane.b32.xlu0 %v3539, 126
      %v3633 = vpop.permute.xlu0 %3632
      %3634 = vrot.lane.b32.xlu0 %v3540, 126
      %v3635 = vpop.permute.xlu0 %3634
      %3636 = vrot.lane.b32.xlu0 %v3541, 126
      %v3637 = vpop.permute.xlu0 %3636
      %v3638 = vsel %vm2017, %v3575, %v3577
      %v3639 = vsel %vm2017, %v3579, %v3581
      %v3640 = vsel %vm2017, %v3583, %v3585
      %v3641 = vsel %vm2017, %v3587, %v3589
      %v3642 = vsel %vm2017, %v3591, %v3593
      %v3643 = vsel %vm2017, %v3595, %v3597
      %v3644 = vsel %vm2017, %v3599, %v3601
      %v3645 = vsel %vm2017, %v3603, %v3605
      %v3646 = vsel %vm2017, %v3607, %v3609
      %v3647 = vsel %vm2017, %v3611, %v3613
      %v3648 = vsel %vm2017, %v3615, %v3617
      %v3649 = vsel %vm2017, %v3619, %v3621
      %v3650 = vsel %vm2017, %v3623, %v3625
      %v3651 = vsel %vm2017, %v3627, %v3629
      %v3652 = vsel %vm2017, %v3631, %v3633
      %v3653 = vsel %vm2017, %v3635, %v3637
      %3686 = vst [vmem:[#allocation2 + $0x810] sm:$0xff] %v3638
      %3687 = vst.msk [vmem:[#allocation2 + $0x818] sm:$0xff] %vm2017, %v3577
      %3688 = vst [vmem:[#allocation2 + $0x830] sm:$0xff] %v3639
      %3689 = vst.msk [vmem:[#allocation2 + $0x838] sm:$0xff] %vm2017, %v3581
      %3690 = vst [vmem:[#allocation2 + $0x850] sm:$0xff] %v3640
      %3691 = vst.msk [vmem:[#allocation2 + $0x858] sm:$0xff] %vm2017, %v3585
      %3692 = vst [vmem:[#allocation2 + $0x870] sm:$0xff] %v3641
      %3693 = vst.msk [vmem:[#allocation2 + $0x878] sm:$0xff] %vm2017, %v3589
      %3694 = vst [vmem:[#allocation2 + $0x890] sm:$0xff] %v3642
      %3695 = vst.msk [vmem:[#allocation2 + $0x898] sm:$0xff] %vm2017, %v3593
      %3696 = vst [vmem:[#allocation2 + $0x8b0] sm:$0xff] %v3643
      %3697 = vst.msk [vmem:[#allocation2 + $0x8b8] sm:$0xff] %vm2017, %v3597
      %3698 = vst [vmem:[#allocation2 + $0x8d0] sm:$0xff] %v3644
      %3699 = vst.msk [vmem:[#allocation2 + $0x8d8] sm:$0xff] %vm2017, %v3601
      %3700 = vst [vmem:[#allocation2 + $0x8f0] sm:$0xff] %v3645
      %3701 = vst.msk [vmem:[#allocation2 + $0x8f8] sm:$0xff] %vm2017, %v3605
      %3702 = vst [vmem:[#allocation2 + $0x910] sm:$0xff] %v3646
      %3703 = vst.msk [vmem:[#allocation2 + $0x918] sm:$0xff] %vm2017, %v3609
      %3704 = vst [vmem:[#allocation2 + $0x930] sm:$0xff] %v3647
      %3705 = vst.msk [vmem:[#allocation2 + $0x938] sm:$0xff] %vm2017, %v3613
      %3706 = vst [vmem:[#allocation2 + $0x950] sm:$0xff] %v3648
      %3707 = vst.msk [vmem:[#allocation2 + $0x958] sm:$0xff] %vm2017, %v3617
      %3708 = vst [vmem:[#allocation2 + $0x970] sm:$0xff] %v3649
      %3709 = vst.msk [vmem:[#allocation2 + $0x978] sm:$0xff] %vm2017, %v3621
      %3710 = vst [vmem:[#allocation2 + $0x990] sm:$0xff] %v3650
      %3711 = vst.msk [vmem:[#allocation2 + $0x998] sm:$0xff] %vm2017, %v3625
      %3712 = vst [vmem:[#allocation2 + $0x9b0] sm:$0xff] %v3651
      %3713 = vst.msk [vmem:[#allocation2 + $0x9b8] sm:$0xff] %vm2017, %v3629
      %3714 = vst [vmem:[#allocation2 + $0x9d0] sm:$0xff] %v3652
      %3715 = vst.msk [vmem:[#allocation2 + $0x9d8] sm:$0xff] %vm2017, %v3633
      %3716 = vst [vmem:[#allocation2 + $0x9f0] sm:$0xff] %v3653
      %3717 = vst.msk [vmem:[#allocation2 + $0x9f8] sm:$0xff] %vm2017, %v3637
      %3718 = vrot.lane.b32.xlu0 %v2568, 126
      %v3719 = vpop.permute.xlu0 %3718
      %3720 = vrot.lane.b32.xlu0 %v2573, 126
      %v3721 = vpop.permute.xlu0 %3720
      %3722 = vrot.lane.b32.xlu0 %v2578, 126
      %v3723 = vpop.permute.xlu0 %3722
      %3724 = vrot.lane.b32.xlu0 %v2583, 126
      %v3725 = vpop.permute.xlu0 %3724
      %3726 = vrot.lane.b32.xlu0 %v2588, 126
      %v3727 = vpop.permute.xlu0 %3726
      %3728 = vrot.lane.b32.xlu0 %v2593, 126
      %v3729 = vpop.permute.xlu0 %3728
      %3730 = vrot.lane.b32.xlu0 %v2598, 126
      %v3731 = vpop.permute.xlu0 %3730
      %3732 = vrot.lane.b32.xlu0 %v2603, 126
      %v3733 = vpop.permute.xlu0 %3732
      %3734 = vrot.lane.b32.xlu0 %v2608, 126
      %v3735 = vpop.permute.xlu0 %3734
      %3736 = vrot.lane.b32.xlu0 %v2613, 126
      %v3737 = vpop.permute.xlu0 %3736
      %3738 = vrot.lane.b32.xlu0 %v2618, 126
      %v3739 = vpop.permute.xlu0 %3738
      %3740 = vrot.lane.b32.xlu0 %v2623, 126
      %v3741 = vpop.permute.xlu0 %3740
      %3742 = vrot.lane.b32.xlu0 %v2628, 126
      %v3743 = vpop.permute.xlu0 %3742
      %3744 = vrot.lane.b32.xlu0 %v2633, 126
      %v3745 = vpop.permute.xlu0 %3744
      %3746 = vrot.lane.b32.xlu0 %v2638, 126
      %v3747 = vpop.permute.xlu0 %3746
      %3748 = vrot.lane.b32.xlu0 %v2643, 126
      %v3749 = vpop.permute.xlu0 %3748
      %3766 = vst.msk [vmem:[#allocation2 + $0x818] sm:$0xff] %vm2146, %v3719
      %3767 = vst.msk [vmem:[#allocation2 + $0x838] sm:$0xff] %vm2146, %v3721
      %3768 = vst.msk [vmem:[#allocation2 + $0x858] sm:$0xff] %vm2146, %v3723
      %3769 = vst.msk [vmem:[#allocation2 + $0x878] sm:$0xff] %vm2146, %v3725
      %3770 = vst.msk [vmem:[#allocation2 + $0x898] sm:$0xff] %vm2146, %v3727
      %3771 = vst.msk [vmem:[#allocation2 + $0x8b8] sm:$0xff] %vm2146, %v3729
      %3772 = vst.msk [vmem:[#allocation2 + $0x8d8] sm:$0xff] %vm2146, %v3731
      %3773 = vst.msk [vmem:[#allocation2 + $0x8f8] sm:$0xff] %vm2146, %v3733
      %3774 = vst.msk [vmem:[#allocation2 + $0x918] sm:$0xff] %vm2146, %v3735
      %3775 = vst.msk [vmem:[#allocation2 + $0x938] sm:$0xff] %vm2146, %v3737
      %3776 = vst.msk [vmem:[#allocation2 + $0x958] sm:$0xff] %vm2146, %v3739
      %3777 = vst.msk [vmem:[#allocation2 + $0x978] sm:$0xff] %vm2146, %v3741
      %3778 = vst.msk [vmem:[#allocation2 + $0x998] sm:$0xff] %vm2146, %v3743
      %3779 = vst.msk [vmem:[#allocation2 + $0x9b8] sm:$0xff] %vm2146, %v3745
      %3780 = vst.msk [vmem:[#allocation2 + $0x9d8] sm:$0xff] %vm2146, %v3747
      %3781 = vst.msk [vmem:[#allocation2 + $0x9f8] sm:$0xff] %vm2146, %v3749
      %v3782 = vld [vmem:[#allocation2] sm:$0xff]
      %v3783 = vld [vmem:[#allocation2 + $0x8] sm:$0xff]
      %v3784 = vld [vmem:[#allocation2 + $0x10] sm:$0xff]
      %v3785 = vld [vmem:[#allocation2 + $0x18] sm:$0xff]
      %v3786 = vld [vmem:[#allocation2 + $0x20] sm:$0xff]
      %v3787 = vld [vmem:[#allocation2 + $0x28] sm:$0xff]
      %v3788 = vld [vmem:[#allocation2 + $0x30] sm:$0xff]
      %v3789 = vld [vmem:[#allocation2 + $0x38] sm:$0xff]
      %v3790 = vld [vmem:[#allocation2 + $0x40] sm:$0xff]
      %v3791 = vld [vmem:[#allocation2 + $0x48] sm:$0xff]
      %v3792 = vld [vmem:[#allocation2 + $0x50] sm:$0xff]
      %v3793 = vld [vmem:[#allocation2 + $0x58] sm:$0xff]
      %v3794 = vld [vmem:[#allocation2 + $0x60] sm:$0xff]
      %v3795 = vld [vmem:[#allocation2 + $0x68] sm:$0xff]
      %v3796 = vld [vmem:[#allocation2 + $0x70] sm:$0xff]
      %v3797 = vld [vmem:[#allocation2 + $0x78] sm:$0xff]
      %v3798 = vld [vmem:[#allocation2 + $0x80] sm:$0xff]
      %v3799 = vld [vmem:[#allocation2 + $0x88] sm:$0xff]
      %v3800 = vld [vmem:[#allocation2 + $0x90] sm:$0xff]
      %v3801 = vld [vmem:[#allocation2 + $0x98] sm:$0xff]
      %v3802 = vld [vmem:[#allocation2 + $0xa0] sm:$0xff]
      %v3803 = vld [vmem:[#allocation2 + $0xa8] sm:$0xff]
      %v3804 = vld [vmem:[#allocation2 + $0xb0] sm:$0xff]
      %v3805 = vld [vmem:[#allocation2 + $0xb8] sm:$0xff]
      %v3806 = vld [vmem:[#allocation2 + $0xc0] sm:$0xff]
      %v3807 = vld [vmem:[#allocation2 + $0xc8] sm:$0xff]
      %v3808 = vld [vmem:[#allocation2 + $0xd0] sm:$0xff]
      %v3809 = vld [vmem:[#allocation2 + $0xd8] sm:$0xff]
      %v3810 = vld [vmem:[#allocation2 + $0xe0] sm:$0xff]
      %v3811 = vld [vmem:[#allocation2 + $0xe8] sm:$0xff]
      %v3812 = vld [vmem:[#allocation2 + $0xf0] sm:$0xff]
      %v3813 = vld [vmem:[#allocation2 + $0xf8] sm:$0xff]
      %v3814 = vld [vmem:[#allocation2 + $0x100] sm:$0xff]
      %v3815 = vld [vmem:[#allocation2 + $0x108] sm:$0xff]
      %v3816 = vld [vmem:[#allocation2 + $0x110] sm:$0xff]
      %v3817 = vld [vmem:[#allocation2 + $0x118] sm:$0xff]
      %v3818 = vld [vmem:[#allocation2 + $0x120] sm:$0xff]
      %v3819 = vld [vmem:[#allocation2 + $0x128] sm:$0xff]
      %v3820 = vld [vmem:[#allocation2 + $0x130] sm:$0xff]
      %v3821 = vld [vmem:[#allocation2 + $0x138] sm:$0xff]
      %v3822 = vld [vmem:[#allocation2 + $0x140] sm:$0xff]
      %v3823 = vld [vmem:[#allocation2 + $0x148] sm:$0xff]
      %v3824 = vld [vmem:[#allocation2 + $0x150] sm:$0xff]
      %v3825 = vld [vmem:[#allocation2 + $0x158] sm:$0xff]
      %v3826 = vld [vmem:[#allocation2 + $0x160] sm:$0xff]
      %v3827 = vld [vmem:[#allocation2 + $0x168] sm:$0xff]
      %v3828 = vld [vmem:[#allocation2 + $0x170] sm:$0xff]
      %v3829 = vld [vmem:[#allocation2 + $0x178] sm:$0xff]
      %v3830 = vld [vmem:[#allocation2 + $0x180] sm:$0xff]
      %v3831 = vld [vmem:[#allocation2 + $0x188] sm:$0xff]
      %v3832 = vld [vmem:[#allocation2 + $0x190] sm:$0xff]
      %v3833 = vld [vmem:[#allocation2 + $0x198] sm:$0xff]
      %v3834 = vld [vmem:[#allocation2 + $0x1a0] sm:$0xff]
      %v3835 = vld [vmem:[#allocation2 + $0x1a8] sm:$0xff]
      %v3836 = vld [vmem:[#allocation2 + $0x1b0] sm:$0xff]
      %v3837 = vld [vmem:[#allocation2 + $0x1b8] sm:$0xff]
      %v3838 = vld [vmem:[#allocation2 + $0x1c0] sm:$0xff]
      %v3839 = vld [vmem:[#allocation2 + $0x1c8] sm:$0xff]
      %v3840 = vld [vmem:[#allocation2 + $0x1d0] sm:$0xff]
      %v3841 = vld [vmem:[#allocation2 + $0x1d8] sm:$0xff]
      %v3842 = vld [vmem:[#allocation2 + $0x1e0] sm:$0xff]
      %v3843 = vld [vmem:[#allocation2 + $0x1e8] sm:$0xff]
      %v3844 = vld [vmem:[#allocation2 + $0x1f0] sm:$0xff]
      %v3845 = vld [vmem:[#allocation2 + $0x1f8] sm:$0xff]
      %v3846 = vld [vmem:[#allocation2 + $0x200] sm:$0xff]
      %v3847 = vld [vmem:[#allocation2 + $0x208] sm:$0xff]
      %v3848 = vld [vmem:[#allocation2 + $0x210] sm:$0xff]
      %v3849 = vld [vmem:[#allocation2 + $0x218] sm:$0xff]
      %v3850 = vld [vmem:[#allocation2 + $0x220] sm:$0xff]
      %v3851 = vld [vmem:[#allocation2 + $0x228] sm:$0xff]
      %v3852 = vld [vmem:[#allocation2 + $0x230] sm:$0xff]
      %v3853 = vld [vmem:[#allocation2 + $0x238] sm:$0xff]
      %v3854 = vld [vmem:[#allocation2 + $0x240] sm:$0xff]
      %v3855 = vld [vmem:[#allocation2 + $0x248] sm:$0xff]
      %v3856 = vld [vmem:[#allocation2 + $0x250] sm:$0xff]
      %v3857 = vld [vmem:[#allocation2 + $0x258] sm:$0xff]
      %v3858 = vld [vmem:[#allocation2 + $0x260] sm:$0xff]
      %v3859 = vld [vmem:[#allocation2 + $0x268] sm:$0xff]
      %v3860 = vld [vmem:[#allocation2 + $0x270] sm:$0xff]
      %v3861 = vld [vmem:[#allocation2 + $0x278] sm:$0xff]
      %v3862 = vld [vmem:[#allocation2 + $0x280] sm:$0xff]
      %v3863 = vld [vmem:[#allocation2 + $0x288] sm:$0xff]
      %v3864 = vld [vmem:[#allocation2 + $0x290] sm:$0xff]
      %v3865 = vld [vmem:[#allocation2 + $0x298] sm:$0xff]
      %v3866 = vld [vmem:[#allocation2 + $0x2a0] sm:$0xff]
      %v3867 = vld [vmem:[#allocation2 + $0x2a8] sm:$0xff]
      %v3868 = vld [vmem:[#allocation2 + $0x2b0] sm:$0xff]
      %v3869 = vld [vmem:[#allocation2 + $0x2b8] sm:$0xff]
      %v3870 = vld [vmem:[#allocation2 + $0x2c0] sm:$0xff]
      %v3871 = vld [vmem:[#allocation2 + $0x2c8] sm:$0xff]
      %v3872 = vld [vmem:[#allocation2 + $0x2d0] sm:$0xff]
      %v3873 = vld [vmem:[#allocation2 + $0x2d8] sm:$0xff]
      %v3874 = vld [vmem:[#allocation2 + $0x2e0] sm:$0xff]
      %v3875 = vld [vmem:[#allocation2 + $0x2e8] sm:$0xff]
      %v3876 = vld [vmem:[#allocation2 + $0x2f0] sm:$0xff]
      %v3877 = vld [vmem:[#allocation2 + $0x2f8] sm:$0xff]
      %v3878 = vld [vmem:[#allocation2 + $0x300] sm:$0xff]
      %v3879 = vld [vmem:[#allocation2 + $0x308] sm:$0xff]
      %v3880 = vld [vmem:[#allocation2 + $0x310] sm:$0xff]
      %v3881 = vld [vmem:[#allocation2 + $0x318] sm:$0xff]
      %v3882 = vld [vmem:[#allocation2 + $0x320] sm:$0xff]
      %v3883 = vld [vmem:[#allocation2 + $0x328] sm:$0xff]
      %v3884 = vld [vmem:[#allocation2 + $0x330] sm:$0xff]
      %v3885 = vld [vmem:[#allocation2 + $0x338] sm:$0xff]
      %v3886 = vld [vmem:[#allocation2 + $0x340] sm:$0xff]
      %v3887 = vld [vmem:[#allocation2 + $0x348] sm:$0xff]
      %v3888 = vld [vmem:[#allocation2 + $0x350] sm:$0xff]
      %v3889 = vld [vmem:[#allocation2 + $0x358] sm:$0xff]
      %v3890 = vld [vmem:[#allocation2 + $0x360] sm:$0xff]
      %v3891 = vld [vmem:[#allocation2 + $0x368] sm:$0xff]
      %v3892 = vld [vmem:[#allocation2 + $0x370] sm:$0xff]
      %v3893 = vld [vmem:[#allocation2 + $0x378] sm:$0xff]
      %v3894 = vld [vmem:[#allocation2 + $0x380] sm:$0xff]
      %v3895 = vld [vmem:[#allocation2 + $0x388] sm:$0xff]
      %v3896 = vld [vmem:[#allocation2 + $0x390] sm:$0xff]
      %v3897 = vld [vmem:[#allocation2 + $0x398] sm:$0xff]
      %v3898 = vld [vmem:[#allocation2 + $0x3a0] sm:$0xff]
      %v3899 = vld [vmem:[#allocation2 + $0x3a8] sm:$0xff]
      %v3900 = vld [vmem:[#allocation2 + $0x3b0] sm:$0xff]
      %v3901 = vld [vmem:[#allocation2 + $0x3b8] sm:$0xff]
      %v3902 = vld [vmem:[#allocation2 + $0x3c0] sm:$0xff]
      %v3903 = vld [vmem:[#allocation2 + $0x3c8] sm:$0xff]
      %v3904 = vld [vmem:[#allocation2 + $0x3d0] sm:$0xff]
      %v3905 = vld [vmem:[#allocation2 + $0x3d8] sm:$0xff]
      %v3906 = vld [vmem:[#allocation2 + $0x3e0] sm:$0xff]
      %v3907 = vld [vmem:[#allocation2 + $0x3e8] sm:$0xff]
      %v3908 = vld [vmem:[#allocation2 + $0x3f0] sm:$0xff]
      %v3909 = vld [vmem:[#allocation2 + $0x3f8] sm:$0xff]
      %v3910 = vld [vmem:[#allocation2 + $0x400] sm:$0xff]
      %v3911 = vld [vmem:[#allocation2 + $0x408] sm:$0xff]
      %v3912 = vld [vmem:[#allocation2 + $0x410] sm:$0xff]
      %v3913 = vld [vmem:[#allocation2 + $0x418] sm:$0xff]
      %v3914 = vld [vmem:[#allocation2 + $0x420] sm:$0xff]
      %v3915 = vld [vmem:[#allocation2 + $0x428] sm:$0xff]
      %v3916 = vld [vmem:[#allocation2 + $0x430] sm:$0xff]
      %v3917 = vld [vmem:[#allocation2 + $0x438] sm:$0xff]
      %v3918 = vld [vmem:[#allocation2 + $0x440] sm:$0xff]
      %v3919 = vld [vmem:[#allocation2 + $0x448] sm:$0xff]
      %v3920 = vld [vmem:[#allocation2 + $0x450] sm:$0xff]
      %v3921 = vld [vmem:[#allocation2 + $0x458] sm:$0xff]
      %v3922 = vld [vmem:[#allocation2 + $0x460] sm:$0xff]
      %v3923 = vld [vmem:[#allocation2 + $0x468] sm:$0xff]
      %v3924 = vld [vmem:[#allocation2 + $0x470] sm:$0xff]
      %v3925 = vld [vmem:[#allocation2 + $0x478] sm:$0xff]
      %v3926 = vld [vmem:[#allocation2 + $0x480] sm:$0xff]
      %v3927 = vld [vmem:[#allocation2 + $0x488] sm:$0xff]
      %v3928 = vld [vmem:[#allocation2 + $0x490] sm:$0xff]
      %v3929 = vld [vmem:[#allocation2 + $0x498] sm:$0xff]
      %v3930 = vld [vmem:[#allocation2 + $0x4a0] sm:$0xff]
      %v3931 = vld [vmem:[#allocation2 + $0x4a8] sm:$0xff]
      %v3932 = vld [vmem:[#allocation2 + $0x4b0] sm:$0xff]
      %v3933 = vld [vmem:[#allocation2 + $0x4b8] sm:$0xff]
      %v3934 = vld [vmem:[#allocation2 + $0x4c0] sm:$0xff]
      %v3935 = vld [vmem:[#allocation2 + $0x4c8] sm:$0xff]
      %v3936 = vld [vmem:[#allocation2 + $0x4d0] sm:$0xff]
      %v3937 = vld [vmem:[#allocation2 + $0x4d8] sm:$0xff]
      %v3938 = vld [vmem:[#allocation2 + $0x4e0] sm:$0xff]
      %v3939 = vld [vmem:[#allocation2 + $0x4e8] sm:$0xff]
      %v3940 = vld [vmem:[#allocation2 + $0x4f0] sm:$0xff]
      %v3941 = vld [vmem:[#allocation2 + $0x4f8] sm:$0xff]
      %v3942 = vld [vmem:[#allocation2 + $0x500] sm:$0xff]
      %v3943 = vld [vmem:[#allocation2 + $0x508] sm:$0xff]
      %v3944 = vld [vmem:[#allocation2 + $0x510] sm:$0xff]
      %v3945 = vld [vmem:[#allocation2 + $0x518] sm:$0xff]
      %v3946 = vld [vmem:[#allocation2 + $0x520] sm:$0xff]
      %v3947 = vld [vmem:[#allocation2 + $0x528] sm:$0xff]
      %v3948 = vld [vmem:[#allocation2 + $0x530] sm:$0xff]
      %v3949 = vld [vmem:[#allocation2 + $0x538] sm:$0xff]
      %v3950 = vld [vmem:[#allocation2 + $0x540] sm:$0xff]
      %v3951 = vld [vmem:[#allocation2 + $0x548] sm:$0xff]
      %v3952 = vld [vmem:[#allocation2 + $0x550] sm:$0xff]
      %v3953 = vld [vmem:[#allocation2 + $0x558] sm:$0xff]
      %v3954 = vld [vmem:[#allocation2 + $0x560] sm:$0xff]
      %v3955 = vld [vmem:[#allocation2 + $0x568] sm:$0xff]
      %v3956 = vld [vmem:[#allocation2 + $0x570] sm:$0xff]
      %v3957 = vld [vmem:[#allocation2 + $0x578] sm:$0xff]
      %v3958 = vld [vmem:[#allocation2 + $0x580] sm:$0xff]
      %v3959 = vld [vmem:[#allocation2 + $0x588] sm:$0xff]
      %v3960 = vld [vmem:[#allocation2 + $0x590] sm:$0xff]
      %v3961 = vld [vmem:[#allocation2 + $0x598] sm:$0xff]
      %v3962 = vld [vmem:[#allocation2 + $0x5a0] sm:$0xff]
      %v3963 = vld [vmem:[#allocation2 + $0x5a8] sm:$0xff]
      %v3964 = vld [vmem:[#allocation2 + $0x5b0] sm:$0xff]
      %v3965 = vld [vmem:[#allocation2 + $0x5b8] sm:$0xff]
      %v3966 = vld [vmem:[#allocation2 + $0x5c0] sm:$0xff]
      %v3967 = vld [vmem:[#allocation2 + $0x5c8] sm:$0xff]
      %v3968 = vld [vmem:[#allocation2 + $0x5d0] sm:$0xff]
      %v3969 = vld [vmem:[#allocation2 + $0x5d8] sm:$0xff]
      %v3970 = vld [vmem:[#allocation2 + $0x5e0] sm:$0xff]
      %v3971 = vld [vmem:[#allocation2 + $0x5e8] sm:$0xff]
      %v3972 = vld [vmem:[#allocation2 + $0x5f0] sm:$0xff]
      %v3973 = vld [vmem:[#allocation2 + $0x5f8] sm:$0xff]
      %v3974 = vld [vmem:[#allocation2 + $0x600] sm:$0xff]
      %v3975 = vld [vmem:[#allocation2 + $0x608] sm:$0xff]
      %v3976 = vld [vmem:[#allocation2 + $0x610] sm:$0xff]
      %v3977 = vld [vmem:[#allocation2 + $0x618] sm:$0xff]
      %v3978 = vld [vmem:[#allocation2 + $0x620] sm:$0xff]
      %v3979 = vld [vmem:[#allocation2 + $0x628] sm:$0xff]
      %v3980 = vld [vmem:[#allocation2 + $0x630] sm:$0xff]
      %v3981 = vld [vmem:[#allocation2 + $0x638] sm:$0xff]
      %v3982 = vld [vmem:[#allocation2 + $0x640] sm:$0xff]
      %v3983 = vld [vmem:[#allocation2 + $0x648] sm:$0xff]
      %v3984 = vld [vmem:[#allocation2 + $0x650] sm:$0xff]
      %v3985 = vld [vmem:[#allocation2 + $0x658] sm:$0xff]
      %v3986 = vld [vmem:[#allocation2 + $0x660] sm:$0xff]
      %v3987 = vld [vmem:[#allocation2 + $0x668] sm:$0xff]
      %v3988 = vld [vmem:[#allocation2 + $0x670] sm:$0xff]
      %v3989 = vld [vmem:[#allocation2 + $0x678] sm:$0xff]
      %v3990 = vld [vmem:[#allocation2 + $0x680] sm:$0xff]
      %v3991 = vld [vmem:[#allocation2 + $0x688] sm:$0xff]
      %v3992 = vld [vmem:[#allocation2 + $0x690] sm:$0xff]
      %v3993 = vld [vmem:[#allocation2 + $0x698] sm:$0xff]
      %v3994 = vld [vmem:[#allocation2 + $0x6a0] sm:$0xff]
      %v3995 = vld [vmem:[#allocation2 + $0x6a8] sm:$0xff]
      %v3996 = vld [vmem:[#allocation2 + $0x6b0] sm:$0xff]
      %v3997 = vld [vmem:[#allocation2 + $0x6b8] sm:$0xff]
      %v3998 = vld [vmem:[#allocation2 + $0x6c0] sm:$0xff]
      %v3999 = vld [vmem:[#allocation2 + $0x6c8] sm:$0xff]
      %v4000 = vld [vmem:[#allocation2 + $0x6d0] sm:$0xff]
      %v4001 = vld [vmem:[#allocation2 + $0x6d8] sm:$0xff]
      %v4002 = vld [vmem:[#allocation2 + $0x6e0] sm:$0xff]
      %v4003 = vld [vmem:[#allocation2 + $0x6e8] sm:$0xff]
      %v4004 = vld [vmem:[#allocation2 + $0x6f0] sm:$0xff]
      %v4005 = vld [vmem:[#allocation2 + $0x6f8] sm:$0xff]
      %v4006 = vld [vmem:[#allocation2 + $0x700] sm:$0xff]
      %v4007 = vld [vmem:[#allocation2 + $0x708] sm:$0xff]
      %v4008 = vld [vmem:[#allocation2 + $0x710] sm:$0xff]
      %v4009 = vld [vmem:[#allocation2 + $0x718] sm:$0xff]
      %v4010 = vld [vmem:[#allocation2 + $0x720] sm:$0xff]
      %v4011 = vld [vmem:[#allocation2 + $0x728] sm:$0xff]
      %v4012 = vld [vmem:[#allocation2 + $0x730] sm:$0xff]
      %v4013 = vld [vmem:[#allocation2 + $0x738] sm:$0xff]
      %v4014 = vld [vmem:[#allocation2 + $0x740] sm:$0xff]
      %v4015 = vld [vmem:[#allocation2 + $0x748] sm:$0xff]
      %v4016 = vld [vmem:[#allocation2 + $0x750] sm:$0xff]
      %v4017 = vld [vmem:[#allocation2 + $0x758] sm:$0xff]
      %v4018 = vld [vmem:[#allocation2 + $0x760] sm:$0xff]
      %v4019 = vld [vmem:[#allocation2 + $0x768] sm:$0xff]
      %v4020 = vld [vmem:[#allocation2 + $0x770] sm:$0xff]
      %v4021 = vld [vmem:[#allocation2 + $0x778] sm:$0xff]
      %v4022 = vld [vmem:[#allocation2 + $0x780] sm:$0xff]
      %v4023 = vld [vmem:[#allocation2 + $0x788] sm:$0xff]
      %v4024 = vld [vmem:[#allocation2 + $0x790] sm:$0xff]
      %v4025 = vld [vmem:[#allocation2 + $0x798] sm:$0xff]
      %v4026 = vld [vmem:[#allocation2 + $0x7a0] sm:$0xff]
      %v4027 = vld [vmem:[#allocation2 + $0x7a8] sm:$0xff]
      %v4028 = vld [vmem:[#allocation2 + $0x7b0] sm:$0xff]
      %v4029 = vld [vmem:[#allocation2 + $0x7b8] sm:$0xff]
      %v4030 = vld [vmem:[#allocation2 + $0x7c0] sm:$0xff]
      %v4031 = vld [vmem:[#allocation2 + $0x7c8] sm:$0xff]
      %v4032 = vld [vmem:[#allocation2 + $0x7d0] sm:$0xff]
      %v4033 = vld [vmem:[#allocation2 + $0x7d8] sm:$0xff]
      %v4034 = vld [vmem:[#allocation2 + $0x7e0] sm:$0xff]
      %v4035 = vld [vmem:[#allocation2 + $0x7e8] sm:$0xff]
      %v4036 = vld [vmem:[#allocation2 + $0x7f0] sm:$0xff]
      %v4037 = vld [vmem:[#allocation2 + $0x7f8] sm:$0xff]
      %v4038 = vld [vmem:[#allocation2 + $0x800] sm:$0xff]
      %v4039 = vld [vmem:[#allocation2 + $0x808] sm:$0xff]
      %v4040 = vld [vmem:[#allocation2 + $0x810] sm:$0xff]
      %v4041 = vld [vmem:[#allocation2 + $0x818] sm:$0xff]
      %v4042 = vld [vmem:[#allocation2 + $0x820] sm:$0xff]
      %v4043 = vld [vmem:[#allocation2 + $0x828] sm:$0xff]
      %v4044 = vld [vmem:[#allocation2 + $0x830] sm:$0xff]
      %v4045 = vld [vmem:[#allocation2 + $0x838] sm:$0xff]
      %v4046 = vld [vmem:[#allocation2 + $0x840] sm:$0xff]
      %v4047 = vld [vmem:[#allocation2 + $0x848] sm:$0xff]
      %v4048 = vld [vmem:[#allocation2 + $0x850] sm:$0xff]
      %v4049 = vld [vmem:[#allocation2 + $0x858] sm:$0xff]
      %v4050 = vld [vmem:[#allocation2 + $0x860] sm:$0xff]
      %v4051 = vld [vmem:[#allocation2 + $0x868] sm:$0xff]
      %v4052 = vld [vmem:[#allocation2 + $0x870] sm:$0xff]
      %v4053 = vld [vmem:[#allocation2 + $0x878] sm:$0xff]
      %v4054 = vld [vmem:[#allocation2 + $0x880] sm:$0xff]
      %v4055 = vld [vmem:[#allocation2 + $0x888] sm:$0xff]
      %v4056 = vld [vmem:[#allocation2 + $0x890] sm:$0xff]
      %v4057 = vld [vmem:[#allocation2 + $0x898] sm:$0xff]
      %v4058 = vld [vmem:[#allocation2 + $0x8a0] sm:$0xff]
      %v4059 = vld [vmem:[#allocation2 + $0x8a8] sm:$0xff]
      %v4060 = vld [vmem:[#allocation2 + $0x8b0] sm:$0xff]
      %v4061 = vld [vmem:[#allocation2 + $0x8b8] sm:$0xff]
      %v4062 = vld [vmem:[#allocation2 + $0x8c0] sm:$0xff]
      %v4063 = vld [vmem:[#allocation2 + $0x8c8] sm:$0xff]
      %v4064 = vld [vmem:[#allocation2 + $0x8d0] sm:$0xff]
      %v4065 = vld [vmem:[#allocation2 + $0x8d8] sm:$0xff]
      %v4066 = vld [vmem:[#allocation2 + $0x8e0] sm:$0xff]
      %v4067 = vld [vmem:[#allocation2 + $0x8e8] sm:$0xff]
      %v4068 = vld [vmem:[#allocation2 + $0x8f0] sm:$0xff]
      %v4069 = vld [vmem:[#allocation2 + $0x8f8] sm:$0xff]
      %v4070 = vld [vmem:[#allocation2 + $0x900] sm:$0xff]
      %v4071 = vld [vmem:[#allocation2 + $0x908] sm:$0xff]
      %v4072 = vld [vmem:[#allocation2 + $0x910] sm:$0xff]
      %v4073 = vld [vmem:[#allocation2 + $0x918] sm:$0xff]
      %v4074 = vld [vmem:[#allocation2 + $0x920] sm:$0xff]
      %v4075 = vld [vmem:[#allocation2 + $0x928] sm:$0xff]
      %v4076 = vld [vmem:[#allocation2 + $0x930] sm:$0xff]
      %v4077 = vld [vmem:[#allocation2 + $0x938] sm:$0xff]
      %v4078 = vld [vmem:[#allocation2 + $0x940] sm:$0xff]
      %v4079 = vld [vmem:[#allocation2 + $0x948] sm:$0xff]
      %v4080 = vld [vmem:[#allocation2 + $0x950] sm:$0xff]
      %v4081 = vld [vmem:[#allocation2 + $0x958] sm:$0xff]
      %v4082 = vld [vmem:[#allocation2 + $0x960] sm:$0xff]
      %v4083 = vld [vmem:[#allocation2 + $0x968] sm:$0xff]
      %v4084 = vld [vmem:[#allocation2 + $0x970] sm:$0xff]
      %v4085 = vld [vmem:[#allocation2 + $0x978] sm:$0xff]
      %v4086 = vld [vmem:[#allocation2 + $0x980] sm:$0xff]
      %v4087 = vld [vmem:[#allocation2 + $0x988] sm:$0xff]
      %v4088 = vld [vmem:[#allocation2 + $0x990] sm:$0xff]
      %v4089 = vld [vmem:[#allocation2 + $0x998] sm:$0xff]
      %v4090 = vld [vmem:[#allocation2 + $0x9a0] sm:$0xff]
      %v4091 = vld [vmem:[#allocation2 + $0x9a8] sm:$0xff]
      %v4092 = vld [vmem:[#allocation2 + $0x9b0] sm:$0xff]
      %v4093 = vld [vmem:[#allocation2 + $0x9b8] sm:$0xff]
      %v4094 = vld [vmem:[#allocation2 + $0x9c0] sm:$0xff]
      %v4095 = vld [vmem:[#allocation2 + $0x9c8] sm:$0xff]
      %v4096 = vld [vmem:[#allocation2 + $0x9d0] sm:$0xff]
      %v4097 = vld [vmem:[#allocation2 + $0x9d8] sm:$0xff]
      %v4098 = vld [vmem:[#allocation2 + $0x9e0] sm:$0xff]
      %v4099 = vld [vmem:[#allocation2 + $0x9e8] sm:$0xff]
      %v4100 = vld [vmem:[#allocation2 + $0x9f0] sm:$0xff]
      %v4101 = vld [vmem:[#allocation2 + $0x9f8] sm:$0xff]
      %v4102 = vld [vmem:[%s6] sm:$0xff]
      %v4103 = vld [vmem:[%s6 + $0x8] sm:$0xff]
      %v4104 = vld [vmem:[%s6 + $0x10] sm:$0xff]
      %v4105 = vld [vmem:[%s6 + $0x18] sm:$0xff]
      %v4106 = vld [vmem:[%s6 + $0x20] sm:$0xff]
      %v4107 = vld [vmem:[%s6 + $0x28] sm:$0xff]
      %v4108 = vld [vmem:[%s6 + $0x30] sm:$0xff]
      %v4109 = vld [vmem:[%s6 + $0x38] sm:$0xff]
      %v4110 = vld [vmem:[%s6 + $0x40] sm:$0xff]
      %v4111 = vld [vmem:[%s6 + $0x48] sm:$0xff]
      %v4112 = vld [vmem:[%s6 + $0x50] sm:$0xff]
      %v4113 = vld [vmem:[%s6 + $0x58] sm:$0xff]
      %v4114 = vld [vmem:[%s6 + $0x60] sm:$0xff]
      %v4115 = vld [vmem:[%s6 + $0x68] sm:$0xff]
      %v4116 = vld [vmem:[%s6 + $0x70] sm:$0xff]
      %v4117 = vld [vmem:[%s6 + $0x78] sm:$0xff]
      %v4118 = vld [vmem:[%s6 + $0x80] sm:$0xff]
      %v4119 = vld [vmem:[%s6 + $0x88] sm:$0xff]
      %v4120 = vld [vmem:[%s6 + $0x90] sm:$0xff]
      %v4121 = vld [vmem:[%s6 + $0x98] sm:$0xff]
      %v4122 = vld [vmem:[%s6 + $0xa0] sm:$0xff]
      %v4123 = vld [vmem:[%s6 + $0xa8] sm:$0xff]
      %v4124 = vld [vmem:[%s6 + $0xb0] sm:$0xff]
      %v4125 = vld [vmem:[%s6 + $0xb8] sm:$0xff]
      %v4126 = vld [vmem:[%s6 + $0xc0] sm:$0xff]
      %v4127 = vld [vmem:[%s6 + $0xc8] sm:$0xff]
      %v4128 = vld [vmem:[%s6 + $0xd0] sm:$0xff]
      %v4129 = vld [vmem:[%s6 + $0xd8] sm:$0xff]
      %v4130 = vld [vmem:[%s6 + $0xe0] sm:$0xff]
      %v4131 = vld [vmem:[%s6 + $0xe8] sm:$0xff]
      %v4132 = vld [vmem:[%s6 + $0xf0] sm:$0xff]
      %v4133 = vld [vmem:[%s6 + $0xf8] sm:$0xff]
      %v4134 = vld [vmem:[%s6 + $0x100] sm:$0xff]
      %v4135 = vld [vmem:[%s6 + $0x108] sm:$0xff]
      %v4136 = vld [vmem:[%s6 + $0x110] sm:$0xff]
      %v4137 = vld [vmem:[%s6 + $0x118] sm:$0xff]
      %v4138 = vld [vmem:[%s6 + $0x120] sm:$0xff]
      %v4139 = vld [vmem:[%s6 + $0x128] sm:$0xff]
      %v4140 = vld [vmem:[%s6 + $0x130] sm:$0xff]
      %v4141 = vld [vmem:[%s6 + $0x138] sm:$0xff]
      %v4142 = vld [vmem:[%s7] sm:$0xff]
      %v4143 = vld [vmem:[%s7 + $0x8] sm:$0xff]
      %v4144 = vld [vmem:[%s7 + $0x10] sm:$0xff]
      %v4145 = vld [vmem:[%s7 + $0x18] sm:$0xff]
      %v4146 = vld [vmem:[%s7 + $0x20] sm:$0xff]
      %v4147 = vld [vmem:[%s7 + $0x28] sm:$0xff]
      %v4148 = vld [vmem:[%s7 + $0x30] sm:$0xff]
      %v4149 = vld [vmem:[%s7 + $0x38] sm:$0xff]
      %4151 = vset.pattern.permute.xlu0 0
      %4152 = vperm.xlu0 %4151, %v4142
      %v4153 = vpop.permute.xlu0 %4152
      %4156 = vset.pattern.permute.xlu0 0
      %4157 = vperm.xlu0 %4156, %v4143
      %v4158 = vpop.permute.xlu0 %4157
      %4161 = vset.pattern.permute.xlu0 0
      %4162 = vperm.xlu0 %4161, %v4144
      %v4163 = vpop.permute.xlu0 %4162
      %4166 = vset.pattern.permute.xlu0 0
      %4167 = vperm.xlu0 %4166, %v4145
      %v4168 = vpop.permute.xlu0 %4167
      %4171 = vset.pattern.permute.xlu0 0
      %4172 = vperm.xlu0 %4171, %v4146
      %v4173 = vpop.permute.xlu0 %4172
      %4176 = vset.pattern.permute.xlu0 0
      %4177 = vperm.xlu0 %4176, %v4147
      %v4178 = vpop.permute.xlu0 %4177
      %4181 = vset.pattern.permute.xlu0 0
      %4182 = vperm.xlu0 %4181, %v4148
      %v4183 = vpop.permute.xlu0 %4182
      %4186 = vset.pattern.permute.xlu0 0
      %4187 = vperm.xlu0 %4186, %v4149
      %v4188 = vpop.permute.xlu0 %4187
      %4190 = vmatprep.subr.mxu0 %v3843
      %4191 = vmatpush1.msra.mxu0 %v3842
      %4192 = vmatprep.subr.mxu0 %v3839
      %4193 = vmatpush1.msra.mxu0 %v3838
      %4194 = vmatprep.subr.mxu0 %v3835
      %4195 = vmatpush1.msra.mxu0 %v3834
      %4196 = vmatprep.subr.mxu0 %v3831
      %4197 = vmatpush1.msra.mxu0 %v3830
      %4198 = vmatprep.subr.mxu0 %v3827
      %4199 = vmatpush1.msra.mxu0 %v3826
      %4200 = vmatprep.subr.mxu0 %v3823
      %4201 = vmatpush1.msra.mxu0 %v3822
      %4202 = vmatprep.subr.mxu0 %v3819
      %4203 = vmatpush1.msra.mxu0 %v3818
      %4204 = vmatprep.subr.mxu0 %v3815
      %4205 = vmatpush1.msra.mxu0 %v3814
      %4206 = vmatprep.subr.mxu0 %v3811
      %4207 = vmatpush1.msra.mxu0 %v3810
      %4208 = vmatprep.subr.mxu0 %v3807
      %4209 = vmatpush1.msra.mxu0 %v3806
      %4210 = vmatprep.subr.mxu0 %v3803
      %4211 = vmatpush1.msra.mxu0 %v3802
      %4212 = vmatprep.subr.mxu0 %v3799
      %4213 = vmatpush1.msra.mxu0 %v3798
      %4214 = vmatprep.subr.mxu0 %v3795
      %4215 = vmatpush1.msra.mxu0 %v3794
      %4216 = vmatprep.subr.mxu0 %v3791
      %4217 = vmatpush1.msra.mxu0 %v3790
      %4218 = vmatprep.subr.mxu0 %v3787
      %4219 = vmatpush1.msra.mxu0 %v3786
      %4220 = vmatprep.subr.mxu0 %v3783
      %4221 = vmatpush1.msra.mxu0 %v3782
      %4222 = vmatprep.subr.mxu0 %v3907
      %4223 = vmatpush2.msra.mxu0 %v3906
      %4224 = vmatprep.subr.mxu0 %v3903
      %4225 = vmatpush2.msra.mxu0 %v3902
      %4226 = vmatprep.subr.mxu0 %v3899
      %4227 = vmatpush2.msra.mxu0 %v3898
      %4228 = vmatprep.subr.mxu0 %v3895
      %4229 = vmatpush2.msra.mxu0 %v3894
      %4230 = vmatprep.subr.mxu0 %v3891
      %4231 = vmatpush2.msra.mxu0 %v3890
      %4232 = vmatprep.subr.mxu0 %v3887
      %4233 = vmatpush2.msra.mxu0 %v3886
      %4234 = vmatprep.subr.mxu0 %v3883
      %4235 = vmatpush2.msra.mxu0 %v3882
      %4236 = vmatprep.subr.mxu0 %v3879
      %4237 = vmatpush2.msra.mxu0 %v3878
      %4238 = vmatprep.subr.mxu0 %v3875
      %4239 = vmatpush2.msra.mxu0 %v3874
      %4240 = vmatprep.subr.mxu0 %v3871
      %4241 = vmatpush2.msra.mxu0 %v3870
      %4242 = vmatprep.subr.mxu0 %v3867
      %4243 = vmatpush2.msra.mxu0 %v3866
      %4244 = vmatprep.subr.mxu0 %v3863
      %4245 = vmatpush2.msra.mxu0 %v3862
      %4246 = vmatprep.subr.mxu0 %v3859
      %4247 = vmatpush2.msra.mxu0 %v3858
      %4248 = vmatprep.subr.mxu0 %v3855
      %4249 = vmatpush2.msra.mxu0 %v3854
      %4250 = vmatprep.subr.mxu0 %v3851
      %4251 = vmatpush2.msra.mxu0 %v3850
      %4252 = vmatprep.subr.mxu0 %v3847
      %4253 = vmatpush2.msra.mxu0 %v3846
      %4254 = vmatprep.mubr.f32.mxu0 %v4103
      %4255 = vmatmul.mubr.f32.gmra.mxu0 %v4102
      %v4256 = vpop.f32.mrf.mxu0
      %v4257 = vadd.f32 %v4153, %v4256
      %v4258 = vpop.f32.mrf.mxu0
      %v4259 = vadd.f32 %v4153, %v4258
      %4260 = vmatprep.mubr.f32.mxu0 %v4108
      %4261 = vmatmul.mubr.f32.gmra.mxu0 %v4107
      %v4262 = vpop.f32.mrf.mxu0
      %v4263 = vadd.f32 %v4158, %v4262
      %v4264 = vpop.f32.mrf.mxu0
      %v4265 = vadd.f32 %v4158, %v4264
      %4266 = vmatprep.mubr.f32.mxu0 %v4113
      %4267 = vmatmul.mubr.f32.gmra.mxu0 %v4112
      %v4268 = vpop.f32.mrf.mxu0
      %v4269 = vadd.f32 %v4163, %v4268
      %v4270 = vpop.f32.mrf.mxu0
      %v4271 = vadd.f32 %v4163, %v4270
      %4272 = vmatprep.mubr.f32.mxu0 %v4118
      %4273 = vmatmul.mubr.f32.gmra.mxu0 %v4117
      %v4274 = vpop.f32.mrf.mxu0
      %v4275 = vadd.f32 %v4168, %v4274
      %v4276 = vpop.f32.mrf.mxu0
      %v4277 = vadd.f32 %v4168, %v4276
      %4278 = vmatprep.mubr.f32.mxu0 %v4123
      %4279 = vmatmul.mubr.f32.gmra.mxu0 %v4122
      %v4280 = vpop.f32.mrf.mxu0
      %v4281 = vadd.f32 %v4173, %v4280
      %v4282 = vpop.f32.mrf.mxu0
      %v4283 = vadd.f32 %v4173, %v4282
      %4284 = vmatprep.mubr.f32.mxu0 %v4128
      %4285 = vmatmul.mubr.f32.gmra.mxu0 %v4127
      %v4286 = vpop.f32.mrf.mxu0
      %v4287 = vadd.f32 %v4178, %v4286
      %v4288 = vpop.f32.mrf.mxu0
      %v4289 = vadd.f32 %v4178, %v4288
      %4290 = vmatprep.mubr.f32.mxu0 %v4133
      %4291 = vmatmul.mubr.f32.gmra.mxu0 %v4132
      %v4292 = vpop.f32.mrf.mxu0
      %v4293 = vadd.f32 %v4183, %v4292
      %v4294 = vpop.f32.mrf.mxu0
      %v4295 = vadd.f32 %v4183, %v4294
      %4296 = vmatprep.mubr.f32.mxu0 %v4138
      %4297 = vmatmul.mubr.f32.gmra.mxu0 %v4137
      %v4298 = vpop.f32.mrf.mxu0
      %v4299 = vadd.f32 %v4188, %v4298
      %v4300 = vpop.f32.mrf.mxu0
      %v4301 = vadd.f32 %v4188, %v4300
      %4302 = vdwg.mxu0
      %4303 = vmatprep.subr.mxu0 %v3971
      %4304 = vmatpush1.msra.mxu0 %v3970
      %4305 = vmatprep.subr.mxu0 %v3967
      %4306 = vmatpush1.msra.mxu0 %v3966
      %4307 = vmatprep.subr.mxu0 %v3963
      %4308 = vmatpush1.msra.mxu0 %v3962
      %4309 = vmatprep.subr.mxu0 %v3959
      %4310 = vmatpush1.msra.mxu0 %v3958
      %4311 = vmatprep.subr.mxu0 %v3955
      %4312 = vmatpush1.msra.mxu0 %v3954
      %4313 = vmatprep.subr.mxu0 %v3951
      %4314 = vmatpush1.msra.mxu0 %v3950
      %4315 = vmatprep.subr.mxu0 %v3947
      %4316 = vmatpush1.msra.mxu0 %v3946
      %4317 = vmatprep.subr.mxu0 %v3943
      %4318 = vmatpush1.msra.mxu0 %v3942
      %4319 = vmatprep.subr.mxu0 %v3939
      %4320 = vmatpush1.msra.mxu0 %v3938
      %4321 = vmatprep.subr.mxu0 %v3935
      %4322 = vmatpush1.msra.mxu0 %v3934
      %4323 = vmatprep.subr.mxu0 %v3931
      %4324 = vmatpush1.msra.mxu0 %v3930
      %4325 = vmatprep.subr.mxu0 %v3927
      %4326 = vmatpush1.msra.mxu0 %v3926
      %4327 = vmatprep.subr.mxu0 %v3923
      %4328 = vmatpush1.msra.mxu0 %v3922
      %4329 = vmatprep.subr.mxu0 %v3919
      %4330 = vmatpush1.msra.mxu0 %v3918
      %4331 = vmatprep.subr.mxu0 %v3915
      %4332 = vmatpush1.msra.mxu0 %v3914
      %4333 = vmatprep.subr.mxu0 %v3911
      %4334 = vmatpush1.msra.mxu0 %v3910
      %4335 = vmatprep.subr.mxu0 %v4035
      %4336 = vmatpush2.msra.mxu0 %v4034
      %4337 = vmatprep.subr.mxu0 %v4031
      %4338 = vmatpush2.msra.mxu0 %v4030
      %4339 = vmatprep.subr.mxu0 %v4027
      %4340 = vmatpush2.msra.mxu0 %v4026
      %4341 = vmatprep.subr.mxu0 %v4023
      %4342 = vmatpush2.msra.mxu0 %v4022
      %4343 = vmatprep.subr.mxu0 %v4019
      %4344 = vmatpush2.msra.mxu0 %v4018
      %4345 = vmatprep.subr.mxu0 %v4015
      %4346 = vmatpush2.msra.mxu0 %v4014
      %4347 = vmatprep.subr.mxu0 %v4011
      %4348 = vmatpush2.msra.mxu0 %v4010
      %4349 = vmatprep.subr.mxu0 %v4007
      %4350 = vmatpush2.msra.mxu0 %v4006
      %4351 = vmatprep.subr.mxu0 %v4003
      %4352 = vmatpush2.msra.mxu0 %v4002
      %4353 = vmatprep.subr.mxu0 %v3999
      %4354 = vmatpush2.msra.mxu0 %v3998
      %4355 = vmatprep.subr.mxu0 %v3995
      %4356 = vmatpush2.msra.mxu0 %v3994
      %4357 = vmatprep.subr.mxu0 %v3991
      %4358 = vmatpush2.msra.mxu0 %v3990
      %4359 = vmatprep.subr.mxu0 %v3987
      %4360 = vmatpush2.msra.mxu0 %v3986
      %4361 = vmatprep.subr.mxu0 %v3983
      %4362 = vmatpush2.msra.mxu0 %v3982
      %4363 = vmatprep.subr.mxu0 %v3979
      %4364 = vmatpush2.msra.mxu0 %v3978
      %4365 = vmatprep.subr.mxu0 %v3975
      %4366 = vmatpush2.msra.mxu0 %v3974
      %4367 = vmatprep.mubr.f32.mxu0 %v4105
      %4368 = vmatmul.mubr.f32.gmra.mxu0 %v4104
      %v4369 = vpop.f32.mrf.mxu0
      %v4370 = vadd.f32 %v4257, %v4369
      %v4371 = vpop.f32.mrf.mxu0
      %v4372 = vadd.f32 %v4259, %v4371
      %4373 = vmatprep.mubr.f32.mxu0 %v4110
      %4374 = vmatmul.mubr.f32.gmra.mxu0 %v4109
      %v4375 = vpop.f32.mrf.mxu0
      %v4376 = vadd.f32 %v4263, %v4375
      %v4377 = vpop.f32.mrf.mxu0
      %v4378 = vadd.f32 %v4265, %v4377
      %4379 = vmatprep.mubr.f32.mxu0 %v4115
      %4380 = vmatmul.mubr.f32.gmra.mxu0 %v4114
      %v4381 = vpop.f32.mrf.mxu0
      %v4382 = vadd.f32 %v4269, %v4381
      %v4383 = vpop.f32.mrf.mxu0
      %v4384 = vadd.f32 %v4271, %v4383
      %4385 = vmatprep.mubr.f32.mxu0 %v4120
      %4386 = vmatmul.mubr.f32.gmra.mxu0 %v4119
      %v4387 = vpop.f32.mrf.mxu0
      %v4388 = vadd.f32 %v4275, %v4387
      %v4389 = vpop.f32.mrf.mxu0
      %v4390 = vadd.f32 %v4277, %v4389
      %4391 = vmatprep.mubr.f32.mxu0 %v4125
      %4392 = vmatmul.mubr.f32.gmra.mxu0 %v4124
      %v4393 = vpop.f32.mrf.mxu0
      %v4394 = vadd.f32 %v4281, %v4393
      %v4395 = vpop.f32.mrf.mxu0
      %v4396 = vadd.f32 %v4283, %v4395
      %4397 = vmatprep.mubr.f32.mxu0 %v4130
      %4398 = vmatmul.mubr.f32.gmra.mxu0 %v4129
      %v4399 = vpop.f32.mrf.mxu0
      %v4400 = vadd.f32 %v4287, %v4399
      %v4401 = vpop.f32.mrf.mxu0
      %v4402 = vadd.f32 %v4289, %v4401
      %4403 = vmatprep.mubr.f32.mxu0 %v4135
      %4404 = vmatmul.mubr.f32.gmra.mxu0 %v4134
      %v4405 = vpop.f32.mrf.mxu0
      %v4406 = vadd.f32 %v4293, %v4405
      %v4407 = vpop.f32.mrf.mxu0
      %v4408 = vadd.f32 %v4295, %v4407
      %4409 = vmatprep.mubr.f32.mxu0 %v4140
      %4410 = vmatmul.mubr.f32.gmra.mxu0 %v4139
      %v4411 = vpop.f32.mrf.mxu0
      %v4412 = vadd.f32 %v4299, %v4411
      %v4413 = vpop.f32.mrf.mxu0
      %v4414 = vadd.f32 %v4301, %v4413
      %4415 = vdwg.mxu0
      %4416 = vmatprep.subr.mxu0 %v4099
      %4417 = vmatpush1.msra.mxu0 %v4098
      %4418 = vmatprep.subr.mxu0 %v4095
      %4419 = vmatpush1.msra.mxu0 %v4094
      %4420 = vmatprep.subr.mxu0 %v4091
      %4421 = vmatpush1.msra.mxu0 %v4090
      %4422 = vmatprep.subr.mxu0 %v4087
      %4423 = vmatpush1.msra.mxu0 %v4086
      %4424 = vmatprep.subr.mxu0 %v4083
      %4425 = vmatpush1.msra.mxu0 %v4082
      %4426 = vmatprep.subr.mxu0 %v4079
      %4427 = vmatpush1.msra.mxu0 %v4078
      %4428 = vmatprep.subr.mxu0 %v4075
      %4429 = vmatpush1.msra.mxu0 %v4074
      %4430 = vmatprep.subr.mxu0 %v4071
      %4431 = vmatpush1.msra.mxu0 %v4070
      %4432 = vmatprep.subr.mxu0 %v4067
      %4433 = vmatpush1.msra.mxu0 %v4066
      %4434 = vmatprep.subr.mxu0 %v4063
      %4435 = vmatpush1.msra.mxu0 %v4062
      %4436 = vmatprep.subr.mxu0 %v4059
      %4437 = vmatpush1.msra.mxu0 %v4058
      %4438 = vmatprep.subr.mxu0 %v4055
      %4439 = vmatpush1.msra.mxu0 %v4054
      %4440 = vmatprep.subr.mxu0 %v4051
      %4441 = vmatpush1.msra.mxu0 %v4050
      %4442 = vmatprep.subr.mxu0 %v4047
      %4443 = vmatpush1.msra.mxu0 %v4046
      %4444 = vmatprep.subr.mxu0 %v4043
      %4445 = vmatpush1.msra.mxu0 %v4042
      %4446 = vmatprep.subr.mxu0 %v4039
      %4447 = vmatpush1.msra.mxu0 %v4038
      %4448 = vmatprep.subr.mxu0 0.0
      %4449 = vmatpush2.msra.mxu0 0.0
      %4450 = vmatprep.subr.mxu0 0.0
      %4451 = vmatpush2.msra.mxu0 0.0
      %4452 = vmatprep.subr.mxu0 0.0
      %4453 = vmatpush2.msra.mxu0 0.0
      %4454 = vmatprep.subr.mxu0 0.0
      %4455 = vmatpush2.msra.mxu0 0.0
      %4456 = vmatprep.subr.mxu0 0.0
      %4457 = vmatpush2.msra.mxu0 0.0
      %4458 = vmatprep.subr.mxu0 0.0
      %4459 = vmatpush2.msra.mxu0 0.0
      %4460 = vmatprep.subr.mxu0 0.0
      %4461 = vmatpush2.msra.mxu0 0.0
      %4462 = vmatprep.subr.mxu0 0.0
      %4463 = vmatpush2.msra.mxu0 0.0
      %4464 = vmatprep.subr.mxu0 0.0
      %4465 = vmatpush2.msra.mxu0 0.0
      %4466 = vmatprep.subr.mxu0 0.0
      %4467 = vmatpush2.msra.mxu0 0.0
      %4468 = vmatprep.subr.mxu0 0.0
      %4469 = vmatpush2.msra.mxu0 0.0
      %4470 = vmatprep.subr.mxu0 0.0
      %4471 = vmatpush2.msra.mxu0 0.0
      %4472 = vmatprep.subr.mxu0 0.0
      %4473 = vmatpush2.msra.mxu0 0.0
      %4474 = vmatprep.subr.mxu0 0.0
      %4475 = vmatpush2.msra.mxu0 0.0
      %4476 = vmatprep.subr.mxu0 0.0
      %4477 = vmatpush2.msra.mxu0 0.0
      %4478 = vmatprep.subr.mxu0 0.0
      %4479 = vmatpush2.msra.mxu0 0.0
      %4480 = vmatprep.mubr.f32.mxu0 0.0
      %4481 = vmatmul.mubr.f32.gmra.mxu0 %v4106
      %v4482 = vpop.f32.mrf.mxu0
      %v4483 = vadd.f32 %v4370, %v4482
      %v4484 = vpop.f32.mrf.mxu0
      %v4485 = vadd.f32 %v4372, %v4484
      %4486 = vmatprep.mubr.f32.mxu0 0.0
      %4487 = vmatmul.mubr.f32.gmra.mxu0 %v4111
      %v4488 = vpop.f32.mrf.mxu0
      %v4489 = vadd.f32 %v4376, %v4488
      %v4490 = vpop.f32.mrf.mxu0
      %v4491 = vadd.f32 %v4378, %v4490
      %4492 = vmatprep.mubr.f32.mxu0 0.0
      %4493 = vmatmul.mubr.f32.gmra.mxu0 %v4116
      %v4494 = vpop.f32.mrf.mxu0
      %v4495 = vadd.f32 %v4382, %v4494
      %v4496 = vpop.f32.mrf.mxu0
      %v4497 = vadd.f32 %v4384, %v4496
      %4498 = vmatprep.mubr.f32.mxu0 0.0
      %4499 = vmatmul.mubr.f32.gmra.mxu0 %v4121
      %v4500 = vpop.f32.mrf.mxu0
      %v4501 = vadd.f32 %v4388, %v4500
      %v4502 = vpop.f32.mrf.mxu0
      %v4503 = vadd.f32 %v4390, %v4502
      %4504 = vmatprep.mubr.f32.mxu0 0.0
      %4505 = vmatmul.mubr.f32.gmra.mxu0 %v4126
      %v4506 = vpop.f32.mrf.mxu0
      %v4507 = vadd.f32 %v4394, %v4506
      %v4508 = vpop.f32.mrf.mxu0
      %v4509 = vadd.f32 %v4396, %v4508
      %4510 = vmatprep.mubr.f32.mxu0 0.0
      %4511 = vmatmul.mubr.f32.gmra.mxu0 %v4131
      %v4512 = vpop.f32.mrf.mxu0
      %v4513 = vadd.f32 %v4400, %v4512
      %v4514 = vpop.f32.mrf.mxu0
      %v4515 = vadd.f32 %v4402, %v4514
      %4516 = vmatprep.mubr.f32.mxu0 0.0
      %4517 = vmatmul.mubr.f32.gmra.mxu0 %v4136
      %v4518 = vpop.f32.mrf.mxu0
      %v4519 = vadd.f32 %v4406, %v4518
      %v4520 = vpop.f32.mrf.mxu0
      %v4521 = vadd.f32 %v4408, %v4520
      %4522 = vmatprep.mubr.f32.mxu0 0.0
      %4523 = vmatmul.mubr.f32.gmra.mxu0 %v4141
      %v4524 = vpop.f32.mrf.mxu0
      %v4525 = vadd.f32 %v4412, %v4524
      %v4526 = vpop.f32.mrf.mxu0
      %v4527 = vadd.f32 %v4414, %v4526
      %4528 = vdwg.mxu0
      %4529 = vmatprep.subr.mxu0 %v3845
      %4530 = vmatpush1.msra.mxu0 %v3844
      %4531 = vmatprep.subr.mxu0 %v3841
      %4532 = vmatpush1.msra.mxu0 %v3840
      %4533 = vmatprep.subr.mxu0 %v3837
      %4534 = vmatpush1.msra.mxu0 %v3836
      %4535 = vmatprep.subr.mxu0 %v3833
      %4536 = vmatpush1.msra.mxu0 %v3832
      %4537 = vmatprep.subr.mxu0 %v3829
      %4538 = vmatpush1.msra.mxu0 %v3828
      %4539 = vmatprep.subr.mxu0 %v3825
      %4540 = vmatpush1.msra.mxu0 %v3824
      %4541 = vmatprep.subr.mxu0 %v3821
      %4542 = vmatpush1.msra.mxu0 %v3820
      %4543 = vmatprep.subr.mxu0 %v3817
      %4544 = vmatpush1.msra.mxu0 %v3816
      %4545 = vmatprep.subr.mxu0 %v3813
      %4546 = vmatpush1.msra.mxu0 %v3812
      %4547 = vmatprep.subr.mxu0 %v3809
      %4548 = vmatpush1.msra.mxu0 %v3808
      %4549 = vmatprep.subr.mxu0 %v3805
      %4550 = vmatpush1.msra.mxu0 %v3804
      %4551 = vmatprep.subr.mxu0 %v3801
      %4552 = vmatpush1.msra.mxu0 %v3800
      %4553 = vmatprep.subr.mxu0 %v3797
      %4554 = vmatpush1.msra.mxu0 %v3796
      %4555 = vmatprep.subr.mxu0 %v3793
      %4556 = vmatpush1.msra.mxu0 %v3792
      %4557 = vmatprep.subr.mxu0 %v3789
      %4558 = vmatpush1.msra.mxu0 %v3788
      %4559 = vmatprep.subr.mxu0 %v3785
      %4560 = vmatpush1.msra.mxu0 %v3784
      %4561 = vmatprep.subr.mxu0 %v3909
      %4562 = vmatpush2.msra.mxu0 %v3908
      %4563 = vmatprep.subr.mxu0 %v3905
      %4564 = vmatpush2.msra.mxu0 %v3904
      %4565 = vmatprep.subr.mxu0 %v3901
      %4566 = vmatpush2.msra.mxu0 %v3900
      %4567 = vmatprep.subr.mxu0 %v3897
      %4568 = vmatpush2.msra.mxu0 %v3896
      %4569 = vmatprep.subr.mxu0 %v3893
      %4570 = vmatpush2.msra.mxu0 %v3892
      %4571 = vmatprep.subr.mxu0 %v3889
      %4572 = vmatpush2.msra.mxu0 %v3888
      %4573 = vmatprep.subr.mxu0 %v3885
      %4574 = vmatpush2.msra.mxu0 %v3884
      %4575 = vmatprep.subr.mxu0 %v3881
      %4576 = vmatpush2.msra.mxu0 %v3880
      %4577 = vmatprep.subr.mxu0 %v3877
      %4578 = vmatpush2.msra.mxu0 %v3876
      %4579 = vmatprep.subr.mxu0 %v3873
      %4580 = vmatpush2.msra.mxu0 %v3872
      %4581 = vmatprep.subr.mxu0 %v3869
      %4582 = vmatpush2.msra.mxu0 %v3868
      %4583 = vmatprep.subr.mxu0 %v3865
      %4584 = vmatpush2.msra.mxu0 %v3864
      %4585 = vmatprep.subr.mxu0 %v3861
      %4586 = vmatpush2.msra.mxu0 %v3860
      %4587 = vmatprep.subr.mxu0 %v3857
      %4588 = vmatpush2.msra.mxu0 %v3856
      %4589 = vmatprep.subr.mxu0 %v3853
      %4590 = vmatpush2.msra.mxu0 %v3852
      %4591 = vmatprep.subr.mxu0 %v3849
      %4592 = vmatpush2.msra.mxu0 %v3848
      %4593 = vmatprep.mubr.f32.mxu0 %v4103
      %4594 = vmatmul.mubr.f32.gmra.mxu0 %v4102
      %v4595 = vpop.f32.mrf.mxu0
      %v4596 = vadd.f32 %v4153, %v4595
      %v4597 = vpop.f32.mrf.mxu0
      %v4598 = vadd.f32 %v4153, %v4597
      %4599 = vmatprep.mubr.f32.mxu0 %v4108
      %4600 = vmatmul.mubr.f32.gmra.mxu0 %v4107
      %v4601 = vpop.f32.mrf.mxu0
      %v4602 = vadd.f32 %v4158, %v4601
      %v4603 = vpop.f32.mrf.mxu0
      %v4604 = vadd.f32 %v4158, %v4603
      %4605 = vmatprep.mubr.f32.mxu0 %v4113
      %4606 = vmatmul.mubr.f32.gmra.mxu0 %v4112
      %v4607 = vpop.f32.mrf.mxu0
      %v4608 = vadd.f32 %v4163, %v4607
      %v4609 = vpop.f32.mrf.mxu0
      %v4610 = vadd.f32 %v4163, %v4609
      %4611 = vmatprep.mubr.f32.mxu0 %v4118
      %4612 = vmatmul.mubr.f32.gmra.mxu0 %v4117
      %v4613 = vpop.f32.mrf.mxu0
      %v4614 = vadd.f32 %v4168, %v4613
      %v4615 = vpop.f32.mrf.mxu0
      %v4616 = vadd.f32 %v4168, %v4615
      %4617 = vmatprep.mubr.f32.mxu0 %v4123
      %4618 = vmatmul.mubr.f32.gmra.mxu0 %v4122
      %v4619 = vpop.f32.mrf.mxu0
      %v4620 = vadd.f32 %v4173, %v4619
      %v4621 = vpop.f32.mrf.mxu0
      %v4622 = vadd.f32 %v4173, %v4621
      %4623 = vmatprep.mubr.f32.mxu0 %v4128
      %4624 = vmatmul.mubr.f32.gmra.mxu0 %v4127
      %v4625 = vpop.f32.mrf.mxu0
      %v4626 = vadd.f32 %v4178, %v4625
      %v4627 = vpop.f32.mrf.mxu0
      %v4628 = vadd.f32 %v4178, %v4627
      %4629 = vmatprep.mubr.f32.mxu0 %v4133
      %4630 = vmatmul.mubr.f32.gmra.mxu0 %v4132
      %v4631 = vpop.f32.mrf.mxu0
      %v4632 = vadd.f32 %v4183, %v4631
      %v4633 = vpop.f32.mrf.mxu0
      %v4634 = vadd.f32 %v4183, %v4633
      %4635 = vmatprep.mubr.f32.mxu0 %v4138
      %4636 = vmatmul.mubr.f32.gmra.mxu0 %v4137
      %v4637 = vpop.f32.mrf.mxu0
      %v4638 = vadd.f32 %v4188, %v4637
      %v4639 = vpop.f32.mrf.mxu0
      %v4640 = vadd.f32 %v4188, %v4639
      %4641 = vdwg.mxu0
      %4642 = vmatprep.subr.mxu0 %v3973
      %4643 = vmatpush1.msra.mxu0 %v3972
      %4644 = vmatprep.subr.mxu0 %v3969
      %4645 = vmatpush1.msra.mxu0 %v3968
      %4646 = vmatprep.subr.mxu0 %v3965
      %4647 = vmatpush1.msra.mxu0 %v3964
      %4648 = vmatprep.subr.mxu0 %v3961
      %4649 = vmatpush1.msra.mxu0 %v3960
      %4650 = vmatprep.subr.mxu0 %v3957
      %4651 = vmatpush1.msra.mxu0 %v3956
      %4652 = vmatprep.subr.mxu0 %v3953
      %4653 = vmatpush1.msra.mxu0 %v3952
      %4654 = vmatprep.subr.mxu0 %v3949
      %4655 = vmatpush1.msra.mxu0 %v3948
      %4656 = vmatprep.subr.mxu0 %v3945
      %4657 = vmatpush1.msra.mxu0 %v3944
      %4658 = vmatprep.subr.mxu0 %v3941
      %4659 = vmatpush1.msra.mxu0 %v3940
      %4660 = vmatprep.subr.mxu0 %v3937
      %4661 = vmatpush1.msra.mxu0 %v3936
      %4662 = vmatprep.subr.mxu0 %v3933
      %4663 = vmatpush1.msra.mxu0 %v3932
      %4664 = vmatprep.subr.mxu0 %v3929
      %4665 = vmatpush1.msra.mxu0 %v3928
      %4666 = vmatprep.subr.mxu0 %v3925
      %4667 = vmatpush1.msra.mxu0 %v3924
      %4668 = vmatprep.subr.mxu0 %v3921
      %4669 = vmatpush1.msra.mxu0 %v3920
      %4670 = vmatprep.subr.mxu0 %v3917
      %4671 = vmatpush1.msra.mxu0 %v3916
      %4672 = vmatprep.subr.mxu0 %v3913
      %4673 = vmatpush1.msra.mxu0 %v3912
      %4674 = vmatprep.subr.mxu0 %v4037
      %4675 = vmatpush2.msra.mxu0 %v4036
      %4676 = vmatprep.subr.mxu0 %v4033
      %4677 = vmatpush2.msra.mxu0 %v4032
      %4678 = vmatprep.subr.mxu0 %v4029
      %4679 = vmatpush2.msra.mxu0 %v4028
      %4680 = vmatprep.subr.mxu0 %v4025
      %4681 = vmatpush2.msra.mxu0 %v4024
      %4682 = vmatprep.subr.mxu0 %v4021
      %4683 = vmatpush2.msra.mxu0 %v4020
      %4684 = vmatprep.subr.mxu0 %v4017
      %4685 = vmatpush2.msra.mxu0 %v4016
      %4686 = vmatprep.subr.mxu0 %v4013
      %4687 = vmatpush2.msra.mxu0 %v4012
      %4688 = vmatprep.subr.mxu0 %v4009
      %4689 = vmatpush2.msra.mxu0 %v4008
      %4690 = vmatprep.subr.mxu0 %v4005
      %4691 = vmatpush2.msra.mxu0 %v4004
      %4692 = vmatprep.subr.mxu0 %v4001
      %4693 = vmatpush2.msra.mxu0 %v4000
      %4694 = vmatprep.subr.mxu0 %v3997
      %4695 = vmatpush2.msra.mxu0 %v3996
      %4696 = vmatprep.subr.mxu0 %v3993
      %4697 = vmatpush2.msra.mxu0 %v3992
      %4698 = vmatprep.subr.mxu0 %v3989
      %4699 = vmatpush2.msra.mxu0 %v3988
      %4700 = vmatprep.subr.mxu0 %v3985
      %4701 = vmatpush2.msra.mxu0 %v3984
      %4702 = vmatprep.subr.mxu0 %v3981
      %4703 = vmatpush2.msra.mxu0 %v3980
      %4704 = vmatprep.subr.mxu0 %v3977
      %4705 = vmatpush2.msra.mxu0 %v3976
      %4706 = vmatprep.mubr.f32.mxu0 %v4105
      %4707 = vmatmul.mubr.f32.gmra.mxu0 %v4104
      %v4708 = vpop.f32.mrf.mxu0
      %v4709 = vadd.f32 %v4596, %v4708
      %v4710 = vpop.f32.mrf.mxu0
      %v4711 = vadd.f32 %v4598, %v4710
      %4712 = vmatprep.mubr.f32.mxu0 %v4110
      %4713 = vmatmul.mubr.f32.gmra.mxu0 %v4109
      %v4714 = vpop.f32.mrf.mxu0
      %v4715 = vadd.f32 %v4602, %v4714
      %v4716 = vpop.f32.mrf.mxu0
      %v4717 = vadd.f32 %v4604, %v4716
      %4718 = vmatprep.mubr.f32.mxu0 %v4115
      %4719 = vmatmul.mubr.f32.gmra.mxu0 %v4114
      %v4720 = vpop.f32.mrf.mxu0
      %v4721 = vadd.f32 %v4608, %v4720
      %v4722 = vpop.f32.mrf.mxu0
      %v4723 = vadd.f32 %v4610, %v4722
      %4724 = vmatprep.mubr.f32.mxu0 %v4120
      %4725 = vmatmul.mubr.f32.gmra.mxu0 %v4119
      %v4726 = vpop.f32.mrf.mxu0
      %v4727 = vadd.f32 %v4614, %v4726
      %v4728 = vpop.f32.mrf.mxu0
      %v4729 = vadd.f32 %v4616, %v4728
      %4730 = vmatprep.mubr.f32.mxu0 %v4125
      %4731 = vmatmul.mubr.f32.gmra.mxu0 %v4124
      %v4732 = vpop.f32.mrf.mxu0
      %v4733 = vadd.f32 %v4620, %v4732
      %v4734 = vpop.f32.mrf.mxu0
      %v4735 = vadd.f32 %v4622, %v4734
      %4736 = vmatprep.mubr.f32.mxu0 %v4130
      %4737 = vmatmul.mubr.f32.gmra.mxu0 %v4129
      %v4738 = vpop.f32.mrf.mxu0
      %v4739 = vadd.f32 %v4626, %v4738
      %v4740 = vpop.f32.mrf.mxu0
      %v4741 = vadd.f32 %v4628, %v4740
      %4742 = vmatprep.mubr.f32.mxu0 %v4135
      %4743 = vmatmul.mubr.f32.gmra.mxu0 %v4134
      %v4744 = vpop.f32.mrf.mxu0
      %v4745 = vadd.f32 %v4632, %v4744
      %v4746 = vpop.f32.mrf.mxu0
      %v4747 = vadd.f32 %v4634, %v4746
      %4748 = vmatprep.mubr.f32.mxu0 %v4140
      %4749 = vmatmul.mubr.f32.gmra.mxu0 %v4139
      %v4750 = vpop.f32.mrf.mxu0
      %v4751 = vadd.f32 %v4638, %v4750
      %v4752 = vpop.f32.mrf.mxu0
      %v4753 = vadd.f32 %v4640, %v4752
      %4754 = vdwg.mxu0
      %4755 = vmatprep.subr.mxu0 %v4101
      %4756 = vmatpush1.msra.mxu0 %v4100
      %4757 = vmatprep.subr.mxu0 %v4097
      %4758 = vmatpush1.msra.mxu0 %v4096
      %4759 = vmatprep.subr.mxu0 %v4093
      %4760 = vmatpush1.msra.mxu0 %v4092
      %4761 = vmatprep.subr.mxu0 %v4089
      %4762 = vmatpush1.msra.mxu0 %v4088
      %4763 = vmatprep.subr.mxu0 %v4085
      %4764 = vmatpush1.msra.mxu0 %v4084
      %4765 = vmatprep.subr.mxu0 %v4081
      %4766 = vmatpush1.msra.mxu0 %v4080
      %4767 = vmatprep.subr.mxu0 %v4077
      %4768 = vmatpush1.msra.mxu0 %v4076
      %4769 = vmatprep.subr.mxu0 %v4073
      %4770 = vmatpush1.msra.mxu0 %v4072
      %4771 = vmatprep.subr.mxu0 %v4069
      %4772 = vmatpush1.msra.mxu0 %v4068
      %4773 = vmatprep.subr.mxu0 %v4065
      %4774 = vmatpush1.msra.mxu0 %v4064
      %4775 = vmatprep.subr.mxu0 %v4061
      %4776 = vmatpush1.msra.mxu0 %v4060
      %4777 = vmatprep.subr.mxu0 %v4057
      %4778 = vmatpush1.msra.mxu0 %v4056
      %4779 = vmatprep.subr.mxu0 %v4053
      %4780 = vmatpush1.msra.mxu0 %v4052
      %4781 = vmatprep.subr.mxu0 %v4049
      %4782 = vmatpush1.msra.mxu0 %v4048
      %4783 = vmatprep.subr.mxu0 %v4045
      %4784 = vmatpush1.msra.mxu0 %v4044
      %4785 = vmatprep.subr.mxu0 %v4041
      %4786 = vmatpush1.msra.mxu0 %v4040
      %4787 = vmatprep.subr.mxu0 0.0
      %4788 = vmatpush2.msra.mxu0 0.0
      %4789 = vmatprep.subr.mxu0 0.0
      %4790 = vmatpush2.msra.mxu0 0.0
      %4791 = vmatprep.subr.mxu0 0.0
      %4792 = vmatpush2.msra.mxu0 0.0
      %4793 = vmatprep.subr.mxu0 0.0
      %4794 = vmatpush2.msra.mxu0 0.0
      %4795 = vmatprep.subr.mxu0 0.0
      %4796 = vmatpush2.msra.mxu0 0.0
      %4797 = vmatprep.subr.mxu0 0.0
      %4798 = vmatpush2.msra.mxu0 0.0
      %4799 = vmatprep.subr.mxu0 0.0
      %4800 = vmatpush2.msra.mxu0 0.0
      %4801 = vmatprep.subr.mxu0 0.0
      %4802 = vmatpush2.msra.mxu0 0.0
      %4803 = vmatprep.subr.mxu0 0.0
      %4804 = vmatpush2.msra.mxu0 0.0
      %4805 = vmatprep.subr.mxu0 0.0
      %4806 = vmatpush2.msra.mxu0 0.0
      %4807 = vmatprep.subr.mxu0 0.0
      %4808 = vmatpush2.msra.mxu0 0.0
      %4809 = vmatprep.subr.mxu0 0.0
      %4810 = vmatpush2.msra.mxu0 0.0
      %4811 = vmatprep.subr.mxu0 0.0
      %4812 = vmatpush2.msra.mxu0 0.0
      %4813 = vmatprep.subr.mxu0 0.0
      %4814 = vmatpush2.msra.mxu0 0.0
      %4815 = vmatprep.subr.mxu0 0.0
      %4816 = vmatpush2.msra.mxu0 0.0
      %4817 = vmatprep.subr.mxu0 0.0
      %4818 = vmatpush2.msra.mxu0 0.0
      %4819 = vmatprep.mubr.f32.mxu0 0.0
      %4820 = vmatmul.mubr.f32.gmra.mxu0 %v4106
      %v4821 = vpop.f32.mrf.mxu0
      %v4822 = vadd.f32 %v4709, %v4821
      %v4823 = vpop.f32.mrf.mxu0
      %v4824 = vadd.f32 %v4711, %v4823
      %4825 = vmatprep.mubr.f32.mxu0 0.0
      %4826 = vmatmul.mubr.f32.gmra.mxu0 %v4111
      %v4827 = vpop.f32.mrf.mxu0
      %v4828 = vadd.f32 %v4715, %v4827
      %v4829 = vpop.f32.mrf.mxu0
      %v4830 = vadd.f32 %v4717, %v4829
      %4831 = vmatprep.mubr.f32.mxu0 0.0
      %4832 = vmatmul.mubr.f32.gmra.mxu0 %v4116
      %v4833 = vpop.f32.mrf.mxu0
      %v4834 = vadd.f32 %v4721, %v4833
      %v4835 = vpop.f32.mrf.mxu0
      %v4836 = vadd.f32 %v4723, %v4835
      %4837 = vmatprep.mubr.f32.mxu0 0.0
      %4838 = vmatmul.mubr.f32.gmra.mxu0 %v4121
      %v4839 = vpop.f32.mrf.mxu0
      %v4840 = vadd.f32 %v4727, %v4839
      %v4841 = vpop.f32.mrf.mxu0
      %v4842 = vadd.f32 %v4729, %v4841
      %4843 = vmatprep.mubr.f32.mxu0 0.0
      %4844 = vmatmul.mubr.f32.gmra.mxu0 %v4126
      %v4845 = vpop.f32.mrf.mxu0
      %v4846 = vadd.f32 %v4733, %v4845
      %v4847 = vpop.f32.mrf.mxu0
      %v4848 = vadd.f32 %v4735, %v4847
      %4849 = vmatprep.mubr.f32.mxu0 0.0
      %4850 = vmatmul.mubr.f32.gmra.mxu0 %v4131
      %v4851 = vpop.f32.mrf.mxu0
      %v4852 = vadd.f32 %v4739, %v4851
      %v4853 = vpop.f32.mrf.mxu0
      %v4854 = vadd.f32 %v4741, %v4853
      %4855 = vmatprep.mubr.f32.mxu0 0.0
      %4856 = vmatmul.mubr.f32.gmra.mxu0 %v4136
      %v4857 = vpop.f32.mrf.mxu0
      %v4858 = vadd.f32 %v4745, %v4857
      %v4859 = vpop.f32.mrf.mxu0
      %v4860 = vadd.f32 %v4747, %v4859
      %4861 = vmatprep.mubr.f32.mxu0 0.0
      %4862 = vmatmul.mubr.f32.gmra.mxu0 %v4141
      %v4863 = vpop.f32.mrf.mxu0
      %v4864 = vadd.f32 %v4751, %v4863
      %v4865 = vpop.f32.mrf.mxu0
      %v4866 = vadd.f32 %v4753, %v4865
      %4867 = vdwg.mxu0
      %v4868 = vmax.f32 %v4483, 0.0
      %v4869 = vmax.f32 %v4485, 0.0
      %v4870 = vmax.f32 %v4822, 0.0
      %v4871 = vmax.f32 %v4824, 0.0
      %v4872 = vmax.f32 %v4489, 0.0
      %v4873 = vmax.f32 %v4491, 0.0
      %v4874 = vmax.f32 %v4828, 0.0
      %v4875 = vmax.f32 %v4830, 0.0
      %v4876 = vmax.f32 %v4495, 0.0
      %v4877 = vmax.f32 %v4497, 0.0
      %v4878 = vmax.f32 %v4834, 0.0
      %v4879 = vmax.f32 %v4836, 0.0
      %v4880 = vmax.f32 %v4501, 0.0
      %v4881 = vmax.f32 %v4503, 0.0
      %v4882 = vmax.f32 %v4840, 0.0
      %v4883 = vmax.f32 %v4842, 0.0
      %v4884 = vmax.f32 %v4507, 0.0
      %v4885 = vmax.f32 %v4509, 0.0
      %v4886 = vmax.f32 %v4846, 0.0
      %v4887 = vmax.f32 %v4848, 0.0
      %v4888 = vmax.f32 %v4513, 0.0
      %v4889 = vmax.f32 %v4515, 0.0
      %v4890 = vmax.f32 %v4852, 0.0
      %v4891 = vmax.f32 %v4854, 0.0
      %v4892 = vmax.f32 %v4519, 0.0
      %v4893 = vmax.f32 %v4521, 0.0
      %v4894 = vmax.f32 %v4858, 0.0
      %v4895 = vmax.f32 %v4860, 0.0
      %v4896 = vmax.f32 %v4525, 0.0
      %v4897 = vmax.f32 %v4527, 0.0
      %v4898 = vmax.f32 %v4864, 0.0
      %v4899 = vmax.f32 %v4866, 0.0
      %4900 = vst [vmem:[#allocation3] sm:$0xff] %v4868
      %4901 = vst [vmem:[#allocation3 + $0x8] sm:$0xff] %v4869
      %4902 = vst [vmem:[#allocation3 + $0x10] sm:$0xff] %v4870
      %4903 = vst [vmem:[#allocation3 + $0x18] sm:$0xff] %v4871
      %4904 = vst [vmem:[#allocation3 + $0x20] sm:$0xff] %v4872
      %4905 = vst [vmem:[#allocation3 + $0x28] sm:$0xff] %v4873
      %4906 = vst [vmem:[#allocation3 + $0x30] sm:$0xff] %v4874
      %4907 = vst [vmem:[#allocation3 + $0x38] sm:$0xff] %v4875
      %4908 = vst [vmem:[#allocation3 + $0x40] sm:$0xff] %v4876
      %4909 = vst [vmem:[#allocation3 + $0x48] sm:$0xff] %v4877
      %4910 = vst [vmem:[#allocation3 + $0x50] sm:$0xff] %v4878
      %4911 = vst [vmem:[#allocation3 + $0x58] sm:$0xff] %v4879
      %4912 = vst [vmem:[#allocation3 + $0x60] sm:$0xff] %v4880
      %4913 = vst [vmem:[#allocation3 + $0x68] sm:$0xff] %v4881
      %4914 = vst [vmem:[#allocation3 + $0x70] sm:$0xff] %v4882
      %4915 = vst [vmem:[#allocation3 + $0x78] sm:$0xff] %v4883
      %4916 = vst [vmem:[#allocation3 + $0x80] sm:$0xff] %v4884
      %4917 = vst [vmem:[#allocation3 + $0x88] sm:$0xff] %v4885
      %4918 = vst [vmem:[#allocation3 + $0x90] sm:$0xff] %v4886
      %4919 = vst [vmem:[#allocation3 + $0x98] sm:$0xff] %v4887
      %4920 = vst [vmem:[#allocation3 + $0xa0] sm:$0xff] %v4888
      %4921 = vst [vmem:[#allocation3 + $0xa8] sm:$0xff] %v4889
      %4922 = vst [vmem:[#allocation3 + $0xb0] sm:$0xff] %v4890
      %4923 = vst [vmem:[#allocation3 + $0xb8] sm:$0xff] %v4891
      %4924 = vst [vmem:[#allocation3 + $0xc0] sm:$0xff] %v4892
      %4925 = vst [vmem:[#allocation3 + $0xc8] sm:$0xff] %v4893
      %4926 = vst [vmem:[#allocation3 + $0xd0] sm:$0xff] %v4894
      %4927 = vst [vmem:[#allocation3 + $0xd8] sm:$0xff] %v4895
      %4928 = vst [vmem:[#allocation3 + $0xe0] sm:$0xff] %v4896
      %4929 = vst [vmem:[#allocation3 + $0xe8] sm:$0xff] %v4897
      %4930 = vst [vmem:[#allocation3 + $0xf0] sm:$0xff] %v4898
      %4931 = vst [vmem:[#allocation3 + $0xf8] sm:$0xff] %v4899
      %v4932 = vld [vmem:[%s2] sm:$0xf]
      %v4933 = vld [vmem:[#allocation3] sm:$0xff]
      %v4934 = vld [vmem:[#allocation3 + $0x20] sm:$0xff]
      %v4935 = vld [vmem:[#allocation3 + $0x40] sm:$0xff]
      %v4936 = vld [vmem:[#allocation3 + $0x60] sm:$0xff]
      %v4937 = vld [vmem:[#allocation3 + $0x80] sm:$0xff]
      %v4938 = vld [vmem:[#allocation3 + $0xa0] sm:$0xff]
      %v4939 = vld [vmem:[#allocation3 + $0xc0] sm:$0xff]
      %v4940 = vld [vmem:[#allocation3 + $0xe0] sm:$0xff]
      %4949 = vrot.lane.b32.xlu0 %v4933, 127
      %v4950 = vpop.permute.xlu0 %4949
      %4951 = vrot.lane.b32.xlu0 %v4934, 127
      %v4952 = vpop.permute.xlu0 %4951
      %4953 = vrot.lane.b32.xlu0 %v4935, 127
      %v4954 = vpop.permute.xlu0 %4953
      %4955 = vrot.lane.b32.xlu0 %v4936, 127
      %v4956 = vpop.permute.xlu0 %4955
      %4957 = vrot.lane.b32.xlu0 %v4937, 127
      %v4958 = vpop.permute.xlu0 %4957
      %4959 = vrot.lane.b32.xlu0 %v4938, 127
      %v4960 = vpop.permute.xlu0 %4959
      %4961 = vrot.lane.b32.xlu0 %v4939, 127
      %v4962 = vpop.permute.xlu0 %4961
      %4963 = vrot.lane.b32.xlu0 %v4940, 127
      %v4964 = vpop.permute.xlu0 %4963
      %vm4965 = vcmask 31744
      %v4966 = vsel %vm4965, %v4950, 0
      %v4968 = vsel %vm4965, %v4952, 0
      %v4970 = vsel %vm4965, %v4954, 0
      %v4972 = vsel %vm4965, %v4956, 0
      %v4974 = vsel %vm4965, %v4958, 0
      %v4976 = vsel %vm4965, %v4960, 0
      %v4978 = vsel %vm4965, %v4962, 0
      %v4980 = vsel %vm4965, %v4964, 0
      %vm4982 = vcmask 1043456
      %v4984 = vsel %vm4982, %v4932, 0
      %4986 = vmatprep.subr.mxu0 0.0
      %4987 = vmatpush1.msra.mxu0 0.0
      %4988 = vmatprep.subr.mxu0 0.0
      %4989 = vmatpush1.msra.mxu0 0.0
      %4990 = vmatprep.subr.mxu0 0.0
      %4991 = vmatpush1.msra.mxu0 0.0
      %4992 = vmatprep.subr.mxu0 0.0
      %4993 = vmatpush1.msra.mxu0 0.0
      %4994 = vmatprep.subr.mxu0 0.0
      %4995 = vmatpush1.msra.mxu0 0.0
      %4996 = vmatprep.subr.mxu0 0.0
      %4997 = vmatpush1.msra.mxu0 0.0
      %4998 = vmatprep.subr.mxu0 0.0
      %4999 = vmatpush1.msra.mxu0 0.0
      %5000 = vmatprep.subr.mxu0 0.0
      %5001 = vmatpush1.msra.mxu0 0.0
      %5002 = vmatprep.subr.mxu0 0.0
      %5003 = vmatpush1.msra.mxu0 0.0
      %5004 = vmatprep.subr.mxu0 0.0
      %5005 = vmatpush1.msra.mxu0 0.0
      %5006 = vmatprep.subr.mxu0 0.0
      %5007 = vmatpush1.msra.mxu0 0.0
      %5008 = vmatprep.subr.mxu0 0.0
      %5009 = vmatpush1.msra.mxu0 0.0
      %5010 = vmatprep.subr.mxu0 0.0
      %5011 = vmatpush1.msra.mxu0 0.0
      %5012 = vmatprep.subr.mxu0 0.0
      %5013 = vmatpush1.msra.mxu0 0.0
      %5014 = vmatprep.subr.mxu0 0.0
      %5015 = vmatpush1.msra.mxu0 0.0
      %5016 = vmatprep.subr.mxu0 0.0
      %5017 = vmatpush1.msra.mxu0 %v4984
      %5018 = vmatprep.subr.mxu0 0.0
      %5019 = vmatpush2.msra.mxu0 0.0
      %5020 = vmatprep.subr.mxu0 0.0
      %5021 = vmatpush2.msra.mxu0 0.0
      %5022 = vmatprep.subr.mxu0 0.0
      %5023 = vmatpush2.msra.mxu0 0.0
      %5024 = vmatprep.subr.mxu0 0.0
      %5025 = vmatpush2.msra.mxu0 0.0
      %5026 = vmatprep.subr.mxu0 0.0
      %5027 = vmatpush2.msra.mxu0 0.0
      %5028 = vmatprep.subr.mxu0 0.0
      %5029 = vmatpush2.msra.mxu0 0.0
      %5030 = vmatprep.subr.mxu0 0.0
      %5031 = vmatpush2.msra.mxu0 0.0
      %5032 = vmatprep.subr.mxu0 0.0
      %5033 = vmatpush2.msra.mxu0 0.0
      %5034 = vmatprep.subr.mxu0 0.0
      %5035 = vmatpush2.msra.mxu0 0.0
      %5036 = vmatprep.subr.mxu0 0.0
      %5037 = vmatpush2.msra.mxu0 0.0
      %5038 = vmatprep.subr.mxu0 0.0
      %5039 = vmatpush2.msra.mxu0 0.0
      %5040 = vmatprep.subr.mxu0 0.0
      %5041 = vmatpush2.msra.mxu0 0.0
      %5042 = vmatprep.subr.mxu0 0.0
      %5043 = vmatpush2.msra.mxu0 0.0
      %5044 = vmatprep.subr.mxu0 0.0
      %5045 = vmatpush2.msra.mxu0 0.0
      %5046 = vmatprep.subr.mxu0 0.0
      %5047 = vmatpush2.msra.mxu0 0.0
      %5048 = vmatprep.subr.mxu0 0.0
      %5049 = vmatpush2.msra.mxu0 0.0
      %5050 = vmatprep.mubr.f32.mxu0 0.0
      %5051 = vmatmul.mubr.f32.gmra.mxu0 %v4966
      %v5052 = vpop.f32.mrf.mxu0
      %v5053 = vadd.f32 0.0, %v5052
      %v5054 = vpop.f32.mrf.mxu0
      %5055 = vmatprep.mubr.f32.mxu0 0.0
      %5056 = vmatmul.mubr.f32.gmra.mxu0 %v4968
      %v5057 = vpop.f32.mrf.mxu0
      %v5058 = vadd.f32 0.0, %v5057
      %v5059 = vpop.f32.mrf.mxu0
      %5060 = vmatprep.mubr.f32.mxu0 0.0
      %5061 = vmatmul.mubr.f32.gmra.mxu0 %v4970
      %v5062 = vpop.f32.mrf.mxu0
      %v5063 = vadd.f32 0.0, %v5062
      %v5064 = vpop.f32.mrf.mxu0
      %5065 = vmatprep.mubr.f32.mxu0 0.0
      %5066 = vmatmul.mubr.f32.gmra.mxu0 %v4972
      %v5067 = vpop.f32.mrf.mxu0
      %v5068 = vadd.f32 0.0, %v5067
      %v5069 = vpop.f32.mrf.mxu0
      %5070 = vmatprep.mubr.f32.mxu0 0.0
      %5071 = vmatmul.mubr.f32.gmra.mxu0 %v4974
      %v5072 = vpop.f32.mrf.mxu0
      %v5073 = vadd.f32 0.0, %v5072
      %v5074 = vpop.f32.mrf.mxu0
      %5075 = vmatprep.mubr.f32.mxu0 0.0
      %5076 = vmatmul.mubr.f32.gmra.mxu0 %v4976
      %v5077 = vpop.f32.mrf.mxu0
      %v5078 = vadd.f32 0.0, %v5077
      %v5079 = vpop.f32.mrf.mxu0
      %5080 = vmatprep.mubr.f32.mxu0 0.0
      %5081 = vmatmul.mubr.f32.gmra.mxu0 %v4978
      %v5082 = vpop.f32.mrf.mxu0
      %v5083 = vadd.f32 0.0, %v5082
      %v5084 = vpop.f32.mrf.mxu0
      %5085 = vmatprep.mubr.f32.mxu0 0.0
      %5086 = vmatmul.mubr.f32.gmra.mxu0 %v4980
      %v5087 = vpop.f32.mrf.mxu0
      %v5088 = vadd.f32 0.0, %v5087
      %v5089 = vpop.f32.mrf.mxu0
      %5090 = vdwg.mxu0
      %v5091 = vld [vmem:[#allocation3 + $0x8] sm:$0xff]
      %v5092 = vld [vmem:[#allocation3 + $0x28] sm:$0xff]
      %v5093 = vld [vmem:[#allocation3 + $0x48] sm:$0xff]
      %v5094 = vld [vmem:[#allocation3 + $0x68] sm:$0xff]
      %v5095 = vld [vmem:[#allocation3 + $0x88] sm:$0xff]
      %v5096 = vld [vmem:[#allocation3 + $0xa8] sm:$0xff]
      %v5097 = vld [vmem:[#allocation3 + $0xc8] sm:$0xff]
      %v5098 = vld [vmem:[#allocation3 + $0xe8] sm:$0xff]
      %5107 = vrot.lane.b32.xlu0 %v5091, 5
      %v5108 = vpop.permute.xlu0 %5107
      %5109 = vrot.lane.b32.xlu0 %v5092, 5
      %v5110 = vpop.permute.xlu0 %5109
      %5111 = vrot.lane.b32.xlu0 %v5093, 5
      %v5112 = vpop.permute.xlu0 %5111
      %5113 = vrot.lane.b32.xlu0 %v5094, 5
      %v5114 = vpop.permute.xlu0 %5113
      %5115 = vrot.lane.b32.xlu0 %v5095, 5
      %v5116 = vpop.permute.xlu0 %5115
      %5117 = vrot.lane.b32.xlu0 %v5096, 5
      %v5118 = vpop.permute.xlu0 %5117
      %5119 = vrot.lane.b32.xlu0 %v5097, 5
      %v5120 = vpop.permute.xlu0 %5119
      %5121 = vrot.lane.b32.xlu0 %v5098, 5
      %v5122 = vpop.permute.xlu0 %5121
      %v5123 = vsel %vm4965, %v5108, 0
      %v5125 = vsel %vm4965, %v5110, 0
      %v5127 = vsel %vm4965, %v5112, 0
      %v5129 = vsel %vm4965, %v5114, 0
      %v5131 = vsel %vm4965, %v5116, 0
      %v5133 = vsel %vm4965, %v5118, 0
      %v5135 = vsel %vm4965, %v5120, 0
      %v5137 = vsel %vm4965, %v5122, 0
      %5139 = vmatprep.subr.mxu0 0.0
      %5140 = vmatpush1.msra.mxu0 0.0
      %5141 = vmatprep.subr.mxu0 0.0
      %5142 = vmatpush1.msra.mxu0 0.0
      %5143 = vmatprep.subr.mxu0 0.0
      %5144 = vmatpush1.msra.mxu0 0.0
      %5145 = vmatprep.subr.mxu0 0.0
      %5146 = vmatpush1.msra.mxu0 0.0
      %5147 = vmatprep.subr.mxu0 0.0
      %5148 = vmatpush1.msra.mxu0 0.0
      %5149 = vmatprep.subr.mxu0 0.0
      %5150 = vmatpush1.msra.mxu0 0.0
      %5151 = vmatprep.subr.mxu0 0.0
      %5152 = vmatpush1.msra.mxu0 0.0
      %5153 = vmatprep.subr.mxu0 0.0
      %5154 = vmatpush1.msra.mxu0 0.0
      %5155 = vmatprep.subr.mxu0 0.0
      %5156 = vmatpush1.msra.mxu0 0.0
      %5157 = vmatprep.subr.mxu0 0.0
      %5158 = vmatpush1.msra.mxu0 0.0
      %5159 = vmatprep.subr.mxu0 0.0
      %5160 = vmatpush1.msra.mxu0 0.0
      %5161 = vmatprep.subr.mxu0 0.0
      %5162 = vmatpush1.msra.mxu0 0.0
      %5163 = vmatprep.subr.mxu0 0.0
      %5164 = vmatpush1.msra.mxu0 0.0
      %5165 = vmatprep.subr.mxu0 0.0
      %5166 = vmatpush1.msra.mxu0 0.0
      %5167 = vmatprep.subr.mxu0 0.0
      %5168 = vmatpush1.msra.mxu0 0.0
      %5169 = vmatprep.subr.mxu0 0.0
      %5170 = vmatpush1.msra.mxu0 %v4984
      %5171 = vmatprep.subr.mxu0 0.0
      %5172 = vmatpush2.msra.mxu0 0.0
      %5173 = vmatprep.subr.mxu0 0.0
      %5174 = vmatpush2.msra.mxu0 0.0
      %5175 = vmatprep.subr.mxu0 0.0
      %5176 = vmatpush2.msra.mxu0 0.0
      %5177 = vmatprep.subr.mxu0 0.0
      %5178 = vmatpush2.msra.mxu0 0.0
      %5179 = vmatprep.subr.mxu0 0.0
      %5180 = vmatpush2.msra.mxu0 0.0
      %5181 = vmatprep.subr.mxu0 0.0
      %5182 = vmatpush2.msra.mxu0 0.0
      %5183 = vmatprep.subr.mxu0 0.0
      %5184 = vmatpush2.msra.mxu0 0.0
      %5185 = vmatprep.subr.mxu0 0.0
      %5186 = vmatpush2.msra.mxu0 0.0
      %5187 = vmatprep.subr.mxu0 0.0
      %5188 = vmatpush2.msra.mxu0 0.0
      %5189 = vmatprep.subr.mxu0 0.0
      %5190 = vmatpush2.msra.mxu0 0.0
      %5191 = vmatprep.subr.mxu0 0.0
      %5192 = vmatpush2.msra.mxu0 0.0
      %5193 = vmatprep.subr.mxu0 0.0
      %5194 = vmatpush2.msra.mxu0 0.0
      %5195 = vmatprep.subr.mxu0 0.0
      %5196 = vmatpush2.msra.mxu0 0.0
      %5197 = vmatprep.subr.mxu0 0.0
      %5198 = vmatpush2.msra.mxu0 0.0
      %5199 = vmatprep.subr.mxu0 0.0
      %5200 = vmatpush2.msra.mxu0 0.0
      %5201 = vmatprep.subr.mxu0 0.0
      %5202 = vmatpush2.msra.mxu0 0.0
      %5203 = vmatprep.mubr.f32.mxu0 0.0
      %5204 = vmatmul.mubr.f32.gmra.mxu0 %v5123
      %v5205 = vpop.f32.mrf.mxu0
      %v5206 = vadd.f32 0.0, %v5205
      %v5207 = vpop.f32.mrf.mxu0
      %5208 = vmatprep.mubr.f32.mxu0 0.0
      %5209 = vmatmul.mubr.f32.gmra.mxu0 %v5125
      %v5210 = vpop.f32.mrf.mxu0
      %v5211 = vadd.f32 0.0, %v5210
      %v5212 = vpop.f32.mrf.mxu0
      %5213 = vmatprep.mubr.f32.mxu0 0.0
      %5214 = vmatmul.mubr.f32.gmra.mxu0 %v5127
      %v5215 = vpop.f32.mrf.mxu0
      %v5216 = vadd.f32 0.0, %v5215
      %v5217 = vpop.f32.mrf.mxu0
      %5218 = vmatprep.mubr.f32.mxu0 0.0
      %5219 = vmatmul.mubr.f32.gmra.mxu0 %v5129
      %v5220 = vpop.f32.mrf.mxu0
      %v5221 = vadd.f32 0.0, %v5220
      %v5222 = vpop.f32.mrf.mxu0
      %5223 = vmatprep.mubr.f32.mxu0 0.0
      %5224 = vmatmul.mubr.f32.gmra.mxu0 %v5131
      %v5225 = vpop.f32.mrf.mxu0
      %v5226 = vadd.f32 0.0, %v5225
      %v5227 = vpop.f32.mrf.mxu0
      %5228 = vmatprep.mubr.f32.mxu0 0.0
      %5229 = vmatmul.mubr.f32.gmra.mxu0 %v5133
      %v5230 = vpop.f32.mrf.mxu0
      %v5231 = vadd.f32 0.0, %v5230
      %v5232 = vpop.f32.mrf.mxu0
      %5233 = vmatprep.mubr.f32.mxu0 0.0
      %5234 = vmatmul.mubr.f32.gmra.mxu0 %v5135
      %v5235 = vpop.f32.mrf.mxu0
      %v5236 = vadd.f32 0.0, %v5235
      %v5237 = vpop.f32.mrf.mxu0
      %5238 = vmatprep.mubr.f32.mxu0 0.0
      %5239 = vmatmul.mubr.f32.gmra.mxu0 %v5137
      %v5240 = vpop.f32.mrf.mxu0
      %v5241 = vadd.f32 0.0, %v5240
      %v5242 = vpop.f32.mrf.mxu0
      %5243 = vdwg.mxu0
      %5244 = vst.msk [vmem:[#allocation2] sm:$0xff] %vm4965, %v5053
      %5245 = vst.msk [vmem:[#allocation2 + $0x20] sm:$0xff] %vm4965, %v5058
      %5246 = vst.msk [vmem:[#allocation2 + $0x40] sm:$0xff] %vm4965, %v5063
      %5247 = vst.msk [vmem:[#allocation2 + $0x60] sm:$0xff] %vm4965, %v5068
      %5248 = vst.msk [vmem:[#allocation2 + $0x80] sm:$0xff] %vm4965, %v5073
      %5249 = vst.msk [vmem:[#allocation2 + $0xa0] sm:$0xff] %vm4965, %v5078
      %5250 = vst.msk [vmem:[#allocation2 + $0xc0] sm:$0xff] %vm4965, %v5083
      %5251 = vst.msk [vmem:[#allocation2 + $0xe0] sm:$0xff] %vm4965, %v5088
      %v5252 = vld [vmem:[#allocation3] sm:$0xff]
      %v5253 = vld [vmem:[#allocation3 + $0x8] sm:$0xff]
      %v5254 = vld [vmem:[#allocation3 + $0x20] sm:$0xff]
      %v5255 = vld [vmem:[#allocation3 + $0x28] sm:$0xff]
      %v5256 = vld [vmem:[#allocation3 + $0x40] sm:$0xff]
      %v5257 = vld [vmem:[#allocation3 + $0x48] sm:$0xff]
      %v5258 = vld [vmem:[#allocation3 + $0x60] sm:$0xff]
      %v5259 = vld [vmem:[#allocation3 + $0x68] sm:$0xff]
      %v5260 = vld [vmem:[#allocation3 + $0x80] sm:$0xff]
      %v5261 = vld [vmem:[#allocation3 + $0x88] sm:$0xff]
      %v5262 = vld [vmem:[#allocation3 + $0xa0] sm:$0xff]
      %v5263 = vld [vmem:[#allocation3 + $0xa8] sm:$0xff]
      %v5264 = vld [vmem:[#allocation3 + $0xc0] sm:$0xff]
      %v5265 = vld [vmem:[#allocation3 + $0xc8] sm:$0xff]
      %v5266 = vld [vmem:[#allocation3 + $0xe0] sm:$0xff]
      %v5267 = vld [vmem:[#allocation3 + $0xe8] sm:$0xff]
      %5284 = vrot.lane.b32.xlu0 %v5252, 4
      %v5285 = vpop.permute.xlu0 %5284
      %5286 = vrot.lane.b32.xlu0 %v5253, 4
      %v5287 = vpop.permute.xlu0 %5286
      %5288 = vrot.lane.b32.xlu0 %v5254, 4
      %v5289 = vpop.permute.xlu0 %5288
      %5290 = vrot.lane.b32.xlu0 %v5255, 4
      %v5291 = vpop.permute.xlu0 %5290
      %5292 = vrot.lane.b32.xlu0 %v5256, 4
      %v5293 = vpop.permute.xlu0 %5292
      %5294 = vrot.lane.b32.xlu0 %v5257, 4
      %v5295 = vpop.permute.xlu0 %5294
      %5296 = vrot.lane.b32.xlu0 %v5258, 4
      %v5297 = vpop.permute.xlu0 %5296
      %5298 = vrot.lane.b32.xlu0 %v5259, 4
      %v5299 = vpop.permute.xlu0 %5298
      %5300 = vrot.lane.b32.xlu0 %v5260, 4
      %v5301 = vpop.permute.xlu0 %5300
      %5302 = vrot.lane.b32.xlu0 %v5261, 4
      %v5303 = vpop.permute.xlu0 %5302
      %5304 = vrot.lane.b32.xlu0 %v5262, 4
      %v5305 = vpop.permute.xlu0 %5304
      %5306 = vrot.lane.b32.xlu0 %v5263, 4
      %v5307 = vpop.permute.xlu0 %5306
      %5308 = vrot.lane.b32.xlu0 %v5264, 4
      %v5309 = vpop.permute.xlu0 %5308
      %5310 = vrot.lane.b32.xlu0 %v5265, 4
      %v5311 = vpop.permute.xlu0 %5310
      %5312 = vrot.lane.b32.xlu0 %v5266, 4
      %v5313 = vpop.permute.xlu0 %5312
      %5314 = vrot.lane.b32.xlu0 %v5267, 4
      %v5315 = vpop.permute.xlu0 %5314
      %v5316 = vsel %vm4965, %v5285, %v5287
      %v5317 = vsel %vm4965, %v5289, %v5291
      %v5318 = vsel %vm4965, %v5293, %v5295
      %v5319 = vsel %vm4965, %v5297, %v5299
      %v5320 = vsel %vm4965, %v5301, %v5303
      %v5321 = vsel %vm4965, %v5305, %v5307
      %v5322 = vsel %vm4965, %v5309, %v5311
      %v5323 = vsel %vm4965, %v5313, %v5315
      %vm5340 = vcmask 1047584
      %5341 = vst.msk [vmem:[#allocation2] sm:$0xff] %vm5340, %v5285
      %5342 = vst [vmem:[#allocation2 + $0x8] sm:$0xff] %v5316
      %5343 = vst.msk [vmem:[#allocation2 + $0x20] sm:$0xff] %vm5340, %v5289
      %5344 = vst [vmem:[#allocation2 + $0x28] sm:$0xff] %v5317
      %5345 = vst.msk [vmem:[#allocation2 + $0x40] sm:$0xff] %vm5340, %v5293
      %5346 = vst [vmem:[#allocation2 + $0x48] sm:$0xff] %v5318
      %5347 = vst.msk [vmem:[#allocation2 + $0x60] sm:$0xff] %vm5340, %v5297
      %5348 = vst [vmem:[#allocation2 + $0x68] sm:$0xff] %v5319
      %5349 = vst.msk [vmem:[#allocation2 + $0x80] sm:$0xff] %vm5340, %v5301
      %5350 = vst [vmem:[#allocation2 + $0x88] sm:$0xff] %v5320
      %5351 = vst.msk [vmem:[#allocation2 + $0xa0] sm:$0xff] %vm5340, %v5305
      %5352 = vst [vmem:[#allocation2 + $0xa8] sm:$0xff] %v5321
      %5353 = vst.msk [vmem:[#allocation2 + $0xc0] sm:$0xff] %vm5340, %v5309
      %5354 = vst [vmem:[#allocation2 + $0xc8] sm:$0xff] %v5322
      %5355 = vst.msk [vmem:[#allocation2 + $0xe0] sm:$0xff] %vm5340, %v5313
      %5356 = vst [vmem:[#allocation2 + $0xe8] sm:$0xff] %v5323
      %5365 = vrot.lane.b32.xlu0 %v5053, 126
      %v5366 = vpop.permute.xlu0 %5365
      %5367 = vrot.lane.b32.xlu0 %v5058, 126
      %v5368 = vpop.permute.xlu0 %5367
      %5369 = vrot.lane.b32.xlu0 %v5063, 126
      %v5370 = vpop.permute.xlu0 %5369
      %5371 = vrot.lane.b32.xlu0 %v5068, 126
      %v5372 = vpop.permute.xlu0 %5371
      %5373 = vrot.lane.b32.xlu0 %v5073, 126
      %v5374 = vpop.permute.xlu0 %5373
      %5375 = vrot.lane.b32.xlu0 %v5078, 126
      %v5376 = vpop.permute.xlu0 %5375
      %5377 = vrot.lane.b32.xlu0 %v5083, 126
      %v5378 = vpop.permute.xlu0 %5377
      %5379 = vrot.lane.b32.xlu0 %v5088, 126
      %v5380 = vpop.permute.xlu0 %5379
      %5389 = vst.msk [vmem:[#allocation2 + $0x100] sm:$0xff] %vm597, %v5366
      %5390 = vst.msk [vmem:[#allocation2 + $0x120] sm:$0xff] %vm597, %v5368
      %5391 = vst.msk [vmem:[#allocation2 + $0x140] sm:$0xff] %vm597, %v5370
      %5392 = vst.msk [vmem:[#allocation2 + $0x160] sm:$0xff] %vm597, %v5372
      %5393 = vst.msk [vmem:[#allocation2 + $0x180] sm:$0xff] %vm597, %v5374
      %5394 = vst.msk [vmem:[#allocation2 + $0x1a0] sm:$0xff] %vm597, %v5376
      %5395 = vst.msk [vmem:[#allocation2 + $0x1c0] sm:$0xff] %vm597, %v5378
      %5396 = vst.msk [vmem:[#allocation2 + $0x1e0] sm:$0xff] %vm597, %v5380
      %v5397 = vld [vmem:[#allocation3] sm:$0xff]
      %v5398 = vld [vmem:[#allocation3 + $0x8] sm:$0xff]
      %v5399 = vld [vmem:[#allocation3 + $0x20] sm:$0xff]
      %v5400 = vld [vmem:[#allocation3 + $0x28] sm:$0xff]
      %v5401 = vld [vmem:[#allocation3 + $0x40] sm:$0xff]
      %v5402 = vld [vmem:[#allocation3 + $0x48] sm:$0xff]
      %v5403 = vld [vmem:[#allocation3 + $0x60] sm:$0xff]
      %v5404 = vld [vmem:[#allocation3 + $0x68] sm:$0xff]
      %v5405 = vld [vmem:[#allocation3 + $0x80] sm:$0xff]
      %v5406 = vld [vmem:[#allocation3 + $0x88] sm:$0xff]
      %v5407 = vld [vmem:[#allocation3 + $0xa0] sm:$0xff]
      %v5408 = vld [vmem:[#allocation3 + $0xa8] sm:$0xff]
      %v5409 = vld [vmem:[#allocation3 + $0xc0] sm:$0xff]
      %v5410 = vld [vmem:[#allocation3 + $0xc8] sm:$0xff]
      %v5411 = vld [vmem:[#allocation3 + $0xe0] sm:$0xff]
      %v5412 = vld [vmem:[#allocation3 + $0xe8] sm:$0xff]
      %5429 = vrot.lane.b32.xlu0 %v5397, 2
      %v5430 = vpop.permute.xlu0 %5429
      %5431 = vrot.lane.b32.xlu0 %v5398, 2
      %v5432 = vpop.permute.xlu0 %5431
      %5433 = vrot.lane.b32.xlu0 %v5399, 2
      %v5434 = vpop.permute.xlu0 %5433
      %5435 = vrot.lane.b32.xlu0 %v5400, 2
      %v5436 = vpop.permute.xlu0 %5435
      %5437 = vrot.lane.b32.xlu0 %v5401, 2
      %v5438 = vpop.permute.xlu0 %5437
      %5439 = vrot.lane.b32.xlu0 %v5402, 2
      %v5440 = vpop.permute.xlu0 %5439
      %5441 = vrot.lane.b32.xlu0 %v5403, 2
      %v5442 = vpop.permute.xlu0 %5441
      %5443 = vrot.lane.b32.xlu0 %v5404, 2
      %v5444 = vpop.permute.xlu0 %5443
      %5445 = vrot.lane.b32.xlu0 %v5405, 2
      %v5446 = vpop.permute.xlu0 %5445
      %5447 = vrot.lane.b32.xlu0 %v5406, 2
      %v5448 = vpop.permute.xlu0 %5447
      %5449 = vrot.lane.b32.xlu0 %v5407, 2
      %v5450 = vpop.permute.xlu0 %5449
      %5451 = vrot.lane.b32.xlu0 %v5408, 2
      %v5452 = vpop.permute.xlu0 %5451
      %5453 = vrot.lane.b32.xlu0 %v5409, 2
      %v5454 = vpop.permute.xlu0 %5453
      %5455 = vrot.lane.b32.xlu0 %v5410, 2
      %v5456 = vpop.permute.xlu0 %5455
      %5457 = vrot.lane.b32.xlu0 %v5411, 2
      %v5458 = vpop.permute.xlu0 %5457
      %5459 = vrot.lane.b32.xlu0 %v5412, 2
      %v5460 = vpop.permute.xlu0 %5459
      %v5461 = vsel %vm597, %v5430, %v5432
      %v5462 = vsel %vm597, %v5434, %v5436
      %v5463 = vsel %vm597, %v5438, %v5440
      %v5464 = vsel %vm597, %v5442, %v5444
      %v5465 = vsel %vm597, %v5446, %v5448
      %v5466 = vsel %vm597, %v5450, %v5452
      %v5467 = vsel %vm597, %v5454, %v5456
      %v5468 = vsel %vm597, %v5458, %v5460
      %5485 = vst.msk [vmem:[#allocation2 + $0x100] sm:$0xff] %vm1212, %v5430
      %5486 = vst [vmem:[#allocation2 + $0x108] sm:$0xff] %v5461
      %5487 = vst.msk [vmem:[#allocation2 + $0x120] sm:$0xff] %vm1212, %v5434
      %5488 = vst [vmem:[#allocation2 + $0x128] sm:$0xff] %v5462
      %5489 = vst.msk [vmem:[#allocation2 + $0x140] sm:$0xff] %vm1212, %v5438
      %5490 = vst [vmem:[#allocation2 + $0x148] sm:$0xff] %v5463
      %5491 = vst.msk [vmem:[#allocation2 + $0x160] sm:$0xff] %vm1212, %v5442
      %5492 = vst [vmem:[#allocation2 + $0x168] sm:$0xff] %v5464
      %5493 = vst.msk [vmem:[#allocation2 + $0x180] sm:$0xff] %vm1212, %v5446
      %5494 = vst [vmem:[#allocation2 + $0x188] sm:$0xff] %v5465
      %5495 = vst.msk [vmem:[#allocation2 + $0x1a0] sm:$0xff] %vm1212, %v5450
      %5496 = vst [vmem:[#allocation2 + $0x1a8] sm:$0xff] %v5466
      %5497 = vst.msk [vmem:[#allocation2 + $0x1c0] sm:$0xff] %vm1212, %v5454
      %5498 = vst [vmem:[#allocation2 + $0x1c8] sm:$0xff] %v5467
      %5499 = vst.msk [vmem:[#allocation2 + $0x1e0] sm:$0xff] %vm1212, %v5458
      %5500 = vst [vmem:[#allocation2 + $0x1e8] sm:$0xff] %v5468
      %v5501 = vld [vmem:[#allocation3] sm:$0xff]
      %v5502 = vld [vmem:[#allocation3 + $0x8] sm:$0xff]
      %v5503 = vld [vmem:[#allocation3 + $0x20] sm:$0xff]
      %v5504 = vld [vmem:[#allocation3 + $0x28] sm:$0xff]
      %v5505 = vld [vmem:[#allocation3 + $0x40] sm:$0xff]
      %v5506 = vld [vmem:[#allocation3 + $0x48] sm:$0xff]
      %v5507 = vld [vmem:[#allocation3 + $0x60] sm:$0xff]
      %v5508 = vld [vmem:[#allocation3 + $0x68] sm:$0xff]
      %v5509 = vld [vmem:[#allocation3 + $0x80] sm:$0xff]
      %v5510 = vld [vmem:[#allocation3 + $0x88] sm:$0xff]
      %v5511 = vld [vmem:[#allocation3 + $0xa0] sm:$0xff]
      %v5512 = vld [vmem:[#allocation3 + $0xa8] sm:$0xff]
      %v5513 = vld [vmem:[#allocation3 + $0xc0] sm:$0xff]
      %v5514 = vld [vmem:[#allocation3 + $0xc8] sm:$0xff]
      %v5515 = vld [vmem:[#allocation3 + $0xe0] sm:$0xff]
      %v5516 = vld [vmem:[#allocation3 + $0xe8] sm:$0xff]
      %5517 = vst [vmem:[#allocation2 + $0x200] sm:$0xff] %v5501
      %5518 = vst [vmem:[#allocation2 + $0x208] sm:$0xff] %v5502
      %5519 = vst [vmem:[#allocation2 + $0x220] sm:$0xff] %v5503
      %5520 = vst [vmem:[#allocation2 + $0x228] sm:$0xff] %v5504
      %5521 = vst [vmem:[#allocation2 + $0x240] sm:$0xff] %v5505
      %5522 = vst [vmem:[#allocation2 + $0x248] sm:$0xff] %v5506
      %5523 = vst [vmem:[#allocation2 + $0x260] sm:$0xff] %v5507
      %5524 = vst [vmem:[#allocation2 + $0x268] sm:$0xff] %v5508
      %5525 = vst [vmem:[#allocation2 + $0x280] sm:$0xff] %v5509
      %5526 = vst [vmem:[#allocation2 + $0x288] sm:$0xff] %v5510
      %5527 = vst [vmem:[#allocation2 + $0x2a0] sm:$0xff] %v5511
      %5528 = vst [vmem:[#allocation2 + $0x2a8] sm:$0xff] %v5512
      %5529 = vst [vmem:[#allocation2 + $0x2c0] sm:$0xff] %v5513
      %5530 = vst [vmem:[#allocation2 + $0x2c8] sm:$0xff] %v5514
      %5531 = vst [vmem:[#allocation2 + $0x2e0] sm:$0xff] %v5515
      %5532 = vst [vmem:[#allocation2 + $0x2e8] sm:$0xff] %v5516
      %v5533 = vld [vmem:[#allocation3] sm:$0xff]
      %v5534 = vld [vmem:[#allocation3 + $0x8] sm:$0xff]
      %v5535 = vld [vmem:[#allocation3 + $0x20] sm:$0xff]
      %v5536 = vld [vmem:[#allocation3 + $0x28] sm:$0xff]
      %v5537 = vld [vmem:[#allocation3 + $0x40] sm:$0xff]
      %v5538 = vld [vmem:[#allocation3 + $0x48] sm:$0xff]
      %v5539 = vld [vmem:[#allocation3 + $0x60] sm:$0xff]
      %v5540 = vld [vmem:[#allocation3 + $0x68] sm:$0xff]
      %v5541 = vld [vmem:[#allocation3 + $0x80] sm:$0xff]
      %v5542 = vld [vmem:[#allocation3 + $0x88] sm:$0xff]
      %v5543 = vld [vmem:[#allocation3 + $0xa0] sm:$0xff]
      %v5544 = vld [vmem:[#allocation3 + $0xa8] sm:$0xff]
      %v5545 = vld [vmem:[#allocation3 + $0xc0] sm:$0xff]
      %v5546 = vld [vmem:[#allocation3 + $0xc8] sm:$0xff]
      %v5547 = vld [vmem:[#allocation3 + $0xe0] sm:$0xff]
      %v5548 = vld [vmem:[#allocation3 + $0xe8] sm:$0xff]
      %5565 = vrot.lane.b32.xlu0 %v5533, 126
      %v5566 = vpop.permute.xlu0 %5565
      %5567 = vrot.lane.b32.xlu0 %v5534, 126
      %v5568 = vpop.permute.xlu0 %5567
      %5569 = vrot.lane.b32.xlu0 %v5535, 126
      %v5570 = vpop.permute.xlu0 %5569
      %5571 = vrot.lane.b32.xlu0 %v5536, 126
      %v5572 = vpop.permute.xlu0 %5571
      %5573 = vrot.lane.b32.xlu0 %v5537, 126
      %v5574 = vpop.permute.xlu0 %5573
      %5575 = vrot.lane.b32.xlu0 %v5538, 126
      %v5576 = vpop.permute.xlu0 %5575
      %5577 = vrot.lane.b32.xlu0 %v5539, 126
      %v5578 = vpop.permute.xlu0 %5577
      %5579 = vrot.lane.b32.xlu0 %v5540, 126
      %v5580 = vpop.permute.xlu0 %5579
      %5581 = vrot.lane.b32.xlu0 %v5541, 126
      %v5582 = vpop.permute.xlu0 %5581
      %5583 = vrot.lane.b32.xlu0 %v5542, 126
      %v5584 = vpop.permute.xlu0 %5583
      %5585 = vrot.lane.b32.xlu0 %v5543, 126
      %v5586 = vpop.permute.xlu0 %5585
      %5587 = vrot.lane.b32.xlu0 %v5544, 126
      %v5588 = vpop.permute.xlu0 %5587
      %5589 = vrot.lane.b32.xlu0 %v5545, 126
      %v5590 = vpop.permute.xlu0 %5589
      %5591 = vrot.lane.b32.xlu0 %v5546, 126
      %v5592 = vpop.permute.xlu0 %5591
      %5593 = vrot.lane.b32.xlu0 %v5547, 126
      %v5594 = vpop.permute.xlu0 %5593
      %5595 = vrot.lane.b32.xlu0 %v5548, 126
      %v5596 = vpop.permute.xlu0 %5595
      %v5597 = vsel %vm2017, %v5566, %v5568
      %v5598 = vsel %vm2017, %v5570, %v5572
      %v5599 = vsel %vm2017, %v5574, %v5576
      %v5600 = vsel %vm2017, %v5578, %v5580
      %v5601 = vsel %vm2017, %v5582, %v5584
      %v5602 = vsel %vm2017, %v5586, %v5588
      %v5603 = vsel %vm2017, %v5590, %v5592
      %v5604 = vsel %vm2017, %v5594, %v5596
      %5621 = vst [vmem:[#allocation2 + $0x300] sm:$0xff] %v5597
      %5622 = vst.msk [vmem:[#allocation2 + $0x308] sm:$0xff] %vm2017, %v5568
      %5623 = vst [vmem:[#allocation2 + $0x320] sm:$0xff] %v5598
      %5624 = vst.msk [vmem:[#allocation2 + $0x328] sm:$0xff] %vm2017, %v5572
      %5625 = vst [vmem:[#allocation2 + $0x340] sm:$0xff] %v5599
      %5626 = vst.msk [vmem:[#allocation2 + $0x348] sm:$0xff] %vm2017, %v5576
      %5627 = vst [vmem:[#allocation2 + $0x360] sm:$0xff] %v5600
      %5628 = vst.msk [vmem:[#allocation2 + $0x368] sm:$0xff] %vm2017, %v5580
      %5629 = vst [vmem:[#allocation2 + $0x380] sm:$0xff] %v5601
      %5630 = vst.msk [vmem:[#allocation2 + $0x388] sm:$0xff] %vm2017, %v5584
      %5631 = vst [vmem:[#allocation2 + $0x3a0] sm:$0xff] %v5602
      %5632 = vst.msk [vmem:[#allocation2 + $0x3a8] sm:$0xff] %vm2017, %v5588
      %5633 = vst [vmem:[#allocation2 + $0x3c0] sm:$0xff] %v5603
      %5634 = vst.msk [vmem:[#allocation2 + $0x3c8] sm:$0xff] %vm2017, %v5592
      %5635 = vst [vmem:[#allocation2 + $0x3e0] sm:$0xff] %v5604
      %5636 = vst.msk [vmem:[#allocation2 + $0x3e8] sm:$0xff] %vm2017, %v5596
      %5645 = vrot.lane.b32.xlu0 %v5206, 126
      %v5646 = vpop.permute.xlu0 %5645
      %5647 = vrot.lane.b32.xlu0 %v5211, 126
      %v5648 = vpop.permute.xlu0 %5647
      %5649 = vrot.lane.b32.xlu0 %v5216, 126
      %v5650 = vpop.permute.xlu0 %5649
      %5651 = vrot.lane.b32.xlu0 %v5221, 126
      %v5652 = vpop.permute.xlu0 %5651
      %5653 = vrot.lane.b32.xlu0 %v5226, 126
      %v5654 = vpop.permute.xlu0 %5653
      %5655 = vrot.lane.b32.xlu0 %v5231, 126
      %v5656 = vpop.permute.xlu0 %5655
      %5657 = vrot.lane.b32.xlu0 %v5236, 126
      %v5658 = vpop.permute.xlu0 %5657
      %5659 = vrot.lane.b32.xlu0 %v5241, 126
      %v5660 = vpop.permute.xlu0 %5659
      %5669 = vst.msk [vmem:[#allocation2 + $0x308] sm:$0xff] %vm2146, %v5646
      %5670 = vst.msk [vmem:[#allocation2 + $0x328] sm:$0xff] %vm2146, %v5648
      %5671 = vst.msk [vmem:[#allocation2 + $0x348] sm:$0xff] %vm2146, %v5650
      %5672 = vst.msk [vmem:[#allocation2 + $0x368] sm:$0xff] %vm2146, %v5652
      %5673 = vst.msk [vmem:[#allocation2 + $0x388] sm:$0xff] %vm2146, %v5654
      %5674 = vst.msk [vmem:[#allocation2 + $0x3a8] sm:$0xff] %vm2146, %v5656
      %5675 = vst.msk [vmem:[#allocation2 + $0x3c8] sm:$0xff] %vm2146, %v5658
      %5676 = vst.msk [vmem:[#allocation2 + $0x3e8] sm:$0xff] %vm2146, %v5660
      %v5677 = vld [vmem:[#allocation3] sm:$0xff]
      %v5678 = vld [vmem:[#allocation3 + $0x8] sm:$0xff]
      %v5679 = vld [vmem:[#allocation3 + $0x20] sm:$0xff]
      %v5680 = vld [vmem:[#allocation3 + $0x28] sm:$0xff]
      %v5681 = vld [vmem:[#allocation3 + $0x40] sm:$0xff]
      %v5682 = vld [vmem:[#allocation3 + $0x48] sm:$0xff]
      %v5683 = vld [vmem:[#allocation3 + $0x60] sm:$0xff]
      %v5684 = vld [vmem:[#allocation3 + $0x68] sm:$0xff]
      %v5685 = vld [vmem:[#allocation3 + $0x80] sm:$0xff]
      %v5686 = vld [vmem:[#allocation3 + $0x88] sm:$0xff]
      %v5687 = vld [vmem:[#allocation3 + $0xa0] sm:$0xff]
      %v5688 = vld [vmem:[#allocation3 + $0xa8] sm:$0xff]
      %v5689 = vld [vmem:[#allocation3 + $0xc0] sm:$0xff]
      %v5690 = vld [vmem:[#allocation3 + $0xc8] sm:$0xff]
      %v5691 = vld [vmem:[#allocation3 + $0xe0] sm:$0xff]
      %v5692 = vld [vmem:[#allocation3 + $0xe8] sm:$0xff]
      %5709 = vrot.lane.b32.xlu0 %v5677, 124
      %v5710 = vpop.permute.xlu0 %5709
      %5711 = vrot.lane.b32.xlu0 %v5678, 124
      %v5712 = vpop.permute.xlu0 %5711
      %5713 = vrot.lane.b32.xlu0 %v5679, 124
      %v5714 = vpop.permute.xlu0 %5713
      %5715 = vrot.lane.b32.xlu0 %v5680, 124
      %v5716 = vpop.permute.xlu0 %5715
      %5717 = vrot.lane.b32.xlu0 %v5681, 124
      %v5718 = vpop.permute.xlu0 %5717
      %5719 = vrot.lane.b32.xlu0 %v5682, 124
      %v5720 = vpop.permute.xlu0 %5719
      %5721 = vrot.lane.b32.xlu0 %v5683, 124
      %v5722 = vpop.permute.xlu0 %5721
      %5723 = vrot.lane.b32.xlu0 %v5684, 124
      %v5724 = vpop.permute.xlu0 %5723
      %5725 = vrot.lane.b32.xlu0 %v5685, 124
      %v5726 = vpop.permute.xlu0 %5725
      %5727 = vrot.lane.b32.xlu0 %v5686, 124
      %v5728 = vpop.permute.xlu0 %5727
      %5729 = vrot.lane.b32.xlu0 %v5687, 124
      %v5730 = vpop.permute.xlu0 %5729
      %5731 = vrot.lane.b32.xlu0 %v5688, 124
      %v5732 = vpop.permute.xlu0 %5731
      %5733 = vrot.lane.b32.xlu0 %v5689, 124
      %v5734 = vpop.permute.xlu0 %5733
      %5735 = vrot.lane.b32.xlu0 %v5690, 124
      %v5736 = vpop.permute.xlu0 %5735
      %5737 = vrot.lane.b32.xlu0 %v5691, 124
      %v5738 = vpop.permute.xlu0 %5737
      %5739 = vrot.lane.b32.xlu0 %v5692, 124
      %v5740 = vpop.permute.xlu0 %5739
      %vm5741 = vcmask 1014784
      %v5742 = vsel %vm5741, %v5710, %v5712
      %v5743 = vsel %vm5741, %v5714, %v5716
      %v5744 = vsel %vm5741, %v5718, %v5720
      %v5745 = vsel %vm5741, %v5722, %v5724
      %v5746 = vsel %vm5741, %v5726, %v5728
      %v5747 = vsel %vm5741, %v5730, %v5732
      %v5748 = vsel %vm5741, %v5734, %v5736
      %v5749 = vsel %vm5741, %v5738, %v5740
      %5766 = vst [vmem:[#allocation2 + $0x400] sm:$0xff] %v5742
      %5767 = vst.msk [vmem:[#allocation2 + $0x408] sm:$0xff] %vm5741, %v5712
      %5768 = vst [vmem:[#allocation2 + $0x420] sm:$0xff] %v5743
      %5769 = vst.msk [vmem:[#allocation2 + $0x428] sm:$0xff] %vm5741, %v5716
      %5770 = vst [vmem:[#allocation2 + $0x440] sm:$0xff] %v5744
      %5771 = vst.msk [vmem:[#allocation2 + $0x448] sm:$0xff] %vm5741, %v5720
      %5772 = vst [vmem:[#allocation2 + $0x460] sm:$0xff] %v5745
      %5773 = vst.msk [vmem:[#allocation2 + $0x468] sm:$0xff] %vm5741, %v5724
      %5774 = vst [vmem:[#allocation2 + $0x480] sm:$0xff] %v5746
      %5775 = vst.msk [vmem:[#allocation2 + $0x488] sm:$0xff] %vm5741, %v5728
      %5776 = vst [vmem:[#allocation2 + $0x4a0] sm:$0xff] %v5747
      %5777 = vst.msk [vmem:[#allocation2 + $0x4a8] sm:$0xff] %vm5741, %v5732
      %5778 = vst [vmem:[#allocation2 + $0x4c0] sm:$0xff] %v5748
      %5779 = vst.msk [vmem:[#allocation2 + $0x4c8] sm:$0xff] %vm5741, %v5736
      %5780 = vst [vmem:[#allocation2 + $0x4e0] sm:$0xff] %v5749
      %5781 = vst.msk [vmem:[#allocation2 + $0x4e8] sm:$0xff] %vm5741, %v5740
      %5782 = vrot.lane.b32.xlu0 %v5206, 124
      %v5783 = vpop.permute.xlu0 %5782
      %5784 = vrot.lane.b32.xlu0 %v5211, 124
      %v5785 = vpop.permute.xlu0 %5784
      %5786 = vrot.lane.b32.xlu0 %v5216, 124
      %v5787 = vpop.permute.xlu0 %5786
      %5788 = vrot.lane.b32.xlu0 %v5221, 124
      %v5789 = vpop.permute.xlu0 %5788
      %5790 = vrot.lane.b32.xlu0 %v5226, 124
      %v5791 = vpop.permute.xlu0 %5790
      %5792 = vrot.lane.b32.xlu0 %v5231, 124
      %v5793 = vpop.permute.xlu0 %5792
      %5794 = vrot.lane.b32.xlu0 %v5236, 124
      %v5795 = vpop.permute.xlu0 %5794
      %5796 = vrot.lane.b32.xlu0 %v5241, 124
      %v5797 = vpop.permute.xlu0 %5796
      %vm5806 = vcmask 1048544
      %5807 = vst.msk [vmem:[#allocation2 + $0x408] sm:$0xff] %vm5806, %v5783
      %5808 = vst.msk [vmem:[#allocation2 + $0x428] sm:$0xff] %vm5806, %v5785
      %5809 = vst.msk [vmem:[#allocation2 + $0x448] sm:$0xff] %vm5806, %v5787
      %5810 = vst.msk [vmem:[#allocation2 + $0x468] sm:$0xff] %vm5806, %v5789
      %5811 = vst.msk [vmem:[#allocation2 + $0x488] sm:$0xff] %vm5806, %v5791
      %5812 = vst.msk [vmem:[#allocation2 + $0x4a8] sm:$0xff] %vm5806, %v5793
      %5813 = vst.msk [vmem:[#allocation2 + $0x4c8] sm:$0xff] %vm5806, %v5795
      %5814 = vst.msk [vmem:[#allocation2 + $0x4e8] sm:$0xff] %vm5806, %v5797
      %v5815 = vld [vmem:[#allocation3 + $0x10] sm:$0xff]
      %v5816 = vld [vmem:[#allocation3 + $0x30] sm:$0xff]
      %v5817 = vld [vmem:[#allocation3 + $0x50] sm:$0xff]
      %v5818 = vld [vmem:[#allocation3 + $0x70] sm:$0xff]
      %v5819 = vld [vmem:[#allocation3 + $0x90] sm:$0xff]
      %v5820 = vld [vmem:[#allocation3 + $0xb0] sm:$0xff]
      %v5821 = vld [vmem:[#allocation3 + $0xd0] sm:$0xff]
      %v5822 = vld [vmem:[#allocation3 + $0xf0] sm:$0xff]
      %5831 = vrot.lane.b32.xlu0 %v5815, 127
      %v5832 = vpop.permute.xlu0 %5831
      %5833 = vrot.lane.b32.xlu0 %v5816, 127
      %v5834 = vpop.permute.xlu0 %5833
      %5835 = vrot.lane.b32.xlu0 %v5817, 127
      %v5836 = vpop.permute.xlu0 %5835
      %5837 = vrot.lane.b32.xlu0 %v5818, 127
      %v5838 = vpop.permute.xlu0 %5837
      %5839 = vrot.lane.b32.xlu0 %v5819, 127
      %v5840 = vpop.permute.xlu0 %5839
      %5841 = vrot.lane.b32.xlu0 %v5820, 127
      %v5842 = vpop.permute.xlu0 %5841
      %5843 = vrot.lane.b32.xlu0 %v5821, 127
      %v5844 = vpop.permute.xlu0 %5843
      %5845 = vrot.lane.b32.xlu0 %v5822, 127
      %v5846 = vpop.permute.xlu0 %5845
      %v5847 = vsel %vm4965, %v5832, 0
      %v5849 = vsel %vm4965, %v5834, 0
      %v5851 = vsel %vm4965, %v5836, 0
      %v5853 = vsel %vm4965, %v5838, 0
      %v5855 = vsel %vm4965, %v5840, 0
      %v5857 = vsel %vm4965, %v5842, 0
      %v5859 = vsel %vm4965, %v5844, 0
      %v5861 = vsel %vm4965, %v5846, 0
      %5863 = vmatprep.subr.mxu0 0.0
      %5864 = vmatpush1.msra.mxu0 0.0
      %5865 = vmatprep.subr.mxu0 0.0
      %5866 = vmatpush1.msra.mxu0 0.0
      %5867 = vmatprep.subr.mxu0 0.0
      %5868 = vmatpush1.msra.mxu0 0.0
      %5869 = vmatprep.subr.mxu0 0.0
      %5870 = vmatpush1.msra.mxu0 0.0
      %5871 = vmatprep.subr.mxu0 0.0
      %5872 = vmatpush1.msra.mxu0 0.0
      %5873 = vmatprep.subr.mxu0 0.0
      %5874 = vmatpush1.msra.mxu0 0.0
      %5875 = vmatprep.subr.mxu0 0.0
      %5876 = vmatpush1.msra.mxu0 0.0
      %5877 = vmatprep.subr.mxu0 0.0
      %5878 = vmatpush1.msra.mxu0 0.0
      %5879 = vmatprep.subr.mxu0 0.0
      %5880 = vmatpush1.msra.mxu0 0.0
      %5881 = vmatprep.subr.mxu0 0.0
      %5882 = vmatpush1.msra.mxu0 0.0
      %5883 = vmatprep.subr.mxu0 0.0
      %5884 = vmatpush1.msra.mxu0 0.0
      %5885 = vmatprep.subr.mxu0 0.0
      %5886 = vmatpush1.msra.mxu0 0.0
      %5887 = vmatprep.subr.mxu0 0.0
      %5888 = vmatpush1.msra.mxu0 0.0
      %5889 = vmatprep.subr.mxu0 0.0
      %5890 = vmatpush1.msra.mxu0 0.0
      %5891 = vmatprep.subr.mxu0 0.0
      %5892 = vmatpush1.msra.mxu0 0.0
      %5893 = vmatprep.subr.mxu0 0.0
      %5894 = vmatpush1.msra.mxu0 %v4984
      %5895 = vmatprep.subr.mxu0 0.0
      %5896 = vmatpush2.msra.mxu0 0.0
      %5897 = vmatprep.subr.mxu0 0.0
      %5898 = vmatpush2.msra.mxu0 0.0
      %5899 = vmatprep.subr.mxu0 0.0
      %5900 = vmatpush2.msra.mxu0 0.0
      %5901 = vmatprep.subr.mxu0 0.0
      %5902 = vmatpush2.msra.mxu0 0.0
      %5903 = vmatprep.subr.mxu0 0.0
      %5904 = vmatpush2.msra.mxu0 0.0
      %5905 = vmatprep.subr.mxu0 0.0
      %5906 = vmatpush2.msra.mxu0 0.0
      %5907 = vmatprep.subr.mxu0 0.0
      %5908 = vmatpush2.msra.mxu0 0.0
      %5909 = vmatprep.subr.mxu0 0.0
      %5910 = vmatpush2.msra.mxu0 0.0
      %5911 = vmatprep.subr.mxu0 0.0
      %5912 = vmatpush2.msra.mxu0 0.0
      %5913 = vmatprep.subr.mxu0 0.0
      %5914 = vmatpush2.msra.mxu0 0.0
      %5915 = vmatprep.subr.mxu0 0.0
      %5916 = vmatpush2.msra.mxu0 0.0
      %5917 = vmatprep.subr.mxu0 0.0
      %5918 = vmatpush2.msra.mxu0 0.0
      %5919 = vmatprep.subr.mxu0 0.0
      %5920 = vmatpush2.msra.mxu0 0.0
      %5921 = vmatprep.subr.mxu0 0.0
      %5922 = vmatpush2.msra.mxu0 0.0
      %5923 = vmatprep.subr.mxu0 0.0
      %5924 = vmatpush2.msra.mxu0 0.0
      %5925 = vmatprep.subr.mxu0 0.0
      %5926 = vmatpush2.msra.mxu0 0.0
      %5927 = vmatprep.mubr.f32.mxu0 0.0
      %5928 = vmatmul.mubr.f32.gmra.mxu0 %v5847
      %v5929 = vpop.f32.mrf.mxu0
      %v5930 = vadd.f32 0.0, %v5929
      %v5931 = vpop.f32.mrf.mxu0
      %5932 = vmatprep.mubr.f32.mxu0 0.0
      %5933 = vmatmul.mubr.f32.gmra.mxu0 %v5849
      %v5934 = vpop.f32.mrf.mxu0
      %v5935 = vadd.f32 0.0, %v5934
      %v5936 = vpop.f32.mrf.mxu0
      %5937 = vmatprep.mubr.f32.mxu0 0.0
      %5938 = vmatmul.mubr.f32.gmra.mxu0 %v5851
      %v5939 = vpop.f32.mrf.mxu0
      %v5940 = vadd.f32 0.0, %v5939
      %v5941 = vpop.f32.mrf.mxu0
      %5942 = vmatprep.mubr.f32.mxu0 0.0
      %5943 = vmatmul.mubr.f32.gmra.mxu0 %v5853
      %v5944 = vpop.f32.mrf.mxu0
      %v5945 = vadd.f32 0.0, %v5944
      %v5946 = vpop.f32.mrf.mxu0
      %5947 = vmatprep.mubr.f32.mxu0 0.0
      %5948 = vmatmul.mubr.f32.gmra.mxu0 %v5855
      %v5949 = vpop.f32.mrf.mxu0
      %v5950 = vadd.f32 0.0, %v5949
      %v5951 = vpop.f32.mrf.mxu0
      %5952 = vmatprep.mubr.f32.mxu0 0.0
      %5953 = vmatmul.mubr.f32.gmra.mxu0 %v5857
      %v5954 = vpop.f32.mrf.mxu0
      %v5955 = vadd.f32 0.0, %v5954
      %v5956 = vpop.f32.mrf.mxu0
      %5957 = vmatprep.mubr.f32.mxu0 0.0
      %5958 = vmatmul.mubr.f32.gmra.mxu0 %v5859
      %v5959 = vpop.f32.mrf.mxu0
      %v5960 = vadd.f32 0.0, %v5959
      %v5961 = vpop.f32.mrf.mxu0
      %5962 = vmatprep.mubr.f32.mxu0 0.0
      %5963 = vmatmul.mubr.f32.gmra.mxu0 %v5861
      %v5964 = vpop.f32.mrf.mxu0
      %v5965 = vadd.f32 0.0, %v5964
      %v5966 = vpop.f32.mrf.mxu0
      %5967 = vdwg.mxu0
      %v5968 = vld [vmem:[#allocation3 + $0x18] sm:$0xff]
      %v5969 = vld [vmem:[#allocation3 + $0x38] sm:$0xff]
      %v5970 = vld [vmem:[#allocation3 + $0x58] sm:$0xff]
      %v5971 = vld [vmem:[#allocation3 + $0x78] sm:$0xff]
      %v5972 = vld [vmem:[#allocation3 + $0x98] sm:$0xff]
      %v5973 = vld [vmem:[#allocation3 + $0xb8] sm:$0xff]
      %v5974 = vld [vmem:[#allocation3 + $0xd8] sm:$0xff]
      %v5975 = vld [vmem:[#allocation3 + $0xf8] sm:$0xff]
      %5984 = vrot.lane.b32.xlu0 %v5968, 5
      %v5985 = vpop.permute.xlu0 %5984
      %5986 = vrot.lane.b32.xlu0 %v5969, 5
      %v5987 = vpop.permute.xlu0 %5986
      %5988 = vrot.lane.b32.xlu0 %v5970, 5
      %v5989 = vpop.permute.xlu0 %5988
      %5990 = vrot.lane.b32.xlu0 %v5971, 5
      %v5991 = vpop.permute.xlu0 %5990
      %5992 = vrot.lane.b32.xlu0 %v5972, 5
      %v5993 = vpop.permute.xlu0 %5992
      %5994 = vrot.lane.b32.xlu0 %v5973, 5
      %v5995 = vpop.permute.xlu0 %5994
      %5996 = vrot.lane.b32.xlu0 %v5974, 5
      %v5997 = vpop.permute.xlu0 %5996
      %5998 = vrot.lane.b32.xlu0 %v5975, 5
      %v5999 = vpop.permute.xlu0 %5998
      %v6000 = vsel %vm4965, %v5985, 0
      %v6002 = vsel %vm4965, %v5987, 0
      %v6004 = vsel %vm4965, %v5989, 0
      %v6006 = vsel %vm4965, %v5991, 0
      %v6008 = vsel %vm4965, %v5993, 0
      %v6010 = vsel %vm4965, %v5995, 0
      %v6012 = vsel %vm4965, %v5997, 0
      %v6014 = vsel %vm4965, %v5999, 0
      %6016 = vmatprep.subr.mxu0 0.0
      %6017 = vmatpush1.msra.mxu0 0.0
      %6018 = vmatprep.subr.mxu0 0.0
      %6019 = vmatpush1.msra.mxu0 0.0
      %6020 = vmatprep.subr.mxu0 0.0
      %6021 = vmatpush1.msra.mxu0 0.0
      %6022 = vmatprep.subr.mxu0 0.0
      %6023 = vmatpush1.msra.mxu0 0.0
      %6024 = vmatprep.subr.mxu0 0.0
      %6025 = vmatpush1.msra.mxu0 0.0
      %6026 = vmatprep.subr.mxu0 0.0
      %6027 = vmatpush1.msra.mxu0 0.0
      %6028 = vmatprep.subr.mxu0 0.0
      %6029 = vmatpush1.msra.mxu0 0.0
      %6030 = vmatprep.subr.mxu0 0.0
      %6031 = vmatpush1.msra.mxu0 0.0
      %6032 = vmatprep.subr.mxu0 0.0
      %6033 = vmatpush1.msra.mxu0 0.0
      %6034 = vmatprep.subr.mxu0 0.0
      %6035 = vmatpush1.msra.mxu0 0.0
      %6036 = vmatprep.subr.mxu0 0.0
      %6037 = vmatpush1.msra.mxu0 0.0
      %6038 = vmatprep.subr.mxu0 0.0
      %6039 = vmatpush1.msra.mxu0 0.0
      %6040 = vmatprep.subr.mxu0 0.0
      %6041 = vmatpush1.msra.mxu0 0.0
      %6042 = vmatprep.subr.mxu0 0.0
      %6043 = vmatpush1.msra.mxu0 0.0
      %6044 = vmatprep.subr.mxu0 0.0
      %6045 = vmatpush1.msra.mxu0 0.0
      %6046 = vmatprep.subr.mxu0 0.0
      %6047 = vmatpush1.msra.mxu0 %v4984
      %6048 = vmatprep.subr.mxu0 0.0
      %6049 = vmatpush2.msra.mxu0 0.0
      %6050 = vmatprep.subr.mxu0 0.0
      %6051 = vmatpush2.msra.mxu0 0.0
      %6052 = vmatprep.subr.mxu0 0.0
      %6053 = vmatpush2.msra.mxu0 0.0
      %6054 = vmatprep.subr.mxu0 0.0
      %6055 = vmatpush2.msra.mxu0 0.0
      %6056 = vmatprep.subr.mxu0 0.0
      %6057 = vmatpush2.msra.mxu0 0.0
      %6058 = vmatprep.subr.mxu0 0.0
      %6059 = vmatpush2.msra.mxu0 0.0
      %6060 = vmatprep.subr.mxu0 0.0
      %6061 = vmatpush2.msra.mxu0 0.0
      %6062 = vmatprep.subr.mxu0 0.0
      %6063 = vmatpush2.msra.mxu0 0.0
      %6064 = vmatprep.subr.mxu0 0.0
      %6065 = vmatpush2.msra.mxu0 0.0
      %6066 = vmatprep.subr.mxu0 0.0
      %6067 = vmatpush2.msra.mxu0 0.0
      %6068 = vmatprep.subr.mxu0 0.0
      %6069 = vmatpush2.msra.mxu0 0.0
      %6070 = vmatprep.subr.mxu0 0.0
      %6071 = vmatpush2.msra.mxu0 0.0
      %6072 = vmatprep.subr.mxu0 0.0
      %6073 = vmatpush2.msra.mxu0 0.0
      %6074 = vmatprep.subr.mxu0 0.0
      %6075 = vmatpush2.msra.mxu0 0.0
      %6076 = vmatprep.subr.mxu0 0.0
      %6077 = vmatpush2.msra.mxu0 0.0
      %6078 = vmatprep.subr.mxu0 0.0
      %6079 = vmatpush2.msra.mxu0 0.0
      %6080 = vmatprep.mubr.f32.mxu0 0.0
      %6081 = vmatmul.mubr.f32.gmra.mxu0 %v6000
      %v6082 = vpop.f32.mrf.mxu0
      %v6083 = vadd.f32 0.0, %v6082
      %v6084 = vpop.f32.mrf.mxu0
      %6085 = vmatprep.mubr.f32.mxu0 0.0
      %6086 = vmatmul.mubr.f32.gmra.mxu0 %v6002
      %v6087 = vpop.f32.mrf.mxu0
      %v6088 = vadd.f32 0.0, %v6087
      %v6089 = vpop.f32.mrf.mxu0
      %6090 = vmatprep.mubr.f32.mxu0 0.0
      %6091 = vmatmul.mubr.f32.gmra.mxu0 %v6004
      %v6092 = vpop.f32.mrf.mxu0
      %v6093 = vadd.f32 0.0, %v6092
      %v6094 = vpop.f32.mrf.mxu0
      %6095 = vmatprep.mubr.f32.mxu0 0.0
      %6096 = vmatmul.mubr.f32.gmra.mxu0 %v6006
      %v6097 = vpop.f32.mrf.mxu0
      %v6098 = vadd.f32 0.0, %v6097
      %v6099 = vpop.f32.mrf.mxu0
      %6100 = vmatprep.mubr.f32.mxu0 0.0
      %6101 = vmatmul.mubr.f32.gmra.mxu0 %v6008
      %v6102 = vpop.f32.mrf.mxu0
      %v6103 = vadd.f32 0.0, %v6102
      %v6104 = vpop.f32.mrf.mxu0
      %6105 = vmatprep.mubr.f32.mxu0 0.0
      %6106 = vmatmul.mubr.f32.gmra.mxu0 %v6010
      %v6107 = vpop.f32.mrf.mxu0
      %v6108 = vadd.f32 0.0, %v6107
      %v6109 = vpop.f32.mrf.mxu0
      %6110 = vmatprep.mubr.f32.mxu0 0.0
      %6111 = vmatmul.mubr.f32.gmra.mxu0 %v6012
      %v6112 = vpop.f32.mrf.mxu0
      %v6113 = vadd.f32 0.0, %v6112
      %v6114 = vpop.f32.mrf.mxu0
      %6115 = vmatprep.mubr.f32.mxu0 0.0
      %6116 = vmatmul.mubr.f32.gmra.mxu0 %v6014
      %v6117 = vpop.f32.mrf.mxu0
      %v6118 = vadd.f32 0.0, %v6117
      %v6119 = vpop.f32.mrf.mxu0
      %6120 = vdwg.mxu0
      %6121 = vst.msk [vmem:[#allocation2 + $0x10] sm:$0xff] %vm4965, %v5930
      %6122 = vst.msk [vmem:[#allocation2 + $0x30] sm:$0xff] %vm4965, %v5935
      %6123 = vst.msk [vmem:[#allocation2 + $0x50] sm:$0xff] %vm4965, %v5940
      %6124 = vst.msk [vmem:[#allocation2 + $0x70] sm:$0xff] %vm4965, %v5945
      %6125 = vst.msk [vmem:[#allocation2 + $0x90] sm:$0xff] %vm4965, %v5950
      %6126 = vst.msk [vmem:[#allocation2 + $0xb0] sm:$0xff] %vm4965, %v5955
      %6127 = vst.msk [vmem:[#allocation2 + $0xd0] sm:$0xff] %vm4965, %v5960
      %6128 = vst.msk [vmem:[#allocation2 + $0xf0] sm:$0xff] %vm4965, %v5965
      %v6129 = vld [vmem:[#allocation3 + $0x10] sm:$0xff]
      %v6130 = vld [vmem:[#allocation3 + $0x18] sm:$0xff]
      %v6131 = vld [vmem:[#allocation3 + $0x30] sm:$0xff]
      %v6132 = vld [vmem:[#allocation3 + $0x38] sm:$0xff]
      %v6133 = vld [vmem:[#allocation3 + $0x50] sm:$0xff]
      %v6134 = vld [vmem:[#allocation3 + $0x58] sm:$0xff]
      %v6135 = vld [vmem:[#allocation3 + $0x70] sm:$0xff]
      %v6136 = vld [vmem:[#allocation3 + $0x78] sm:$0xff]
      %v6137 = vld [vmem:[#allocation3 + $0x90] sm:$0xff]
      %v6138 = vld [vmem:[#allocation3 + $0x98] sm:$0xff]
      %v6139 = vld [vmem:[#allocation3 + $0xb0] sm:$0xff]
      %v6140 = vld [vmem:[#allocation3 + $0xb8] sm:$0xff]
      %v6141 = vld [vmem:[#allocation3 + $0xd0] sm:$0xff]
      %v6142 = vld [vmem:[#allocation3 + $0xd8] sm:$0xff]
      %v6143 = vld [vmem:[#allocation3 + $0xf0] sm:$0xff]
      %v6144 = vld [vmem:[#allocation3 + $0xf8] sm:$0xff]
      %6161 = vrot.lane.b32.xlu0 %v6129, 4
      %v6162 = vpop.permute.xlu0 %6161
      %6163 = vrot.lane.b32.xlu0 %v6130, 4
      %v6164 = vpop.permute.xlu0 %6163
      %6165 = vrot.lane.b32.xlu0 %v6131, 4
      %v6166 = vpop.permute.xlu0 %6165
      %6167 = vrot.lane.b32.xlu0 %v6132, 4
      %v6168 = vpop.permute.xlu0 %6167
      %6169 = vrot.lane.b32.xlu0 %v6133, 4
      %v6170 = vpop.permute.xlu0 %6169
      %6171 = vrot.lane.b32.xlu0 %v6134, 4
      %v6172 = vpop.permute.xlu0 %6171
      %6173 = vrot.lane.b32.xlu0 %v6135, 4
      %v6174 = vpop.permute.xlu0 %6173
      %6175 = vrot.lane.b32.xlu0 %v6136, 4
      %v6176 = vpop.permute.xlu0 %6175
      %6177 = vrot.lane.b32.xlu0 %v6137, 4
      %v6178 = vpop.permute.xlu0 %6177
      %6179 = vrot.lane.b32.xlu0 %v6138, 4
      %v6180 = vpop.permute.xlu0 %6179
      %6181 = vrot.lane.b32.xlu0 %v6139, 4
      %v6182 = vpop.permute.xlu0 %6181
      %6183 = vrot.lane.b32.xlu0 %v6140, 4
      %v6184 = vpop.permute.xlu0 %6183
      %6185 = vrot.lane.b32.xlu0 %v6141, 4
      %v6186 = vpop.permute.xlu0 %6185
      %6187 = vrot.lane.b32.xlu0 %v6142, 4
      %v6188 = vpop.permute.xlu0 %6187
      %6189 = vrot.lane.b32.xlu0 %v6143, 4
      %v6190 = vpop.permute.xlu0 %6189
      %6191 = vrot.lane.b32.xlu0 %v6144, 4
      %v6192 = vpop.permute.xlu0 %6191
      %v6193 = vsel %vm4965, %v6162, %v6164
      %v6194 = vsel %vm4965, %v6166, %v6168
      %v6195 = vsel %vm4965, %v6170, %v6172
      %v6196 = vsel %vm4965, %v6174, %v6176
      %v6197 = vsel %vm4965, %v6178, %v6180
      %v6198 = vsel %vm4965, %v6182, %v6184
      %v6199 = vsel %vm4965, %v6186, %v6188
      %v6200 = vsel %vm4965, %v6190, %v6192
      %6217 = vst.msk [vmem:[#allocation2 + $0x10] sm:$0xff] %vm5340, %v6162
      %6218 = vst [vmem:[#allocation2 + $0x18] sm:$0xff] %v6193
      %6219 = vst.msk [vmem:[#allocation2 + $0x30] sm:$0xff] %vm5340, %v6166
      %6220 = vst [vmem:[#allocation2 + $0x38] sm:$0xff] %v6194
      %6221 = vst.msk [vmem:[#allocation2 + $0x50] sm:$0xff] %vm5340, %v6170
      %6222 = vst [vmem:[#allocation2 + $0x58] sm:$0xff] %v6195
      %6223 = vst.msk [vmem:[#allocation2 + $0x70] sm:$0xff] %vm5340, %v6174
      %6224 = vst [vmem:[#allocation2 + $0x78] sm:$0xff] %v6196
      %6225 = vst.msk [vmem:[#allocation2 + $0x90] sm:$0xff] %vm5340, %v6178
      %6226 = vst [vmem:[#allocation2 + $0x98] sm:$0xff] %v6197
      %6227 = vst.msk [vmem:[#allocation2 + $0xb0] sm:$0xff] %vm5340, %v6182
      %6228 = vst [vmem:[#allocation2 + $0xb8] sm:$0xff] %v6198
      %6229 = vst.msk [vmem:[#allocation2 + $0xd0] sm:$0xff] %vm5340, %v6186
      %6230 = vst [vmem:[#allocation2 + $0xd8] sm:$0xff] %v6199
      %6231 = vst.msk [vmem:[#allocation2 + $0xf0] sm:$0xff] %vm5340, %v6190
      %6232 = vst [vmem:[#allocation2 + $0xf8] sm:$0xff] %v6200
      %6241 = vrot.lane.b32.xlu0 %v5930, 126
      %v6242 = vpop.permute.xlu0 %6241
      %6243 = vrot.lane.b32.xlu0 %v5935, 126
      %v6244 = vpop.permute.xlu0 %6243
      %6245 = vrot.lane.b32.xlu0 %v5940, 126
      %v6246 = vpop.permute.xlu0 %6245
      %6247 = vrot.lane.b32.xlu0 %v5945, 126
      %v6248 = vpop.permute.xlu0 %6247
      %6249 = vrot.lane.b32.xlu0 %v5950, 126
      %v6250 = vpop.permute.xlu0 %6249
      %6251 = vrot.lane.b32.xlu0 %v5955, 126
      %v6252 = vpop.permute.xlu0 %6251
      %6253 = vrot.lane.b32.xlu0 %v5960, 126
      %v6254 = vpop.permute.xlu0 %6253
      %6255 = vrot.lane.b32.xlu0 %v5965, 126
      %v6256 = vpop.permute.xlu0 %6255
      %6265 = vst.msk [vmem:[#allocation2 + $0x110] sm:$0xff] %vm597, %v6242
      %6266 = vst.msk [vmem:[#allocation2 + $0x130] sm:$0xff] %vm597, %v6244
      %6267 = vst.msk [vmem:[#allocation2 + $0x150] sm:$0xff] %vm597, %v6246
      %6268 = vst.msk [vmem:[#allocation2 + $0x170] sm:$0xff] %vm597, %v6248
      %6269 = vst.msk [vmem:[#allocation2 + $0x190] sm:$0xff] %vm597, %v6250
      %6270 = vst.msk [vmem:[#allocation2 + $0x1b0] sm:$0xff] %vm597, %v6252
      %6271 = vst.msk [vmem:[#allocation2 + $0x1d0] sm:$0xff] %vm597, %v6254
      %6272 = vst.msk [vmem:[#allocation2 + $0x1f0] sm:$0xff] %vm597, %v6256
      %v6273 = vld [vmem:[#allocation3 + $0x10] sm:$0xff]
      %v6274 = vld [vmem:[#allocation3 + $0x18] sm:$0xff]
      %v6275 = vld [vmem:[#allocation3 + $0x30] sm:$0xff]
      %v6276 = vld [vmem:[#allocation3 + $0x38] sm:$0xff]
      %v6277 = vld [vmem:[#allocation3 + $0x50] sm:$0xff]
      %v6278 = vld [vmem:[#allocation3 + $0x58] sm:$0xff]
      %v6279 = vld [vmem:[#allocation3 + $0x70] sm:$0xff]
      %v6280 = vld [vmem:[#allocation3 + $0x78] sm:$0xff]
      %v6281 = vld [vmem:[#allocation3 + $0x90] sm:$0xff]
      %v6282 = vld [vmem:[#allocation3 + $0x98] sm:$0xff]
      %v6283 = vld [vmem:[#allocation3 + $0xb0] sm:$0xff]
      %v6284 = vld [vmem:[#allocation3 + $0xb8] sm:$0xff]
      %v6285 = vld [vmem:[#allocation3 + $0xd0] sm:$0xff]
      %v6286 = vld [vmem:[#allocation3 + $0xd8] sm:$0xff]
      %v6287 = vld [vmem:[#allocation3 + $0xf0] sm:$0xff]
      %v6288 = vld [vmem:[#allocation3 + $0xf8] sm:$0xff]
      %6305 = vrot.lane.b32.xlu0 %v6273, 2
      %v6306 = vpop.permute.xlu0 %6305
      %6307 = vrot.lane.b32.xlu0 %v6274, 2
      %v6308 = vpop.permute.xlu0 %6307
      %6309 = vrot.lane.b32.xlu0 %v6275, 2
      %v6310 = vpop.permute.xlu0 %6309
      %6311 = vrot.lane.b32.xlu0 %v6276, 2
      %v6312 = vpop.permute.xlu0 %6311
      %6313 = vrot.lane.b32.xlu0 %v6277, 2
      %v6314 = vpop.permute.xlu0 %6313
      %6315 = vrot.lane.b32.xlu0 %v6278, 2
      %v6316 = vpop.permute.xlu0 %6315
      %6317 = vrot.lane.b32.xlu0 %v6279, 2
      %v6318 = vpop.permute.xlu0 %6317
      %6319 = vrot.lane.b32.xlu0 %v6280, 2
      %v6320 = vpop.permute.xlu0 %6319
      %6321 = vrot.lane.b32.xlu0 %v6281, 2
      %v6322 = vpop.permute.xlu0 %6321
      %6323 = vrot.lane.b32.xlu0 %v6282, 2
      %v6324 = vpop.permute.xlu0 %6323
      %6325 = vrot.lane.b32.xlu0 %v6283, 2
      %v6326 = vpop.permute.xlu0 %6325
      %6327 = vrot.lane.b32.xlu0 %v6284, 2
      %v6328 = vpop.permute.xlu0 %6327
      %6329 = vrot.lane.b32.xlu0 %v6285, 2
      %v6330 = vpop.permute.xlu0 %6329
      %6331 = vrot.lane.b32.xlu0 %v6286, 2
      %v6332 = vpop.permute.xlu0 %6331
      %6333 = vrot.lane.b32.xlu0 %v6287, 2
      %v6334 = vpop.permute.xlu0 %6333
      %6335 = vrot.lane.b32.xlu0 %v6288, 2
      %v6336 = vpop.permute.xlu0 %6335
      %v6337 = vsel %vm597, %v6306, %v6308
      %v6338 = vsel %vm597, %v6310, %v6312
      %v6339 = vsel %vm597, %v6314, %v6316
      %v6340 = vsel %vm597, %v6318, %v6320
      %v6341 = vsel %vm597, %v6322, %v6324
      %v6342 = vsel %vm597, %v6326, %v6328
      %v6343 = vsel %vm597, %v6330, %v6332
      %v6344 = vsel %vm597, %v6334, %v6336
      %6361 = vst.msk [vmem:[#allocation2 + $0x110] sm:$0xff] %vm1212, %v6306
      %6362 = vst [vmem:[#allocation2 + $0x118] sm:$0xff] %v6337
      %6363 = vst.msk [vmem:[#allocation2 + $0x130] sm:$0xff] %vm1212, %v6310
      %6364 = vst [vmem:[#allocation2 + $0x138] sm:$0xff] %v6338
      %6365 = vst.msk [vmem:[#allocation2 + $0x150] sm:$0xff] %vm1212, %v6314
      %6366 = vst [vmem:[#allocation2 + $0x158] sm:$0xff] %v6339
      %6367 = vst.msk [vmem:[#allocation2 + $0x170] sm:$0xff] %vm1212, %v6318
      %6368 = vst [vmem:[#allocation2 + $0x178] sm:$0xff] %v6340
      %6369 = vst.msk [vmem:[#allocation2 + $0x190] sm:$0xff] %vm1212, %v6322
      %6370 = vst [vmem:[#allocation2 + $0x198] sm:$0xff] %v6341
      %6371 = vst.msk [vmem:[#allocation2 + $0x1b0] sm:$0xff] %vm1212, %v6326
      %6372 = vst [vmem:[#allocation2 + $0x1b8] sm:$0xff] %v6342
      %6373 = vst.msk [vmem:[#allocation2 + $0x1d0] sm:$0xff] %vm1212, %v6330
      %6374 = vst [vmem:[#allocation2 + $0x1d8] sm:$0xff] %v6343
      %6375 = vst.msk [vmem:[#allocation2 + $0x1f0] sm:$0xff] %vm1212, %v6334
      %6376 = vst [vmem:[#allocation2 + $0x1f8] sm:$0xff] %v6344
      %v6377 = vld [vmem:[#allocation3 + $0x10] sm:$0xff]
      %v6378 = vld [vmem:[#allocation3 + $0x18] sm:$0xff]
      %v6379 = vld [vmem:[#allocation3 + $0x30] sm:$0xff]
      %v6380 = vld [vmem:[#allocation3 + $0x38] sm:$0xff]
      %v6381 = vld [vmem:[#allocation3 + $0x50] sm:$0xff]
      %v6382 = vld [vmem:[#allocation3 + $0x58] sm:$0xff]
      %v6383 = vld [vmem:[#allocation3 + $0x70] sm:$0xff]
      %v6384 = vld [vmem:[#allocation3 + $0x78] sm:$0xff]
      %v6385 = vld [vmem:[#allocation3 + $0x90] sm:$0xff]
      %v6386 = vld [vmem:[#allocation3 + $0x98] sm:$0xff]
      %v6387 = vld [vmem:[#allocation3 + $0xb0] sm:$0xff]
      %v6388 = vld [vmem:[#allocation3 + $0xb8] sm:$0xff]
      %v6389 = vld [vmem:[#allocation3 + $0xd0] sm:$0xff]
      %v6390 = vld [vmem:[#allocation3 + $0xd8] sm:$0xff]
      %v6391 = vld [vmem:[#allocation3 + $0xf0] sm:$0xff]
      %v6392 = vld [vmem:[#allocation3 + $0xf8] sm:$0xff]
      %6393 = vst [vmem:[#allocation2 + $0x210] sm:$0xff] %v6377
      %6394 = vst [vmem:[#allocation2 + $0x218] sm:$0xff] %v6378
      %6395 = vst [vmem:[#allocation2 + $0x230] sm:$0xff] %v6379
      %6396 = vst [vmem:[#allocation2 + $0x238] sm:$0xff] %v6380
      %6397 = vst [vmem:[#allocation2 + $0x250] sm:$0xff] %v6381
      %6398 = vst [vmem:[#allocation2 + $0x258] sm:$0xff] %v6382
      %6399 = vst [vmem:[#allocation2 + $0x270] sm:$0xff] %v6383
      %6400 = vst [vmem:[#allocation2 + $0x278] sm:$0xff] %v6384
      %6401 = vst [vmem:[#allocation2 + $0x290] sm:$0xff] %v6385
      %6402 = vst [vmem:[#allocation2 + $0x298] sm:$0xff] %v6386
      %6403 = vst [vmem:[#allocation2 + $0x2b0] sm:$0xff] %v6387
      %6404 = vst [vmem:[#allocation2 + $0x2b8] sm:$0xff] %v6388
      %6405 = vst [vmem:[#allocation2 + $0x2d0] sm:$0xff] %v6389
      %6406 = vst [vmem:[#allocation2 + $0x2d8] sm:$0xff] %v6390
      %6407 = vst [vmem:[#allocation2 + $0x2f0] sm:$0xff] %v6391
      %6408 = vst [vmem:[#allocation2 + $0x2f8] sm:$0xff] %v6392
      %v6409 = vld [vmem:[#allocation3 + $0x10] sm:$0xff]
      %v6410 = vld [vmem:[#allocation3 + $0x18] sm:$0xff]
      %v6411 = vld [vmem:[#allocation3 + $0x30] sm:$0xff]
      %v6412 = vld [vmem:[#allocation3 + $0x38] sm:$0xff]
      %v6413 = vld [vmem:[#allocation3 + $0x50] sm:$0xff]
      %v6414 = vld [vmem:[#allocation3 + $0x58] sm:$0xff]
      %v6415 = vld [vmem:[#allocation3 + $0x70] sm:$0xff]
      %v6416 = vld [vmem:[#allocation3 + $0x78] sm:$0xff]
      %v6417 = vld [vmem:[#allocation3 + $0x90] sm:$0xff]
      %v6418 = vld [vmem:[#allocation3 + $0x98] sm:$0xff]
      %v6419 = vld [vmem:[#allocation3 + $0xb0] sm:$0xff]
      %v6420 = vld [vmem:[#allocation3 + $0xb8] sm:$0xff]
      %v6421 = vld [vmem:[#allocation3 + $0xd0] sm:$0xff]
      %v6422 = vld [vmem:[#allocation3 + $0xd8] sm:$0xff]
      %v6423 = vld [vmem:[#allocation3 + $0xf0] sm:$0xff]
      %v6424 = vld [vmem:[#allocation3 + $0xf8] sm:$0xff]
      %6441 = vrot.lane.b32.xlu0 %v6409, 126
      %v6442 = vpop.permute.xlu0 %6441
      %6443 = vrot.lane.b32.xlu0 %v6410, 126
      %v6444 = vpop.permute.xlu0 %6443
      %6445 = vrot.lane.b32.xlu0 %v6411, 126
      %v6446 = vpop.permute.xlu0 %6445
      %6447 = vrot.lane.b32.xlu0 %v6412, 126
      %v6448 = vpop.permute.xlu0 %6447
      %6449 = vrot.lane.b32.xlu0 %v6413, 126
      %v6450 = vpop.permute.xlu0 %6449
      %6451 = vrot.lane.b32.xlu0 %v6414, 126
      %v6452 = vpop.permute.xlu0 %6451
      %6453 = vrot.lane.b32.xlu0 %v6415, 126
      %v6454 = vpop.permute.xlu0 %6453
      %6455 = vrot.lane.b32.xlu0 %v6416, 126
      %v6456 = vpop.permute.xlu0 %6455
      %6457 = vrot.lane.b32.xlu0 %v6417, 126
      %v6458 = vpop.permute.xlu0 %6457
      %6459 = vrot.lane.b32.xlu0 %v6418, 126
      %v6460 = vpop.permute.xlu0 %6459
      %6461 = vrot.lane.b32.xlu0 %v6419, 126
      %v6462 = vpop.permute.xlu0 %6461
      %6463 = vrot.lane.b32.xlu0 %v6420, 126
      %v6464 = vpop.permute.xlu0 %6463
      %6465 = vrot.lane.b32.xlu0 %v6421, 126
      %v6466 = vpop.permute.xlu0 %6465
      %6467 = vrot.lane.b32.xlu0 %v6422, 126
      %v6468 = vpop.permute.xlu0 %6467
      %6469 = vrot.lane.b32.xlu0 %v6423, 126
      %v6470 = vpop.permute.xlu0 %6469
      %6471 = vrot.lane.b32.xlu0 %v6424, 126
      %v6472 = vpop.permute.xlu0 %6471
      %v6473 = vsel %vm2017, %v6442, %v6444
      %v6474 = vsel %vm2017, %v6446, %v6448
      %v6475 = vsel %vm2017, %v6450, %v6452
      %v6476 = vsel %vm2017, %v6454, %v6456
      %v6477 = vsel %vm2017, %v6458, %v6460
      %v6478 = vsel %vm2017, %v6462, %v6464
      %v6479 = vsel %vm2017, %v6466, %v6468
      %v6480 = vsel %vm2017, %v6470, %v6472
      %6497 = vst [vmem:[#allocation2 + $0x310] sm:$0xff] %v6473
      %6498 = vst.msk [vmem:[#allocation2 + $0x318] sm:$0xff] %vm2017, %v6444
      %6499 = vst [vmem:[#allocation2 + $0x330] sm:$0xff] %v6474
      %6500 = vst.msk [vmem:[#allocation2 + $0x338] sm:$0xff] %vm2017, %v6448
      %6501 = vst [vmem:[#allocation2 + $0x350] sm:$0xff] %v6475
      %6502 = vst.msk [vmem:[#allocation2 + $0x358] sm:$0xff] %vm2017, %v6452
      %6503 = vst [vmem:[#allocation2 + $0x370] sm:$0xff] %v6476
      %6504 = vst.msk [vmem:[#allocation2 + $0x378] sm:$0xff] %vm2017, %v6456
      %6505 = vst [vmem:[#allocation2 + $0x390] sm:$0xff] %v6477
      %6506 = vst.msk [vmem:[#allocation2 + $0x398] sm:$0xff] %vm2017, %v6460
      %6507 = vst [vmem:[#allocation2 + $0x3b0] sm:$0xff] %v6478
      %6508 = vst.msk [vmem:[#allocation2 + $0x3b8] sm:$0xff] %vm2017, %v6464
      %6509 = vst [vmem:[#allocation2 + $0x3d0] sm:$0xff] %v6479
      %6510 = vst.msk [vmem:[#allocation2 + $0x3d8] sm:$0xff] %vm2017, %v6468
      %6511 = vst [vmem:[#allocation2 + $0x3f0] sm:$0xff] %v6480
      %6512 = vst.msk [vmem:[#allocation2 + $0x3f8] sm:$0xff] %vm2017, %v6472
      %6521 = vrot.lane.b32.xlu0 %v6083, 126
      %v6522 = vpop.permute.xlu0 %6521
      %6523 = vrot.lane.b32.xlu0 %v6088, 126
      %v6524 = vpop.permute.xlu0 %6523
      %6525 = vrot.lane.b32.xlu0 %v6093, 126
      %v6526 = vpop.permute.xlu0 %6525
      %6527 = vrot.lane.b32.xlu0 %v6098, 126
      %v6528 = vpop.permute.xlu0 %6527
      %6529 = vrot.lane.b32.xlu0 %v6103, 126
      %v6530 = vpop.permute.xlu0 %6529
      %6531 = vrot.lane.b32.xlu0 %v6108, 126
      %v6532 = vpop.permute.xlu0 %6531
      %6533 = vrot.lane.b32.xlu0 %v6113, 126
      %v6534 = vpop.permute.xlu0 %6533
      %6535 = vrot.lane.b32.xlu0 %v6118, 126
      %v6536 = vpop.permute.xlu0 %6535
      %6545 = vst.msk [vmem:[#allocation2 + $0x318] sm:$0xff] %vm2146, %v6522
      %6546 = vst.msk [vmem:[#allocation2 + $0x338] sm:$0xff] %vm2146, %v6524
      %6547 = vst.msk [vmem:[#allocation2 + $0x358] sm:$0xff] %vm2146, %v6526
      %6548 = vst.msk [vmem:[#allocation2 + $0x378] sm:$0xff] %vm2146, %v6528
      %6549 = vst.msk [vmem:[#allocation2 + $0x398] sm:$0xff] %vm2146, %v6530
      %6550 = vst.msk [vmem:[#allocation2 + $0x3b8] sm:$0xff] %vm2146, %v6532
      %6551 = vst.msk [vmem:[#allocation2 + $0x3d8] sm:$0xff] %vm2146, %v6534
      %6552 = vst.msk [vmem:[#allocation2 + $0x3f8] sm:$0xff] %vm2146, %v6536
      %v6553 = vld [vmem:[#allocation3 + $0x10] sm:$0xff]
      %v6554 = vld [vmem:[#allocation3 + $0x18] sm:$0xff]
      %v6555 = vld [vmem:[#allocation3 + $0x30] sm:$0xff]
      %v6556 = vld [vmem:[#allocation3 + $0x38] sm:$0xff]
      %v6557 = vld [vmem:[#allocation3 + $0x50] sm:$0xff]
      %v6558 = vld [vmem:[#allocation3 + $0x58] sm:$0xff]
      %v6559 = vld [vmem:[#allocation3 + $0x70] sm:$0xff]
      %v6560 = vld [vmem:[#allocation3 + $0x78] sm:$0xff]
      %v6561 = vld [vmem:[#allocation3 + $0x90] sm:$0xff]
      %v6562 = vld [vmem:[#allocation3 + $0x98] sm:$0xff]
      %v6563 = vld [vmem:[#allocation3 + $0xb0] sm:$0xff]
      %v6564 = vld [vmem:[#allocation3 + $0xb8] sm:$0xff]
      %v6565 = vld [vmem:[#allocation3 + $0xd0] sm:$0xff]
      %v6566 = vld [vmem:[#allocation3 + $0xd8] sm:$0xff]
      %v6567 = vld [vmem:[#allocation3 + $0xf0] sm:$0xff]
      %v6568 = vld [vmem:[#allocation3 + $0xf8] sm:$0xff]
      %6585 = vrot.lane.b32.xlu0 %v6553, 124
      %v6586 = vpop.permute.xlu0 %6585
      %6587 = vrot.lane.b32.xlu0 %v6554, 124
      %v6588 = vpop.permute.xlu0 %6587
      %6589 = vrot.lane.b32.xlu0 %v6555, 124
      %v6590 = vpop.permute.xlu0 %6589
      %6591 = vrot.lane.b32.xlu0 %v6556, 124
      %v6592 = vpop.permute.xlu0 %6591
      %6593 = vrot.lane.b32.xlu0 %v6557, 124
      %v6594 = vpop.permute.xlu0 %6593
      %6595 = vrot.lane.b32.xlu0 %v6558, 124
      %v6596 = vpop.permute.xlu0 %6595
      %6597 = vrot.lane.b32.xlu0 %v6559, 124
      %v6598 = vpop.permute.xlu0 %6597
      %6599 = vrot.lane.b32.xlu0 %v6560, 124
      %v6600 = vpop.permute.xlu0 %6599
      %6601 = vrot.lane.b32.xlu0 %v6561, 124
      %v6602 = vpop.permute.xlu0 %6601
      %6603 = vrot.lane.b32.xlu0 %v6562, 124
      %v6604 = vpop.permute.xlu0 %6603
      %6605 = vrot.lane.b32.xlu0 %v6563, 124
      %v6606 = vpop.permute.xlu0 %6605
      %6607 = vrot.lane.b32.xlu0 %v6564, 124
      %v6608 = vpop.permute.xlu0 %6607
      %6609 = vrot.lane.b32.xlu0 %v6565, 124
      %v6610 = vpop.permute.xlu0 %6609
      %6611 = vrot.lane.b32.xlu0 %v6566, 124
      %v6612 = vpop.permute.xlu0 %6611
      %6613 = vrot.lane.b32.xlu0 %v6567, 124
      %v6614 = vpop.permute.xlu0 %6613
      %6615 = vrot.lane.b32.xlu0 %v6568, 124
      %v6616 = vpop.permute.xlu0 %6615
      %v6617 = vsel %vm5741, %v6586, %v6588
      %v6618 = vsel %vm5741, %v6590, %v6592
      %v6619 = vsel %vm5741, %v6594, %v6596
      %v6620 = vsel %vm5741, %v6598, %v6600
      %v6621 = vsel %vm5741, %v6602, %v6604
      %v6622 = vsel %vm5741, %v6606, %v6608
      %v6623 = vsel %vm5741, %v6610, %v6612
      %v6624 = vsel %vm5741, %v6614, %v6616
      %6641 = vst [vmem:[#allocation2 + $0x410] sm:$0xff] %v6617
      %6642 = vst.msk [vmem:[#allocation2 + $0x418] sm:$0xff] %vm5741, %v6588
      %6643 = vst [vmem:[#allocation2 + $0x430] sm:$0xff] %v6618
      %6644 = vst.msk [vmem:[#allocation2 + $0x438] sm:$0xff] %vm5741, %v6592
      %6645 = vst [vmem:[#allocation2 + $0x450] sm:$0xff] %v6619
      %6646 = vst.msk [vmem:[#allocation2 + $0x458] sm:$0xff] %vm5741, %v6596
      %6647 = vst [vmem:[#allocation2 + $0x470] sm:$0xff] %v6620
      %6648 = vst.msk [vmem:[#allocation2 + $0x478] sm:$0xff] %vm5741, %v6600
      %6649 = vst [vmem:[#allocation2 + $0x490] sm:$0xff] %v6621
      %6650 = vst.msk [vmem:[#allocation2 + $0x498] sm:$0xff] %vm5741, %v6604
      %6651 = vst [vmem:[#allocation2 + $0x4b0] sm:$0xff] %v6622
      %6652 = vst.msk [vmem:[#allocation2 + $0x4b8] sm:$0xff] %vm5741, %v6608
      %6653 = vst [vmem:[#allocation2 + $0x4d0] sm:$0xff] %v6623
      %6654 = vst.msk [vmem:[#allocation2 + $0x4d8] sm:$0xff] %vm5741, %v6612
      %6655 = vst [vmem:[#allocation2 + $0x4f0] sm:$0xff] %v6624
      %6656 = vst.msk [vmem:[#allocation2 + $0x4f8] sm:$0xff] %vm5741, %v6616
      %6657 = vrot.lane.b32.xlu0 %v6083, 124
      %v6658 = vpop.permute.xlu0 %6657
      %6659 = vrot.lane.b32.xlu0 %v6088, 124
      %v6660 = vpop.permute.xlu0 %6659
      %6661 = vrot.lane.b32.xlu0 %v6093, 124
      %v6662 = vpop.permute.xlu0 %6661
      %6663 = vrot.lane.b32.xlu0 %v6098, 124
      %v6664 = vpop.permute.xlu0 %6663
      %6665 = vrot.lane.b32.xlu0 %v6103, 124
      %v6666 = vpop.permute.xlu0 %6665
      %6667 = vrot.lane.b32.xlu0 %v6108, 124
      %v6668 = vpop.permute.xlu0 %6667
      %6669 = vrot.lane.b32.xlu0 %v6113, 124
      %v6670 = vpop.permute.xlu0 %6669
      %6671 = vrot.lane.b32.xlu0 %v6118, 124
      %v6672 = vpop.permute.xlu0 %6671
      %6681 = vst.msk [vmem:[#allocation2 + $0x418] sm:$0xff] %vm5806, %v6658
      %6682 = vst.msk [vmem:[#allocation2 + $0x438] sm:$0xff] %vm5806, %v6660
      %6683 = vst.msk [vmem:[#allocation2 + $0x458] sm:$0xff] %vm5806, %v6662
      %6684 = vst.msk [vmem:[#allocation2 + $0x478] sm:$0xff] %vm5806, %v6664
      %6685 = vst.msk [vmem:[#allocation2 + $0x498] sm:$0xff] %vm5806, %v6666
      %6686 = vst.msk [vmem:[#allocation2 + $0x4b8] sm:$0xff] %vm5806, %v6668
      %6687 = vst.msk [vmem:[#allocation2 + $0x4d8] sm:$0xff] %vm5806, %v6670
      %6688 = vst.msk [vmem:[#allocation2 + $0x4f8] sm:$0xff] %vm5806, %v6672
      %v6689 = vld [vmem:[#allocation2] sm:$0xff]
      %v6690 = vld [vmem:[#allocation2 + $0x8] sm:$0xff]
      %v6691 = vld [vmem:[#allocation2 + $0x10] sm:$0xff]
      %v6692 = vld [vmem:[#allocation2 + $0x18] sm:$0xff]
      %v6693 = vld [vmem:[#allocation2 + $0x20] sm:$0xff]
      %v6694 = vld [vmem:[#allocation2 + $0x28] sm:$0xff]
      %v6695 = vld [vmem:[#allocation2 + $0x30] sm:$0xff]
      %v6696 = vld [vmem:[#allocation2 + $0x38] sm:$0xff]
      %v6697 = vld [vmem:[#allocation2 + $0x40] sm:$0xff]
      %v6698 = vld [vmem:[#allocation2 + $0x48] sm:$0xff]
      %v6699 = vld [vmem:[#allocation2 + $0x50] sm:$0xff]
      %v6700 = vld [vmem:[#allocation2 + $0x58] sm:$0xff]
      %v6701 = vld [vmem:[#allocation2 + $0x60] sm:$0xff]
      %v6702 = vld [vmem:[#allocation2 + $0x68] sm:$0xff]
      %v6703 = vld [vmem:[#allocation2 + $0x70] sm:$0xff]
      %v6704 = vld [vmem:[#allocation2 + $0x78] sm:$0xff]
      %v6705 = vld [vmem:[#allocation2 + $0x80] sm:$0xff]
      %v6706 = vld [vmem:[#allocation2 + $0x88] sm:$0xff]
      %v6707 = vld [vmem:[#allocation2 + $0x90] sm:$0xff]
      %v6708 = vld [vmem:[#allocation2 + $0x98] sm:$0xff]
      %v6709 = vld [vmem:[#allocation2 + $0xa0] sm:$0xff]
      %v6710 = vld [vmem:[#allocation2 + $0xa8] sm:$0xff]
      %v6711 = vld [vmem:[#allocation2 + $0xb0] sm:$0xff]
      %v6712 = vld [vmem:[#allocation2 + $0xb8] sm:$0xff]
      %v6713 = vld [vmem:[#allocation2 + $0xc0] sm:$0xff]
      %v6714 = vld [vmem:[#allocation2 + $0xc8] sm:$0xff]
      %v6715 = vld [vmem:[#allocation2 + $0xd0] sm:$0xff]
      %v6716 = vld [vmem:[#allocation2 + $0xd8] sm:$0xff]
      %v6717 = vld [vmem:[#allocation2 + $0xe0] sm:$0xff]
      %v6718 = vld [vmem:[#allocation2 + $0xe8] sm:$0xff]
      %v6719 = vld [vmem:[#allocation2 + $0xf0] sm:$0xff]
      %v6720 = vld [vmem:[#allocation2 + $0xf8] sm:$0xff]
      %v6721 = vld [vmem:[#allocation2 + $0x100] sm:$0xff]
      %v6722 = vld [vmem:[#allocation2 + $0x108] sm:$0xff]
      %v6723 = vld [vmem:[#allocation2 + $0x110] sm:$0xff]
      %v6724 = vld [vmem:[#allocation2 + $0x118] sm:$0xff]
      %v6725 = vld [vmem:[#allocation2 + $0x120] sm:$0xff]
      %v6726 = vld [vmem:[#allocation2 + $0x128] sm:$0xff]
      %v6727 = vld [vmem:[#allocation2 + $0x130] sm:$0xff]
      %v6728 = vld [vmem:[#allocation2 + $0x138] sm:$0xff]
      %v6729 = vld [vmem:[#allocation2 + $0x140] sm:$0xff]
      %v6730 = vld [vmem:[#allocation2 + $0x148] sm:$0xff]
      %v6731 = vld [vmem:[#allocation2 + $0x150] sm:$0xff]
      %v6732 = vld [vmem:[#allocation2 + $0x158] sm:$0xff]
      %v6733 = vld [vmem:[#allocation2 + $0x160] sm:$0xff]
      %v6734 = vld [vmem:[#allocation2 + $0x168] sm:$0xff]
      %v6735 = vld [vmem:[#allocation2 + $0x170] sm:$0xff]
      %v6736 = vld [vmem:[#allocation2 + $0x178] sm:$0xff]
      %v6737 = vld [vmem:[#allocation2 + $0x180] sm:$0xff]
      %v6738 = vld [vmem:[#allocation2 + $0x188] sm:$0xff]
      %v6739 = vld [vmem:[#allocation2 + $0x190] sm:$0xff]
      %v6740 = vld [vmem:[#allocation2 + $0x198] sm:$0xff]
      %v6741 = vld [vmem:[#allocation2 + $0x1a0] sm:$0xff]
      %v6742 = vld [vmem:[#allocation2 + $0x1a8] sm:$0xff]
      %v6743 = vld [vmem:[#allocation2 + $0x1b0] sm:$0xff]
      %v6744 = vld [vmem:[#allocation2 + $0x1b8] sm:$0xff]
      %v6745 = vld [vmem:[#allocation2 + $0x1c0] sm:$0xff]
      %v6746 = vld [vmem:[#allocation2 + $0x1c8] sm:$0xff]
      %v6747 = vld [vmem:[#allocation2 + $0x1d0] sm:$0xff]
      %v6748 = vld [vmem:[#allocation2 + $0x1d8] sm:$0xff]
      %v6749 = vld [vmem:[#allocation2 + $0x1e0] sm:$0xff]
      %v6750 = vld [vmem:[#allocation2 + $0x1e8] sm:$0xff]
      %v6751 = vld [vmem:[#allocation2 + $0x1f0] sm:$0xff]
      %v6752 = vld [vmem:[#allocation2 + $0x1f8] sm:$0xff]
      %v6753 = vld [vmem:[#allocation2 + $0x200] sm:$0xff]
      %v6754 = vld [vmem:[#allocation2 + $0x208] sm:$0xff]
      %v6755 = vld [vmem:[#allocation2 + $0x210] sm:$0xff]
      %v6756 = vld [vmem:[#allocation2 + $0x218] sm:$0xff]
      %v6757 = vld [vmem:[#allocation2 + $0x220] sm:$0xff]
      %v6758 = vld [vmem:[#allocation2 + $0x228] sm:$0xff]
      %v6759 = vld [vmem:[#allocation2 + $0x230] sm:$0xff]
      %v6760 = vld [vmem:[#allocation2 + $0x238] sm:$0xff]
      %v6761 = vld [vmem:[#allocation2 + $0x240] sm:$0xff]
      %v6762 = vld [vmem:[#allocation2 + $0x248] sm:$0xff]
      %v6763 = vld [vmem:[#allocation2 + $0x250] sm:$0xff]
      %v6764 = vld [vmem:[#allocation2 + $0x258] sm:$0xff]
      %v6765 = vld [vmem:[#allocation2 + $0x260] sm:$0xff]
      %v6766 = vld [vmem:[#allocation2 + $0x268] sm:$0xff]
      %v6767 = vld [vmem:[#allocation2 + $0x270] sm:$0xff]
      %v6768 = vld [vmem:[#allocation2 + $0x278] sm:$0xff]
      %v6769 = vld [vmem:[#allocation2 + $0x280] sm:$0xff]
      %v6770 = vld [vmem:[#allocation2 + $0x288] sm:$0xff]
      %v6771 = vld [vmem:[#allocation2 + $0x290] sm:$0xff]
      %v6772 = vld [vmem:[#allocation2 + $0x298] sm:$0xff]
      %v6773 = vld [vmem:[#allocation2 + $0x2a0] sm:$0xff]
      %v6774 = vld [vmem:[#allocation2 + $0x2a8] sm:$0xff]
      %v6775 = vld [vmem:[#allocation2 + $0x2b0] sm:$0xff]
      %v6776 = vld [vmem:[#allocation2 + $0x2b8] sm:$0xff]
      %v6777 = vld [vmem:[#allocation2 + $0x2c0] sm:$0xff]
      %v6778 = vld [vmem:[#allocation2 + $0x2c8] sm:$0xff]
      %v6779 = vld [vmem:[#allocation2 + $0x2d0] sm:$0xff]
      %v6780 = vld [vmem:[#allocation2 + $0x2d8] sm:$0xff]
      %v6781 = vld [vmem:[#allocation2 + $0x2e0] sm:$0xff]
      %v6782 = vld [vmem:[#allocation2 + $0x2e8] sm:$0xff]
      %v6783 = vld [vmem:[#allocation2 + $0x2f0] sm:$0xff]
      %v6784 = vld [vmem:[#allocation2 + $0x2f8] sm:$0xff]
      %v6785 = vld [vmem:[#allocation2 + $0x300] sm:$0xff]
      %v6786 = vld [vmem:[#allocation2 + $0x308] sm:$0xff]
      %v6787 = vld [vmem:[#allocation2 + $0x310] sm:$0xff]
      %v6788 = vld [vmem:[#allocation2 + $0x318] sm:$0xff]
      %v6789 = vld [vmem:[#allocation2 + $0x320] sm:$0xff]
      %v6790 = vld [vmem:[#allocation2 + $0x328] sm:$0xff]
      %v6791 = vld [vmem:[#allocation2 + $0x330] sm:$0xff]
      %v6792 = vld [vmem:[#allocation2 + $0x338] sm:$0xff]
      %v6793 = vld [vmem:[#allocation2 + $0x340] sm:$0xff]
      %v6794 = vld [vmem:[#allocation2 + $0x348] sm:$0xff]
      %v6795 = vld [vmem:[#allocation2 + $0x350] sm:$0xff]
      %v6796 = vld [vmem:[#allocation2 + $0x358] sm:$0xff]
      %v6797 = vld [vmem:[#allocation2 + $0x360] sm:$0xff]
      %v6798 = vld [vmem:[#allocation2 + $0x368] sm:$0xff]
      %v6799 = vld [vmem:[#allocation2 + $0x370] sm:$0xff]
      %v6800 = vld [vmem:[#allocation2 + $0x378] sm:$0xff]
      %v6801 = vld [vmem:[#allocation2 + $0x380] sm:$0xff]
      %v6802 = vld [vmem:[#allocation2 + $0x388] sm:$0xff]
      %v6803 = vld [vmem:[#allocation2 + $0x390] sm:$0xff]
      %v6804 = vld [vmem:[#allocation2 + $0x398] sm:$0xff]
      %v6805 = vld [vmem:[#allocation2 + $0x3a0] sm:$0xff]
      %v6806 = vld [vmem:[#allocation2 + $0x3a8] sm:$0xff]
      %v6807 = vld [vmem:[#allocation2 + $0x3b0] sm:$0xff]
      %v6808 = vld [vmem:[#allocation2 + $0x3b8] sm:$0xff]
      %v6809 = vld [vmem:[#allocation2 + $0x3c0] sm:$0xff]
      %v6810 = vld [vmem:[#allocation2 + $0x3c8] sm:$0xff]
      %v6811 = vld [vmem:[#allocation2 + $0x3d0] sm:$0xff]
      %v6812 = vld [vmem:[#allocation2 + $0x3d8] sm:$0xff]
      %v6813 = vld [vmem:[#allocation2 + $0x3e0] sm:$0xff]
      %v6814 = vld [vmem:[#allocation2 + $0x3e8] sm:$0xff]
      %v6815 = vld [vmem:[#allocation2 + $0x3f0] sm:$0xff]
      %v6816 = vld [vmem:[#allocation2 + $0x3f8] sm:$0xff]
      %v6817 = vld [vmem:[#allocation2 + $0x400] sm:$0xff]
      %v6818 = vld [vmem:[#allocation2 + $0x408] sm:$0xff]
      %v6819 = vld [vmem:[#allocation2 + $0x410] sm:$0xff]
      %v6820 = vld [vmem:[#allocation2 + $0x418] sm:$0xff]
      %v6821 = vld [vmem:[#allocation2 + $0x420] sm:$0xff]
      %v6822 = vld [vmem:[#allocation2 + $0x428] sm:$0xff]
      %v6823 = vld [vmem:[#allocation2 + $0x430] sm:$0xff]
      %v6824 = vld [vmem:[#allocation2 + $0x438] sm:$0xff]
      %v6825 = vld [vmem:[#allocation2 + $0x440] sm:$0xff]
      %v6826 = vld [vmem:[#allocation2 + $0x448] sm:$0xff]
      %v6827 = vld [vmem:[#allocation2 + $0x450] sm:$0xff]
      %v6828 = vld [vmem:[#allocation2 + $0x458] sm:$0xff]
      %v6829 = vld [vmem:[#allocation2 + $0x460] sm:$0xff]
      %v6830 = vld [vmem:[#allocation2 + $0x468] sm:$0xff]
      %v6831 = vld [vmem:[#allocation2 + $0x470] sm:$0xff]
      %v6832 = vld [vmem:[#allocation2 + $0x478] sm:$0xff]
      %v6833 = vld [vmem:[#allocation2 + $0x480] sm:$0xff]
      %v6834 = vld [vmem:[#allocation2 + $0x488] sm:$0xff]
      %v6835 = vld [vmem:[#allocation2 + $0x490] sm:$0xff]
      %v6836 = vld [vmem:[#allocation2 + $0x498] sm:$0xff]
      %v6837 = vld [vmem:[#allocation2 + $0x4a0] sm:$0xff]
      %v6838 = vld [vmem:[#allocation2 + $0x4a8] sm:$0xff]
      %v6839 = vld [vmem:[#allocation2 + $0x4b0] sm:$0xff]
      %v6840 = vld [vmem:[#allocation2 + $0x4b8] sm:$0xff]
      %v6841 = vld [vmem:[#allocation2 + $0x4c0] sm:$0xff]
      %v6842 = vld [vmem:[#allocation2 + $0x4c8] sm:$0xff]
      %v6843 = vld [vmem:[#allocation2 + $0x4d0] sm:$0xff]
      %v6844 = vld [vmem:[#allocation2 + $0x4d8] sm:$0xff]
      %v6845 = vld [vmem:[#allocation2 + $0x4e0] sm:$0xff]
      %v6846 = vld [vmem:[#allocation2 + $0x4e8] sm:$0xff]
      %v6847 = vld [vmem:[#allocation2 + $0x4f0] sm:$0xff]
      %v6848 = vld [vmem:[#allocation2 + $0x4f8] sm:$0xff]
      %v6849 = vld [vmem:[%s8] sm:$0xff]
      %v6850 = vld [vmem:[%s8 + $0x8] sm:$0xff]
      %v6851 = vld [vmem:[%s8 + $0x10] sm:$0xff]
      %v6852 = vld [vmem:[%s8 + $0x18] sm:$0xff]
      %v6853 = vld [vmem:[%s8 + $0x20] sm:$0xff]
      %v6854 = vld [vmem:[%s8 + $0x28] sm:$0xff]
      %v6855 = vld [vmem:[%s8 + $0x30] sm:$0xff]
      %v6856 = vld [vmem:[%s8 + $0x38] sm:$0xff]
      %v6857 = vld [vmem:[%s8 + $0x40] sm:$0xff]
      %v6858 = vld [vmem:[%s8 + $0x48] sm:$0xff]
      %v6859 = vld [vmem:[%s8 + $0x50] sm:$0xff]
      %v6860 = vld [vmem:[%s8 + $0x58] sm:$0xff]
      %v6861 = vld [vmem:[%s9] sm:$0xff]
      %v6862 = vld [vmem:[%s9 + $0x8] sm:$0xff]
      %v6863 = vld [vmem:[%s9 + $0x10] sm:$0xff]
      %v6864 = vld [vmem:[%s9 + $0x18] sm:$0xff]
      %6866 = vset.pattern.permute.xlu0 0
      %6867 = vperm.xlu0 %6866, %v6861
      %v6868 = vpop.permute.xlu0 %6867
      %6871 = vset.pattern.permute.xlu0 0
      %6872 = vperm.xlu0 %6871, %v6862
      %v6873 = vpop.permute.xlu0 %6872
      %6876 = vset.pattern.permute.xlu0 0
      %6877 = vperm.xlu0 %6876, %v6863
      %v6878 = vpop.permute.xlu0 %6877
      %6881 = vset.pattern.permute.xlu0 0
      %6882 = vperm.xlu0 %6881, %v6864
      %v6883 = vpop.permute.xlu0 %6882
      %vm6885 = vcmask 523264
      %v6887 = vsel %vm6885, %v6851, 0
      %v6890 = vsel %vm6885, %v6854, 0
      %v6893 = vsel %vm6885, %v6857, 0
      %v6896 = vsel %vm6885, %v6860, 0
      %6898 = vmatprep.subr.mxu0 %v6750
      %6899 = vmatpush1.msra.mxu0 %v6749
      %6900 = vmatprep.subr.mxu0 %v6746
      %6901 = vmatpush1.msra.mxu0 %v6745
      %6902 = vmatprep.subr.mxu0 %v6742
      %6903 = vmatpush1.msra.mxu0 %v6741
      %6904 = vmatprep.subr.mxu0 %v6738
      %6905 = vmatpush1.msra.mxu0 %v6737
      %6906 = vmatprep.subr.mxu0 %v6734
      %6907 = vmatpush1.msra.mxu0 %v6733
      %6908 = vmatprep.subr.mxu0 %v6730
      %6909 = vmatpush1.msra.mxu0 %v6729
      %6910 = vmatprep.subr.mxu0 %v6726
      %6911 = vmatpush1.msra.mxu0 %v6725
      %6912 = vmatprep.subr.mxu0 %v6722
      %6913 = vmatpush1.msra.mxu0 %v6721
      %6914 = vmatprep.subr.mxu0 %v6718
      %6915 = vmatpush1.msra.mxu0 %v6717
      %6916 = vmatprep.subr.mxu0 %v6714
      %6917 = vmatpush1.msra.mxu0 %v6713
      %6918 = vmatprep.subr.mxu0 %v6710
      %6919 = vmatpush1.msra.mxu0 %v6709
      %6920 = vmatprep.subr.mxu0 %v6706
      %6921 = vmatpush1.msra.mxu0 %v6705
      %6922 = vmatprep.subr.mxu0 %v6702
      %6923 = vmatpush1.msra.mxu0 %v6701
      %6924 = vmatprep.subr.mxu0 %v6698
      %6925 = vmatpush1.msra.mxu0 %v6697
      %6926 = vmatprep.subr.mxu0 %v6694
      %6927 = vmatpush1.msra.mxu0 %v6693
      %6928 = vmatprep.subr.mxu0 %v6690
      %6929 = vmatpush1.msra.mxu0 %v6689
      %6930 = vmatprep.subr.mxu0 %v6814
      %6931 = vmatpush2.msra.mxu0 %v6813
      %6932 = vmatprep.subr.mxu0 %v6810
      %6933 = vmatpush2.msra.mxu0 %v6809
      %6934 = vmatprep.subr.mxu0 %v6806
      %6935 = vmatpush2.msra.mxu0 %v6805
      %6936 = vmatprep.subr.mxu0 %v6802
      %6937 = vmatpush2.msra.mxu0 %v6801
      %6938 = vmatprep.subr.mxu0 %v6798
      %6939 = vmatpush2.msra.mxu0 %v6797
      %6940 = vmatprep.subr.mxu0 %v6794
      %6941 = vmatpush2.msra.mxu0 %v6793
      %6942 = vmatprep.subr.mxu0 %v6790
      %6943 = vmatpush2.msra.mxu0 %v6789
      %6944 = vmatprep.subr.mxu0 %v6786
      %6945 = vmatpush2.msra.mxu0 %v6785
      %6946 = vmatprep.subr.mxu0 %v6782
      %6947 = vmatpush2.msra.mxu0 %v6781
      %6948 = vmatprep.subr.mxu0 %v6778
      %6949 = vmatpush2.msra.mxu0 %v6777
      %6950 = vmatprep.subr.mxu0 %v6774
      %6951 = vmatpush2.msra.mxu0 %v6773
      %6952 = vmatprep.subr.mxu0 %v6770
      %6953 = vmatpush2.msra.mxu0 %v6769
      %6954 = vmatprep.subr.mxu0 %v6766
      %6955 = vmatpush2.msra.mxu0 %v6765
      %6956 = vmatprep.subr.mxu0 %v6762
      %6957 = vmatpush2.msra.mxu0 %v6761
      %6958 = vmatprep.subr.mxu0 %v6758
      %6959 = vmatpush2.msra.mxu0 %v6757
      %6960 = vmatprep.subr.mxu0 %v6754
      %6961 = vmatpush2.msra.mxu0 %v6753
      %6962 = vmatprep.mubr.f32.mxu0 %v6850
      %6963 = vmatmul.mubr.f32.gmra.mxu0 %v6849
      %v6964 = vpop.f32.mrf.mxu0
      %v6965 = vadd.f32 %v6868, %v6964
      %v6966 = vpop.f32.mrf.mxu0
      %v6967 = vadd.f32 %v6868, %v6966
      %6968 = vmatprep.mubr.f32.mxu0 %v6853
      %6969 = vmatmul.mubr.f32.gmra.mxu0 %v6852
      %v6970 = vpop.f32.mrf.mxu0
      %v6971 = vadd.f32 %v6873, %v6970
      %v6972 = vpop.f32.mrf.mxu0
      %v6973 = vadd.f32 %v6873, %v6972
      %6974 = vmatprep.mubr.f32.mxu0 %v6856
      %6975 = vmatmul.mubr.f32.gmra.mxu0 %v6855
      %v6976 = vpop.f32.mrf.mxu0
      %v6977 = vadd.f32 %v6878, %v6976
      %v6978 = vpop.f32.mrf.mxu0
      %v6979 = vadd.f32 %v6878, %v6978
      %6980 = vmatprep.mubr.f32.mxu0 %v6859
      %6981 = vmatmul.mubr.f32.gmra.mxu0 %v6858
      %v6982 = vpop.f32.mrf.mxu0
      %v6983 = vadd.f32 %v6883, %v6982
      %v6984 = vpop.f32.mrf.mxu0
      %v6985 = vadd.f32 %v6883, %v6984
      %6986 = vdwg.mxu0
      %6987 = vmatprep.subr.mxu0 0.0
      %6988 = vmatpush1.msra.mxu0 0.0
      %6989 = vmatprep.subr.mxu0 0.0
      %6990 = vmatpush1.msra.mxu0 0.0
      %6991 = vmatprep.subr.mxu0 0.0
      %6992 = vmatpush1.msra.mxu0 0.0
      %6993 = vmatprep.subr.mxu0 0.0
      %6994 = vmatpush1.msra.mxu0 0.0
      %6995 = vmatprep.subr.mxu0 0.0
      %6996 = vmatpush1.msra.mxu0 0.0
      %6997 = vmatprep.subr.mxu0 0.0
      %6998 = vmatpush1.msra.mxu0 0.0
      %6999 = vmatprep.subr.mxu0 0.0
      %7000 = vmatpush1.msra.mxu0 0.0
      %7001 = vmatprep.subr.mxu0 0.0
      %7002 = vmatpush1.msra.mxu0 0.0
      %7003 = vmatprep.subr.mxu0 %v6846
      %7004 = vmatpush1.msra.mxu0 %v6845
      %7005 = vmatprep.subr.mxu0 %v6842
      %7006 = vmatpush1.msra.mxu0 %v6841
      %7007 = vmatprep.subr.mxu0 %v6838
      %7008 = vmatpush1.msra.mxu0 %v6837
      %7009 = vmatprep.subr.mxu0 %v6834
      %7010 = vmatpush1.msra.mxu0 %v6833
      %7011 = vmatprep.subr.mxu0 %v6830
      %7012 = vmatpush1.msra.mxu0 %v6829
      %7013 = vmatprep.subr.mxu0 %v6826
      %7014 = vmatpush1.msra.mxu0 %v6825
      %7015 = vmatprep.subr.mxu0 %v6822
      %7016 = vmatpush1.msra.mxu0 %v6821
      %7017 = vmatprep.subr.mxu0 %v6818
      %7018 = vmatpush1.msra.mxu0 %v6817
      %7019 = vmatprep.subr.mxu0 0.0
      %7020 = vmatpush2.msra.mxu0 0.0
      %7021 = vmatprep.subr.mxu0 0.0
      %7022 = vmatpush2.msra.mxu0 0.0
      %7023 = vmatprep.subr.mxu0 0.0
      %7024 = vmatpush2.msra.mxu0 0.0
      %7025 = vmatprep.subr.mxu0 0.0
      %7026 = vmatpush2.msra.mxu0 0.0
      %7027 = vmatprep.subr.mxu0 0.0
      %7028 = vmatpush2.msra.mxu0 0.0
      %7029 = vmatprep.subr.mxu0 0.0
      %7030 = vmatpush2.msra.mxu0 0.0
      %7031 = vmatprep.subr.mxu0 0.0
      %7032 = vmatpush2.msra.mxu0 0.0
      %7033 = vmatprep.subr.mxu0 0.0
      %7034 = vmatpush2.msra.mxu0 0.0
      %7035 = vmatprep.subr.mxu0 0.0
      %7036 = vmatpush2.msra.mxu0 0.0
      %7037 = vmatprep.subr.mxu0 0.0
      %7038 = vmatpush2.msra.mxu0 0.0
      %7039 = vmatprep.subr.mxu0 0.0
      %7040 = vmatpush2.msra.mxu0 0.0
      %7041 = vmatprep.subr.mxu0 0.0
      %7042 = vmatpush2.msra.mxu0 0.0
      %7043 = vmatprep.subr.mxu0 0.0
      %7044 = vmatpush2.msra.mxu0 0.0
      %7045 = vmatprep.subr.mxu0 0.0
      %7046 = vmatpush2.msra.mxu0 0.0
      %7047 = vmatprep.subr.mxu0 0.0
      %7048 = vmatpush2.msra.mxu0 0.0
      %7049 = vmatprep.subr.mxu0 0.0
      %7050 = vmatpush2.msra.mxu0 0.0
      %7051 = vmatprep.mubr.f32.mxu0 0.0
      %7052 = vmatmul.mubr.f32.gmra.mxu0 %v6887
      %v7053 = vpop.f32.mrf.mxu0
      %v7054 = vadd.f32 %v6965, %v7053
      %v7055 = vpop.f32.mrf.mxu0
      %v7056 = vadd.f32 %v6967, %v7055
      %7057 = vmatprep.mubr.f32.mxu0 0.0
      %7058 = vmatmul.mubr.f32.gmra.mxu0 %v6890
      %v7059 = vpop.f32.mrf.mxu0
      %v7060 = vadd.f32 %v6971, %v7059
      %v7061 = vpop.f32.mrf.mxu0
      %v7062 = vadd.f32 %v6973, %v7061
      %7063 = vmatprep.mubr.f32.mxu0 0.0
      %7064 = vmatmul.mubr.f32.gmra.mxu0 %v6893
      %v7065 = vpop.f32.mrf.mxu0
      %v7066 = vadd.f32 %v6977, %v7065
      %v7067 = vpop.f32.mrf.mxu0
      %v7068 = vadd.f32 %v6979, %v7067
      %7069 = vmatprep.mubr.f32.mxu0 0.0
      %7070 = vmatmul.mubr.f32.gmra.mxu0 %v6896
      %v7071 = vpop.f32.mrf.mxu0
      %v7072 = vadd.f32 %v6983, %v7071
      %v7073 = vpop.f32.mrf.mxu0
      %v7074 = vadd.f32 %v6985, %v7073
      %7075 = vdwg.mxu0
      %7076 = vmatprep.subr.mxu0 %v6752
      %7077 = vmatpush1.msra.mxu0 %v6751
      %7078 = vmatprep.subr.mxu0 %v6748
      %7079 = vmatpush1.msra.mxu0 %v6747
      %7080 = vmatprep.subr.mxu0 %v6744
      %7081 = vmatpush1.msra.mxu0 %v6743
      %7082 = vmatprep.subr.mxu0 %v6740
      %7083 = vmatpush1.msra.mxu0 %v6739
      %7084 = vmatprep.subr.mxu0 %v6736
      %7085 = vmatpush1.msra.mxu0 %v6735
      %7086 = vmatprep.subr.mxu0 %v6732
      %7087 = vmatpush1.msra.mxu0 %v6731
      %7088 = vmatprep.subr.mxu0 %v6728
      %7089 = vmatpush1.msra.mxu0 %v6727
      %7090 = vmatprep.subr.mxu0 %v6724
      %7091 = vmatpush1.msra.mxu0 %v6723
      %7092 = vmatprep.subr.mxu0 %v6720
      %7093 = vmatpush1.msra.mxu0 %v6719
      %7094 = vmatprep.subr.mxu0 %v6716
      %7095 = vmatpush1.msra.mxu0 %v6715
      %7096 = vmatprep.subr.mxu0 %v6712
      %7097 = vmatpush1.msra.mxu0 %v6711
      %7098 = vmatprep.subr.mxu0 %v6708
      %7099 = vmatpush1.msra.mxu0 %v6707
      %7100 = vmatprep.subr.mxu0 %v6704
      %7101 = vmatpush1.msra.mxu0 %v6703
      %7102 = vmatprep.subr.mxu0 %v6700
      %7103 = vmatpush1.msra.mxu0 %v6699
      %7104 = vmatprep.subr.mxu0 %v6696
      %7105 = vmatpush1.msra.mxu0 %v6695
      %7106 = vmatprep.subr.mxu0 %v6692
      %7107 = vmatpush1.msra.mxu0 %v6691
      %7108 = vmatprep.subr.mxu0 %v6816
      %7109 = vmatpush2.msra.mxu0 %v6815
      %7110 = vmatprep.subr.mxu0 %v6812
      %7111 = vmatpush2.msra.mxu0 %v6811
      %7112 = vmatprep.subr.mxu0 %v6808
      %7113 = vmatpush2.msra.mxu0 %v6807
      %7114 = vmatprep.subr.mxu0 %v6804
      %7115 = vmatpush2.msra.mxu0 %v6803
      %7116 = vmatprep.subr.mxu0 %v6800
      %7117 = vmatpush2.msra.mxu0 %v6799
      %7118 = vmatprep.subr.mxu0 %v6796
      %7119 = vmatpush2.msra.mxu0 %v6795
      %7120 = vmatprep.subr.mxu0 %v6792
      %7121 = vmatpush2.msra.mxu0 %v6791
      %7122 = vmatprep.subr.mxu0 %v6788
      %7123 = vmatpush2.msra.mxu0 %v6787
      %7124 = vmatprep.subr.mxu0 %v6784
      %7125 = vmatpush2.msra.mxu0 %v6783
      %7126 = vmatprep.subr.mxu0 %v6780
      %7127 = vmatpush2.msra.mxu0 %v6779
      %7128 = vmatprep.subr.mxu0 %v6776
      %7129 = vmatpush2.msra.mxu0 %v6775
      %7130 = vmatprep.subr.mxu0 %v6772
      %7131 = vmatpush2.msra.mxu0 %v6771
      %7132 = vmatprep.subr.mxu0 %v6768
      %7133 = vmatpush2.msra.mxu0 %v6767
      %7134 = vmatprep.subr.mxu0 %v6764
      %7135 = vmatpush2.msra.mxu0 %v6763
      %7136 = vmatprep.subr.mxu0 %v6760
      %7137 = vmatpush2.msra.mxu0 %v6759
      %7138 = vmatprep.subr.mxu0 %v6756
      %7139 = vmatpush2.msra.mxu0 %v6755
      %7140 = vmatprep.mubr.f32.mxu0 %v6850
      %7141 = vmatmul.mubr.f32.gmra.mxu0 %v6849
      %v7142 = vpop.f32.mrf.mxu0
      %v7143 = vadd.f32 %v6868, %v7142
      %v7144 = vpop.f32.mrf.mxu0
      %v7145 = vadd.f32 %v6868, %v7144
      %7146 = vmatprep.mubr.f32.mxu0 %v6853
      %7147 = vmatmul.mubr.f32.gmra.mxu0 %v6852
      %v7148 = vpop.f32.mrf.mxu0
      %v7149 = vadd.f32 %v6873, %v7148
      %v7150 = vpop.f32.mrf.mxu0
      %v7151 = vadd.f32 %v6873, %v7150
      %7152 = vmatprep.mubr.f32.mxu0 %v6856
      %7153 = vmatmul.mubr.f32.gmra.mxu0 %v6855
      %v7154 = vpop.f32.mrf.mxu0
      %v7155 = vadd.f32 %v6878, %v7154
      %v7156 = vpop.f32.mrf.mxu0
      %v7157 = vadd.f32 %v6878, %v7156
      %7158 = vmatprep.mubr.f32.mxu0 %v6859
      %7159 = vmatmul.mubr.f32.gmra.mxu0 %v6858
      %v7160 = vpop.f32.mrf.mxu0
      %v7161 = vadd.f32 %v6883, %v7160
      %v7162 = vpop.f32.mrf.mxu0
      %v7163 = vadd.f32 %v6883, %v7162
      %7164 = vdwg.mxu0
      %7165 = vmatprep.subr.mxu0 0.0
      %7166 = vmatpush1.msra.mxu0 0.0
      %7167 = vmatprep.subr.mxu0 0.0
      %7168 = vmatpush1.msra.mxu0 0.0
      %7169 = vmatprep.subr.mxu0 0.0
      %7170 = vmatpush1.msra.mxu0 0.0
      %7171 = vmatprep.subr.mxu0 0.0
      %7172 = vmatpush1.msra.mxu0 0.0
      %7173 = vmatprep.subr.mxu0 0.0
      %7174 = vmatpush1.msra.mxu0 0.0
      %7175 = vmatprep.subr.mxu0 0.0
      %7176 = vmatpush1.msra.mxu0 0.0
      %7177 = vmatprep.subr.mxu0 0.0
      %7178 = vmatpush1.msra.mxu0 0.0
      %7179 = vmatprep.subr.mxu0 0.0
      %7180 = vmatpush1.msra.mxu0 0.0
      %7181 = vmatprep.subr.mxu0 %v6848
      %7182 = vmatpush1.msra.mxu0 %v6847
      %7183 = vmatprep.subr.mxu0 %v6844
      %7184 = vmatpush1.msra.mxu0 %v6843
      %7185 = vmatprep.subr.mxu0 %v6840
      %7186 = vmatpush1.msra.mxu0 %v6839
      %7187 = vmatprep.subr.mxu0 %v6836
      %7188 = vmatpush1.msra.mxu0 %v6835
      %7189 = vmatprep.subr.mxu0 %v6832
      %7190 = vmatpush1.msra.mxu0 %v6831
      %7191 = vmatprep.subr.mxu0 %v6828
      %7192 = vmatpush1.msra.mxu0 %v6827
      %7193 = vmatprep.subr.mxu0 %v6824
      %7194 = vmatpush1.msra.mxu0 %v6823
      %7195 = vmatprep.subr.mxu0 %v6820
      %7196 = vmatpush1.msra.mxu0 %v6819
      %7197 = vmatprep.subr.mxu0 0.0
      %7198 = vmatpush2.msra.mxu0 0.0
      %7199 = vmatprep.subr.mxu0 0.0
      %7200 = vmatpush2.msra.mxu0 0.0
      %7201 = vmatprep.subr.mxu0 0.0
      %7202 = vmatpush2.msra.mxu0 0.0
      %7203 = vmatprep.subr.mxu0 0.0
      %7204 = vmatpush2.msra.mxu0 0.0
      %7205 = vmatprep.subr.mxu0 0.0
      %7206 = vmatpush2.msra.mxu0 0.0
      %7207 = vmatprep.subr.mxu0 0.0
      %7208 = vmatpush2.msra.mxu0 0.0
      %7209 = vmatprep.subr.mxu0 0.0
      %7210 = vmatpush2.msra.mxu0 0.0
      %7211 = vmatprep.subr.mxu0 0.0
      %7212 = vmatpush2.msra.mxu0 0.0
      %7213 = vmatprep.subr.mxu0 0.0
      %7214 = vmatpush2.msra.mxu0 0.0
      %7215 = vmatprep.subr.mxu0 0.0
      %7216 = vmatpush2.msra.mxu0 0.0
      %7217 = vmatprep.subr.mxu0 0.0
      %7218 = vmatpush2.msra.mxu0 0.0
      %7219 = vmatprep.subr.mxu0 0.0
      %7220 = vmatpush2.msra.mxu0 0.0
      %7221 = vmatprep.subr.mxu0 0.0
      %7222 = vmatpush2.msra.mxu0 0.0
      %7223 = vmatprep.subr.mxu0 0.0
      %7224 = vmatpush2.msra.mxu0 0.0
      %7225 = vmatprep.subr.mxu0 0.0
      %7226 = vmatpush2.msra.mxu0 0.0
      %7227 = vmatprep.subr.mxu0 0.0
      %7228 = vmatpush2.msra.mxu0 0.0
      %7229 = vmatprep.mubr.f32.mxu0 0.0
      %7230 = vmatmul.mubr.f32.gmra.mxu0 %v6887
      %v7231 = vpop.f32.mrf.mxu0
      %v7232 = vadd.f32 %v7143, %v7231
      %v7233 = vpop.f32.mrf.mxu0
      %v7234 = vadd.f32 %v7145, %v7233
      %7235 = vmatprep.mubr.f32.mxu0 0.0
      %7236 = vmatmul.mubr.f32.gmra.mxu0 %v6890
      %v7237 = vpop.f32.mrf.mxu0
      %v7238 = vadd.f32 %v7149, %v7237
      %v7239 = vpop.f32.mrf.mxu0
      %v7240 = vadd.f32 %v7151, %v7239
      %7241 = vmatprep.mubr.f32.mxu0 0.0
      %7242 = vmatmul.mubr.f32.gmra.mxu0 %v6893
      %v7243 = vpop.f32.mrf.mxu0
      %v7244 = vadd.f32 %v7155, %v7243
      %v7245 = vpop.f32.mrf.mxu0
      %v7246 = vadd.f32 %v7157, %v7245
      %7247 = vmatprep.mubr.f32.mxu0 0.0
      %7248 = vmatmul.mubr.f32.gmra.mxu0 %v6896
      %v7249 = vpop.f32.mrf.mxu0
      %v7250 = vadd.f32 %v7161, %v7249
      %v7251 = vpop.f32.mrf.mxu0
      %v7252 = vadd.f32 %v7163, %v7251
      %7253 = vdwg.mxu0
      %v7254 = vmax.f32 %v7054, 0.0
      %v7255 = vmax.f32 %v7056, 0.0
      %v7256 = vmax.f32 %v7232, 0.0
      %v7257 = vmax.f32 %v7234, 0.0
      %v7258 = vmax.f32 %v7060, 0.0
      %v7259 = vmax.f32 %v7062, 0.0
      %v7260 = vmax.f32 %v7238, 0.0
      %v7261 = vmax.f32 %v7240, 0.0
      %v7262 = vmax.f32 %v7066, 0.0
      %v7263 = vmax.f32 %v7068, 0.0
      %v7264 = vmax.f32 %v7244, 0.0
      %v7265 = vmax.f32 %v7246, 0.0
      %v7266 = vmax.f32 %v7072, 0.0
      %v7267 = vmax.f32 %v7074, 0.0
      %v7268 = vmax.f32 %v7250, 0.0
      %v7269 = vmax.f32 %v7252, 0.0
      %7270 = vst [vmem:[#allocation3] sm:$0xff] %v7254
      %7271 = vst [vmem:[#allocation3 + $0x8] sm:$0xff] %v7255
      %7272 = vst [vmem:[#allocation3 + $0x10] sm:$0xff] %v7256
      %7273 = vst [vmem:[#allocation3 + $0x18] sm:$0xff] %v7257
      %7274 = vst [vmem:[#allocation3 + $0x20] sm:$0xff] %v7258
      %7275 = vst [vmem:[#allocation3 + $0x28] sm:$0xff] %v7259
      %7276 = vst [vmem:[#allocation3 + $0x30] sm:$0xff] %v7260
      %7277 = vst [vmem:[#allocation3 + $0x38] sm:$0xff] %v7261
      %7278 = vst [vmem:[#allocation3 + $0x40] sm:$0xff] %v7262
      %7279 = vst [vmem:[#allocation3 + $0x48] sm:$0xff] %v7263
      %7280 = vst [vmem:[#allocation3 + $0x50] sm:$0xff] %v7264
      %7281 = vst [vmem:[#allocation3 + $0x58] sm:$0xff] %v7265
      %7282 = vst [vmem:[#allocation3 + $0x60] sm:$0xff] %v7266
      %7283 = vst [vmem:[#allocation3 + $0x68] sm:$0xff] %v7267
      %7284 = vst [vmem:[#allocation3 + $0x70] sm:$0xff] %v7268
      %7285 = vst [vmem:[#allocation3 + $0x78] sm:$0xff] %v7269
      %v7286 = vld [vmem:[%s3] sm:$0xff]
      %v7287 = vld [vmem:[#allocation3] sm:$0xff]
      %v7288 = vld [vmem:[#allocation3 + $0x20] sm:$0xff]
      %v7289 = vld [vmem:[#allocation3 + $0x40] sm:$0xff]
      %v7290 = vld [vmem:[#allocation3 + $0x60] sm:$0xff]
      %7295 = vrot.lane.b32.xlu0 %v7287, 127
      %v7296 = vpop.permute.xlu0 %7295
      %7297 = vrot.lane.b32.xlu0 %v7288, 127
      %v7298 = vpop.permute.xlu0 %7297
      %7299 = vrot.lane.b32.xlu0 %v7289, 127
      %v7300 = vpop.permute.xlu0 %7299
      %7301 = vrot.lane.b32.xlu0 %v7290, 127
      %v7302 = vpop.permute.xlu0 %7301
      %vm7303 = vcmask 64512
      %v7304 = vsel %vm7303, %v7296, 0
      %v7306 = vsel %vm7303, %v7298, 0
      %v7308 = vsel %vm7303, %v7300, 0
      %v7310 = vsel %vm7303, %v7302, 0
      %7312 = vmatprep.subr.mxu0 0.0
      %7313 = vmatpush1.msra.mxu0 0.0
      %7314 = vmatprep.subr.mxu0 0.0
      %7315 = vmatpush1.msra.mxu0 0.0
      %7316 = vmatprep.subr.mxu0 0.0
      %7317 = vmatpush1.msra.mxu0 0.0
      %7318 = vmatprep.subr.mxu0 0.0
      %7319 = vmatpush1.msra.mxu0 0.0
      %7320 = vmatprep.subr.mxu0 0.0
      %7321 = vmatpush1.msra.mxu0 0.0
      %7322 = vmatprep.subr.mxu0 0.0
      %7323 = vmatpush1.msra.mxu0 0.0
      %7324 = vmatprep.subr.mxu0 0.0
      %7325 = vmatpush1.msra.mxu0 0.0
      %7326 = vmatprep.subr.mxu0 0.0
      %7327 = vmatpush1.msra.mxu0 0.0
      %7328 = vmatprep.subr.mxu0 0.0
      %7329 = vmatpush1.msra.mxu0 0.0
      %7330 = vmatprep.subr.mxu0 0.0
      %7331 = vmatpush1.msra.mxu0 0.0
      %7332 = vmatprep.subr.mxu0 0.0
      %7333 = vmatpush1.msra.mxu0 0.0
      %7334 = vmatprep.subr.mxu0 0.0
      %7335 = vmatpush1.msra.mxu0 0.0
      %7336 = vmatprep.subr.mxu0 0.0
      %7337 = vmatpush1.msra.mxu0 0.0
      %7338 = vmatprep.subr.mxu0 0.0
      %7339 = vmatpush1.msra.mxu0 0.0
      %7340 = vmatprep.subr.mxu0 0.0
      %7341 = vmatpush1.msra.mxu0 0.0
      %7342 = vmatprep.subr.mxu0 0.0
      %7343 = vmatpush1.msra.mxu0 %v7286
      %7344 = vmatprep.subr.mxu0 0.0
      %7345 = vmatpush2.msra.mxu0 0.0
      %7346 = vmatprep.subr.mxu0 0.0
      %7347 = vmatpush2.msra.mxu0 0.0
      %7348 = vmatprep.subr.mxu0 0.0
      %7349 = vmatpush2.msra.mxu0 0.0
      %7350 = vmatprep.subr.mxu0 0.0
      %7351 = vmatpush2.msra.mxu0 0.0
      %7352 = vmatprep.subr.mxu0 0.0
      %7353 = vmatpush2.msra.mxu0 0.0
      %7354 = vmatprep.subr.mxu0 0.0
      %7355 = vmatpush2.msra.mxu0 0.0
      %7356 = vmatprep.subr.mxu0 0.0
      %7357 = vmatpush2.msra.mxu0 0.0
      %7358 = vmatprep.subr.mxu0 0.0
      %7359 = vmatpush2.msra.mxu0 0.0
      %7360 = vmatprep.subr.mxu0 0.0
      %7361 = vmatpush2.msra.mxu0 0.0
      %7362 = vmatprep.subr.mxu0 0.0
      %7363 = vmatpush2.msra.mxu0 0.0
      %7364 = vmatprep.subr.mxu0 0.0
      %7365 = vmatpush2.msra.mxu0 0.0
      %7366 = vmatprep.subr.mxu0 0.0
      %7367 = vmatpush2.msra.mxu0 0.0
      %7368 = vmatprep.subr.mxu0 0.0
      %7369 = vmatpush2.msra.mxu0 0.0
      %7370 = vmatprep.subr.mxu0 0.0
      %7371 = vmatpush2.msra.mxu0 0.0
      %7372 = vmatprep.subr.mxu0 0.0
      %7373 = vmatpush2.msra.mxu0 0.0
      %7374 = vmatprep.subr.mxu0 0.0
      %7375 = vmatpush2.msra.mxu0 0.0
      %7376 = vmatprep.mubr.f32.mxu0 0.0
      %7377 = vmatmul.mubr.f32.gmra.mxu0 %v7304
      %v7378 = vpop.f32.mrf.mxu0
      %v7379 = vadd.f32 0.0, %v7378
      %v7380 = vpop.f32.mrf.mxu0
      %7381 = vmatprep.mubr.f32.mxu0 0.0
      %7382 = vmatmul.mubr.f32.gmra.mxu0 %v7306
      %v7383 = vpop.f32.mrf.mxu0
      %v7384 = vadd.f32 0.0, %v7383
      %v7385 = vpop.f32.mrf.mxu0
      %7386 = vmatprep.mubr.f32.mxu0 0.0
      %7387 = vmatmul.mubr.f32.gmra.mxu0 %v7308
      %v7388 = vpop.f32.mrf.mxu0
      %v7389 = vadd.f32 0.0, %v7388
      %v7390 = vpop.f32.mrf.mxu0
      %7391 = vmatprep.mubr.f32.mxu0 0.0
      %7392 = vmatmul.mubr.f32.gmra.mxu0 %v7310
      %v7393 = vpop.f32.mrf.mxu0
      %v7394 = vadd.f32 0.0, %v7393
      %v7395 = vpop.f32.mrf.mxu0
      %7396 = vdwg.mxu0
      %v7397 = vld [vmem:[#allocation3 + $0x8] sm:$0xff]
      %v7398 = vld [vmem:[#allocation3 + $0x28] sm:$0xff]
      %v7399 = vld [vmem:[#allocation3 + $0x48] sm:$0xff]
      %v7400 = vld [vmem:[#allocation3 + $0x68] sm:$0xff]
      %7405 = vrot.lane.b32.xlu0 %v7397, 9
      %v7406 = vpop.permute.xlu0 %7405
      %7407 = vrot.lane.b32.xlu0 %v7398, 9
      %v7408 = vpop.permute.xlu0 %7407
      %7409 = vrot.lane.b32.xlu0 %v7399, 9
      %v7410 = vpop.permute.xlu0 %7409
      %7411 = vrot.lane.b32.xlu0 %v7400, 9
      %v7412 = vpop.permute.xlu0 %7411
      %v7413 = vsel %vm7303, %v7406, 0
      %v7415 = vsel %vm7303, %v7408, 0
      %v7417 = vsel %vm7303, %v7410, 0
      %v7419 = vsel %vm7303, %v7412, 0
      %7421 = vmatprep.subr.mxu0 0.0
      %7422 = vmatpush1.msra.mxu0 0.0
      %7423 = vmatprep.subr.mxu0 0.0
      %7424 = vmatpush1.msra.mxu0 0.0
      %7425 = vmatprep.subr.mxu0 0.0
      %7426 = vmatpush1.msra.mxu0 0.0
      %7427 = vmatprep.subr.mxu0 0.0
      %7428 = vmatpush1.msra.mxu0 0.0
      %7429 = vmatprep.subr.mxu0 0.0
      %7430 = vmatpush1.msra.mxu0 0.0
      %7431 = vmatprep.subr.mxu0 0.0
      %7432 = vmatpush1.msra.mxu0 0.0
      %7433 = vmatprep.subr.mxu0 0.0
      %7434 = vmatpush1.msra.mxu0 0.0
      %7435 = vmatprep.subr.mxu0 0.0
      %7436 = vmatpush1.msra.mxu0 0.0
      %7437 = vmatprep.subr.mxu0 0.0
      %7438 = vmatpush1.msra.mxu0 0.0
      %7439 = vmatprep.subr.mxu0 0.0
      %7440 = vmatpush1.msra.mxu0 0.0
      %7441 = vmatprep.subr.mxu0 0.0
      %7442 = vmatpush1.msra.mxu0 0.0
      %7443 = vmatprep.subr.mxu0 0.0
      %7444 = vmatpush1.msra.mxu0 0.0
      %7445 = vmatprep.subr.mxu0 0.0
      %7446 = vmatpush1.msra.mxu0 0.0
      %7447 = vmatprep.subr.mxu0 0.0
      %7448 = vmatpush1.msra.mxu0 0.0
      %7449 = vmatprep.subr.mxu0 0.0
      %7450 = vmatpush1.msra.mxu0 0.0
      %7451 = vmatprep.subr.mxu0 0.0
      %7452 = vmatpush1.msra.mxu0 %v7286
      %7453 = vmatprep.subr.mxu0 0.0
      %7454 = vmatpush2.msra.mxu0 0.0
      %7455 = vmatprep.subr.mxu0 0.0
      %7456 = vmatpush2.msra.mxu0 0.0
      %7457 = vmatprep.subr.mxu0 0.0
      %7458 = vmatpush2.msra.mxu0 0.0
      %7459 = vmatprep.subr.mxu0 0.0
      %7460 = vmatpush2.msra.mxu0 0.0
      %7461 = vmatprep.subr.mxu0 0.0
      %7462 = vmatpush2.msra.mxu0 0.0
      %7463 = vmatprep.subr.mxu0 0.0
      %7464 = vmatpush2.msra.mxu0 0.0
      %7465 = vmatprep.subr.mxu0 0.0
      %7466 = vmatpush2.msra.mxu0 0.0
      %7467 = vmatprep.subr.mxu0 0.0
      %7468 = vmatpush2.msra.mxu0 0.0
      %7469 = vmatprep.subr.mxu0 0.0
      %7470 = vmatpush2.msra.mxu0 0.0
      %7471 = vmatprep.subr.mxu0 0.0
      %7472 = vmatpush2.msra.mxu0 0.0
      %7473 = vmatprep.subr.mxu0 0.0
      %7474 = vmatpush2.msra.mxu0 0.0
      %7475 = vmatprep.subr.mxu0 0.0
      %7476 = vmatpush2.msra.mxu0 0.0
      %7477 = vmatprep.subr.mxu0 0.0
      %7478 = vmatpush2.msra.mxu0 0.0
      %7479 = vmatprep.subr.mxu0 0.0
      %7480 = vmatpush2.msra.mxu0 0.0
      %7481 = vmatprep.subr.mxu0 0.0
      %7482 = vmatpush2.msra.mxu0 0.0
      %7483 = vmatprep.subr.mxu0 0.0
      %7484 = vmatpush2.msra.mxu0 0.0
      %7485 = vmatprep.mubr.f32.mxu0 0.0
      %7486 = vmatmul.mubr.f32.gmra.mxu0 %v7413
      %v7487 = vpop.f32.mrf.mxu0
      %v7488 = vadd.f32 0.0, %v7487
      %v7489 = vpop.f32.mrf.mxu0
      %7490 = vmatprep.mubr.f32.mxu0 0.0
      %7491 = vmatmul.mubr.f32.gmra.mxu0 %v7415
      %v7492 = vpop.f32.mrf.mxu0
      %v7493 = vadd.f32 0.0, %v7492
      %v7494 = vpop.f32.mrf.mxu0
      %7495 = vmatprep.mubr.f32.mxu0 0.0
      %7496 = vmatmul.mubr.f32.gmra.mxu0 %v7417
      %v7497 = vpop.f32.mrf.mxu0
      %v7498 = vadd.f32 0.0, %v7497
      %v7499 = vpop.f32.mrf.mxu0
      %7500 = vmatprep.mubr.f32.mxu0 0.0
      %7501 = vmatmul.mubr.f32.gmra.mxu0 %v7419
      %v7502 = vpop.f32.mrf.mxu0
      %v7503 = vadd.f32 0.0, %v7502
      %v7504 = vpop.f32.mrf.mxu0
      %7505 = vdwg.mxu0
      %7506 = vst.msk [vmem:[#allocation2] sm:$0xff] %vm7303, %v7379
      %7507 = vst.msk [vmem:[#allocation2 + $0x20] sm:$0xff] %vm7303, %v7384
      %7508 = vst.msk [vmem:[#allocation2 + $0x40] sm:$0xff] %vm7303, %v7389
      %7509 = vst.msk [vmem:[#allocation2 + $0x60] sm:$0xff] %vm7303, %v7394
      %v7510 = vld [vmem:[#allocation3] sm:$0xff]
      %v7511 = vld [vmem:[#allocation3 + $0x8] sm:$0xff]
      %v7512 = vld [vmem:[#allocation3 + $0x20] sm:$0xff]
      %v7513 = vld [vmem:[#allocation3 + $0x28] sm:$0xff]
      %v7514 = vld [vmem:[#allocation3 + $0x40] sm:$0xff]
      %v7515 = vld [vmem:[#allocation3 + $0x48] sm:$0xff]
      %v7516 = vld [vmem:[#allocation3 + $0x60] sm:$0xff]
      %v7517 = vld [vmem:[#allocation3 + $0x68] sm:$0xff]
      %7526 = vrot.lane.b32.xlu0 %v7510, 8
      %v7527 = vpop.permute.xlu0 %7526
      %7528 = vrot.lane.b32.xlu0 %v7511, 8
      %v7529 = vpop.permute.xlu0 %7528
      %7530 = vrot.lane.b32.xlu0 %v7512, 8
      %v7531 = vpop.permute.xlu0 %7530
      %7532 = vrot.lane.b32.xlu0 %v7513, 8
      %v7533 = vpop.permute.xlu0 %7532
      %7534 = vrot.lane.b32.xlu0 %v7514, 8
      %v7535 = vpop.permute.xlu0 %7534
      %7536 = vrot.lane.b32.xlu0 %v7515, 8
      %v7537 = vpop.permute.xlu0 %7536
      %7538 = vrot.lane.b32.xlu0 %v7516, 8
      %v7539 = vpop.permute.xlu0 %7538
      %7540 = vrot.lane.b32.xlu0 %v7517, 8
      %v7541 = vpop.permute.xlu0 %7540
      %v7542 = vsel %vm7303, %v7527, %v7529
      %v7543 = vsel %vm7303, %v7531, %v7533
      %v7544 = vsel %vm7303, %v7535, %v7537
      %v7545 = vsel %vm7303, %v7539, %v7541
      %vm7554 = vcmask 1047616
      %7555 = vst.msk [vmem:[#allocation2] sm:$0xff] %vm7554, %v7527
      %7556 = vst [vmem:[#allocation2 + $0x8] sm:$0xff] %v7542
      %7557 = vst.msk [vmem:[#allocation2 + $0x20] sm:$0xff] %vm7554, %v7531
      %7558 = vst [vmem:[#allocation2 + $0x28] sm:$0xff] %v7543
      %7559 = vst.msk [vmem:[#allocation2 + $0x40] sm:$0xff] %vm7554, %v7535
      %7560 = vst [vmem:[#allocation2 + $0x48] sm:$0xff] %v7544
      %7561 = vst.msk [vmem:[#allocation2 + $0x60] sm:$0xff] %vm7554, %v7539
      %7562 = vst [vmem:[#allocation2 + $0x68] sm:$0xff] %v7545
      %7567 = vrot.lane.b32.xlu0 %v7379, 124
      %v7568 = vpop.permute.xlu0 %7567
      %7569 = vrot.lane.b32.xlu0 %v7384, 124
      %v7570 = vpop.permute.xlu0 %7569
      %7571 = vrot.lane.b32.xlu0 %v7389, 124
      %v7572 = vpop.permute.xlu0 %7571
      %7573 = vrot.lane.b32.xlu0 %v7394, 124
      %v7574 = vpop.permute.xlu0 %7573
      %7579 = vst.msk [vmem:[#allocation2 + $0x80] sm:$0xff] %vm4965, %v7568
      %7580 = vst.msk [vmem:[#allocation2 + $0xa0] sm:$0xff] %vm4965, %v7570
      %7581 = vst.msk [vmem:[#allocation2 + $0xc0] sm:$0xff] %vm4965, %v7572
      %7582 = vst.msk [vmem:[#allocation2 + $0xe0] sm:$0xff] %vm4965, %v7574
      %v7583 = vld [vmem:[#allocation3] sm:$0xff]
      %v7584 = vld [vmem:[#allocation3 + $0x8] sm:$0xff]
      %v7585 = vld [vmem:[#allocation3 + $0x20] sm:$0xff]
      %v7586 = vld [vmem:[#allocation3 + $0x28] sm:$0xff]
      %v7587 = vld [vmem:[#allocation3 + $0x40] sm:$0xff]
      %v7588 = vld [vmem:[#allocation3 + $0x48] sm:$0xff]
      %v7589 = vld [vmem:[#allocation3 + $0x60] sm:$0xff]
      %v7590 = vld [vmem:[#allocation3 + $0x68] sm:$0xff]
      %7599 = vrot.lane.b32.xlu0 %v7583, 4
      %v7600 = vpop.permute.xlu0 %7599
      %7601 = vrot.lane.b32.xlu0 %v7584, 4
      %v7602 = vpop.permute.xlu0 %7601
      %7603 = vrot.lane.b32.xlu0 %v7585, 4
      %v7604 = vpop.permute.xlu0 %7603
      %7605 = vrot.lane.b32.xlu0 %v7586, 4
      %v7606 = vpop.permute.xlu0 %7605
      %7607 = vrot.lane.b32.xlu0 %v7587, 4
      %v7608 = vpop.permute.xlu0 %7607
      %7609 = vrot.lane.b32.xlu0 %v7588, 4
      %v7610 = vpop.permute.xlu0 %7609
      %7611 = vrot.lane.b32.xlu0 %v7589, 4
      %v7612 = vpop.permute.xlu0 %7611
      %7613 = vrot.lane.b32.xlu0 %v7590, 4
      %v7614 = vpop.permute.xlu0 %7613
      %v7615 = vsel %vm4965, %v7600, %v7602
      %v7616 = vsel %vm4965, %v7604, %v7606
      %v7617 = vsel %vm4965, %v7608, %v7610
      %v7618 = vsel %vm4965, %v7612, %v7614
      %7627 = vst.msk [vmem:[#allocation2 + $0x80] sm:$0xff] %vm5340, %v7600
      %7628 = vst [vmem:[#allocation2 + $0x88] sm:$0xff] %v7615
      %7629 = vst.msk [vmem:[#allocation2 + $0xa0] sm:$0xff] %vm5340, %v7604
      %7630 = vst [vmem:[#allocation2 + $0xa8] sm:$0xff] %v7616
      %7631 = vst.msk [vmem:[#allocation2 + $0xc0] sm:$0xff] %vm5340, %v7608
      %7632 = vst [vmem:[#allocation2 + $0xc8] sm:$0xff] %v7617
      %7633 = vst.msk [vmem:[#allocation2 + $0xe0] sm:$0xff] %vm5340, %v7612
      %7634 = vst [vmem:[#allocation2 + $0xe8] sm:$0xff] %v7618
      %v7635 = vld [vmem:[#allocation3] sm:$0xff]
      %v7636 = vld [vmem:[#allocation3 + $0x8] sm:$0xff]
      %v7637 = vld [vmem:[#allocation3 + $0x20] sm:$0xff]
      %v7638 = vld [vmem:[#allocation3 + $0x28] sm:$0xff]
      %v7639 = vld [vmem:[#allocation3 + $0x40] sm:$0xff]
      %v7640 = vld [vmem:[#allocation3 + $0x48] sm:$0xff]
      %v7641 = vld [vmem:[#allocation3 + $0x60] sm:$0xff]
      %v7642 = vld [vmem:[#allocation3 + $0x68] sm:$0xff]
      %7643 = vst [vmem:[#allocation2 + $0x100] sm:$0xff] %v7635
      %7644 = vst [vmem:[#allocation2 + $0x108] sm:$0xff] %v7636
      %7645 = vst [vmem:[#allocation2 + $0x120] sm:$0xff] %v7637
      %7646 = vst [vmem:[#allocation2 + $0x128] sm:$0xff] %v7638
      %7647 = vst [vmem:[#allocation2 + $0x140] sm:$0xff] %v7639
      %7648 = vst [vmem:[#allocation2 + $0x148] sm:$0xff] %v7640
      %7649 = vst [vmem:[#allocation2 + $0x160] sm:$0xff] %v7641
      %7650 = vst [vmem:[#allocation2 + $0x168] sm:$0xff] %v7642
      %v7651 = vld [vmem:[#allocation3] sm:$0xff]
      %v7652 = vld [vmem:[#allocation3 + $0x8] sm:$0xff]
      %v7653 = vld [vmem:[#allocation3 + $0x20] sm:$0xff]
      %v7654 = vld [vmem:[#allocation3 + $0x28] sm:$0xff]
      %v7655 = vld [vmem:[#allocation3 + $0x40] sm:$0xff]
      %v7656 = vld [vmem:[#allocation3 + $0x48] sm:$0xff]
      %v7657 = vld [vmem:[#allocation3 + $0x60] sm:$0xff]
      %v7658 = vld [vmem:[#allocation3 + $0x68] sm:$0xff]
      %7667 = vrot.lane.b32.xlu0 %v7651, 124
      %v7668 = vpop.permute.xlu0 %7667
      %7669 = vrot.lane.b32.xlu0 %v7652, 124
      %v7670 = vpop.permute.xlu0 %7669
      %7671 = vrot.lane.b32.xlu0 %v7653, 124
      %v7672 = vpop.permute.xlu0 %7671
      %7673 = vrot.lane.b32.xlu0 %v7654, 124
      %v7674 = vpop.permute.xlu0 %7673
      %7675 = vrot.lane.b32.xlu0 %v7655, 124
      %v7676 = vpop.permute.xlu0 %7675
      %7677 = vrot.lane.b32.xlu0 %v7656, 124
      %v7678 = vpop.permute.xlu0 %7677
      %7679 = vrot.lane.b32.xlu0 %v7657, 124
      %v7680 = vpop.permute.xlu0 %7679
      %7681 = vrot.lane.b32.xlu0 %v7658, 124
      %v7682 = vpop.permute.xlu0 %7681
      %v7683 = vsel %vm5741, %v7668, %v7670
      %v7684 = vsel %vm5741, %v7672, %v7674
      %v7685 = vsel %vm5741, %v7676, %v7678
      %v7686 = vsel %vm5741, %v7680, %v7682
      %7695 = vst [vmem:[#allocation2 + $0x180] sm:$0xff] %v7683
      %7696 = vst.msk [vmem:[#allocation2 + $0x188] sm:$0xff] %vm5741, %v7670
      %7697 = vst [vmem:[#allocation2 + $0x1a0] sm:$0xff] %v7684
      %7698 = vst.msk [vmem:[#allocation2 + $0x1a8] sm:$0xff] %vm5741, %v7674
      %7699 = vst [vmem:[#allocation2 + $0x1c0] sm:$0xff] %v7685
      %7700 = vst.msk [vmem:[#allocation2 + $0x1c8] sm:$0xff] %vm5741, %v7678
      %7701 = vst [vmem:[#allocation2 + $0x1e0] sm:$0xff] %v7686
      %7702 = vst.msk [vmem:[#allocation2 + $0x1e8] sm:$0xff] %vm5741, %v7682
      %7707 = vrot.lane.b32.xlu0 %v7488, 124
      %v7708 = vpop.permute.xlu0 %7707
      %7709 = vrot.lane.b32.xlu0 %v7493, 124
      %v7710 = vpop.permute.xlu0 %7709
      %7711 = vrot.lane.b32.xlu0 %v7498, 124
      %v7712 = vpop.permute.xlu0 %7711
      %7713 = vrot.lane.b32.xlu0 %v7503, 124
      %v7714 = vpop.permute.xlu0 %7713
      %7719 = vst.msk [vmem:[#allocation2 + $0x188] sm:$0xff] %vm5806, %v7708
      %7720 = vst.msk [vmem:[#allocation2 + $0x1a8] sm:$0xff] %vm5806, %v7710
      %7721 = vst.msk [vmem:[#allocation2 + $0x1c8] sm:$0xff] %vm5806, %v7712
      %7722 = vst.msk [vmem:[#allocation2 + $0x1e8] sm:$0xff] %vm5806, %v7714
      %v7723 = vld [vmem:[#allocation3] sm:$0xff]
      %v7724 = vld [vmem:[#allocation3 + $0x8] sm:$0xff]
      %v7725 = vld [vmem:[#allocation3 + $0x20] sm:$0xff]
      %v7726 = vld [vmem:[#allocation3 + $0x28] sm:$0xff]
      %v7727 = vld [vmem:[#allocation3 + $0x40] sm:$0xff]
      %v7728 = vld [vmem:[#allocation3 + $0x48] sm:$0xff]
      %v7729 = vld [vmem:[#allocation3 + $0x60] sm:$0xff]
      %v7730 = vld [vmem:[#allocation3 + $0x68] sm:$0xff]
      %7739 = vrot.lane.b32.xlu0 %v7723, 120
      %v7740 = vpop.permute.xlu0 %7739
      %7741 = vrot.lane.b32.xlu0 %v7724, 120
      %v7742 = vpop.permute.xlu0 %7741
      %7743 = vrot.lane.b32.xlu0 %v7725, 120
      %v7744 = vpop.permute.xlu0 %7743
      %7745 = vrot.lane.b32.xlu0 %v7726, 120
      %v7746 = vpop.permute.xlu0 %7745
      %7747 = vrot.lane.b32.xlu0 %v7727, 120
      %v7748 = vpop.permute.xlu0 %7747
      %7749 = vrot.lane.b32.xlu0 %v7728, 120
      %v7750 = vpop.permute.xlu0 %7749
      %7751 = vrot.lane.b32.xlu0 %v7729, 120
      %v7752 = vpop.permute.xlu0 %7751
      %7753 = vrot.lane.b32.xlu0 %v7730, 120
      %v7754 = vpop.permute.xlu0 %7753
      %vm7755 = vcmask 982016
      %v7756 = vsel %vm7755, %v7740, %v7742
      %v7757 = vsel %vm7755, %v7744, %v7746
      %v7758 = vsel %vm7755, %v7748, %v7750
      %v7759 = vsel %vm7755, %v7752, %v7754
      %7768 = vst [vmem:[#allocation2 + $0x200] sm:$0xff] %v7756
      %7769 = vst.msk [vmem:[#allocation2 + $0x208] sm:$0xff] %vm7755, %v7742
      %7770 = vst [vmem:[#allocation2 + $0x220] sm:$0xff] %v7757
      %7771 = vst.msk [vmem:[#allocation2 + $0x228] sm:$0xff] %vm7755, %v7746
      %7772 = vst [vmem:[#allocation2 + $0x240] sm:$0xff] %v7758
      %7773 = vst.msk [vmem:[#allocation2 + $0x248] sm:$0xff] %vm7755, %v7750
      %7774 = vst [vmem:[#allocation2 + $0x260] sm:$0xff] %v7759
      %7775 = vst.msk [vmem:[#allocation2 + $0x268] sm:$0xff] %vm7755, %v7754
      %7776 = vrot.lane.b32.xlu0 %v7488, 120
      %v7777 = vpop.permute.xlu0 %7776
      %7778 = vrot.lane.b32.xlu0 %v7493, 120
      %v7779 = vpop.permute.xlu0 %7778
      %7780 = vrot.lane.b32.xlu0 %v7498, 120
      %v7781 = vpop.permute.xlu0 %7780
      %7782 = vrot.lane.b32.xlu0 %v7503, 120
      %v7783 = vpop.permute.xlu0 %7782
      %vm7788 = vcmask 1048512
      %7789 = vst.msk [vmem:[#allocation2 + $0x208] sm:$0xff] %vm7788, %v7777
      %7790 = vst.msk [vmem:[#allocation2 + $0x228] sm:$0xff] %vm7788, %v7779
      %7791 = vst.msk [vmem:[#allocation2 + $0x248] sm:$0xff] %vm7788, %v7781
      %7792 = vst.msk [vmem:[#allocation2 + $0x268] sm:$0xff] %vm7788, %v7783
      %v7793 = vld [vmem:[#allocation3 + $0x10] sm:$0xff]
      %v7794 = vld [vmem:[#allocation3 + $0x30] sm:$0xff]
      %v7795 = vld [vmem:[#allocation3 + $0x50] sm:$0xff]
      %v7796 = vld [vmem:[#allocation3 + $0x70] sm:$0xff]
      %7801 = vrot.lane.b32.xlu0 %v7793, 127
      %v7802 = vpop.permute.xlu0 %7801
      %7803 = vrot.lane.b32.xlu0 %v7794, 127
      %v7804 = vpop.permute.xlu0 %7803
      %7805 = vrot.lane.b32.xlu0 %v7795, 127
      %v7806 = vpop.permute.xlu0 %7805
      %7807 = vrot.lane.b32.xlu0 %v7796, 127
      %v7808 = vpop.permute.xlu0 %7807
      %v7809 = vsel %vm7303, %v7802, 0
      %v7811 = vsel %vm7303, %v7804, 0
      %v7813 = vsel %vm7303, %v7806, 0
      %v7815 = vsel %vm7303, %v7808, 0
      %7817 = vmatprep.subr.mxu0 0.0
      %7818 = vmatpush1.msra.mxu0 0.0
      %7819 = vmatprep.subr.mxu0 0.0
      %7820 = vmatpush1.msra.mxu0 0.0
      %7821 = vmatprep.subr.mxu0 0.0
      %7822 = vmatpush1.msra.mxu0 0.0
      %7823 = vmatprep.subr.mxu0 0.0
      %7824 = vmatpush1.msra.mxu0 0.0
      %7825 = vmatprep.subr.mxu0 0.0
      %7826 = vmatpush1.msra.mxu0 0.0
      %7827 = vmatprep.subr.mxu0 0.0
      %7828 = vmatpush1.msra.mxu0 0.0
      %7829 = vmatprep.subr.mxu0 0.0
      %7830 = vmatpush1.msra.mxu0 0.0
      %7831 = vmatprep.subr.mxu0 0.0
      %7832 = vmatpush1.msra.mxu0 0.0
      %7833 = vmatprep.subr.mxu0 0.0
      %7834 = vmatpush1.msra.mxu0 0.0
      %7835 = vmatprep.subr.mxu0 0.0
      %7836 = vmatpush1.msra.mxu0 0.0
      %7837 = vmatprep.subr.mxu0 0.0
      %7838 = vmatpush1.msra.mxu0 0.0
      %7839 = vmatprep.subr.mxu0 0.0
      %7840 = vmatpush1.msra.mxu0 0.0
      %7841 = vmatprep.subr.mxu0 0.0
      %7842 = vmatpush1.msra.mxu0 0.0
      %7843 = vmatprep.subr.mxu0 0.0
      %7844 = vmatpush1.msra.mxu0 0.0
      %7845 = vmatprep.subr.mxu0 0.0
      %7846 = vmatpush1.msra.mxu0 0.0
      %7847 = vmatprep.subr.mxu0 0.0
      %7848 = vmatpush1.msra.mxu0 %v7286
      %7849 = vmatprep.subr.mxu0 0.0
      %7850 = vmatpush2.msra.mxu0 0.0
      %7851 = vmatprep.subr.mxu0 0.0
      %7852 = vmatpush2.msra.mxu0 0.0
      %7853 = vmatprep.subr.mxu0 0.0
      %7854 = vmatpush2.msra.mxu0 0.0
      %7855 = vmatprep.subr.mxu0 0.0
      %7856 = vmatpush2.msra.mxu0 0.0
      %7857 = vmatprep.subr.mxu0 0.0
      %7858 = vmatpush2.msra.mxu0 0.0
      %7859 = vmatprep.subr.mxu0 0.0
      %7860 = vmatpush2.msra.mxu0 0.0
      %7861 = vmatprep.subr.mxu0 0.0
      %7862 = vmatpush2.msra.mxu0 0.0
      %7863 = vmatprep.subr.mxu0 0.0
      %7864 = vmatpush2.msra.mxu0 0.0
      %7865 = vmatprep.subr.mxu0 0.0
      %7866 = vmatpush2.msra.mxu0 0.0
      %7867 = vmatprep.subr.mxu0 0.0
      %7868 = vmatpush2.msra.mxu0 0.0
      %7869 = vmatprep.subr.mxu0 0.0
      %7870 = vmatpush2.msra.mxu0 0.0
      %7871 = vmatprep.subr.mxu0 0.0
      %7872 = vmatpush2.msra.mxu0 0.0
      %7873 = vmatprep.subr.mxu0 0.0
      %7874 = vmatpush2.msra.mxu0 0.0
      %7875 = vmatprep.subr.mxu0 0.0
      %7876 = vmatpush2.msra.mxu0 0.0
      %7877 = vmatprep.subr.mxu0 0.0
      %7878 = vmatpush2.msra.mxu0 0.0
      %7879 = vmatprep.subr.mxu0 0.0
      %7880 = vmatpush2.msra.mxu0 0.0
      %7881 = vmatprep.mubr.f32.mxu0 0.0
      %7882 = vmatmul.mubr.f32.gmra.mxu0 %v7809
      %v7883 = vpop.f32.mrf.mxu0
      %v7884 = vadd.f32 0.0, %v7883
      %v7885 = vpop.f32.mrf.mxu0
      %7886 = vmatprep.mubr.f32.mxu0 0.0
      %7887 = vmatmul.mubr.f32.gmra.mxu0 %v7811
      %v7888 = vpop.f32.mrf.mxu0
      %v7889 = vadd.f32 0.0, %v7888
      %v7890 = vpop.f32.mrf.mxu0
      %7891 = vmatprep.mubr.f32.mxu0 0.0
      %7892 = vmatmul.mubr.f32.gmra.mxu0 %v7813
      %v7893 = vpop.f32.mrf.mxu0
      %v7894 = vadd.f32 0.0, %v7893
      %v7895 = vpop.f32.mrf.mxu0
      %7896 = vmatprep.mubr.f32.mxu0 0.0
      %7897 = vmatmul.mubr.f32.gmra.mxu0 %v7815
      %v7898 = vpop.f32.mrf.mxu0
      %v7899 = vadd.f32 0.0, %v7898
      %v7900 = vpop.f32.mrf.mxu0
      %7901 = vdwg.mxu0
      %v7902 = vld [vmem:[#allocation3 + $0x18] sm:$0xff]
      %v7903 = vld [vmem:[#allocation3 + $0x38] sm:$0xff]
      %v7904 = vld [vmem:[#allocation3 + $0x58] sm:$0xff]
      %v7905 = vld [vmem:[#allocation3 + $0x78] sm:$0xff]
      %7910 = vrot.lane.b32.xlu0 %v7902, 9
      %v7911 = vpop.permute.xlu0 %7910
      %7912 = vrot.lane.b32.xlu0 %v7903, 9
      %v7913 = vpop.permute.xlu0 %7912
      %7914 = vrot.lane.b32.xlu0 %v7904, 9
      %v7915 = vpop.permute.xlu0 %7914
      %7916 = vrot.lane.b32.xlu0 %v7905, 9
      %v7917 = vpop.permute.xlu0 %7916
      %v7918 = vsel %vm7303, %v7911, 0
      %v7920 = vsel %vm7303, %v7913, 0
      %v7922 = vsel %vm7303, %v7915, 0
      %v7924 = vsel %vm7303, %v7917, 0
      %7926 = vmatprep.subr.mxu0 0.0
      %7927 = vmatpush1.msra.mxu0 0.0
      %7928 = vmatprep.subr.mxu0 0.0
      %7929 = vmatpush1.msra.mxu0 0.0
      %7930 = vmatprep.subr.mxu0 0.0
      %7931 = vmatpush1.msra.mxu0 0.0
      %7932 = vmatprep.subr.mxu0 0.0
      %7933 = vmatpush1.msra.mxu0 0.0
      %7934 = vmatprep.subr.mxu0 0.0
      %7935 = vmatpush1.msra.mxu0 0.0
      %7936 = vmatprep.subr.mxu0 0.0
      %7937 = vmatpush1.msra.mxu0 0.0
      %7938 = vmatprep.subr.mxu0 0.0
      %7939 = vmatpush1.msra.mxu0 0.0
      %7940 = vmatprep.subr.mxu0 0.0
      %7941 = vmatpush1.msra.mxu0 0.0
      %7942 = vmatprep.subr.mxu0 0.0
      %7943 = vmatpush1.msra.mxu0 0.0
      %7944 = vmatprep.subr.mxu0 0.0
      %7945 = vmatpush1.msra.mxu0 0.0
      %7946 = vmatprep.subr.mxu0 0.0
      %7947 = vmatpush1.msra.mxu0 0.0
      %7948 = vmatprep.subr.mxu0 0.0
      %7949 = vmatpush1.msra.mxu0 0.0
      %7950 = vmatprep.subr.mxu0 0.0
      %7951 = vmatpush1.msra.mxu0 0.0
      %7952 = vmatprep.subr.mxu0 0.0
      %7953 = vmatpush1.msra.mxu0 0.0
      %7954 = vmatprep.subr.mxu0 0.0
      %7955 = vmatpush1.msra.mxu0 0.0
      %7956 = vmatprep.subr.mxu0 0.0
      %7957 = vmatpush1.msra.mxu0 %v7286
      %7958 = vmatprep.subr.mxu0 0.0
      %7959 = vmatpush2.msra.mxu0 0.0
      %7960 = vmatprep.subr.mxu0 0.0
      %7961 = vmatpush2.msra.mxu0 0.0
      %7962 = vmatprep.subr.mxu0 0.0
      %7963 = vmatpush2.msra.mxu0 0.0
      %7964 = vmatprep.subr.mxu0 0.0
      %7965 = vmatpush2.msra.mxu0 0.0
      %7966 = vmatprep.subr.mxu0 0.0
      %7967 = vmatpush2.msra.mxu0 0.0
      %7968 = vmatprep.subr.mxu0 0.0
      %7969 = vmatpush2.msra.mxu0 0.0
      %7970 = vmatprep.subr.mxu0 0.0
      %7971 = vmatpush2.msra.mxu0 0.0
      %7972 = vmatprep.subr.mxu0 0.0
      %7973 = vmatpush2.msra.mxu0 0.0
      %7974 = vmatprep.subr.mxu0 0.0
      %7975 = vmatpush2.msra.mxu0 0.0
      %7976 = vmatprep.subr.mxu0 0.0
      %7977 = vmatpush2.msra.mxu0 0.0
      %7978 = vmatprep.subr.mxu0 0.0
      %7979 = vmatpush2.msra.mxu0 0.0
      %7980 = vmatprep.subr.mxu0 0.0
      %7981 = vmatpush2.msra.mxu0 0.0
      %7982 = vmatprep.subr.mxu0 0.0
      %7983 = vmatpush2.msra.mxu0 0.0
      %7984 = vmatprep.subr.mxu0 0.0
      %7985 = vmatpush2.msra.mxu0 0.0
      %7986 = vmatprep.subr.mxu0 0.0
      %7987 = vmatpush2.msra.mxu0 0.0
      %7988 = vmatprep.subr.mxu0 0.0
      %7989 = vmatpush2.msra.mxu0 0.0
      %7990 = vmatprep.mubr.f32.mxu0 0.0
      %7991 = vmatmul.mubr.f32.gmra.mxu0 %v7918
      %v7992 = vpop.f32.mrf.mxu0
      %v7993 = vadd.f32 0.0, %v7992
      %v7994 = vpop.f32.mrf.mxu0
      %7995 = vmatprep.mubr.f32.mxu0 0.0
      %7996 = vmatmul.mubr.f32.gmra.mxu0 %v7920
      %v7997 = vpop.f32.mrf.mxu0
      %v7998 = vadd.f32 0.0, %v7997
      %v7999 = vpop.f32.mrf.mxu0
      %8000 = vmatprep.mubr.f32.mxu0 0.0
      %8001 = vmatmul.mubr.f32.gmra.mxu0 %v7922
      %v8002 = vpop.f32.mrf.mxu0
      %v8003 = vadd.f32 0.0, %v8002
      %v8004 = vpop.f32.mrf.mxu0
      %8005 = vmatprep.mubr.f32.mxu0 0.0
      %8006 = vmatmul.mubr.f32.gmra.mxu0 %v7924
      %v8007 = vpop.f32.mrf.mxu0
      %v8008 = vadd.f32 0.0, %v8007
      %v8009 = vpop.f32.mrf.mxu0
      %8010 = vdwg.mxu0
      %8011 = vst.msk [vmem:[#allocation2 + $0x10] sm:$0xff] %vm7303, %v7884
      %8012 = vst.msk [vmem:[#allocation2 + $0x30] sm:$0xff] %vm7303, %v7889
      %8013 = vst.msk [vmem:[#allocation2 + $0x50] sm:$0xff] %vm7303, %v7894
      %8014 = vst.msk [vmem:[#allocation2 + $0x70] sm:$0xff] %vm7303, %v7899
      %v8015 = vld [vmem:[#allocation3 + $0x10] sm:$0xff]
      %v8016 = vld [vmem:[#allocation3 + $0x18] sm:$0xff]
      %v8017 = vld [vmem:[#allocation3 + $0x30] sm:$0xff]
      %v8018 = vld [vmem:[#allocation3 + $0x38] sm:$0xff]
      %v8019 = vld [vmem:[#allocation3 + $0x50] sm:$0xff]
      %v8020 = vld [vmem:[#allocation3 + $0x58] sm:$0xff]
      %v8021 = vld [vmem:[#allocation3 + $0x70] sm:$0xff]
      %v8022 = vld [vmem:[#allocation3 + $0x78] sm:$0xff]
      %8031 = vrot.lane.b32.xlu0 %v8015, 8
      %v8032 = vpop.permute.xlu0 %8031
      %8033 = vrot.lane.b32.xlu0 %v8016, 8
      %v8034 = vpop.permute.xlu0 %8033
      %8035 = vrot.lane.b32.xlu0 %v8017, 8
      %v8036 = vpop.permute.xlu0 %8035
      %8037 = vrot.lane.b32.xlu0 %v8018, 8
      %v8038 = vpop.permute.xlu0 %8037
      %8039 = vrot.lane.b32.xlu0 %v8019, 8
      %v8040 = vpop.permute.xlu0 %8039
      %8041 = vrot.lane.b32.xlu0 %v8020, 8
      %v8042 = vpop.permute.xlu0 %8041
      %8043 = vrot.lane.b32.xlu0 %v8021, 8
      %v8044 = vpop.permute.xlu0 %8043
      %8045 = vrot.lane.b32.xlu0 %v8022, 8
      %v8046 = vpop.permute.xlu0 %8045
      %v8047 = vsel %vm7303, %v8032, %v8034
      %v8048 = vsel %vm7303, %v8036, %v8038
      %v8049 = vsel %vm7303, %v8040, %v8042
      %v8050 = vsel %vm7303, %v8044, %v8046
      %8059 = vst.msk [vmem:[#allocation2 + $0x10] sm:$0xff] %vm7554, %v8032
      %8060 = vst [vmem:[#allocation2 + $0x18] sm:$0xff] %v8047
      %8061 = vst.msk [vmem:[#allocation2 + $0x30] sm:$0xff] %vm7554, %v8036
      %8062 = vst [vmem:[#allocation2 + $0x38] sm:$0xff] %v8048
      %8063 = vst.msk [vmem:[#allocation2 + $0x50] sm:$0xff] %vm7554, %v8040
      %8064 = vst [vmem:[#allocation2 + $0x58] sm:$0xff] %v8049
      %8065 = vst.msk [vmem:[#allocation2 + $0x70] sm:$0xff] %vm7554, %v8044
      %8066 = vst [vmem:[#allocation2 + $0x78] sm:$0xff] %v8050
      %8071 = vrot.lane.b32.xlu0 %v7884, 124
      %v8072 = vpop.permute.xlu0 %8071
      %8073 = vrot.lane.b32.xlu0 %v7889, 124
      %v8074 = vpop.permute.xlu0 %8073
      %8075 = vrot.lane.b32.xlu0 %v7894, 124
      %v8076 = vpop.permute.xlu0 %8075
      %8077 = vrot.lane.b32.xlu0 %v7899, 124
      %v8078 = vpop.permute.xlu0 %8077
      %8083 = vst.msk [vmem:[#allocation2 + $0x90] sm:$0xff] %vm4965, %v8072
      %8084 = vst.msk [vmem:[#allocation2 + $0xb0] sm:$0xff] %vm4965, %v8074
      %8085 = vst.msk [vmem:[#allocation2 + $0xd0] sm:$0xff] %vm4965, %v8076
      %8086 = vst.msk [vmem:[#allocation2 + $0xf0] sm:$0xff] %vm4965, %v8078
      %v8087 = vld [vmem:[#allocation3 + $0x10] sm:$0xff]
      %v8088 = vld [vmem:[#allocation3 + $0x18] sm:$0xff]
      %v8089 = vld [vmem:[#allocation3 + $0x30] sm:$0xff]
      %v8090 = vld [vmem:[#allocation3 + $0x38] sm:$0xff]
      %v8091 = vld [vmem:[#allocation3 + $0x50] sm:$0xff]
      %v8092 = vld [vmem:[#allocation3 + $0x58] sm:$0xff]
      %v8093 = vld [vmem:[#allocation3 + $0x70] sm:$0xff]
      %v8094 = vld [vmem:[#allocation3 + $0x78] sm:$0xff]
      %8103 = vrot.lane.b32.xlu0 %v8087, 4
      %v8104 = vpop.permute.xlu0 %8103
      %8105 = vrot.lane.b32.xlu0 %v8088, 4
      %v8106 = vpop.permute.xlu0 %8105
      %8107 = vrot.lane.b32.xlu0 %v8089, 4
      %v8108 = vpop.permute.xlu0 %8107
      %8109 = vrot.lane.b32.xlu0 %v8090, 4
      %v8110 = vpop.permute.xlu0 %8109
      %8111 = vrot.lane.b32.xlu0 %v8091, 4
      %v8112 = vpop.permute.xlu0 %8111
      %8113 = vrot.lane.b32.xlu0 %v8092, 4
      %v8114 = vpop.permute.xlu0 %8113
      %8115 = vrot.lane.b32.xlu0 %v8093, 4
      %v8116 = vpop.permute.xlu0 %8115
      %8117 = vrot.lane.b32.xlu0 %v8094, 4
      %v8118 = vpop.permute.xlu0 %8117
      %v8119 = vsel %vm4965, %v8104, %v8106
      %v8120 = vsel %vm4965, %v8108, %v8110
      %v8121 = vsel %vm4965, %v8112, %v8114
      %v8122 = vsel %vm4965, %v8116, %v8118
      %8131 = vst.msk [vmem:[#allocation2 + $0x90] sm:$0xff] %vm5340, %v8104
      %8132 = vst [vmem:[#allocation2 + $0x98] sm:$0xff] %v8119
      %8133 = vst.msk [vmem:[#allocation2 + $0xb0] sm:$0xff] %vm5340, %v8108
      %8134 = vst [vmem:[#allocation2 + $0xb8] sm:$0xff] %v8120
      %8135 = vst.msk [vmem:[#allocation2 + $0xd0] sm:$0xff] %vm5340, %v8112
      %8136 = vst [vmem:[#allocation2 + $0xd8] sm:$0xff] %v8121
      %8137 = vst.msk [vmem:[#allocation2 + $0xf0] sm:$0xff] %vm5340, %v8116
      %8138 = vst [vmem:[#allocation2 + $0xf8] sm:$0xff] %v8122
      %v8139 = vld [vmem:[#allocation3 + $0x10] sm:$0xff]
      %v8140 = vld [vmem:[#allocation3 + $0x18] sm:$0xff]
      %v8141 = vld [vmem:[#allocation3 + $0x30] sm:$0xff]
      %v8142 = vld [vmem:[#allocation3 + $0x38] sm:$0xff]
      %v8143 = vld [vmem:[#allocation3 + $0x50] sm:$0xff]
      %v8144 = vld [vmem:[#allocation3 + $0x58] sm:$0xff]
      %v8145 = vld [vmem:[#allocation3 + $0x70] sm:$0xff]
      %v8146 = vld [vmem:[#allocation3 + $0x78] sm:$0xff]
      %8147 = vst [vmem:[#allocation2 + $0x110] sm:$0xff] %v8139
      %8148 = vst [vmem:[#allocation2 + $0x118] sm:$0xff] %v8140
      %8149 = vst [vmem:[#allocation2 + $0x130] sm:$0xff] %v8141
      %8150 = vst [vmem:[#allocation2 + $0x138] sm:$0xff] %v8142
      %8151 = vst [vmem:[#allocation2 + $0x150] sm:$0xff] %v8143
      %8152 = vst [vmem:[#allocation2 + $0x158] sm:$0xff] %v8144
      %8153 = vst [vmem:[#allocation2 + $0x170] sm:$0xff] %v8145
      %8154 = vst [vmem:[#allocation2 + $0x178] sm:$0xff] %v8146
      %v8155 = vld [vmem:[#allocation3 + $0x10] sm:$0xff]
      %v8156 = vld [vmem:[#allocation3 + $0x18] sm:$0xff]
      %v8157 = vld [vmem:[#allocation3 + $0x30] sm:$0xff]
      %v8158 = vld [vmem:[#allocation3 + $0x38] sm:$0xff]
      %v8159 = vld [vmem:[#allocation3 + $0x50] sm:$0xff]
      %v8160 = vld [vmem:[#allocation3 + $0x58] sm:$0xff]
      %v8161 = vld [vmem:[#allocation3 + $0x70] sm:$0xff]
      %v8162 = vld [vmem:[#allocation3 + $0x78] sm:$0xff]
      %8171 = vrot.lane.b32.xlu0 %v8155, 124
      %v8172 = vpop.permute.xlu0 %8171
      %8173 = vrot.lane.b32.xlu0 %v8156, 124
      %v8174 = vpop.permute.xlu0 %8173
      %8175 = vrot.lane.b32.xlu0 %v8157, 124
      %v8176 = vpop.permute.xlu0 %8175
      %8177 = vrot.lane.b32.xlu0 %v8158, 124
      %v8178 = vpop.permute.xlu0 %8177
      %8179 = vrot.lane.b32.xlu0 %v8159, 124
      %v8180 = vpop.permute.xlu0 %8179
      %8181 = vrot.lane.b32.xlu0 %v8160, 124
      %v8182 = vpop.permute.xlu0 %8181
      %8183 = vrot.lane.b32.xlu0 %v8161, 124
      %v8184 = vpop.permute.xlu0 %8183
      %8185 = vrot.lane.b32.xlu0 %v8162, 124
      %v8186 = vpop.permute.xlu0 %8185
      %v8187 = vsel %vm5741, %v8172, %v8174
      %v8188 = vsel %vm5741, %v8176, %v8178
      %v8189 = vsel %vm5741, %v8180, %v8182
      %v8190 = vsel %vm5741, %v8184, %v8186
      %8199 = vst [vmem:[#allocation2 + $0x190] sm:$0xff] %v8187
      %8200 = vst.msk [vmem:[#allocation2 + $0x198] sm:$0xff] %vm5741, %v8174
      %8201 = vst [vmem:[#allocation2 + $0x1b0] sm:$0xff] %v8188
      %8202 = vst.msk [vmem:[#allocation2 + $0x1b8] sm:$0xff] %vm5741, %v8178
      %8203 = vst [vmem:[#allocation2 + $0x1d0] sm:$0xff] %v8189
      %8204 = vst.msk [vmem:[#allocation2 + $0x1d8] sm:$0xff] %vm5741, %v8182
      %8205 = vst [vmem:[#allocation2 + $0x1f0] sm:$0xff] %v8190
      %8206 = vst.msk [vmem:[#allocation2 + $0x1f8] sm:$0xff] %vm5741, %v8186
      %8211 = vrot.lane.b32.xlu0 %v7993, 124
      %v8212 = vpop.permute.xlu0 %8211
      %8213 = vrot.lane.b32.xlu0 %v7998, 124
      %v8214 = vpop.permute.xlu0 %8213
      %8215 = vrot.lane.b32.xlu0 %v8003, 124
      %v8216 = vpop.permute.xlu0 %8215
      %8217 = vrot.lane.b32.xlu0 %v8008, 124
      %v8218 = vpop.permute.xlu0 %8217
      %8223 = vst.msk [vmem:[#allocation2 + $0x198] sm:$0xff] %vm5806, %v8212
      %8224 = vst.msk [vmem:[#allocation2 + $0x1b8] sm:$0xff] %vm5806, %v8214
      %8225 = vst.msk [vmem:[#allocation2 + $0x1d8] sm:$0xff] %vm5806, %v8216
      %8226 = vst.msk [vmem:[#allocation2 + $0x1f8] sm:$0xff] %vm5806, %v8218
      %v8227 = vld [vmem:[#allocation3 + $0x10] sm:$0xff]
      %v8228 = vld [vmem:[#allocation3 + $0x18] sm:$0xff]
      %v8229 = vld [vmem:[#allocation3 + $0x30] sm:$0xff]
      %v8230 = vld [vmem:[#allocation3 + $0x38] sm:$0xff]
      %v8231 = vld [vmem:[#allocation3 + $0x50] sm:$0xff]
      %v8232 = vld [vmem:[#allocation3 + $0x58] sm:$0xff]
      %v8233 = vld [vmem:[#allocation3 + $0x70] sm:$0xff]
      %v8234 = vld [vmem:[#allocation3 + $0x78] sm:$0xff]
      %8243 = vrot.lane.b32.xlu0 %v8227, 120
      %v8244 = vpop.permute.xlu0 %8243
      %8245 = vrot.lane.b32.xlu0 %v8228, 120
      %v8246 = vpop.permute.xlu0 %8245
      %8247 = vrot.lane.b32.xlu0 %v8229, 120
      %v8248 = vpop.permute.xlu0 %8247
      %8249 = vrot.lane.b32.xlu0 %v8230, 120
      %v8250 = vpop.permute.xlu0 %8249
      %8251 = vrot.lane.b32.xlu0 %v8231, 120
      %v8252 = vpop.permute.xlu0 %8251
      %8253 = vrot.lane.b32.xlu0 %v8232, 120
      %v8254 = vpop.permute.xlu0 %8253
      %8255 = vrot.lane.b32.xlu0 %v8233, 120
      %v8256 = vpop.permute.xlu0 %8255
      %8257 = vrot.lane.b32.xlu0 %v8234, 120
      %v8258 = vpop.permute.xlu0 %8257
      %v8259 = vsel %vm7755, %v8244, %v8246
      %v8260 = vsel %vm7755, %v8248, %v8250
      %v8261 = vsel %vm7755, %v8252, %v8254
      %v8262 = vsel %vm7755, %v8256, %v8258
      %8271 = vst [vmem:[#allocation2 + $0x210] sm:$0xff] %v8259
      %8272 = vst.msk [vmem:[#allocation2 + $0x218] sm:$0xff] %vm7755, %v8246
      %8273 = vst [vmem:[#allocation2 + $0x230] sm:$0xff] %v8260
      %8274 = vst.msk [vmem:[#allocation2 + $0x238] sm:$0xff] %vm7755, %v8250
      %8275 = vst [vmem:[#allocation2 + $0x250] sm:$0xff] %v8261
      %8276 = vst.msk [vmem:[#allocation2 + $0x258] sm:$0xff] %vm7755, %v8254
      %8277 = vst [vmem:[#allocation2 + $0x270] sm:$0xff] %v8262
      %8278 = vst.msk [vmem:[#allocation2 + $0x278] sm:$0xff] %vm7755, %v8258
      %8279 = vrot.lane.b32.xlu0 %v7993, 120
      %v8280 = vpop.permute.xlu0 %8279
      %8281 = vrot.lane.b32.xlu0 %v7998, 120
      %v8282 = vpop.permute.xlu0 %8281
      %8283 = vrot.lane.b32.xlu0 %v8003, 120
      %v8284 = vpop.permute.xlu0 %8283
      %8285 = vrot.lane.b32.xlu0 %v8008, 120
      %v8286 = vpop.permute.xlu0 %8285
      %8291 = vst.msk [vmem:[#allocation2 + $0x218] sm:$0xff] %vm7788, %v8280
      %8292 = vst.msk [vmem:[#allocation2 + $0x238] sm:$0xff] %vm7788, %v8282
      %8293 = vst.msk [vmem:[#allocation2 + $0x258] sm:$0xff] %vm7788, %v8284
      %8294 = vst.msk [vmem:[#allocation2 + $0x278] sm:$0xff] %vm7788, %v8286
      %v8295 = vld [vmem:[#allocation2] sm:$0xff]
      %v8296 = vld [vmem:[#allocation2 + $0x8] sm:$0xff]
      %v8297 = vld [vmem:[#allocation2 + $0x10] sm:$0xff]
      %v8298 = vld [vmem:[#allocation2 + $0x18] sm:$0xff]
      %v8299 = vld [vmem:[#allocation2 + $0x20] sm:$0xff]
      %v8300 = vld [vmem:[#allocation2 + $0x28] sm:$0xff]
      %v8301 = vld [vmem:[#allocation2 + $0x30] sm:$0xff]
      %v8302 = vld [vmem:[#allocation2 + $0x38] sm:$0xff]
      %v8303 = vld [vmem:[#allocation2 + $0x40] sm:$0xff]
      %v8304 = vld [vmem:[#allocation2 + $0x48] sm:$0xff]
      %v8305 = vld [vmem:[#allocation2 + $0x50] sm:$0xff]
      %v8306 = vld [vmem:[#allocation2 + $0x58] sm:$0xff]
      %v8307 = vld [vmem:[#allocation2 + $0x60] sm:$0xff]
      %v8308 = vld [vmem:[#allocation2 + $0x68] sm:$0xff]
      %v8309 = vld [vmem:[#allocation2 + $0x70] sm:$0xff]
      %v8310 = vld [vmem:[#allocation2 + $0x78] sm:$0xff]
      %v8311 = vld [vmem:[#allocation2 + $0x80] sm:$0xff]
      %v8312 = vld [vmem:[#allocation2 + $0x88] sm:$0xff]
      %v8313 = vld [vmem:[#allocation2 + $0x90] sm:$0xff]
      %v8314 = vld [vmem:[#allocation2 + $0x98] sm:$0xff]
      %v8315 = vld [vmem:[#allocation2 + $0xa0] sm:$0xff]
      %v8316 = vld [vmem:[#allocation2 + $0xa8] sm:$0xff]
      %v8317 = vld [vmem:[#allocation2 + $0xb0] sm:$0xff]
      %v8318 = vld [vmem:[#allocation2 + $0xb8] sm:$0xff]
      %v8319 = vld [vmem:[#allocation2 + $0xc0] sm:$0xff]
      %v8320 = vld [vmem:[#allocation2 + $0xc8] sm:$0xff]
      %v8321 = vld [vmem:[#allocation2 + $0xd0] sm:$0xff]
      %v8322 = vld [vmem:[#allocation2 + $0xd8] sm:$0xff]
      %v8323 = vld [vmem:[#allocation2 + $0xe0] sm:$0xff]
      %v8324 = vld [vmem:[#allocation2 + $0xe8] sm:$0xff]
      %v8325 = vld [vmem:[#allocation2 + $0xf0] sm:$0xff]
      %v8326 = vld [vmem:[#allocation2 + $0xf8] sm:$0xff]
      %v8327 = vld [vmem:[#allocation2 + $0x100] sm:$0xff]
      %v8328 = vld [vmem:[#allocation2 + $0x108] sm:$0xff]
      %v8329 = vld [vmem:[#allocation2 + $0x110] sm:$0xff]
      %v8330 = vld [vmem:[#allocation2 + $0x118] sm:$0xff]
      %v8331 = vld [vmem:[#allocation2 + $0x120] sm:$0xff]
      %v8332 = vld [vmem:[#allocation2 + $0x128] sm:$0xff]
      %v8333 = vld [vmem:[#allocation2 + $0x130] sm:$0xff]
      %v8334 = vld [vmem:[#allocation2 + $0x138] sm:$0xff]
      %v8335 = vld [vmem:[#allocation2 + $0x140] sm:$0xff]
      %v8336 = vld [vmem:[#allocation2 + $0x148] sm:$0xff]
      %v8337 = vld [vmem:[#allocation2 + $0x150] sm:$0xff]
      %v8338 = vld [vmem:[#allocation2 + $0x158] sm:$0xff]
      %v8339 = vld [vmem:[#allocation2 + $0x160] sm:$0xff]
      %v8340 = vld [vmem:[#allocation2 + $0x168] sm:$0xff]
      %v8341 = vld [vmem:[#allocation2 + $0x170] sm:$0xff]
      %v8342 = vld [vmem:[#allocation2 + $0x178] sm:$0xff]
      %v8343 = vld [vmem:[#allocation2 + $0x180] sm:$0xff]
      %v8344 = vld [vmem:[#allocation2 + $0x188] sm:$0xff]
      %v8345 = vld [vmem:[#allocation2 + $0x190] sm:$0xff]
      %v8346 = vld [vmem:[#allocation2 + $0x198] sm:$0xff]
      %v8347 = vld [vmem:[#allocation2 + $0x1a0] sm:$0xff]
      %v8348 = vld [vmem:[#allocation2 + $0x1a8] sm:$0xff]
      %v8349 = vld [vmem:[#allocation2 + $0x1b0] sm:$0xff]
      %v8350 = vld [vmem:[#allocation2 + $0x1b8] sm:$0xff]
      %v8351 = vld [vmem:[#allocation2 + $0x1c0] sm:$0xff]
      %v8352 = vld [vmem:[#allocation2 + $0x1c8] sm:$0xff]
      %v8353 = vld [vmem:[#allocation2 + $0x1d0] sm:$0xff]
      %v8354 = vld [vmem:[#allocation2 + $0x1d8] sm:$0xff]
      %v8355 = vld [vmem:[#allocation2 + $0x1e0] sm:$0xff]
      %v8356 = vld [vmem:[#allocation2 + $0x1e8] sm:$0xff]
      %v8357 = vld [vmem:[#allocation2 + $0x1f0] sm:$0xff]
      %v8358 = vld [vmem:[#allocation2 + $0x1f8] sm:$0xff]
      %v8359 = vld [vmem:[#allocation2 + $0x200] sm:$0xff]
      %v8360 = vld [vmem:[#allocation2 + $0x208] sm:$0xff]
      %v8361 = vld [vmem:[#allocation2 + $0x210] sm:$0xff]
      %v8362 = vld [vmem:[#allocation2 + $0x218] sm:$0xff]
      %v8363 = vld [vmem:[#allocation2 + $0x220] sm:$0xff]
      %v8364 = vld [vmem:[#allocation2 + $0x228] sm:$0xff]
      %v8365 = vld [vmem:[#allocation2 + $0x230] sm:$0xff]
      %v8366 = vld [vmem:[#allocation2 + $0x238] sm:$0xff]
      %v8367 = vld [vmem:[#allocation2 + $0x240] sm:$0xff]
      %v8368 = vld [vmem:[#allocation2 + $0x248] sm:$0xff]
      %v8369 = vld [vmem:[#allocation2 + $0x250] sm:$0xff]
      %v8370 = vld [vmem:[#allocation2 + $0x258] sm:$0xff]
      %v8371 = vld [vmem:[#allocation2 + $0x260] sm:$0xff]
      %v8372 = vld [vmem:[#allocation2 + $0x268] sm:$0xff]
      %v8373 = vld [vmem:[#allocation2 + $0x270] sm:$0xff]
      %v8374 = vld [vmem:[#allocation2 + $0x278] sm:$0xff]
      %v8375 = vld [vmem:[%s10] sm:$0xff]
      %v8376 = vld [vmem:[%s10 + $0x8] sm:$0xff]
      %v8377 = vld [vmem:[%s10 + $0x10] sm:$0xff]
      %v8378 = vld [vmem:[%s10 + $0x18] sm:$0xff]
      %v8379 = vld [vmem:[%s11] sm:$0xff]
      %v8380 = vld [vmem:[%s11 + $0x8] sm:$0xff]
      %8382 = vset.pattern.permute.xlu0 0
      %8383 = vperm.xlu0 %8382, %v8379
      %v8384 = vpop.permute.xlu0 %8383
      %8387 = vset.pattern.permute.xlu0 0
      %8388 = vperm.xlu0 %8387, %v8380
      %v8389 = vpop.permute.xlu0 %8388
      %vm8391 = vcmask 261120
      %v8393 = vsel %vm8391, %v8376, 0
      %v8396 = vsel %vm8391, %v8378, 0
      %8398 = vmatprep.subr.mxu0 %v8356
      %8399 = vmatpush1.msra.mxu0 %v8355
      %8400 = vmatprep.subr.mxu0 %v8352
      %8401 = vmatpush1.msra.mxu0 %v8351
      %8402 = vmatprep.subr.mxu0 %v8348
      %8403 = vmatpush1.msra.mxu0 %v8347
      %8404 = vmatprep.subr.mxu0 %v8344
      %8405 = vmatpush1.msra.mxu0 %v8343
      %8406 = vmatprep.subr.mxu0 %v8340
      %8407 = vmatpush1.msra.mxu0 %v8339
      %8408 = vmatprep.subr.mxu0 %v8336
      %8409 = vmatpush1.msra.mxu0 %v8335
      %8410 = vmatprep.subr.mxu0 %v8332
      %8411 = vmatpush1.msra.mxu0 %v8331
      %8412 = vmatprep.subr.mxu0 %v8328
      %8413 = vmatpush1.msra.mxu0 %v8327
      %8414 = vmatprep.subr.mxu0 %v8324
      %8415 = vmatpush1.msra.mxu0 %v8323
      %8416 = vmatprep.subr.mxu0 %v8320
      %8417 = vmatpush1.msra.mxu0 %v8319
      %8418 = vmatprep.subr.mxu0 %v8316
      %8419 = vmatpush1.msra.mxu0 %v8315
      %8420 = vmatprep.subr.mxu0 %v8312
      %8421 = vmatpush1.msra.mxu0 %v8311
      %8422 = vmatprep.subr.mxu0 %v8308
      %8423 = vmatpush1.msra.mxu0 %v8307
      %8424 = vmatprep.subr.mxu0 %v8304
      %8425 = vmatpush1.msra.mxu0 %v8303
      %8426 = vmatprep.subr.mxu0 %v8300
      %8427 = vmatpush1.msra.mxu0 %v8299
      %8428 = vmatprep.subr.mxu0 %v8296
      %8429 = vmatpush1.msra.mxu0 %v8295
      %8430 = vmatprep.subr.mxu0 0.0
      %8431 = vmatpush2.msra.mxu0 0.0
      %8432 = vmatprep.subr.mxu0 0.0
      %8433 = vmatpush2.msra.mxu0 0.0
      %8434 = vmatprep.subr.mxu0 0.0
      %8435 = vmatpush2.msra.mxu0 0.0
      %8436 = vmatprep.subr.mxu0 0.0
      %8437 = vmatpush2.msra.mxu0 0.0
      %8438 = vmatprep.subr.mxu0 0.0
      %8439 = vmatpush2.msra.mxu0 0.0
      %8440 = vmatprep.subr.mxu0 0.0
      %8441 = vmatpush2.msra.mxu0 0.0
      %8442 = vmatprep.subr.mxu0 0.0
      %8443 = vmatpush2.msra.mxu0 0.0
      %8444 = vmatprep.subr.mxu0 0.0
      %8445 = vmatpush2.msra.mxu0 0.0
      %8446 = vmatprep.subr.mxu0 0.0
      %8447 = vmatpush2.msra.mxu0 0.0
      %8448 = vmatprep.subr.mxu0 0.0
      %8449 = vmatpush2.msra.mxu0 0.0
      %8450 = vmatprep.subr.mxu0 0.0
      %8451 = vmatpush2.msra.mxu0 0.0
      %8452 = vmatprep.subr.mxu0 0.0
      %8453 = vmatpush2.msra.mxu0 0.0
      %8454 = vmatprep.subr.mxu0 %v8372
      %8455 = vmatpush2.msra.mxu0 %v8371
      %8456 = vmatprep.subr.mxu0 %v8368
      %8457 = vmatpush2.msra.mxu0 %v8367
      %8458 = vmatprep.subr.mxu0 %v8364
      %8459 = vmatpush2.msra.mxu0 %v8363
      %8460 = vmatprep.subr.mxu0 %v8360
      %8461 = vmatpush2.msra.mxu0 %v8359
      %8462 = vmatprep.mubr.f32.mxu0 %v8393
      %8463 = vmatmul.mubr.f32.gmra.mxu0 %v8375
      %v8464 = vpop.f32.mrf.mxu0
      %v8465 = vadd.f32 %v8384, %v8464
      %v8466 = vpop.f32.mrf.mxu0
      %v8467 = vadd.f32 %v8384, %v8466
      %8468 = vmatprep.mubr.f32.mxu0 %v8396
      %8469 = vmatmul.mubr.f32.gmra.mxu0 %v8377
      %v8470 = vpop.f32.mrf.mxu0
      %v8471 = vadd.f32 %v8389, %v8470
      %v8472 = vpop.f32.mrf.mxu0
      %v8473 = vadd.f32 %v8389, %v8472
      %8474 = vdwg.mxu0
      %8475 = vmatprep.subr.mxu0 %v8358
      %8476 = vmatpush1.msra.mxu0 %v8357
      %8477 = vmatprep.subr.mxu0 %v8354
      %8478 = vmatpush1.msra.mxu0 %v8353
      %8479 = vmatprep.subr.mxu0 %v8350
      %8480 = vmatpush1.msra.mxu0 %v8349
      %8481 = vmatprep.subr.mxu0 %v8346
      %8482 = vmatpush1.msra.mxu0 %v8345
      %8483 = vmatprep.subr.mxu0 %v8342
      %8484 = vmatpush1.msra.mxu0 %v8341
      %8485 = vmatprep.subr.mxu0 %v8338
      %8486 = vmatpush1.msra.mxu0 %v8337
      %8487 = vmatprep.subr.mxu0 %v8334
      %8488 = vmatpush1.msra.mxu0 %v8333
      %8489 = vmatprep.subr.mxu0 %v8330
      %8490 = vmatpush1.msra.mxu0 %v8329
      %8491 = vmatprep.subr.mxu0 %v8326
      %8492 = vmatpush1.msra.mxu0 %v8325
      %8493 = vmatprep.subr.mxu0 %v8322
      %8494 = vmatpush1.msra.mxu0 %v8321
      %8495 = vmatprep.subr.mxu0 %v8318
      %8496 = vmatpush1.msra.mxu0 %v8317
      %8497 = vmatprep.subr.mxu0 %v8314
      %8498 = vmatpush1.msra.mxu0 %v8313
      %8499 = vmatprep.subr.mxu0 %v8310
      %8500 = vmatpush1.msra.mxu0 %v8309
      %8501 = vmatprep.subr.mxu0 %v8306
      %8502 = vmatpush1.msra.mxu0 %v8305
      %8503 = vmatprep.subr.mxu0 %v8302
      %8504 = vmatpush1.msra.mxu0 %v8301
      %8505 = vmatprep.subr.mxu0 %v8298
      %8506 = vmatpush1.msra.mxu0 %v8297
      %8507 = vmatprep.subr.mxu0 0.0
      %8508 = vmatpush2.msra.mxu0 0.0
      %8509 = vmatprep.subr.mxu0 0.0
      %8510 = vmatpush2.msra.mxu0 0.0
      %8511 = vmatprep.subr.mxu0 0.0
      %8512 = vmatpush2.msra.mxu0 0.0
      %8513 = vmatprep.subr.mxu0 0.0
      %8514 = vmatpush2.msra.mxu0 0.0
      %8515 = vmatprep.subr.mxu0 0.0
      %8516 = vmatpush2.msra.mxu0 0.0
      %8517 = vmatprep.subr.mxu0 0.0
      %8518 = vmatpush2.msra.mxu0 0.0
      %8519 = vmatprep.subr.mxu0 0.0
      %8520 = vmatpush2.msra.mxu0 0.0
      %8521 = vmatprep.subr.mxu0 0.0
      %8522 = vmatpush2.msra.mxu0 0.0
      %8523 = vmatprep.subr.mxu0 0.0
      %8524 = vmatpush2.msra.mxu0 0.0
      %8525 = vmatprep.subr.mxu0 0.0
      %8526 = vmatpush2.msra.mxu0 0.0
      %8527 = vmatprep.subr.mxu0 0.0
      %8528 = vmatpush2.msra.mxu0 0.0
      %8529 = vmatprep.subr.mxu0 0.0
      %8530 = vmatpush2.msra.mxu0 0.0
      %8531 = vmatprep.subr.mxu0 %v8374
      %8532 = vmatpush2.msra.mxu0 %v8373
      %8533 = vmatprep.subr.mxu0 %v8370
      %8534 = vmatpush2.msra.mxu0 %v8369
      %8535 = vmatprep.subr.mxu0 %v8366
      %8536 = vmatpush2.msra.mxu0 %v8365
      %8537 = vmatprep.subr.mxu0 %v8362
      %8538 = vmatpush2.msra.mxu0 %v8361
      %8539 = vmatprep.mubr.f32.mxu0 %v8393
      %8540 = vmatmul.mubr.f32.gmra.mxu0 %v8375
      %v8541 = vpop.f32.mrf.mxu0
      %v8542 = vadd.f32 %v8384, %v8541
      %v8543 = vpop.f32.mrf.mxu0
      %v8544 = vadd.f32 %v8384, %v8543
      %8545 = vmatprep.mubr.f32.mxu0 %v8396
      %8546 = vmatmul.mubr.f32.gmra.mxu0 %v8377
      %v8547 = vpop.f32.mrf.mxu0
      %v8548 = vadd.f32 %v8389, %v8547
      %v8549 = vpop.f32.mrf.mxu0
      %v8550 = vadd.f32 %v8389, %v8549
      %8551 = vdwg.mxu0
      %v8552 = vmax.f32 %v8465, 0.0
      %v8553 = vmax.f32 %v8467, 0.0
      %v8554 = vmax.f32 %v8542, 0.0
      %v8555 = vmax.f32 %v8544, 0.0
      %v8556 = vmax.f32 %v8471, 0.0
      %v8557 = vmax.f32 %v8473, 0.0
      %v8558 = vmax.f32 %v8548, 0.0
      %v8559 = vmax.f32 %v8550, 0.0
      %8560 = vst [vmem:[#allocation3] sm:$0xff] %v8552
      %8561 = vst [vmem:[#allocation3 + $0x8] sm:$0xff] %v8553
      %8562 = vst [vmem:[#allocation3 + $0x10] sm:$0xff] %v8554
      %8563 = vst [vmem:[#allocation3 + $0x18] sm:$0xff] %v8555
      %8564 = vst [vmem:[#allocation3 + $0x20] sm:$0xff] %v8556
      %8565 = vst [vmem:[#allocation3 + $0x28] sm:$0xff] %v8557
      %8566 = vst [vmem:[#allocation3 + $0x30] sm:$0xff] %v8558
      %8567 = vst [vmem:[#allocation3 + $0x38] sm:$0xff] %v8559
      %v8568 = vld [vmem:[%s4] sm:$0xff]
      %v8569 = vld [vmem:[%s4 + $0x8] sm:$0xff]
      %v8570 = vld [vmem:[#allocation3] sm:$0xff]
      %v8571 = vld [vmem:[#allocation3 + $0x20] sm:$0xff]
      %8574 = vrot.lane.b32.xlu0 %v8570, 127
      %v8575 = vpop.permute.xlu0 %8574
      %8576 = vrot.lane.b32.xlu0 %v8571, 127
      %v8577 = vpop.permute.xlu0 %8576
      %vm8578 = vcmask 130048
      %v8579 = vsel %vm8578, %v8575, 0
      %v8581 = vsel %vm8578, %v8577, 0
      %8583 = vmatprep.subr.mxu0 0.0
      %8584 = vmatpush1.msra.mxu0 0.0
      %8585 = vmatprep.subr.mxu0 0.0
      %8586 = vmatpush1.msra.mxu0 0.0
      %8587 = vmatprep.subr.mxu0 0.0
      %8588 = vmatpush1.msra.mxu0 0.0
      %8589 = vmatprep.subr.mxu0 0.0
      %8590 = vmatpush1.msra.mxu0 0.0
      %8591 = vmatprep.subr.mxu0 0.0
      %8592 = vmatpush1.msra.mxu0 0.0
      %8593 = vmatprep.subr.mxu0 0.0
      %8594 = vmatpush1.msra.mxu0 0.0
      %8595 = vmatprep.subr.mxu0 0.0
      %8596 = vmatpush1.msra.mxu0 0.0
      %8597 = vmatprep.subr.mxu0 0.0
      %8598 = vmatpush1.msra.mxu0 0.0
      %8599 = vmatprep.subr.mxu0 0.0
      %8600 = vmatpush1.msra.mxu0 0.0
      %8601 = vmatprep.subr.mxu0 0.0
      %8602 = vmatpush1.msra.mxu0 0.0
      %8603 = vmatprep.subr.mxu0 0.0
      %8604 = vmatpush1.msra.mxu0 0.0
      %8605 = vmatprep.subr.mxu0 0.0
      %8606 = vmatpush1.msra.mxu0 0.0
      %8607 = vmatprep.subr.mxu0 0.0
      %8608 = vmatpush1.msra.mxu0 0.0
      %8609 = vmatprep.subr.mxu0 0.0
      %8610 = vmatpush1.msra.mxu0 0.0
      %8611 = vmatprep.subr.mxu0 0.0
      %8612 = vmatpush1.msra.mxu0 %v8569
      %8613 = vmatprep.subr.mxu0 0.0
      %8614 = vmatpush1.msra.mxu0 %v8568
      %8615 = vmatprep.subr.mxu0 0.0
      %8616 = vmatpush2.msra.mxu0 0.0
      %8617 = vmatprep.subr.mxu0 0.0
      %8618 = vmatpush2.msra.mxu0 0.0
      %8619 = vmatprep.subr.mxu0 0.0
      %8620 = vmatpush2.msra.mxu0 0.0
      %8621 = vmatprep.subr.mxu0 0.0
      %8622 = vmatpush2.msra.mxu0 0.0
      %8623 = vmatprep.subr.mxu0 0.0
      %8624 = vmatpush2.msra.mxu0 0.0
      %8625 = vmatprep.subr.mxu0 0.0
      %8626 = vmatpush2.msra.mxu0 0.0
      %8627 = vmatprep.subr.mxu0 0.0
      %8628 = vmatpush2.msra.mxu0 0.0
      %8629 = vmatprep.subr.mxu0 0.0
      %8630 = vmatpush2.msra.mxu0 0.0
      %8631 = vmatprep.subr.mxu0 0.0
      %8632 = vmatpush2.msra.mxu0 0.0
      %8633 = vmatprep.subr.mxu0 0.0
      %8634 = vmatpush2.msra.mxu0 0.0
      %8635 = vmatprep.subr.mxu0 0.0
      %8636 = vmatpush2.msra.mxu0 0.0
      %8637 = vmatprep.subr.mxu0 0.0
      %8638 = vmatpush2.msra.mxu0 0.0
      %8639 = vmatprep.subr.mxu0 0.0
      %8640 = vmatpush2.msra.mxu0 0.0
      %8641 = vmatprep.subr.mxu0 0.0
      %8642 = vmatpush2.msra.mxu0 0.0
      %8643 = vmatprep.subr.mxu0 0.0
      %8644 = vmatpush2.msra.mxu0 0.0
      %8645 = vmatprep.subr.mxu0 0.0
      %8646 = vmatpush2.msra.mxu0 0.0
      %8647 = vmatprep.mubr.f32.mxu0 0.0
      %8648 = vmatmul.mubr.f32.gmra.mxu0 %v8579
      %v8649 = vpop.f32.mrf.mxu0
      %v8650 = vadd.f32 0.0, %v8649
      %v8651 = vpop.f32.mrf.mxu0
      %8652 = vmatprep.mubr.f32.mxu0 0.0
      %8653 = vmatmul.mubr.f32.gmra.mxu0 %v8581
      %v8654 = vpop.f32.mrf.mxu0
      %v8655 = vadd.f32 0.0, %v8654
      %v8656 = vpop.f32.mrf.mxu0
      %8657 = vdwg.mxu0
      %v8658 = vld [vmem:[#allocation3 + $0x8] sm:$0xff]
      %v8659 = vld [vmem:[#allocation3 + $0x28] sm:$0xff]
      %8662 = vrot.lane.b32.xlu0 %v8658, 17
      %v8663 = vpop.permute.xlu0 %8662
      %8664 = vrot.lane.b32.xlu0 %v8659, 17
      %v8665 = vpop.permute.xlu0 %8664
      %v8666 = vsel %vm8578, %v8663, 0
      %v8668 = vsel %vm8578, %v8665, 0
      %8670 = vmatprep.subr.mxu0 0.0
      %8671 = vmatpush1.msra.mxu0 0.0
      %8672 = vmatprep.subr.mxu0 0.0
      %8673 = vmatpush1.msra.mxu0 0.0
      %8674 = vmatprep.subr.mxu0 0.0
      %8675 = vmatpush1.msra.mxu0 0.0
      %8676 = vmatprep.subr.mxu0 0.0
      %8677 = vmatpush1.msra.mxu0 0.0
      %8678 = vmatprep.subr.mxu0 0.0
      %8679 = vmatpush1.msra.mxu0 0.0
      %8680 = vmatprep.subr.mxu0 0.0
      %8681 = vmatpush1.msra.mxu0 0.0
      %8682 = vmatprep.subr.mxu0 0.0
      %8683 = vmatpush1.msra.mxu0 0.0
      %8684 = vmatprep.subr.mxu0 0.0
      %8685 = vmatpush1.msra.mxu0 0.0
      %8686 = vmatprep.subr.mxu0 0.0
      %8687 = vmatpush1.msra.mxu0 0.0
      %8688 = vmatprep.subr.mxu0 0.0
      %8689 = vmatpush1.msra.mxu0 0.0
      %8690 = vmatprep.subr.mxu0 0.0
      %8691 = vmatpush1.msra.mxu0 0.0
      %8692 = vmatprep.subr.mxu0 0.0
      %8693 = vmatpush1.msra.mxu0 0.0
      %8694 = vmatprep.subr.mxu0 0.0
      %8695 = vmatpush1.msra.mxu0 0.0
      %8696 = vmatprep.subr.mxu0 0.0
      %8697 = vmatpush1.msra.mxu0 0.0
      %8698 = vmatprep.subr.mxu0 0.0
      %8699 = vmatpush1.msra.mxu0 %v8569
      %8700 = vmatprep.subr.mxu0 0.0
      %8701 = vmatpush1.msra.mxu0 %v8568
      %8702 = vmatprep.subr.mxu0 0.0
      %8703 = vmatpush2.msra.mxu0 0.0
      %8704 = vmatprep.subr.mxu0 0.0
      %8705 = vmatpush2.msra.mxu0 0.0
      %8706 = vmatprep.subr.mxu0 0.0
      %8707 = vmatpush2.msra.mxu0 0.0
      %8708 = vmatprep.subr.mxu0 0.0
      %8709 = vmatpush2.msra.mxu0 0.0
      %8710 = vmatprep.subr.mxu0 0.0
      %8711 = vmatpush2.msra.mxu0 0.0
      %8712 = vmatprep.subr.mxu0 0.0
      %8713 = vmatpush2.msra.mxu0 0.0
      %8714 = vmatprep.subr.mxu0 0.0
      %8715 = vmatpush2.msra.mxu0 0.0
      %8716 = vmatprep.subr.mxu0 0.0
      %8717 = vmatpush2.msra.mxu0 0.0
      %8718 = vmatprep.subr.mxu0 0.0
      %8719 = vmatpush2.msra.mxu0 0.0
      %8720 = vmatprep.subr.mxu0 0.0
      %8721 = vmatpush2.msra.mxu0 0.0
      %8722 = vmatprep.subr.mxu0 0.0
      %8723 = vmatpush2.msra.mxu0 0.0
      %8724 = vmatprep.subr.mxu0 0.0
      %8725 = vmatpush2.msra.mxu0 0.0
      %8726 = vmatprep.subr.mxu0 0.0
      %8727 = vmatpush2.msra.mxu0 0.0
      %8728 = vmatprep.subr.mxu0 0.0
      %8729 = vmatpush2.msra.mxu0 0.0
      %8730 = vmatprep.subr.mxu0 0.0
      %8731 = vmatpush2.msra.mxu0 0.0
      %8732 = vmatprep.subr.mxu0 0.0
      %8733 = vmatpush2.msra.mxu0 0.0
      %8734 = vmatprep.mubr.f32.mxu0 0.0
      %8735 = vmatmul.mubr.f32.gmra.mxu0 %v8666
      %v8736 = vpop.f32.mrf.mxu0
      %v8737 = vadd.f32 0.0, %v8736
      %v8738 = vpop.f32.mrf.mxu0
      %8739 = vmatprep.mubr.f32.mxu0 0.0
      %8740 = vmatmul.mubr.f32.gmra.mxu0 %v8668
      %v8741 = vpop.f32.mrf.mxu0
      %v8742 = vadd.f32 0.0, %v8741
      %v8743 = vpop.f32.mrf.mxu0
      %8744 = vdwg.mxu0
      %8745 = vst.msk [vmem:[#allocation2] sm:$0xff] %vm8578, %v8650
      %8746 = vst.msk [vmem:[#allocation2 + $0x20] sm:$0xff] %vm8578, %v8655
      %v8747 = vld [vmem:[#allocation3] sm:$0xff]
      %v8748 = vld [vmem:[#allocation3 + $0x8] sm:$0xff]
      %v8749 = vld [vmem:[#allocation3 + $0x20] sm:$0xff]
      %v8750 = vld [vmem:[#allocation3 + $0x28] sm:$0xff]
      %8755 = vrot.lane.b32.xlu0 %v8747, 16
      %v8756 = vpop.permute.xlu0 %8755
      %8757 = vrot.lane.b32.xlu0 %v8748, 16
      %v8758 = vpop.permute.xlu0 %8757
      %8759 = vrot.lane.b32.xlu0 %v8749, 16
      %v8760 = vpop.permute.xlu0 %8759
      %8761 = vrot.lane.b32.xlu0 %v8750, 16
      %v8762 = vpop.permute.xlu0 %8761
      %v8763 = vsel %vm8578, %v8756, %v8758
      %v8764 = vsel %vm8578, %v8760, %v8762
      %vm8769 = vcmask 1047680
      %8770 = vst.msk [vmem:[#allocation2] sm:$0xff] %vm8769, %v8756
      %8771 = vst [vmem:[#allocation2 + $0x8] sm:$0xff] %v8763
      %8772 = vst.msk [vmem:[#allocation2 + $0x20] sm:$0xff] %vm8769, %v8760
      %8773 = vst [vmem:[#allocation2 + $0x28] sm:$0xff] %v8764
      %8776 = vrot.lane.b32.xlu0 %v8650, 120
      %v8777 = vpop.permute.xlu0 %8776
      %8778 = vrot.lane.b32.xlu0 %v8655, 120
      %v8779 = vpop.permute.xlu0 %8778
      %8782 = vst.msk [vmem:[#allocation2 + $0x40] sm:$0xff] %vm7303, %v8777
      %8783 = vst.msk [vmem:[#allocation2 + $0x60] sm:$0xff] %vm7303, %v8779
      %v8784 = vld [vmem:[#allocation3] sm:$0xff]
      %v8785 = vld [vmem:[#allocation3 + $0x8] sm:$0xff]
      %v8786 = vld [vmem:[#allocation3 + $0x20] sm:$0xff]
      %v8787 = vld [vmem:[#allocation3 + $0x28] sm:$0xff]
      %8792 = vrot.lane.b32.xlu0 %v8784, 8
      %v8793 = vpop.permute.xlu0 %8792
      %8794 = vrot.lane.b32.xlu0 %v8785, 8
      %v8795 = vpop.permute.xlu0 %8794
      %8796 = vrot.lane.b32.xlu0 %v8786, 8
      %v8797 = vpop.permute.xlu0 %8796
      %8798 = vrot.lane.b32.xlu0 %v8787, 8
      %v8799 = vpop.permute.xlu0 %8798
      %v8800 = vsel %vm7303, %v8793, %v8795
      %v8801 = vsel %vm7303, %v8797, %v8799
      %8806 = vst.msk [vmem:[#allocation2 + $0x40] sm:$0xff] %vm7554, %v8793
      %8807 = vst [vmem:[#allocation2 + $0x48] sm:$0xff] %v8800
      %8808 = vst.msk [vmem:[#allocation2 + $0x60] sm:$0xff] %vm7554, %v8797
      %8809 = vst [vmem:[#allocation2 + $0x68] sm:$0xff] %v8801
      %v8810 = vld [vmem:[#allocation3] sm:$0xff]
      %v8811 = vld [vmem:[#allocation3 + $0x8] sm:$0xff]
      %v8812 = vld [vmem:[#allocation3 + $0x20] sm:$0xff]
      %v8813 = vld [vmem:[#allocation3 + $0x28] sm:$0xff]
      %8814 = vst [vmem:[#allocation2 + $0x80] sm:$0xff] %v8810
      %8815 = vst [vmem:[#allocation2 + $0x88] sm:$0xff] %v8811
      %8816 = vst [vmem:[#allocation2 + $0xa0] sm:$0xff] %v8812
      %8817 = vst [vmem:[#allocation2 + $0xa8] sm:$0xff] %v8813
      %v8818 = vld [vmem:[#allocation3] sm:$0xff]
      %v8819 = vld [vmem:[#allocation3 + $0x8] sm:$0xff]
      %v8820 = vld [vmem:[#allocation3 + $0x20] sm:$0xff]
      %v8821 = vld [vmem:[#allocation3 + $0x28] sm:$0xff]
      %8826 = vrot.lane.b32.xlu0 %v8818, 120
      %v8827 = vpop.permute.xlu0 %8826
      %8828 = vrot.lane.b32.xlu0 %v8819, 120
      %v8829 = vpop.permute.xlu0 %8828
      %8830 = vrot.lane.b32.xlu0 %v8820, 120
      %v8831 = vpop.permute.xlu0 %8830
      %8832 = vrot.lane.b32.xlu0 %v8821, 120
      %v8833 = vpop.permute.xlu0 %8832
      %v8834 = vsel %vm7755, %v8827, %v8829
      %v8835 = vsel %vm7755, %v8831, %v8833
      %8840 = vst [vmem:[#allocation2 + $0xc0] sm:$0xff] %v8834
      %8841 = vst.msk [vmem:[#allocation2 + $0xc8] sm:$0xff] %vm7755, %v8829
      %8842 = vst [vmem:[#allocation2 + $0xe0] sm:$0xff] %v8835
      %8843 = vst.msk [vmem:[#allocation2 + $0xe8] sm:$0xff] %vm7755, %v8833
      %8846 = vrot.lane.b32.xlu0 %v8737, 120
      %v8847 = vpop.permute.xlu0 %8846
      %8848 = vrot.lane.b32.xlu0 %v8742, 120
      %v8849 = vpop.permute.xlu0 %8848
      %8852 = vst.msk [vmem:[#allocation2 + $0xc8] sm:$0xff] %vm7788, %v8847
      %8853 = vst.msk [vmem:[#allocation2 + $0xe8] sm:$0xff] %vm7788, %v8849
      %v8854 = vld [vmem:[#allocation3] sm:$0xff]
      %v8855 = vld [vmem:[#allocation3 + $0x8] sm:$0xff]
      %v8856 = vld [vmem:[#allocation3 + $0x20] sm:$0xff]
      %v8857 = vld [vmem:[#allocation3 + $0x28] sm:$0xff]
      %8862 = vrot.lane.b32.xlu0 %v8854, 112
      %v8863 = vpop.permute.xlu0 %8862
      %8864 = vrot.lane.b32.xlu0 %v8855, 112
      %v8865 = vpop.permute.xlu0 %8864
      %8866 = vrot.lane.b32.xlu0 %v8856, 112
      %v8867 = vpop.permute.xlu0 %8866
      %8868 = vrot.lane.b32.xlu0 %v8857, 112
      %v8869 = vpop.permute.xlu0 %8868
      %vm8870 = vcmask 916480
      %v8871 = vsel %vm8870, %v8863, %v8865
      %v8872 = vsel %vm8870, %v8867, %v8869
      %8877 = vst [vmem:[#allocation2 + $0x100] sm:$0xff] %v8871
      %8878 = vst.msk [vmem:[#allocation2 + $0x108] sm:$0xff] %vm8870, %v8865
      %8879 = vst [vmem:[#allocation2 + $0x120] sm:$0xff] %v8872
      %8880 = vst.msk [vmem:[#allocation2 + $0x128] sm:$0xff] %vm8870, %v8869
      %8881 = vrot.lane.b32.xlu0 %v8737, 112
      %v8882 = vpop.permute.xlu0 %8881
      %8883 = vrot.lane.b32.xlu0 %v8742, 112
      %v8884 = vpop.permute.xlu0 %8883
      %vm8887 = vcmask 1048448
      %8888 = vst.msk [vmem:[#allocation2 + $0x108] sm:$0xff] %vm8887, %v8882
      %8889 = vst.msk [vmem:[#allocation2 + $0x128] sm:$0xff] %vm8887, %v8884
      %v8890 = vld [vmem:[#allocation3 + $0x10] sm:$0xff]
      %v8891 = vld [vmem:[#allocation3 + $0x30] sm:$0xff]
      %8894 = vrot.lane.b32.xlu0 %v8890, 127
      %v8895 = vpop.permute.xlu0 %8894
      %8896 = vrot.lane.b32.xlu0 %v8891, 127
      %v8897 = vpop.permute.xlu0 %8896
      %v8898 = vsel %vm8578, %v8895, 0
      %v8900 = vsel %vm8578, %v8897, 0
      %8902 = vmatprep.subr.mxu0 0.0
      %8903 = vmatpush1.msra.mxu0 0.0
      %8904 = vmatprep.subr.mxu0 0.0
      %8905 = vmatpush1.msra.mxu0 0.0
      %8906 = vmatprep.subr.mxu0 0.0
      %8907 = vmatpush1.msra.mxu0 0.0
      %8908 = vmatprep.subr.mxu0 0.0
      %8909 = vmatpush1.msra.mxu0 0.0
      %8910 = vmatprep.subr.mxu0 0.0
      %8911 = vmatpush1.msra.mxu0 0.0
      %8912 = vmatprep.subr.mxu0 0.0
      %8913 = vmatpush1.msra.mxu0 0.0
      %8914 = vmatprep.subr.mxu0 0.0
      %8915 = vmatpush1.msra.mxu0 0.0
      %8916 = vmatprep.subr.mxu0 0.0
      %8917 = vmatpush1.msra.mxu0 0.0
      %8918 = vmatprep.subr.mxu0 0.0
      %8919 = vmatpush1.msra.mxu0 0.0
      %8920 = vmatprep.subr.mxu0 0.0
      %8921 = vmatpush1.msra.mxu0 0.0
      %8922 = vmatprep.subr.mxu0 0.0
      %8923 = vmatpush1.msra.mxu0 0.0
      %8924 = vmatprep.subr.mxu0 0.0
      %8925 = vmatpush1.msra.mxu0 0.0
      %8926 = vmatprep.subr.mxu0 0.0
      %8927 = vmatpush1.msra.mxu0 0.0
      %8928 = vmatprep.subr.mxu0 0.0
      %8929 = vmatpush1.msra.mxu0 0.0
      %8930 = vmatprep.subr.mxu0 0.0
      %8931 = vmatpush1.msra.mxu0 %v8569
      %8932 = vmatprep.subr.mxu0 0.0
      %8933 = vmatpush1.msra.mxu0 %v8568
      %8934 = vmatprep.subr.mxu0 0.0
      %8935 = vmatpush2.msra.mxu0 0.0
      %8936 = vmatprep.subr.mxu0 0.0
      %8937 = vmatpush2.msra.mxu0 0.0
      %8938 = vmatprep.subr.mxu0 0.0
      %8939 = vmatpush2.msra.mxu0 0.0
      %8940 = vmatprep.subr.mxu0 0.0
      %8941 = vmatpush2.msra.mxu0 0.0
      %8942 = vmatprep.subr.mxu0 0.0
      %8943 = vmatpush2.msra.mxu0 0.0
      %8944 = vmatprep.subr.mxu0 0.0
      %8945 = vmatpush2.msra.mxu0 0.0
      %8946 = vmatprep.subr.mxu0 0.0
      %8947 = vmatpush2.msra.mxu0 0.0
      %8948 = vmatprep.subr.mxu0 0.0
      %8949 = vmatpush2.msra.mxu0 0.0
      %8950 = vmatprep.subr.mxu0 0.0
      %8951 = vmatpush2.msra.mxu0 0.0
      %8952 = vmatprep.subr.mxu0 0.0
      %8953 = vmatpush2.msra.mxu0 0.0
      %8954 = vmatprep.subr.mxu0 0.0
      %8955 = vmatpush2.msra.mxu0 0.0
      %8956 = vmatprep.subr.mxu0 0.0
      %8957 = vmatpush2.msra.mxu0 0.0
      %8958 = vmatprep.subr.mxu0 0.0
      %8959 = vmatpush2.msra.mxu0 0.0
      %8960 = vmatprep.subr.mxu0 0.0
      %8961 = vmatpush2.msra.mxu0 0.0
      %8962 = vmatprep.subr.mxu0 0.0
      %8963 = vmatpush2.msra.mxu0 0.0
      %8964 = vmatprep.subr.mxu0 0.0
      %8965 = vmatpush2.msra.mxu0 0.0
      %8966 = vmatprep.mubr.f32.mxu0 0.0
      %8967 = vmatmul.mubr.f32.gmra.mxu0 %v8898
      %v8968 = vpop.f32.mrf.mxu0
      %v8969 = vadd.f32 0.0, %v8968
      %v8970 = vpop.f32.mrf.mxu0
      %8971 = vmatprep.mubr.f32.mxu0 0.0
      %8972 = vmatmul.mubr.f32.gmra.mxu0 %v8900
      %v8973 = vpop.f32.mrf.mxu0
      %v8974 = vadd.f32 0.0, %v8973
      %v8975 = vpop.f32.mrf.mxu0
      %8976 = vdwg.mxu0
      %v8977 = vld [vmem:[#allocation3 + $0x18] sm:$0xff]
      %v8978 = vld [vmem:[#allocation3 + $0x38] sm:$0xff]
      %8981 = vrot.lane.b32.xlu0 %v8977, 17
      %v8982 = vpop.permute.xlu0 %8981
      %8983 = vrot.lane.b32.xlu0 %v8978, 17
      %v8984 = vpop.permute.xlu0 %8983
      %v8985 = vsel %vm8578, %v8982, 0
      %v8987 = vsel %vm8578, %v8984, 0
      %8989 = vmatprep.subr.mxu0 0.0
      %8990 = vmatpush1.msra.mxu0 0.0
      %8991 = vmatprep.subr.mxu0 0.0
      %8992 = vmatpush1.msra.mxu0 0.0
      %8993 = vmatprep.subr.mxu0 0.0
      %8994 = vmatpush1.msra.mxu0 0.0
      %8995 = vmatprep.subr.mxu0 0.0
      %8996 = vmatpush1.msra.mxu0 0.0
      %8997 = vmatprep.subr.mxu0 0.0
      %8998 = vmatpush1.msra.mxu0 0.0
      %8999 = vmatprep.subr.mxu0 0.0
      %9000 = vmatpush1.msra.mxu0 0.0
      %9001 = vmatprep.subr.mxu0 0.0
      %9002 = vmatpush1.msra.mxu0 0.0
      %9003 = vmatprep.subr.mxu0 0.0
      %9004 = vmatpush1.msra.mxu0 0.0
      %9005 = vmatprep.subr.mxu0 0.0
      %9006 = vmatpush1.msra.mxu0 0.0
      %9007 = vmatprep.subr.mxu0 0.0
      %9008 = vmatpush1.msra.mxu0 0.0
      %9009 = vmatprep.subr.mxu0 0.0
      %9010 = vmatpush1.msra.mxu0 0.0
      %9011 = vmatprep.subr.mxu0 0.0
      %9012 = vmatpush1.msra.mxu0 0.0
      %9013 = vmatprep.subr.mxu0 0.0
      %9014 = vmatpush1.msra.mxu0 0.0
      %9015 = vmatprep.subr.mxu0 0.0
      %9016 = vmatpush1.msra.mxu0 0.0
      %9017 = vmatprep.subr.mxu0 0.0
      %9018 = vmatpush1.msra.mxu0 %v8569
      %9019 = vmatprep.subr.mxu0 0.0
      %9020 = vmatpush1.msra.mxu0 %v8568
      %9021 = vmatprep.subr.mxu0 0.0
      %9022 = vmatpush2.msra.mxu0 0.0
      %9023 = vmatprep.subr.mxu0 0.0
      %9024 = vmatpush2.msra.mxu0 0.0
      %9025 = vmatprep.subr.mxu0 0.0
      %9026 = vmatpush2.msra.mxu0 0.0
      %9027 = vmatprep.subr.mxu0 0.0
      %9028 = vmatpush2.msra.mxu0 0.0
      %9029 = vmatprep.subr.mxu0 0.0
      %9030 = vmatpush2.msra.mxu0 0.0
      %9031 = vmatprep.subr.mxu0 0.0
      %9032 = vmatpush2.msra.mxu0 0.0
      %9033 = vmatprep.subr.mxu0 0.0
      %9034 = vmatpush2.msra.mxu0 0.0
      %9035 = vmatprep.subr.mxu0 0.0
      %9036 = vmatpush2.msra.mxu0 0.0
      %9037 = vmatprep.subr.mxu0 0.0
      %9038 = vmatpush2.msra.mxu0 0.0
      %9039 = vmatprep.subr.mxu0 0.0
      %9040 = vmatpush2.msra.mxu0 0.0
      %9041 = vmatprep.subr.mxu0 0.0
      %9042 = vmatpush2.msra.mxu0 0.0
      %9043 = vmatprep.subr.mxu0 0.0
      %9044 = vmatpush2.msra.mxu0 0.0
      %9045 = vmatprep.subr.mxu0 0.0
      %9046 = vmatpush2.msra.mxu0 0.0
      %9047 = vmatprep.subr.mxu0 0.0
      %9048 = vmatpush2.msra.mxu0 0.0
      %9049 = vmatprep.subr.mxu0 0.0
      %9050 = vmatpush2.msra.mxu0 0.0
      %9051 = vmatprep.subr.mxu0 0.0
      %9052 = vmatpush2.msra.mxu0 0.0
      %9053 = vmatprep.mubr.f32.mxu0 0.0
      %9054 = vmatmul.mubr.f32.gmra.mxu0 %v8985
      %v9055 = vpop.f32.mrf.mxu0
      %v9056 = vadd.f32 0.0, %v9055
      %v9057 = vpop.f32.mrf.mxu0
      %9058 = vmatprep.mubr.f32.mxu0 0.0
      %9059 = vmatmul.mubr.f32.gmra.mxu0 %v8987
      %v9060 = vpop.f32.mrf.mxu0
      %v9061 = vadd.f32 0.0, %v9060
      %v9062 = vpop.f32.mrf.mxu0
      %9063 = vdwg.mxu0
      %9064 = vst.msk [vmem:[#allocation2 + $0x10] sm:$0xff] %vm8578, %v8969
      %9065 = vst.msk [vmem:[#allocation2 + $0x30] sm:$0xff] %vm8578, %v8974
      %v9066 = vld [vmem:[#allocation3 + $0x10] sm:$0xff]
      %v9067 = vld [vmem:[#allocation3 + $0x18] sm:$0xff]
      %v9068 = vld [vmem:[#allocation3 + $0x30] sm:$0xff]
      %v9069 = vld [vmem:[#allocation3 + $0x38] sm:$0xff]
      %9074 = vrot.lane.b32.xlu0 %v9066, 16
      %v9075 = vpop.permute.xlu0 %9074
      %9076 = vrot.lane.b32.xlu0 %v9067, 16
      %v9077 = vpop.permute.xlu0 %9076
      %9078 = vrot.lane.b32.xlu0 %v9068, 16
      %v9079 = vpop.permute.xlu0 %9078
      %9080 = vrot.lane.b32.xlu0 %v9069, 16
      %v9081 = vpop.permute.xlu0 %9080
      %v9082 = vsel %vm8578, %v9075, %v9077
      %v9083 = vsel %vm8578, %v9079, %v9081
      %9088 = vst.msk [vmem:[#allocation2 + $0x10] sm:$0xff] %vm8769, %v9075
      %9089 = vst [vmem:[#allocation2 + $0x18] sm:$0xff] %v9082
      %9090 = vst.msk [vmem:[#allocation2 + $0x30] sm:$0xff] %vm8769, %v9079
      %9091 = vst [vmem:[#allocation2 + $0x38] sm:$0xff] %v9083
      %9094 = vrot.lane.b32.xlu0 %v8969, 120
      %v9095 = vpop.permute.xlu0 %9094
      %9096 = vrot.lane.b32.xlu0 %v8974, 120
      %v9097 = vpop.permute.xlu0 %9096
      %9100 = vst.msk [vmem:[#allocation2 + $0x50] sm:$0xff] %vm7303, %v9095
      %9101 = vst.msk [vmem:[#allocation2 + $0x70] sm:$0xff] %vm7303, %v9097
      %v9102 = vld [vmem:[#allocation3 + $0x10] sm:$0xff]
      %v9103 = vld [vmem:[#allocation3 + $0x18] sm:$0xff]
      %v9104 = vld [vmem:[#allocation3 + $0x30] sm:$0xff]
      %v9105 = vld [vmem:[#allocation3 + $0x38] sm:$0xff]
      %9110 = vrot.lane.b32.xlu0 %v9102, 8
      %v9111 = vpop.permute.xlu0 %9110
      %9112 = vrot.lane.b32.xlu0 %v9103, 8
      %v9113 = vpop.permute.xlu0 %9112
      %9114 = vrot.lane.b32.xlu0 %v9104, 8
      %v9115 = vpop.permute.xlu0 %9114
      %9116 = vrot.lane.b32.xlu0 %v9105, 8
      %v9117 = vpop.permute.xlu0 %9116
      %v9118 = vsel %vm7303, %v9111, %v9113
      %v9119 = vsel %vm7303, %v9115, %v9117
      %9124 = vst.msk [vmem:[#allocation2 + $0x50] sm:$0xff] %vm7554, %v9111
      %9125 = vst [vmem:[#allocation2 + $0x58] sm:$0xff] %v9118
      %9126 = vst.msk [vmem:[#allocation2 + $0x70] sm:$0xff] %vm7554, %v9115
      %9127 = vst [vmem:[#allocation2 + $0x78] sm:$0xff] %v9119
      %v9128 = vld [vmem:[#allocation3 + $0x10] sm:$0xff]
      %v9129 = vld [vmem:[#allocation3 + $0x18] sm:$0xff]
      %v9130 = vld [vmem:[#allocation3 + $0x30] sm:$0xff]
      %v9131 = vld [vmem:[#allocation3 + $0x38] sm:$0xff]
      %9132 = vst [vmem:[#allocation2 + $0x90] sm:$0xff] %v9128
      %9133 = vst [vmem:[#allocation2 + $0x98] sm:$0xff] %v9129
      %9134 = vst [vmem:[#allocation2 + $0xb0] sm:$0xff] %v9130
      %9135 = vst [vmem:[#allocation2 + $0xb8] sm:$0xff] %v9131
      %v9136 = vld [vmem:[#allocation3 + $0x10] sm:$0xff]
      %v9137 = vld [vmem:[#allocation3 + $0x18] sm:$0xff]
      %v9138 = vld [vmem:[#allocation3 + $0x30] sm:$0xff]
      %v9139 = vld [vmem:[#allocation3 + $0x38] sm:$0xff]
      %9144 = vrot.lane.b32.xlu0 %v9136, 120
      %v9145 = vpop.permute.xlu0 %9144
      %9146 = vrot.lane.b32.xlu0 %v9137, 120
      %v9147 = vpop.permute.xlu0 %9146
      %9148 = vrot.lane.b32.xlu0 %v9138, 120
      %v9149 = vpop.permute.xlu0 %9148
      %9150 = vrot.lane.b32.xlu0 %v9139, 120
      %v9151 = vpop.permute.xlu0 %9150
      %v9152 = vsel %vm7755, %v9145, %v9147
      %v9153 = vsel %vm7755, %v9149, %v9151
      %9158 = vst [vmem:[#allocation2 + $0xd0] sm:$0xff] %v9152
      %9159 = vst.msk [vmem:[#allocation2 + $0xd8] sm:$0xff] %vm7755, %v9147
      %9160 = vst [vmem:[#allocation2 + $0xf0] sm:$0xff] %v9153
      %9161 = vst.msk [vmem:[#allocation2 + $0xf8] sm:$0xff] %vm7755, %v9151
      %9164 = vrot.lane.b32.xlu0 %v9056, 120
      %v9165 = vpop.permute.xlu0 %9164
      %9166 = vrot.lane.b32.xlu0 %v9061, 120
      %v9167 = vpop.permute.xlu0 %9166
      %9170 = vst.msk [vmem:[#allocation2 + $0xd8] sm:$0xff] %vm7788, %v9165
      %9171 = vst.msk [vmem:[#allocation2 + $0xf8] sm:$0xff] %vm7788, %v9167
      %v9172 = vld [vmem:[#allocation3 + $0x10] sm:$0xff]
      %v9173 = vld [vmem:[#allocation3 + $0x18] sm:$0xff]
      %v9174 = vld [vmem:[#allocation3 + $0x30] sm:$0xff]
      %v9175 = vld [vmem:[#allocation3 + $0x38] sm:$0xff]
      %9180 = vrot.lane.b32.xlu0 %v9172, 112
      %v9181 = vpop.permute.xlu0 %9180
      %9182 = vrot.lane.b32.xlu0 %v9173, 112
      %v9183 = vpop.permute.xlu0 %9182
      %9184 = vrot.lane.b32.xlu0 %v9174, 112
      %v9185 = vpop.permute.xlu0 %9184
      %9186 = vrot.lane.b32.xlu0 %v9175, 112
      %v9187 = vpop.permute.xlu0 %9186
      %v9188 = vsel %vm8870, %v9181, %v9183
      %v9189 = vsel %vm8870, %v9185, %v9187
      %9194 = vst [vmem:[#allocation2 + $0x110] sm:$0xff] %v9188
      %9195 = vst.msk [vmem:[#allocation2 + $0x118] sm:$0xff] %vm8870, %v9183
      %9196 = vst [vmem:[#allocation2 + $0x130] sm:$0xff] %v9189
      %9197 = vst.msk [vmem:[#allocation2 + $0x138] sm:$0xff] %vm8870, %v9187
      %9198 = vrot.lane.b32.xlu0 %v9056, 112
      %v9199 = vpop.permute.xlu0 %9198
      %9200 = vrot.lane.b32.xlu0 %v9061, 112
      %v9201 = vpop.permute.xlu0 %9200
      %9204 = vst.msk [vmem:[#allocation2 + $0x118] sm:$0xff] %vm8887, %v9199
      %9205 = vst.msk [vmem:[#allocation2 + $0x138] sm:$0xff] %vm8887, %v9201
      %v9206 = vld [vmem:[#allocation2] sm:$0xff]
      %v9207 = vld [vmem:[#allocation2 + $0x8] sm:$0xff]
      %v9208 = vld [vmem:[#allocation2 + $0x10] sm:$0xff]
      %v9209 = vld [vmem:[#allocation2 + $0x18] sm:$0xff]
      %v9210 = vld [vmem:[#allocation2 + $0x20] sm:$0xff]
      %v9211 = vld [vmem:[#allocation2 + $0x28] sm:$0xff]
      %v9212 = vld [vmem:[#allocation2 + $0x30] sm:$0xff]
      %v9213 = vld [vmem:[#allocation2 + $0x38] sm:$0xff]
      %v9214 = vld [vmem:[#allocation2 + $0x40] sm:$0xff]
      %v9215 = vld [vmem:[#allocation2 + $0x48] sm:$0xff]
      %v9216 = vld [vmem:[#allocation2 + $0x50] sm:$0xff]
      %v9217 = vld [vmem:[#allocation2 + $0x58] sm:$0xff]
      %v9218 = vld [vmem:[#allocation2 + $0x60] sm:$0xff]
      %v9219 = vld [vmem:[#allocation2 + $0x68] sm:$0xff]
      %v9220 = vld [vmem:[#allocation2 + $0x70] sm:$0xff]
      %v9221 = vld [vmem:[#allocation2 + $0x78] sm:$0xff]
      %v9222 = vld [vmem:[#allocation2 + $0x80] sm:$0xff]
      %v9223 = vld [vmem:[#allocation2 + $0x88] sm:$0xff]
      %v9224 = vld [vmem:[#allocation2 + $0x90] sm:$0xff]
      %v9225 = vld [vmem:[#allocation2 + $0x98] sm:$0xff]
      %v9226 = vld [vmem:[#allocation2 + $0xa0] sm:$0xff]
      %v9227 = vld [vmem:[#allocation2 + $0xa8] sm:$0xff]
      %v9228 = vld [vmem:[#allocation2 + $0xb0] sm:$0xff]
      %v9229 = vld [vmem:[#allocation2 + $0xb8] sm:$0xff]
      %v9230 = vld [vmem:[#allocation2 + $0xc0] sm:$0xff]
      %v9231 = vld [vmem:[#allocation2 + $0xc8] sm:$0xff]
      %v9232 = vld [vmem:[#allocation2 + $0xd0] sm:$0xff]
      %v9233 = vld [vmem:[#allocation2 + $0xd8] sm:$0xff]
      %v9234 = vld [vmem:[#allocation2 + $0xe0] sm:$0xff]
      %v9235 = vld [vmem:[#allocation2 + $0xe8] sm:$0xff]
      %v9236 = vld [vmem:[#allocation2 + $0xf0] sm:$0xff]
      %v9237 = vld [vmem:[#allocation2 + $0xf8] sm:$0xff]
      %v9238 = vld [vmem:[#allocation2 + $0x100] sm:$0xff]
      %v9239 = vld [vmem:[#allocation2 + $0x108] sm:$0xff]
      %v9240 = vld [vmem:[#allocation2 + $0x110] sm:$0xff]
      %v9241 = vld [vmem:[#allocation2 + $0x118] sm:$0xff]
      %v9242 = vld [vmem:[#allocation2 + $0x120] sm:$0xff]
      %v9243 = vld [vmem:[#allocation2 + $0x128] sm:$0xff]
      %v9244 = vld [vmem:[#allocation2 + $0x130] sm:$0xff]
      %v9245 = vld [vmem:[#allocation2 + $0x138] sm:$0xff]
      %v9246 = vld [vmem:[%s12] sm:$0xff]
      %v9247 = vld [vmem:[%s13] sm:$0xff]
      %9249 = vset.pattern.permute.xlu0 0
      %9250 = vperm.xlu0 %9249, %v9247
      %v9251 = vpop.permute.xlu0 %9250
      %vm9253 = vcmask 654336
      %v9255 = vsel %vm9253, %v9246, 0
      %9257 = vmatprep.subr.mxu0 0.0
      %9258 = vmatpush1.msra.mxu0 0.0
      %9259 = vmatprep.subr.mxu0 0.0
      %9260 = vmatpush1.msra.mxu0 0.0
      %9261 = vmatprep.subr.mxu0 0.0
      %9262 = vmatpush1.msra.mxu0 0.0
      %9263 = vmatprep.subr.mxu0 0.0
      %9264 = vmatpush1.msra.mxu0 0.0
      %9265 = vmatprep.subr.mxu0 0.0
      %9266 = vmatpush1.msra.mxu0 0.0
      %9267 = vmatprep.subr.mxu0 0.0
      %9268 = vmatpush1.msra.mxu0 0.0
      %9269 = vmatprep.subr.mxu0 %v9243
      %9270 = vmatpush1.msra.mxu0 %v9242
      %9271 = vmatprep.subr.mxu0 %v9239
      %9272 = vmatpush1.msra.mxu0 %v9238
      %9273 = vmatprep.subr.mxu0 %v9235
      %9274 = vmatpush1.msra.mxu0 %v9234
      %9275 = vmatprep.subr.mxu0 %v9231
      %9276 = vmatpush1.msra.mxu0 %v9230
      %9277 = vmatprep.subr.mxu0 %v9227
      %9278 = vmatpush1.msra.mxu0 %v9226
      %9279 = vmatprep.subr.mxu0 %v9223
      %9280 = vmatpush1.msra.mxu0 %v9222
      %9281 = vmatprep.subr.mxu0 %v9219
      %9282 = vmatpush1.msra.mxu0 %v9218
      %9283 = vmatprep.subr.mxu0 %v9215
      %9284 = vmatpush1.msra.mxu0 %v9214
      %9285 = vmatprep.subr.mxu0 %v9211
      %9286 = vmatpush1.msra.mxu0 %v9210
      %9287 = vmatprep.subr.mxu0 %v9207
      %9288 = vmatpush1.msra.mxu0 %v9206
      %9289 = vmatprep.subr.mxu0 0.0
      %9290 = vmatpush2.msra.mxu0 0.0
      %9291 = vmatprep.subr.mxu0 0.0
      %9292 = vmatpush2.msra.mxu0 0.0
      %9293 = vmatprep.subr.mxu0 0.0
      %9294 = vmatpush2.msra.mxu0 0.0
      %9295 = vmatprep.subr.mxu0 0.0
      %9296 = vmatpush2.msra.mxu0 0.0
      %9297 = vmatprep.subr.mxu0 0.0
      %9298 = vmatpush2.msra.mxu0 0.0
      %9299 = vmatprep.subr.mxu0 0.0
      %9300 = vmatpush2.msra.mxu0 0.0
      %9301 = vmatprep.subr.mxu0 0.0
      %9302 = vmatpush2.msra.mxu0 0.0
      %9303 = vmatprep.subr.mxu0 0.0
      %9304 = vmatpush2.msra.mxu0 0.0
      %9305 = vmatprep.subr.mxu0 0.0
      %9306 = vmatpush2.msra.mxu0 0.0
      %9307 = vmatprep.subr.mxu0 0.0
      %9308 = vmatpush2.msra.mxu0 0.0
      %9309 = vmatprep.subr.mxu0 0.0
      %9310 = vmatpush2.msra.mxu0 0.0
      %9311 = vmatprep.subr.mxu0 0.0
      %9312 = vmatpush2.msra.mxu0 0.0
      %9313 = vmatprep.subr.mxu0 0.0
      %9314 = vmatpush2.msra.mxu0 0.0
      %9315 = vmatprep.subr.mxu0 0.0
      %9316 = vmatpush2.msra.mxu0 0.0
      %9317 = vmatprep.subr.mxu0 0.0
      %9318 = vmatpush2.msra.mxu0 0.0
      %9319 = vmatprep.subr.mxu0 0.0
      %9320 = vmatpush2.msra.mxu0 0.0
      %9321 = vmatprep.mubr.f32.mxu0 0.0
      %9322 = vmatmul.mubr.f32.gmra.mxu0 %v9255
      %v9323 = vpop.f32.mrf.mxu0
      %v9324 = vadd.f32 %v9251, %v9323
      %v9325 = vpop.f32.mrf.mxu0
      %v9326 = vadd.f32 %v9251, %v9325
      %9327 = vdwg.mxu0
      %9328 = vmatprep.subr.mxu0 0.0
      %9329 = vmatpush1.msra.mxu0 0.0
      %9330 = vmatprep.subr.mxu0 0.0
      %9331 = vmatpush1.msra.mxu0 0.0
      %9332 = vmatprep.subr.mxu0 0.0
      %9333 = vmatpush1.msra.mxu0 0.0
      %9334 = vmatprep.subr.mxu0 0.0
      %9335 = vmatpush1.msra.mxu0 0.0
      %9336 = vmatprep.subr.mxu0 0.0
      %9337 = vmatpush1.msra.mxu0 0.0
      %9338 = vmatprep.subr.mxu0 0.0
      %9339 = vmatpush1.msra.mxu0 0.0
      %9340 = vmatprep.subr.mxu0 %v9245
      %9341 = vmatpush1.msra.mxu0 %v9244
      %9342 = vmatprep.subr.mxu0 %v9241
      %9343 = vmatpush1.msra.mxu0 %v9240
      %9344 = vmatprep.subr.mxu0 %v9237
      %9345 = vmatpush1.msra.mxu0 %v9236
      %9346 = vmatprep.subr.mxu0 %v9233
      %9347 = vmatpush1.msra.mxu0 %v9232
      %9348 = vmatprep.subr.mxu0 %v9229
      %9349 = vmatpush1.msra.mxu0 %v9228
      %9350 = vmatprep.subr.mxu0 %v9225
      %9351 = vmatpush1.msra.mxu0 %v9224
      %9352 = vmatprep.subr.mxu0 %v9221
      %9353 = vmatpush1.msra.mxu0 %v9220
      %9354 = vmatprep.subr.mxu0 %v9217
      %9355 = vmatpush1.msra.mxu0 %v9216
      %9356 = vmatprep.subr.mxu0 %v9213
      %9357 = vmatpush1.msra.mxu0 %v9212
      %9358 = vmatprep.subr.mxu0 %v9209
      %9359 = vmatpush1.msra.mxu0 %v9208
      %9360 = vmatprep.subr.mxu0 0.0
      %9361 = vmatpush2.msra.mxu0 0.0
      %9362 = vmatprep.subr.mxu0 0.0
      %9363 = vmatpush2.msra.mxu0 0.0
      %9364 = vmatprep.subr.mxu0 0.0
      %9365 = vmatpush2.msra.mxu0 0.0
      %9366 = vmatprep.subr.mxu0 0.0
      %9367 = vmatpush2.msra.mxu0 0.0
      %9368 = vmatprep.subr.mxu0 0.0
      %9369 = vmatpush2.msra.mxu0 0.0
      %9370 = vmatprep.subr.mxu0 0.0
      %9371 = vmatpush2.msra.mxu0 0.0
      %9372 = vmatprep.subr.mxu0 0.0
      %9373 = vmatpush2.msra.mxu0 0.0
      %9374 = vmatprep.subr.mxu0 0.0
      %9375 = vmatpush2.msra.mxu0 0.0
      %9376 = vmatprep.subr.mxu0 0.0
      %9377 = vmatpush2.msra.mxu0 0.0
      %9378 = vmatprep.subr.mxu0 0.0
      %9379 = vmatpush2.msra.mxu0 0.0
      %9380 = vmatprep.subr.mxu0 0.0
      %9381 = vmatpush2.msra.mxu0 0.0
      %9382 = vmatprep.subr.mxu0 0.0
      %9383 = vmatpush2.msra.mxu0 0.0
      %9384 = vmatprep.subr.mxu0 0.0
      %9385 = vmatpush2.msra.mxu0 0.0
      %9386 = vmatprep.subr.mxu0 0.0
      %9387 = vmatpush2.msra.mxu0 0.0
      %9388 = vmatprep.subr.mxu0 0.0
      %9389 = vmatpush2.msra.mxu0 0.0
      %9390 = vmatprep.subr.mxu0 0.0
      %9391 = vmatpush2.msra.mxu0 0.0
      %9392 = vmatprep.mubr.f32.mxu0 0.0
      %9393 = vmatmul.mubr.f32.gmra.mxu0 %v9255
      %v9394 = vpop.f32.mrf.mxu0
      %v9395 = vadd.f32 %v9251, %v9394
      %v9396 = vpop.f32.mrf.mxu0
      %v9397 = vadd.f32 %v9251, %v9396
      %9398 = vdwg.mxu0
      %v9399 = vmax.f32 %v9324, 0.0
      %v9400 = vmax.f32 %v9326, 0.0
      %v9401 = vmax.f32 %v9395, 0.0
      %v9402 = vmax.f32 %v9397, 0.0
      %9403 = vst [vmem:[#allocation3] sm:$0xff] %v9399
      %9404 = vst [vmem:[#allocation3 + $0x8] sm:$0xff] %v9400
      %9405 = vst [vmem:[#allocation3 + $0x10] sm:$0xff] %v9401
      %9406 = vst [vmem:[#allocation3 + $0x18] sm:$0xff] %v9402
      %v9407 = vld [vmem:[%s5] sm:$0xff]
      %v9408 = vld [vmem:[%s5 + $0x8] sm:$0xff]
      %v9409 = vld [vmem:[%s5 + $0x10] sm:$0xff]
      %v9410 = vld [vmem:[%s5 + $0x18] sm:$0xff]
      %v9411 = vld [vmem:[#allocation3] sm:$0xff]
      %9413 = vrot.lane.b32.xlu0 %v9411, 127
      %v9414 = vpop.permute.xlu0 %9413
      %v9415 = vsel %vm8391, %v9414, 0
      %9417 = vmatprep.subr.mxu0 0.0
      %9418 = vmatpush1.msra.mxu0 0.0
      %9419 = vmatprep.subr.mxu0 0.0
      %9420 = vmatpush1.msra.mxu0 0.0
      %9421 = vmatprep.subr.mxu0 0.0
      %9422 = vmatpush1.msra.mxu0 0.0
      %9423 = vmatprep.subr.mxu0 0.0
      %9424 = vmatpush1.msra.mxu0 0.0
      %9425 = vmatprep.subr.mxu0 0.0
      %9426 = vmatpush1.msra.mxu0 0.0
      %9427 = vmatprep.subr.mxu0 0.0
      %9428 = vmatpush1.msra.mxu0 0.0
      %9429 = vmatprep.subr.mxu0 0.0
      %9430 = vmatpush1.msra.mxu0 0.0
      %9431 = vmatprep.subr.mxu0 0.0
      %9432 = vmatpush1.msra.mxu0 0.0
      %9433 = vmatprep.subr.mxu0 0.0
      %9434 = vmatpush1.msra.mxu0 0.0
      %9435 = vmatprep.subr.mxu0 0.0
      %9436 = vmatpush1.msra.mxu0 0.0
      %9437 = vmatprep.subr.mxu0 0.0
      %9438 = vmatpush1.msra.mxu0 0.0
      %9439 = vmatprep.subr.mxu0 0.0
      %9440 = vmatpush1.msra.mxu0 0.0
      %9441 = vmatprep.subr.mxu0 0.0
      %9442 = vmatpush1.msra.mxu0 %v9410
      %9443 = vmatprep.subr.mxu0 0.0
      %9444 = vmatpush1.msra.mxu0 %v9409
      %9445 = vmatprep.subr.mxu0 0.0
      %9446 = vmatpush1.msra.mxu0 %v9408
      %9447 = vmatprep.subr.mxu0 0.0
      %9448 = vmatpush1.msra.mxu0 %v9407
      %9449 = vmatprep.subr.mxu0 0.0
      %9450 = vmatpush2.msra.mxu0 0.0
      %9451 = vmatprep.subr.mxu0 0.0
      %9452 = vmatpush2.msra.mxu0 0.0
      %9453 = vmatprep.subr.mxu0 0.0
      %9454 = vmatpush2.msra.mxu0 0.0
      %9455 = vmatprep.subr.mxu0 0.0
      %9456 = vmatpush2.msra.mxu0 0.0
      %9457 = vmatprep.subr.mxu0 0.0
      %9458 = vmatpush2.msra.mxu0 0.0
      %9459 = vmatprep.subr.mxu0 0.0
      %9460 = vmatpush2.msra.mxu0 0.0
      %9461 = vmatprep.subr.mxu0 0.0
      %9462 = vmatpush2.msra.mxu0 0.0
      %9463 = vmatprep.subr.mxu0 0.0
      %9464 = vmatpush2.msra.mxu0 0.0
      %9465 = vmatprep.subr.mxu0 0.0
      %9466 = vmatpush2.msra.mxu0 0.0
      %9467 = vmatprep.subr.mxu0 0.0
      %9468 = vmatpush2.msra.mxu0 0.0
      %9469 = vmatprep.subr.mxu0 0.0
      %9470 = vmatpush2.msra.mxu0 0.0
      %9471 = vmatprep.subr.mxu0 0.0
      %9472 = vmatpush2.msra.mxu0 0.0
      %9473 = vmatprep.subr.mxu0 0.0
      %9474 = vmatpush2.msra.mxu0 0.0
      %9475 = vmatprep.subr.mxu0 0.0
      %9476 = vmatpush2.msra.mxu0 0.0
      %9477 = vmatprep.subr.mxu0 0.0
      %9478 = vmatpush2.msra.mxu0 0.0
      %9479 = vmatprep.subr.mxu0 0.0
      %9480 = vmatpush2.msra.mxu0 0.0
      %9481 = vmatprep.mubr.f32.mxu0 0.0
      %9482 = vmatmul.mubr.f32.gmra.mxu0 %v9415
      %v9483 = vpop.f32.mrf.mxu0
      %v9484 = vadd.f32 0.0, %v9483
      %v9485 = vpop.f32.mrf.mxu0
      %9486 = vdwg.mxu0
      %v9487 = vld [vmem:[#allocation3 + $0x8] sm:$0xff]
      %9489 = vrot.lane.b32.xlu0 %v9487, 33
      %v9490 = vpop.permute.xlu0 %9489
      %v9491 = vsel %vm8391, %v9490, 0
      %9493 = vmatprep.subr.mxu0 0.0
      %9494 = vmatpush1.msra.mxu0 0.0
      %9495 = vmatprep.subr.mxu0 0.0
      %9496 = vmatpush1.msra.mxu0 0.0
      %9497 = vmatprep.subr.mxu0 0.0
      %9498 = vmatpush1.msra.mxu0 0.0
      %9499 = vmatprep.subr.mxu0 0.0
      %9500 = vmatpush1.msra.mxu0 0.0
      %9501 = vmatprep.subr.mxu0 0.0
      %9502 = vmatpush1.msra.mxu0 0.0
      %9503 = vmatprep.subr.mxu0 0.0
      %9504 = vmatpush1.msra.mxu0 0.0
      %9505 = vmatprep.subr.mxu0 0.0
      %9506 = vmatpush1.msra.mxu0 0.0
      %9507 = vmatprep.subr.mxu0 0.0
      %9508 = vmatpush1.msra.mxu0 0.0
      %9509 = vmatprep.subr.mxu0 0.0
      %9510 = vmatpush1.msra.mxu0 0.0
      %9511 = vmatprep.subr.mxu0 0.0
      %9512 = vmatpush1.msra.mxu0 0.0
      %9513 = vmatprep.subr.mxu0 0.0
      %9514 = vmatpush1.msra.mxu0 0.0
      %9515 = vmatprep.subr.mxu0 0.0
      %9516 = vmatpush1.msra.mxu0 0.0
      %9517 = vmatprep.subr.mxu0 0.0
      %9518 = vmatpush1.msra.mxu0 %v9410
      %9519 = vmatprep.subr.mxu0 0.0
      %9520 = vmatpush1.msra.mxu0 %v9409
      %9521 = vmatprep.subr.mxu0 0.0
      %9522 = vmatpush1.msra.mxu0 %v9408
      %9523 = vmatprep.subr.mxu0 0.0
      %9524 = vmatpush1.msra.mxu0 %v9407
      %9525 = vmatprep.subr.mxu0 0.0
      %9526 = vmatpush2.msra.mxu0 0.0
      %9527 = vmatprep.subr.mxu0 0.0
      %9528 = vmatpush2.msra.mxu0 0.0
      %9529 = vmatprep.subr.mxu0 0.0
      %9530 = vmatpush2.msra.mxu0 0.0
      %9531 = vmatprep.subr.mxu0 0.0
      %9532 = vmatpush2.msra.mxu0 0.0
      %9533 = vmatprep.subr.mxu0 0.0
      %9534 = vmatpush2.msra.mxu0 0.0
      %9535 = vmatprep.subr.mxu0 0.0
      %9536 = vmatpush2.msra.mxu0 0.0
      %9537 = vmatprep.subr.mxu0 0.0
      %9538 = vmatpush2.msra.mxu0 0.0
      %9539 = vmatprep.subr.mxu0 0.0
      %9540 = vmatpush2.msra.mxu0 0.0
      %9541 = vmatprep.subr.mxu0 0.0
      %9542 = vmatpush2.msra.mxu0 0.0
      %9543 = vmatprep.subr.mxu0 0.0
      %9544 = vmatpush2.msra.mxu0 0.0
      %9545 = vmatprep.subr.mxu0 0.0
      %9546 = vmatpush2.msra.mxu0 0.0
      %9547 = vmatprep.subr.mxu0 0.0
      %9548 = vmatpush2.msra.mxu0 0.0
      %9549 = vmatprep.subr.mxu0 0.0
      %9550 = vmatpush2.msra.mxu0 0.0
      %9551 = vmatprep.subr.mxu0 0.0
      %9552 = vmatpush2.msra.mxu0 0.0
      %9553 = vmatprep.subr.mxu0 0.0
      %9554 = vmatpush2.msra.mxu0 0.0
      %9555 = vmatprep.subr.mxu0 0.0
      %9556 = vmatpush2.msra.mxu0 0.0
      %9557 = vmatprep.mubr.f32.mxu0 0.0
      %9558 = vmatmul.mubr.f32.gmra.mxu0 %v9491
      %v9559 = vpop.f32.mrf.mxu0
      %v9560 = vadd.f32 0.0, %v9559
      %v9561 = vpop.f32.mrf.mxu0
      %9562 = vdwg.mxu0
      %9563 = vst.msk [vmem:[#allocation2] sm:$0xff] %vm8391, %v9484
      %v9564 = vld [vmem:[#allocation3] sm:$0xff]
      %v9565 = vld [vmem:[#allocation3 + $0x8] sm:$0xff]
      %9568 = vrot.lane.b32.xlu0 %v9564, 32
      %v9569 = vpop.permute.xlu0 %9568
      %9570 = vrot.lane.b32.xlu0 %v9565, 32
      %v9571 = vpop.permute.xlu0 %9570
      %v9572 = vsel %vm8391, %v9569, %v9571
      %vm9575 = vcmask 1047808
      %9576 = vst.msk [vmem:[#allocation2] sm:$0xff] %vm9575, %v9569
      %9577 = vst [vmem:[#allocation2 + $0x8] sm:$0xff] %v9572
      %9579 = vrot.lane.b32.xlu0 %v9484, 112
      %v9580 = vpop.permute.xlu0 %9579
      %9582 = vst.msk [vmem:[#allocation2 + $0x20] sm:$0xff] %vm8578, %v9580
      %v9583 = vld [vmem:[#allocation3] sm:$0xff]
      %v9584 = vld [vmem:[#allocation3 + $0x8] sm:$0xff]
      %9587 = vrot.lane.b32.xlu0 %v9583, 16
      %v9588 = vpop.permute.xlu0 %9587
      %9589 = vrot.lane.b32.xlu0 %v9584, 16
      %v9590 = vpop.permute.xlu0 %9589
      %v9591 = vsel %vm8578, %v9588, %v9590
      %9594 = vst.msk [vmem:[#allocation2 + $0x20] sm:$0xff] %vm8769, %v9588
      %9595 = vst [vmem:[#allocation2 + $0x28] sm:$0xff] %v9591
      %v9596 = vld [vmem:[#allocation3] sm:$0xff]
      %v9597 = vld [vmem:[#allocation3 + $0x8] sm:$0xff]
      %9598 = vst [vmem:[#allocation2 + $0x40] sm:$0xff] %v9596
      %9599 = vst [vmem:[#allocation2 + $0x48] sm:$0xff] %v9597
      %v9600 = vld [vmem:[#allocation3] sm:$0xff]
      %v9601 = vld [vmem:[#allocation3 + $0x8] sm:$0xff]
      %9604 = vrot.lane.b32.xlu0 %v9600, 112
      %v9605 = vpop.permute.xlu0 %9604
      %9606 = vrot.lane.b32.xlu0 %v9601, 112
      %v9607 = vpop.permute.xlu0 %9606
      %v9608 = vsel %vm8870, %v9605, %v9607
      %9611 = vst [vmem:[#allocation2 + $0x60] sm:$0xff] %v9608
      %9612 = vst.msk [vmem:[#allocation2 + $0x68] sm:$0xff] %vm8870, %v9607
      %9614 = vrot.lane.b32.xlu0 %v9560, 112
      %v9615 = vpop.permute.xlu0 %9614
      %9617 = vst.msk [vmem:[#allocation2 + $0x68] sm:$0xff] %vm8887, %v9615
      %v9618 = vld [vmem:[#allocation3] sm:$0xff]
      %v9619 = vld [vmem:[#allocation3 + $0x8] sm:$0xff]
      %9622 = vrot.lane.b32.xlu0 %v9618, 96
      %v9623 = vpop.permute.xlu0 %9622
      %9624 = vrot.lane.b32.xlu0 %v9619, 96
      %v9625 = vpop.permute.xlu0 %9624
      %vm9626 = vcmask 785408
      %v9627 = vsel %vm9626, %v9623, %v9625
      %9630 = vst [vmem:[#allocation2 + $0x80] sm:$0xff] %v9627
      %9631 = vst.msk [vmem:[#allocation2 + $0x88] sm:$0xff] %vm9626, %v9625
      %9632 = vrot.lane.b32.xlu0 %v9560, 96
      %v9633 = vpop.permute.xlu0 %9632
      %vm9635 = vcmask 1048320
      %9636 = vst.msk [vmem:[#allocation2 + $0x88] sm:$0xff] %vm9635, %v9633
      %v9637 = vld [vmem:[#allocation3 + $0x10] sm:$0xff]
      %9639 = vrot.lane.b32.xlu0 %v9637, 127
      %v9640 = vpop.permute.xlu0 %9639
      %v9641 = vsel %vm8391, %v9640, 0
      %9643 = vmatprep.subr.mxu0 0.0
      %9644 = vmatpush1.msra.mxu0 0.0
      %9645 = vmatprep.subr.mxu0 0.0
      %9646 = vmatpush1.msra.mxu0 0.0
      %9647 = vmatprep.subr.mxu0 0.0
      %9648 = vmatpush1.msra.mxu0 0.0
      %9649 = vmatprep.subr.mxu0 0.0
      %9650 = vmatpush1.msra.mxu0 0.0
      %9651 = vmatprep.subr.mxu0 0.0
      %9652 = vmatpush1.msra.mxu0 0.0
      %9653 = vmatprep.subr.mxu0 0.0
      %9654 = vmatpush1.msra.mxu0 0.0
      %9655 = vmatprep.subr.mxu0 0.0
      %9656 = vmatpush1.msra.mxu0 0.0
      %9657 = vmatprep.subr.mxu0 0.0
      %9658 = vmatpush1.msra.mxu0 0.0
      %9659 = vmatprep.subr.mxu0 0.0
      %9660 = vmatpush1.msra.mxu0 0.0
      %9661 = vmatprep.subr.mxu0 0.0
      %9662 = vmatpush1.msra.mxu0 0.0
      %9663 = vmatprep.subr.mxu0 0.0
      %9664 = vmatpush1.msra.mxu0 0.0
      %9665 = vmatprep.subr.mxu0 0.0
      %9666 = vmatpush1.msra.mxu0 0.0
      %9667 = vmatprep.subr.mxu0 0.0
      %9668 = vmatpush1.msra.mxu0 %v9410
      %9669 = vmatprep.subr.mxu0 0.0
      %9670 = vmatpush1.msra.mxu0 %v9409
      %9671 = vmatprep.subr.mxu0 0.0
      %9672 = vmatpush1.msra.mxu0 %v9408
      %9673 = vmatprep.subr.mxu0 0.0
      %9674 = vmatpush1.msra.mxu0 %v9407
      %9675 = vmatprep.subr.mxu0 0.0
      %9676 = vmatpush2.msra.mxu0 0.0
      %9677 = vmatprep.subr.mxu0 0.0
      %9678 = vmatpush2.msra.mxu0 0.0
      %9679 = vmatprep.subr.mxu0 0.0
      %9680 = vmatpush2.msra.mxu0 0.0
      %9681 = vmatprep.subr.mxu0 0.0
      %9682 = vmatpush2.msra.mxu0 0.0
      %9683 = vmatprep.subr.mxu0 0.0
      %9684 = vmatpush2.msra.mxu0 0.0
      %9685 = vmatprep.subr.mxu0 0.0
      %9686 = vmatpush2.msra.mxu0 0.0
      %9687 = vmatprep.subr.mxu0 0.0
      %9688 = vmatpush2.msra.mxu0 0.0
      %9689 = vmatprep.subr.mxu0 0.0
      %9690 = vmatpush2.msra.mxu0 0.0
      %9691 = vmatprep.subr.mxu0 0.0
      %9692 = vmatpush2.msra.mxu0 0.0
      %9693 = vmatprep.subr.mxu0 0.0
      %9694 = vmatpush2.msra.mxu0 0.0
      %9695 = vmatprep.subr.mxu0 0.0
      %9696 = vmatpush2.msra.mxu0 0.0
      %9697 = vmatprep.subr.mxu0 0.0
      %9698 = vmatpush2.msra.mxu0 0.0
      %9699 = vmatprep.subr.mxu0 0.0
      %9700 = vmatpush2.msra.mxu0 0.0
      %9701 = vmatprep.subr.mxu0 0.0
      %9702 = vmatpush2.msra.mxu0 0.0
      %9703 = vmatprep.subr.mxu0 0.0
      %9704 = vmatpush2.msra.mxu0 0.0
      %9705 = vmatprep.subr.mxu0 0.0
      %9706 = vmatpush2.msra.mxu0 0.0
      %9707 = vmatprep.mubr.f32.mxu0 0.0
      %9708 = vmatmul.mubr.f32.gmra.mxu0 %v9641
      %v9709 = vpop.f32.mrf.mxu0
      %v9710 = vadd.f32 0.0, %v9709
      %v9711 = vpop.f32.mrf.mxu0
      %9712 = vdwg.mxu0
      %v9713 = vld [vmem:[#allocation3 + $0x18] sm:$0xff]
      %9715 = vrot.lane.b32.xlu0 %v9713, 33
      %v9716 = vpop.permute.xlu0 %9715
      %v9717 = vsel %vm8391, %v9716, 0
      %9719 = vmatprep.subr.mxu0 0.0
      %9720 = vmatpush1.msra.mxu0 0.0
      %9721 = vmatprep.subr.mxu0 0.0
      %9722 = vmatpush1.msra.mxu0 0.0
      %9723 = vmatprep.subr.mxu0 0.0
      %9724 = vmatpush1.msra.mxu0 0.0
      %9725 = vmatprep.subr.mxu0 0.0
      %9726 = vmatpush1.msra.mxu0 0.0
      %9727 = vmatprep.subr.mxu0 0.0
      %9728 = vmatpush1.msra.mxu0 0.0
      %9729 = vmatprep.subr.mxu0 0.0
      %9730 = vmatpush1.msra.mxu0 0.0
      %9731 = vmatprep.subr.mxu0 0.0
      %9732 = vmatpush1.msra.mxu0 0.0
      %9733 = vmatprep.subr.mxu0 0.0
      %9734 = vmatpush1.msra.mxu0 0.0
      %9735 = vmatprep.subr.mxu0 0.0
      %9736 = vmatpush1.msra.mxu0 0.0
      %9737 = vmatprep.subr.mxu0 0.0
      %9738 = vmatpush1.msra.mxu0 0.0
      %9739 = vmatprep.subr.mxu0 0.0
      %9740 = vmatpush1.msra.mxu0 0.0
      %9741 = vmatprep.subr.mxu0 0.0
      %9742 = vmatpush1.msra.mxu0 0.0
      %9743 = vmatprep.subr.mxu0 0.0
      %9744 = vmatpush1.msra.mxu0 %v9410
      %9745 = vmatprep.subr.mxu0 0.0
      %9746 = vmatpush1.msra.mxu0 %v9409
      %9747 = vmatprep.subr.mxu0 0.0
      %9748 = vmatpush1.msra.mxu0 %v9408
      %9749 = vmatprep.subr.mxu0 0.0
      %9750 = vmatpush1.msra.mxu0 %v9407
      %9751 = vmatprep.subr.mxu0 0.0
      %9752 = vmatpush2.msra.mxu0 0.0
      %9753 = vmatprep.subr.mxu0 0.0
      %9754 = vmatpush2.msra.mxu0 0.0
      %9755 = vmatprep.subr.mxu0 0.0
      %9756 = vmatpush2.msra.mxu0 0.0
      %9757 = vmatprep.subr.mxu0 0.0
      %9758 = vmatpush2.msra.mxu0 0.0
      %9759 = vmatprep.subr.mxu0 0.0
      %9760 = vmatpush2.msra.mxu0 0.0
      %9761 = vmatprep.subr.mxu0 0.0
      %9762 = vmatpush2.msra.mxu0 0.0
      %9763 = vmatprep.subr.mxu0 0.0
      %9764 = vmatpush2.msra.mxu0 0.0
      %9765 = vmatprep.subr.mxu0 0.0
      %9766 = vmatpush2.msra.mxu0 0.0
      %9767 = vmatprep.subr.mxu0 0.0
      %9768 = vmatpush2.msra.mxu0 0.0
      %9769 = vmatprep.subr.mxu0 0.0
      %9770 = vmatpush2.msra.mxu0 0.0
      %9771 = vmatprep.subr.mxu0 0.0
      %9772 = vmatpush2.msra.mxu0 0.0
      %9773 = vmatprep.subr.mxu0 0.0
      %9774 = vmatpush2.msra.mxu0 0.0
      %9775 = vmatprep.subr.mxu0 0.0
      %9776 = vmatpush2.msra.mxu0 0.0
      %9777 = vmatprep.subr.mxu0 0.0
      %9778 = vmatpush2.msra.mxu0 0.0
      %9779 = vmatprep.subr.mxu0 0.0
      %9780 = vmatpush2.msra.mxu0 0.0
      %9781 = vmatprep.subr.mxu0 0.0
      %9782 = vmatpush2.msra.mxu0 0.0
      %9783 = vmatprep.mubr.f32.mxu0 0.0
      %9784 = vmatmul.mubr.f32.gmra.mxu0 %v9717
      %v9785 = vpop.f32.mrf.mxu0
      %v9786 = vadd.f32 0.0, %v9785
      %v9787 = vpop.f32.mrf.mxu0
      %9788 = vdwg.mxu0
      %9789 = vst.msk [vmem:[#allocation2 + $0x10] sm:$0xff] %vm8391, %v9710
      %v9790 = vld [vmem:[#allocation3 + $0x10] sm:$0xff]
      %v9791 = vld [vmem:[#allocation3 + $0x18] sm:$0xff]
      %9794 = vrot.lane.b32.xlu0 %v9790, 32
      %v9795 = vpop.permute.xlu0 %9794
      %9796 = vrot.lane.b32.xlu0 %v9791, 32
      %v9797 = vpop.permute.xlu0 %9796
      %v9798 = vsel %vm8391, %v9795, %v9797
      %9801 = vst.msk [vmem:[#allocation2 + $0x10] sm:$0xff] %vm9575, %v9795
      %9802 = vst [vmem:[#allocation2 + $0x18] sm:$0xff] %v9798
      %9804 = vrot.lane.b32.xlu0 %v9710, 112
      %v9805 = vpop.permute.xlu0 %9804
      %9807 = vst.msk [vmem:[#allocation2 + $0x30] sm:$0xff] %vm8578, %v9805
      %v9808 = vld [vmem:[#allocation3 + $0x10] sm:$0xff]
      %v9809 = vld [vmem:[#allocation3 + $0x18] sm:$0xff]
      %9812 = vrot.lane.b32.xlu0 %v9808, 16
      %v9813 = vpop.permute.xlu0 %9812
      %9814 = vrot.lane.b32.xlu0 %v9809, 16
      %v9815 = vpop.permute.xlu0 %9814
      %v9816 = vsel %vm8578, %v9813, %v9815
      %9819 = vst.msk [vmem:[#allocation2 + $0x30] sm:$0xff] %vm8769, %v9813
      %9820 = vst [vmem:[#allocation2 + $0x38] sm:$0xff] %v9816
      %v9821 = vld [vmem:[#allocation3 + $0x10] sm:$0xff]
      %v9822 = vld [vmem:[#allocation3 + $0x18] sm:$0xff]
      %9823 = vst [vmem:[#allocation2 + $0x50] sm:$0xff] %v9821
      %9824 = vst [vmem:[#allocation2 + $0x58] sm:$0xff] %v9822
      %v9825 = vld [vmem:[#allocation3 + $0x10] sm:$0xff]
      %v9826 = vld [vmem:[#allocation3 + $0x18] sm:$0xff]
      %9829 = vrot.lane.b32.xlu0 %v9825, 112
      %v9830 = vpop.permute.xlu0 %9829
      %9831 = vrot.lane.b32.xlu0 %v9826, 112
      %v9832 = vpop.permute.xlu0 %9831
      %v9833 = vsel %vm8870, %v9830, %v9832
      %9836 = vst [vmem:[#allocation2 + $0x70] sm:$0xff] %v9833
      %9837 = vst.msk [vmem:[#allocation2 + $0x78] sm:$0xff] %vm8870, %v9832
      %9839 = vrot.lane.b32.xlu0 %v9786, 112
      %v9840 = vpop.permute.xlu0 %9839
      %9842 = vst.msk [vmem:[#allocation2 + $0x78] sm:$0xff] %vm8887, %v9840
      %v9843 = vld [vmem:[#allocation3 + $0x10] sm:$0xff]
      %v9844 = vld [vmem:[#allocation3 + $0x18] sm:$0xff]
      %9847 = vrot.lane.b32.xlu0 %v9843, 96
      %v9848 = vpop.permute.xlu0 %9847
      %9849 = vrot.lane.b32.xlu0 %v9844, 96
      %v9850 = vpop.permute.xlu0 %9849
      %v9851 = vsel %vm9626, %v9848, %v9850
      %9854 = vst [vmem:[#allocation2 + $0x90] sm:$0xff] %v9851
      %9855 = vst.msk [vmem:[#allocation2 + $0x98] sm:$0xff] %vm9626, %v9850
      %9856 = vrot.lane.b32.xlu0 %v9786, 96
      %v9857 = vpop.permute.xlu0 %9856
      %9859 = vst.msk [vmem:[#allocation2 + $0x98] sm:$0xff] %vm9635, %v9857
      %v9860 = vld [vmem:[#allocation2] sm:$0xff]
      %v9861 = vld [vmem:[#allocation2 + $0x8] sm:$0xff]
      %v9862 = vld [vmem:[#allocation2 + $0x10] sm:$0xff]
      %v9863 = vld [vmem:[#allocation2 + $0x18] sm:$0xff]
      %v9864 = vld [vmem:[#allocation2 + $0x20] sm:$0xff]
      %v9865 = vld [vmem:[#allocation2 + $0x28] sm:$0xff]
      %v9866 = vld [vmem:[#allocation2 + $0x30] sm:$0xff]
      %v9867 = vld [vmem:[#allocation2 + $0x38] sm:$0xff]
      %v9868 = vld [vmem:[#allocation2 + $0x40] sm:$0xff]
      %v9869 = vld [vmem:[#allocation2 + $0x48] sm:$0xff]
      %v9870 = vld [vmem:[#allocation2 + $0x50] sm:$0xff]
      %v9871 = vld [vmem:[#allocation2 + $0x58] sm:$0xff]
      %v9872 = vld [vmem:[#allocation2 + $0x60] sm:$0xff]
      %v9873 = vld [vmem:[#allocation2 + $0x68] sm:$0xff]
      %v9874 = vld [vmem:[#allocation2 + $0x70] sm:$0xff]
      %v9875 = vld [vmem:[#allocation2 + $0x78] sm:$0xff]
      %v9876 = vld [vmem:[#allocation2 + $0x80] sm:$0xff]
      %v9877 = vld [vmem:[#allocation2 + $0x88] sm:$0xff]
      %v9878 = vld [vmem:[#allocation2 + $0x90] sm:$0xff]
      %v9879 = vld [vmem:[#allocation2 + $0x98] sm:$0xff]
      %v9880 = vld [vmem:[%s14] sm:$0x1]
      %v9881 = vld [vmem:[#allocation4] sm:$0x1]
      %9883 = vset.pattern.permute.xlu0 0
      %9884 = vperm.xlu0 %9883, %v9881
      %v9885 = vpop.permute.xlu0 %9884
      %v9887 = vlaneseq
      %v9888 = vshrl.u32 %v9887, 7
      %v9889 = vsub.s32 0, %v9888
      %v9890 = vrot.slane %v9885, %v9889
      %vm9891 = vcmask 326656
      %v9893 = vsel %vm9891, %v9880, 0
      %9895 = vmatprep.subr.mxu0 0.0
      %9896 = vmatpush1.msra.mxu0 0.0
      %9897 = vmatprep.subr.mxu0 0.0
      %9898 = vmatpush1.msra.mxu0 0.0
      %9899 = vmatprep.subr.mxu0 0.0
      %9900 = vmatpush1.msra.mxu0 0.0
      %9901 = vmatprep.subr.mxu0 0.0
      %9902 = vmatpush1.msra.mxu0 0.0
      %9903 = vmatprep.subr.mxu0 0.0
      %9904 = vmatpush1.msra.mxu0 0.0
      %9905 = vmatprep.subr.mxu0 0.0
      %9906 = vmatpush1.msra.mxu0 0.0
      %9907 = vmatprep.subr.mxu0 0.0
      %9908 = vmatpush1.msra.mxu0 0.0
      %9909 = vmatprep.subr.mxu0 0.0
      %9910 = vmatpush1.msra.mxu0 0.0
      %9911 = vmatprep.subr.mxu0 0.0
      %9912 = vmatpush1.msra.mxu0 0.0
      %9913 = vmatprep.subr.mxu0 0.0
      %9914 = vmatpush1.msra.mxu0 0.0
      %9915 = vmatprep.subr.mxu0 0.0
      %9916 = vmatpush1.msra.mxu0 0.0
      %9917 = vmatprep.subr.mxu0 %v9877
      %9918 = vmatpush1.msra.mxu0 %v9876
      %9919 = vmatprep.subr.mxu0 %v9873
      %9920 = vmatpush1.msra.mxu0 %v9872
      %9921 = vmatprep.subr.mxu0 %v9869
      %9922 = vmatpush1.msra.mxu0 %v9868
      %9923 = vmatprep.subr.mxu0 %v9865
      %9924 = vmatpush1.msra.mxu0 %v9864
      %9925 = vmatprep.subr.mxu0 %v9861
      %9926 = vmatpush1.msra.mxu0 %v9860
      %9927 = vmatprep.subr.mxu0 0.0
      %9928 = vmatpush2.msra.mxu0 0.0
      %9929 = vmatprep.subr.mxu0 0.0
      %9930 = vmatpush2.msra.mxu0 0.0
      %9931 = vmatprep.subr.mxu0 0.0
      %9932 = vmatpush2.msra.mxu0 0.0
      %9933 = vmatprep.subr.mxu0 0.0
      %9934 = vmatpush2.msra.mxu0 0.0
      %9935 = vmatprep.subr.mxu0 0.0
      %9936 = vmatpush2.msra.mxu0 0.0
      %9937 = vmatprep.subr.mxu0 0.0
      %9938 = vmatpush2.msra.mxu0 0.0
      %9939 = vmatprep.subr.mxu0 0.0
      %9940 = vmatpush2.msra.mxu0 0.0
      %9941 = vmatprep.subr.mxu0 0.0
      %9942 = vmatpush2.msra.mxu0 0.0
      %9943 = vmatprep.subr.mxu0 0.0
      %9944 = vmatpush2.msra.mxu0 0.0
      %9945 = vmatprep.subr.mxu0 0.0
      %9946 = vmatpush2.msra.mxu0 0.0
      %9947 = vmatprep.subr.mxu0 0.0
      %9948 = vmatpush2.msra.mxu0 0.0
      %9949 = vmatprep.subr.mxu0 0.0
      %9950 = vmatpush2.msra.mxu0 0.0
      %9951 = vmatprep.subr.mxu0 0.0
      %9952 = vmatpush2.msra.mxu0 0.0
      %9953 = vmatprep.subr.mxu0 0.0
      %9954 = vmatpush2.msra.mxu0 0.0
      %9955 = vmatprep.subr.mxu0 0.0
      %9956 = vmatpush2.msra.mxu0 0.0
      %9957 = vmatprep.subr.mxu0 0.0
      %9958 = vmatpush2.msra.mxu0 0.0
      %9959 = vmatprep.mubr.f32.mxu0 0.0
      %9960 = vmatmul.mubr.f32.gmra.mxu0 %v9893
      %v9961 = vpop.f32.mrf.mxu0
      %v9962 = vadd.f32 %v9890, %v9961
      %v9963 = vpop.f32.mrf.mxu0
      %v9964 = vadd.f32 %v9890, %v9963
      %9965 = vdwg.mxu0
      %9966 = vmatprep.subr.mxu0 0.0
      %9967 = vmatpush1.msra.mxu0 0.0
      %9968 = vmatprep.subr.mxu0 0.0
      %9969 = vmatpush1.msra.mxu0 0.0
      %9970 = vmatprep.subr.mxu0 0.0
      %9971 = vmatpush1.msra.mxu0 0.0
      %9972 = vmatprep.subr.mxu0 0.0
      %9973 = vmatpush1.msra.mxu0 0.0
      %9974 = vmatprep.subr.mxu0 0.0
      %9975 = vmatpush1.msra.mxu0 0.0
      %9976 = vmatprep.subr.mxu0 0.0
      %9977 = vmatpush1.msra.mxu0 0.0
      %9978 = vmatprep.subr.mxu0 0.0
      %9979 = vmatpush1.msra.mxu0 0.0
      %9980 = vmatprep.subr.mxu0 0.0
      %9981 = vmatpush1.msra.mxu0 0.0
      %9982 = vmatprep.subr.mxu0 0.0
      %9983 = vmatpush1.msra.mxu0 0.0
      %9984 = vmatprep.subr.mxu0 0.0
      %9985 = vmatpush1.msra.mxu0 0.0
      %9986 = vmatprep.subr.mxu0 0.0
      %9987 = vmatpush1.msra.mxu0 0.0
      %9988 = vmatprep.subr.mxu0 %v9879
      %9989 = vmatpush1.msra.mxu0 %v9878
      %9990 = vmatprep.subr.mxu0 %v9875
      %9991 = vmatpush1.msra.mxu0 %v9874
      %9992 = vmatprep.subr.mxu0 %v9871
      %9993 = vmatpush1.msra.mxu0 %v9870
      %9994 = vmatprep.subr.mxu0 %v9867
      %9995 = vmatpush1.msra.mxu0 %v9866
      %9996 = vmatprep.subr.mxu0 %v9863
      %9997 = vmatpush1.msra.mxu0 %v9862
      %9998 = vmatprep.subr.mxu0 0.0
      %9999 = vmatpush2.msra.mxu0 0.0
      %10000 = vmatprep.subr.mxu0 0.0
      %10001 = vmatpush2.msra.mxu0 0.0
      %10002 = vmatprep.subr.mxu0 0.0
      %10003 = vmatpush2.msra.mxu0 0.0
      %10004 = vmatprep.subr.mxu0 0.0
      %10005 = vmatpush2.msra.mxu0 0.0
      %10006 = vmatprep.subr.mxu0 0.0
      %10007 = vmatpush2.msra.mxu0 0.0
      %10008 = vmatprep.subr.mxu0 0.0
      %10009 = vmatpush2.msra.mxu0 0.0
      %10010 = vmatprep.subr.mxu0 0.0
      %10011 = vmatpush2.msra.mxu0 0.0
      %10012 = vmatprep.subr.mxu0 0.0
      %10013 = vmatpush2.msra.mxu0 0.0
      %10014 = vmatprep.subr.mxu0 0.0
      %10015 = vmatpush2.msra.mxu0 0.0
      %10016 = vmatprep.subr.mxu0 0.0
      %10017 = vmatpush2.msra.mxu0 0.0
      %10018 = vmatprep.subr.mxu0 0.0
      %10019 = vmatpush2.msra.mxu0 0.0
      %10020 = vmatprep.subr.mxu0 0.0
      %10021 = vmatpush2.msra.mxu0 0.0
      %10022 = vmatprep.subr.mxu0 0.0
      %10023 = vmatpush2.msra.mxu0 0.0
      %10024 = vmatprep.subr.mxu0 0.0
      %10025 = vmatpush2.msra.mxu0 0.0
      %10026 = vmatprep.subr.mxu0 0.0
      %10027 = vmatpush2.msra.mxu0 0.0
      %10028 = vmatprep.subr.mxu0 0.0
      %10029 = vmatpush2.msra.mxu0 0.0
      %10030 = vmatprep.mubr.f32.mxu0 0.0
      %10031 = vmatmul.mubr.f32.gmra.mxu0 %v9893
      %v10032 = vpop.f32.mrf.mxu0
      %v10033 = vadd.f32 %v9890, %v10032
      %v10034 = vpop.f32.mrf.mxu0
      %v10035 = vadd.f32 %v9890, %v10034
      %10036 = vdwg.mxu0
      %10039 = vrot.lane.b32.xlu0 %v9962, 1
      %v10040 = vpop.permute.xlu0 %10039
      %10041 = vrot.lane.b32.xlu0 %v9964, 1
      %v10042 = vpop.permute.xlu0 %10041
      %v10043 = vsel %vm1309, %v10040, %v10042
      %v10046 = vsel %vm1309, %v9962, %v10040
      %10047 = vrot.lane.b32.xlu0 %v9962, 127
      %v10048 = vpop.permute.xlu0 %10047
      %10049 = vrot.lane.b32.xlu0 %v9964, 127
      %v10050 = vpop.permute.xlu0 %10049
      %v10051 = vsel %vm1727, %v10048, %v10050
      %v10054 = vsel %vm1727, %v10050, %v9964
      %v10055 = vmul.f32 %v10046, 0.25
      %v10056 = vmul.f32 %v10043, 0.25
      %v10057 = vmul.f32 %v9962, 0.75
      %v10058 = vmul.f32 %v9964, 0.75
      %v10059 = vadd.f32 %v10055, %v10057
      %v10060 = vadd.f32 %v10056, %v10058
      %v10061 = vmul.f32 %v10051, 0.25
      %v10062 = vmul.f32 %v10054, 0.25
      %v10063 = vadd.f32 %v10057, %v10061
      %v10064 = vadd.f32 %v10058, %v10062
      %v10067 = vrot.slane %v10063, 7
      %v10068 = vrot.slane %v10064, 7
      %vm10071 = vcmask 1040384
      %v10072 = vsel %vm10071, %v10059, %v10067
      %v10073 = vsel %vm10071, %v10060, %v10068
      %v10076 = vcombine.low %v10072, %v10073
      %v10078 = vunpack.c.l.s4 1983009808
      %v10079 = vunpack.c.0.s8 %v10078
      %v10080 = vlaneseq
      %v10081 = vshrl.u32 %v10080, 7
      %v10082 = vsub.s32 %v10079, %v10081
      %v10083 = vrot.slane %v10076, %v10082
      %10085 = vst [vmem:[%s530] sm:$0xf] %v10083
      %10088 = vrot.lane.b32.xlu0 %v10033, 1
      %v10089 = vpop.permute.xlu0 %10088
      %10090 = vrot.lane.b32.xlu0 %v10035, 1
      %v10091 = vpop.permute.xlu0 %10090
      %v10092 = vsel %vm1309, %v10089, %v10091
      %v10095 = vsel %vm1309, %v10033, %v10089
      %10096 = vrot.lane.b32.xlu0 %v10033, 127
      %v10097 = vpop.permute.xlu0 %10096
      %10098 = vrot.lane.b32.xlu0 %v10035, 127
      %v10099 = vpop.permute.xlu0 %10098
      %v10100 = vsel %vm1727, %v10097, %v10099
      %v10103 = vsel %vm1727, %v10099, %v10035
      %v10104 = vmul.f32 %v10095, 0.25
      %v10105 = vmul.f32 %v10092, 0.25
      %v10106 = vmul.f32 %v10033, 0.75
      %v10107 = vmul.f32 %v10035, 0.75
      %v10108 = vadd.f32 %v10104, %v10106
      %v10109 = vadd.f32 %v10105, %v10107
      %v10110 = vmul.f32 %v10100, 0.25
      %v10111 = vmul.f32 %v10103, 0.25
      %v10112 = vadd.f32 %v10106, %v10110
      %v10113 = vadd.f32 %v10107, %v10111
      %v10116 = vrot.slane %v10112, 7
      %v10117 = vrot.slane %v10113, 7
      %v10120 = vsel %vm10071, %v10108, %v10116
      %v10121 = vsel %vm10071, %v10109, %v10117
      %v10124 = vcombine.low %v10120, %v10121
      %v10126 = vunpack.c.l.s4 1983009808
      %v10127 = vunpack.c.0.s8 %v10126
      %v10128 = vlaneseq
      %v10129 = vshrl.u32 %v10128, 7
      %v10130 = vsub.s32 %v10127, %v10129
      %v10131 = vrot.slane %v10124, %v10130
      %s10133 = scalar_lea.vmem %s530, 4
      %10134 = vst [vmem:[%s10133] sm:$0xf] %v10131
      %s10135 = smul.u32 2, %s29
      %p10136 = scmp.lt.s32.totalorder %s10135, 3
      %s10137 = scalar_select %p10136, %s10135, 3
      %s10138 = smul.addr %s10137, 2
      %s10139 = smul.addr %s10138, 2
      %s10140 = scalar_lea.vmem %s16, %s10139
      // Predicated region
      $region85: #{event_detector_forward.1} parent=83 // pred_check
        %p10141 = pneg %p388
      $region86: #{event_detector_forward.1} parent=83 // pred_check_branch
        %10143 = sbr.rel (%p10141) target = $region88
      $region87: #{event_detector_forward.1} parent=83 // pred_region
        %s10144 = smul.u32 2, %s29
      $region88: #{event_detector_forward.1} parent=83 // pred_fallthru
        _
    $region84: #{event_detector_forward.1} parent=5 // pred_fallthru
      _
    %p10145 = scmp.le.s32.totalorder 2, %s24
    // Predicated region
    $region89: #{event_detector_forward.1} parent=5 // pred_check
      %p10146 = pneg %p10145
    $region90: #{event_detector_forward.1} parent=5 // pred_check_branch
      %10148 = sbr.rel (%p10146) target = $region92
    $region91: #{event_detector_forward.1} parent=5 // pred_region
      %s10149 = ssub.s32 %s24, 2
      // Predicated region
      $region93: #{event_detector_forward.1} parent=91 // pred_check
        %p10150 = pneg %p394
      $region94: #{event_detector_forward.1} parent=91 // pred_check_branch
        %10152 = sbr.rel (%p10150) target = $region96
      $region95: #{event_detector_forward.1} parent=91 // pred_region
        %s10153 = smul.u32 2, %s30
        %p10154 = scmp.lt.s32.totalorder %s10153, 3
        %s10155 = scalar_select %p10154, %s10153, 3
        %s10156 = smul.addr %s10155, 2
        %s10157 = smul.addr %s10156, 2
        %s10158 = scalar_lea.vmem %s16, %s10157
      $region96: #{event_detector_forward.1} parent=91 // pred_fallthru
        _
    $region92: #{event_detector_forward.1} parent=5 // pred_fallthru
      _
  $region6: #{event_detector_forward.1} parent=0 // loop_footer
    %s28 = sadd.s32 1, %s24
  $region7: #{event_detector_forward.1} parent=0 // loop_footer_branch
    %23 = sbr.rel target = $region3
  $region8: #{event_detector_forward.1} parent=0 // loop_exit
    _

</llo_original>
